<compile_context>
chip_gen: v5e
topology: v5e:2x2
jax: 0.10.0
libtpu: 0.0.40
codegen_flags: <defaults>
</compile_context>

<pallas_src>
import numpy as np
import jax
import jax.numpy as jnp
from jax.experimental import pallas as pl
from jax.experimental.pallas import tpu as pltpu

# ----------------------------- config ---------------------------------------
MODEL_CFG = dict(
    LAYER_NUMS=[1, 1],
    LAYER_STRIDES=[1, 2],
    NUM_FILTERS=[8, 16],
    UPSAMPLE_STRIDES=[1, 2],
    NUM_UPSAMPLE_FILTERS=[8, 8],
)
INPUT_CHANNELS = 4
BN_EPS = 1e-3


# ----------------------------- Pallas kernel --------------------------------
def _make_block_kernel(layer_meta, last_conv_idx):
    """Builds the fused per-level kernel.

    layer_meta: list of dicts(taps, has_T), one per conv layer plus the deconv.
    Output of layer `last_conv_idx` -> out_block_ref (block feature map),
    output of the final layer       -> out_up_ref    (upsampled feature map).
    """
    def kernel(*refs):
        out_block_ref, out_up_ref = refs[-2], refs[-1]
        x = refs[0][...]                              # (C_in, M) f32
        ridx = 1
        for li, meta in enumerate(layer_meta):
            w_ref = refs[ridx]                        # (taps, Cout, Cin) bf16
            b_ref = refs[ridx + 1]                    # (Cout, 1) f32
            ridx += 2
            t_ref = None
            if meta["has_T"]:
                t_ref = refs[ridx]                    # (taps, M_in, M_out) bf16
                ridx += 1

            xb = x.astype(jnp.bfloat16)               # bf16 MXU operands
            acc = None
            for t in range(meta["taps"]):
                if t_ref is not None:
                    # Shift / stride / scatter the input with a constant 0/1
                    # tap matrix (selection is exact in bf16).
                    xs = jnp.dot(xb, t_ref[t],
                                 preferred_element_type=jnp.float32
                                 ).astype(jnp.bfloat16)
                else:                                 # 1x1 deconv: no reindexing
                    xs = xb
                contrib = jnp.dot(w_ref[t], xs,
                                  preferred_element_type=jnp.float32)
                acc = contrib if acc is None else acc + contrib
            # folded BN bias + ReLU in f32 (lane-dense (Cout, M_out) value)
            x = jnp.maximum(acc + b_ref[...], 0.0)
            if li == last_conv_idx:
                out_block_ref[...] = x
        out_up_ref[...] = x
    return kernel


def _const_index_map(ndim):
    return lambda b: (0,) * ndim


def _run_block(x_ncm, layers, last_conv_idx):
    """x_ncm: (N, C_in, M_in) f32 activations.  layers: per-layer dicts with
    w (taps,Cout,Cin) bf16, b (Cout,1) f32, T ((taps,M_in,M_out) bf16 or None),
    cout, m_out, taps."""
    n, c0, m0 = x_ncm.shape

    args = [x_ncm]
    in_specs = [pl.BlockSpec((None, c0, m0), lambda b: (b, 0, 0))]
    meta = []
    for layer in layers:
        consts = (layer["w"], layer["b"])
        if layer["T"] is not None:
            consts = consts + (layer["T"],)
        for arr in consts:
            args.append(arr)
            in_specs.append(pl.BlockSpec(arr.shape, _const_index_map(arr.ndim)))
        meta.append(dict(taps=layer["taps"], has_T=layer["T"] is not None))

    cb, mb = layers[last_conv_idx]["cout"], layers[last_conv_idx]["m_out"]
    cu, mu = layers[-1]["cout"], layers[-1]["m_out"]
    out_shape = (jax.ShapeDtypeStruct((n, cb, mb), jnp.float32),
                 jax.ShapeDtypeStruct((n, cu, mu), jnp.float32))
    out_specs = (pl.BlockSpec((None, cb, mb), lambda b: (b, 0, 0)),
                 pl.BlockSpec((None, cu, mu), lambda b: (b, 0, 0)))

    return pl.pallas_call(
        _make_block_kernel(meta, last_conv_idx),
        out_shape=out_shape,
        grid=(n,),                                    # 2 parallel steps (v7x megacore)
        in_specs=in_specs,
        out_specs=out_specs,
        compiler_params=pltpu.CompilerParams(dimension_semantics=("parallel",)),
    )(*args)


# ------------------- constant tap matrices (trace-time, numpy) ---------------
def _conv_tap_matrices(h_in, w_in, stride):
    """T[t, m_in, m_out] = 1 where output position m_out reads input m_in
    through tap t of a zero-padded 3x3 conv with the given stride."""
    h_out = (h_in - 1) // stride + 1
    w_out = (w_in - 1) // stride + 1
    m_in, m_out = h_in * w_in, h_out * w_out
    T = np.zeros((9, m_in, m_out), np.float32)
    for kh in range(3):
        for kw in range(3):
            t = kh * 3 + kw
            for ho in range(h_out):
                hi = stride * ho + kh - 1
                if hi < 0 or hi >= h_in:
                    continue
                for wo in range(w_out):
                    wi = stride * wo + kw - 1
                    if wi < 0 or wi >= w_in:
                        continue
                    T[t, hi * w_in + wi, ho * w_out + wo] = 1.0
    return T, h_out, w_out


def _deconv_scatter_matrices(h_in, w_in, k):
    """P[t, m_in, m_out] = 1 where ConvTranspose2d(kernel=stride=k) tap t
    scatters input position m_in to upsampled position m_out."""
    h_out, w_out = h_in * k, w_in * k
    m_in, m_out = h_in * w_in, h_out * w_out
    P = np.zeros((k * k, m_in, m_out), np.float32)
    for kh in range(k):
        for kw in range(k):
            t = kh * k + kw
            for h in range(h_in):
                for w in range(w_in):
                    P[t, h * w_in + w, (h * k + kh) * w_out + (w * k + kw)] = 1.0
    return P, h_out, w_out


# ----------------------- BN folding into weights ------------------------------
def _bn_scale_bias(bn):
    scale = bn["gamma"] / jnp.sqrt(bn["var"] + BN_EPS)
    bias = bn["beta"] - bn["mean"] * scale
    return scale, bias


def _fold_conv(w_oihw, bn):
    """Conv2d weight (Cout,Cin,3,3) + eval-mode BN -> (9,Cout,Cin) bf16, (Cout,1) f32."""
    cout, cin = w_oihw.shape[0], w_oihw.shape[1]
    scale, bias = _bn_scale_bias(bn)
    w = jnp.transpose(w_oihw, (2, 3, 0, 1)).reshape(9, cout, cin)
    w = w * scale[None, :, None]
    return w.astype(jnp.bfloat16), bias.reshape(cout, 1).astype(jnp.float32)


def _fold_deconv(w_iokk, bn, k):
    """ConvTranspose2d weight (Cin,Cout,k,k) + BN -> (k*k,Cout,Cin) bf16, (Cout,1) f32."""
    cin, cout = w_iokk.shape[0], w_iokk.shape[1]
    scale, bias = _bn_scale_bias(bn)
    w = jnp.transpose(w_iokk, (2, 3, 1, 0)).reshape(k * k, cout, cin)
    w = w * scale[None, :, None]
    return w.astype(jnp.bfloat16), bias.reshape(cout, 1).astype(jnp.float32)


# ----------------------------- parameter init --------------------------------
def _make_bn(key, c):
    k1, k2, k3, k4 = jax.random.split(key, 4)
    return dict(
        gamma=1.0 + 0.1 * jax.random.normal(k1, (c,), jnp.float32),
        beta=0.1 * jax.random.normal(k2, (c,), jnp.float32),
        mean=0.1 * jax.random.normal(k3, (c,), jnp.float32),
        var=0.5 + jnp.abs(jax.random.normal(k4, (c,), jnp.float32)),
    )


def init_params(key):
    layer_nums = MODEL_CFG["LAYER_NUMS"]
    num_filters = MODEL_CFG["NUM_FILTERS"]
    up_strides = MODEL_CFG["UPSAMPLE_STRIDES"]
    num_up = MODEL_CFG["NUM_UPSAMPLE_FILTERS"]
    c_in_list = [INPUT_CHANNELS, *num_filters[:-1]]

    params = {"blocks": [], "deblocks": []}
    for idx in range(len(layer_nums)):
        cin, cout = c_in_list[idx], num_filters[idx]
        block = []
        key, kw, kb = jax.random.split(key, 3)
        block.append(dict(w=0.1 * jax.random.normal(kw, (cout, cin, 3, 3), jnp.float32),
                          bn=_make_bn(kb, cout)))
        for _ in range(layer_nums[idx]):
            key, kw, kb = jax.random.split(key, 3)
            block.append(dict(w=0.1 * jax.random.normal(kw, (cout, cout, 3, 3), jnp.float32),
                              bn=_make_bn(kb, cout)))
        params["blocks"].append(block)

        if len(up_strides) > 0:
            s = up_strides[idx]
            assert s >= 1, "fractional upsample strides not exercised"
            # TODO(synk): UPSAMPLE_STRIDES < 1 branch (strided Conv2d deblock) not implemented.
            key, kw, kb = jax.random.split(key, 3)
            params["deblocks"].append(dict(
                w=0.1 * jax.random.normal(kw, (cout, num_up[idx], s, s), jnp.float32),
                bn=_make_bn(kb, num_up[idx])))
    # TODO(synk): DUAL_NORM / UniNorm2d path not implemented (config does not enable it).
    return params


# ----------------------------- forward ---------------------------------------
def forward(params, spatial_features_nchw):
    n, c, h, w = spatial_features_nchw.shape
    # NCHW -> (N, C, H*W): spatial axis on lanes, channels on sublanes (free reshape).
    x = spatial_features_nchw.reshape(n, c, h * w).astype(jnp.float32)

    layer_strides = MODEL_CFG["LAYER_STRIDES"]
    up_strides = MODEL_CFG["UPSAMPLE_STRIDES"]
    ret, ups = {}, []
    cur_h, cur_w = h, w

    for i, block in enumerate(params["blocks"]):
        layers = []
        h_in, w_in = cur_h, cur_w
        for li, conv in enumerate(block):
            stride = layer_strides[i] if li == 0 else 1
            wf, bf = _fold_conv(conv["w"], conv["bn"])
            T, h_out, w_out = _conv_tap_matrices(h_in, w_in, stride)
            layers.append(dict(w=wf, b=bf, T=jnp.asarray(T, jnp.bfloat16),
                               taps=9, cout=conv["w"].shape[0],
                               m_out=h_out * w_out))
            h_in, w_in = h_out, w_out
        last_conv_idx = len(layers) - 1
        blk_h, blk_w = h_in, w_in
        up_h, up_w = blk_h, blk_w

        if len(params["deblocks"]) > 0:
            k = int(up_strides[i])
            db = params["deblocks"][i]
            wf, bf = _fold_deconv(db["w"], db["bn"], k)
            if k > 1:
                P, up_h, up_w = _deconv_scatter_matrices(blk_h, blk_w, k)
                Tm = jnp.asarray(P, jnp.bfloat16)
            else:
                Tm = None
            layers.append(dict(w=wf, b=bf, T=Tm, taps=k * k,
                               cout=db["w"].shape[1], m_out=up_h * up_w))

        blk_out, up_out = _run_block(x, layers, last_conv_idx)

        stride_total = h // blk_h
        ret["spatial_features_%dx" % stride_total] = blk_out.reshape(n, -1, blk_h, blk_w)
        ups.append(up_out.reshape(n, -1, up_h, up_w))
        x = blk_out
        cur_h, cur_w = blk_h, blk_w

    if len(ups) > 1:
        out = jnp.concatenate(ups, axis=1)
    elif len(ups) == 1:
        out = ups[0]
    else:
        out = x.reshape(n, -1, cur_h, cur_w)
    # TODO(synk): trailing extra deblock (len(UPSAMPLE_STRIDES) > num_levels) not implemented.
    ret["spatial_features_2d"] = out
    return ret


# ----------------------------- pure-JAX reference -----------------------------
def _reference_forward(params, x_nchw):
    def bn_relu(y, bn):
        scale = bn["gamma"] / jnp.sqrt(bn["var"] + BN_EPS)
        bias = bn["beta"] - bn["mean"] * scale
        return jnp.maximum(y * scale[None, :, None, None] + bias[None, :, None, None], 0.0)

    up_strides = MODEL_CFG["UPSAMPLE_STRIDES"]
    x = x_nchw
    ups = []
    for i, block in enumerate(params["blocks"]):
        for li, conv in enumerate(block):
            s = MODEL_CFG["LAYER_STRIDES"][i] if li == 0 else 1
            y = jax.lax.conv_general_dilated(
                x, conv["w"], window_strides=(s, s), padding=((1, 1), (1, 1)),
                dimension_numbers=("NCHW", "OIHW", "NCHW"))
            x = bn_relu(y, conv["bn"])
        if len(params["deblocks"]) > 0:
            k = int(up_strides[i])
            db = params["deblocks"][i]
            nb, _, hh, ww = x.shape
            y = jnp.einsum("nchw,cokl->nohkwl", x, db["w"]).reshape(
                nb, db["w"].shape[1], hh * k, ww * k)
            ups.append(bn_relu(y, db["bn"]))
        else:
            ups.append(x)
    return jnp.concatenate(ups, axis=1) if len(ups) > 1 else ups[0]


# ----------------------------- main -------------------------------------------
if __name__ == "__main__":
    key = jax.random.PRNGKey(0)
    k_x, k_p = jax.random.split(key)
    x = jax.random.normal(k_x, (2, INPUT_CHANNELS, 16, 16), jnp.float32)  # NCHW
    params = init_params(k_p)

    fwd = jax.jit(forward)
    out = fwd(params, x)
    feat2d = jax.block_until_ready(out["spatial_features_2d"])

    expected_c = sum(MODEL_CFG["NUM_UPSAMPLE_FILTERS"])
    assert feat2d.shape == (2, expected_c, 16, 16), feat2d.shape
    assert out["spatial_features_1x"].shape == (2, MODEL_CFG["NUM_FILTERS"][0], 16, 16)
    assert out["spatial_features_2x"].shape == (2, MODEL_CFG["NUM_FILTERS"][1], 8, 8)
    assert bool(jnp.all(jnp.isfinite(feat2d)))

    # numerical check against a pure-JAX (f32) reference; kernel uses bf16 MXU ops.
    ref = jax.block_until_ready(_reference_forward(params, x))
    np.testing.assert_allclose(np.asarray(feat2d), np.asarray(ref),
                               rtol=5e-2, atol=5e-2)

    print("KERNEL_OK")
</pallas_src>

<mosaic_0001>
module attributes {stable_mosaic.version = 11 : i64} {
  func.func @kernel(%arg0: i32, %arg1: memref<1x4x256xf32, #tpu.memory_space<vmem>>, %arg2: memref<9x8x4xbf16, #tpu.memory_space<vmem>>, %arg3: memref<8x1xf32, #tpu.memory_space<vmem>>, %arg4: memref<9x256x256xbf16, #tpu.memory_space<vmem>>, %arg5: memref<9x8x8xbf16, #tpu.memory_space<vmem>>, %arg6: memref<8x1xf32, #tpu.memory_space<vmem>>, %arg7: memref<9x256x256xbf16, #tpu.memory_space<vmem>>, %arg8: memref<1x8x8xbf16, #tpu.memory_space<vmem>>, %arg9: memref<8x1xf32, #tpu.memory_space<vmem>>, %arg10: memref<1x8x256xf32, #tpu.memory_space<vmem>>, %arg11: memref<1x8x256xf32, #tpu.memory_space<vmem>>) attributes {dimension_semantics = [#tpu.dimension_semantics<parallel>], iteration_bounds = array<i64: 2>, scalar_prefetch = 0 : i64, scratch_operands = 0 : i64, tpu.core_type = #tpu.core_type<tc>, window_params = [{transform_indices = @transform_0, window_bounds = array<i64: 1, 4, 256>}, {pipeline_mode = #tpu.pipeline_mode<synchronous>, transform_indices = @transform_1, window_bounds = array<i64: 9, 8, 4>}, {pipeline_mode = #tpu.pipeline_mode<synchronous>, transform_indices = @transform_2, window_bounds = array<i64: 8, 1>}, {pipeline_mode = #tpu.pipeline_mode<synchronous>, transform_indices = @transform_3, window_bounds = array<i64: 9, 256, 256>}, {pipeline_mode = #tpu.pipeline_mode<synchronous>, transform_indices = @transform_4, window_bounds = array<i64: 9, 8, 8>}, {pipeline_mode = #tpu.pipeline_mode<synchronous>, transform_indices = @transform_5, window_bounds = array<i64: 8, 1>}, {pipeline_mode = #tpu.pipeline_mode<synchronous>, transform_indices = @transform_6, window_bounds = array<i64: 9, 256, 256>}, {pipeline_mode = #tpu.pipeline_mode<synchronous>, transform_indices = @transform_7, window_bounds = array<i64: 1, 8, 8>}, {pipeline_mode = #tpu.pipeline_mode<synchronous>, transform_indices = @transform_8, window_bounds = array<i64: 8, 1>}, {transform_indices = @transform_9, window_bounds = array<i64: 1, 8, 256>}, {transform_indices = @transform_10, window_bounds = array<i64: 1, 8, 256>}]} {
    %c0 = arith.constant 0 : index
    %c0_0 = arith.constant 0 : index
    %c0_1 = arith.constant 0 : index
    %0 = vector.load %arg1[%c0, %c0_0, %c0_1] : memref<1x4x256xf32, #tpu.memory_space<vmem>>, vector<1x4x256xf32>
    %1 = vector.shape_cast %0 : vector<1x4x256xf32> to vector<4x256xf32>
    %2 = arith.truncf %1 : vector<4x256xf32> to vector<4x256xbf16>
    %c0_2 = arith.constant 0 : index
    %c0_3 = arith.constant 0 : index
    %c0_4 = arith.constant 0 : index
    %3 = vector.load %arg4[%c0_2, %c0_3, %c0_4] : memref<9x256x256xbf16, #tpu.memory_space<vmem>>, vector<1x256x256xbf16>
    %4 = vector.shape_cast %3 : vector<1x256x256xbf16> to vector<256x256xbf16>
    %cst = arith.constant dense<0.000000e+00> : vector<4x256xf32>
    %5 = tpu.matmul %2, %4, %cst {dimension_numbers = #tpu.dot_dimension_numbers<[1], [0], [0], [1], [0, 0, 1, 1], [], []>} : vector<4x256xbf16>, vector<256x256xbf16>, vector<4x256xf32> -> vector<4x256xf32>
    %6 = arith.truncf %5 : vector<4x256xf32> to vector<4x256xbf16>
    %c0_5 = arith.constant 0 : index
    %c0_6 = arith.constant 0 : index
    %c0_7 = arith.constant 0 : index
    %7 = vector.load %arg2[%c0_5, %c0_6, %c0_7] : memref<9x8x4xbf16, #tpu.memory_space<vmem>>, vector<1x8x4xbf16>
    %8 = vector.shape_cast %7 : vector<1x8x4xbf16> to vector<8x4xbf16>
    %cst_8 = arith.constant dense<0.000000e+00> : vector<8x256xf32>
    %9 = tpu.matmul %8, %6, %cst_8 {dimension_numbers = #tpu.dot_dimension_numbers<[1], [0], [0], [1], [0, 0, 1, 1], [], []>} : vector<8x4xbf16>, vector<4x256xbf16>, vector<8x256xf32> -> vector<8x256xf32>
    %c1 = arith.constant 1 : index
    %c0_9 = arith.constant 0 : index
    %c0_10 = arith.constant 0 : index
    %10 = vector.load %arg4[%c1, %c0_9, %c0_10] : memref<9x256x256xbf16, #tpu.memory_space<vmem>>, vector<1x256x256xbf16>
    %11 = vector.shape_cast %10 : vector<1x256x256xbf16> to vector<256x256xbf16>
    %cst_11 = arith.constant dense<0.000000e+00> : vector<4x256xf32>
    %12 = tpu.matmul %2, %11, %cst_11 {dimension_numbers = #tpu.dot_dimension_numbers<[1], [0], [0], [1], [0, 0, 1, 1], [], []>} : vector<4x256xbf16>, vector<256x256xbf16>, vector<4x256xf32> -> vector<4x256xf32>
    %13 = arith.truncf %12 : vector<4x256xf32> to vector<4x256xbf16>
    %c1_12 = arith.constant 1 : index
    %c0_13 = arith.constant 0 : index
    %c0_14 = arith.constant 0 : index
    %14 = vector.load %arg2[%c1_12, %c0_13, %c0_14] : memref<9x8x4xbf16, #tpu.memory_space<vmem>>, vector<1x8x4xbf16>
    %15 = vector.shape_cast %14 : vector<1x8x4xbf16> to vector<8x4xbf16>
    %cst_15 = arith.constant dense<0.000000e+00> : vector<8x256xf32>
    %16 = tpu.matmul %15, %13, %cst_15 {dimension_numbers = #tpu.dot_dimension_numbers<[1], [0], [0], [1], [0, 0, 1, 1], [], []>} : vector<8x4xbf16>, vector<4x256xbf16>, vector<8x256xf32> -> vector<8x256xf32>
    %17 = arith.addf %9, %16 : vector<8x256xf32>
    %c2 = arith.constant 2 : index
    %c0_16 = arith.constant 0 : index
    %c0_17 = arith.constant 0 : index
    %18 = vector.load %arg4[%c2, %c0_16, %c0_17] : memref<9x256x256xbf16, #tpu.memory_space<vmem>>, vector<1x256x256xbf16>
    %19 = vector.shape_cast %18 : vector<1x256x256xbf16> to vector<256x256xbf16>
    %cst_18 = arith.constant dense<0.000000e+00> : vector<4x256xf32>
    %20 = tpu.matmul %2, %19, %cst_18 {dimension_numbers = #tpu.dot_dimension_numbers<[1], [0], [0], [1], [0, 0, 1, 1], [], []>} : vector<4x256xbf16>, vector<256x256xbf16>, vector<4x256xf32> -> vector<4x256xf32>
    %21 = arith.truncf %20 : vector<4x256xf32> to vector<4x256xbf16>
    %c2_19 = arith.constant 2 : index
    %c0_20 = arith.constant 0 : index
    %c0_21 = arith.constant 0 : index
    %22 = vector.load %arg2[%c2_19, %c0_20, %c0_21] : memref<9x8x4xbf16, #tpu.memory_space<vmem>>, vector<1x8x4xbf16>
    %23 = vector.shape_cast %22 : vector<1x8x4xbf16> to vector<8x4xbf16>
    %cst_22 = arith.constant dense<0.000000e+00> : vector<8x256xf32>
    %24 = tpu.matmul %23, %21, %cst_22 {dimension_numbers = #tpu.dot_dimension_numbers<[1], [0], [0], [1], [0, 0, 1, 1], [], []>} : vector<8x4xbf16>, vector<4x256xbf16>, vector<8x256xf32> -> vector<8x256xf32>
    %25 = arith.addf %17, %24 : vector<8x256xf32>
    %c3 = arith.constant 3 : index
    %c0_23 = arith.constant 0 : index
    %c0_24 = arith.constant 0 : index
    %26 = vector.load %arg4[%c3, %c0_23, %c0_24] : memref<9x256x256xbf16, #tpu.memory_space<vmem>>, vector<1x256x256xbf16>
    %27 = vector.shape_cast %26 : vector<1x256x256xbf16> to vector<256x256xbf16>
    %cst_25 = arith.constant dense<0.000000e+00> : vector<4x256xf32>
    %28 = tpu.matmul %2, %27, %cst_25 {dimension_numbers = #tpu.dot_dimension_numbers<[1], [0], [0], [1], [0, 0, 1, 1], [], []>} : vector<4x256xbf16>, vector<256x256xbf16>, vector<4x256xf32> -> vector<4x256xf32>
    %29 = arith.truncf %28 : vector<4x256xf32> to vector<4x256xbf16>
    %c3_26 = arith.constant 3 : index
    %c0_27 = arith.constant 0 : index
    %c0_28 = arith.constant 0 : index
    %30 = vector.load %arg2[%c3_26, %c0_27, %c0_28] : memref<9x8x4xbf16, #tpu.memory_space<vmem>>, vector<1x8x4xbf16>
    %31 = vector.shape_cast %30 : vector<1x8x4xbf16> to vector<8x4xbf16>
    %cst_29 = arith.constant dense<0.000000e+00> : vector<8x256xf32>
    %32 = tpu.matmul %31, %29, %cst_29 {dimension_numbers = #tpu.dot_dimension_numbers<[1], [0], [0], [1], [0, 0, 1, 1], [], []>} : vector<8x4xbf16>, vector<4x256xbf16>, vector<8x256xf32> -> vector<8x256xf32>
    %33 = arith.addf %25, %32 : vector<8x256xf32>
    %c4 = arith.constant 4 : index
    %c0_30 = arith.constant 0 : index
    %c0_31 = arith.constant 0 : index
    %34 = vector.load %arg4[%c4, %c0_30, %c0_31] : memref<9x256x256xbf16, #tpu.memory_space<vmem>>, vector<1x256x256xbf16>
    %35 = vector.shape_cast %34 : vector<1x256x256xbf16> to vector<256x256xbf16>
    %cst_32 = arith.constant dense<0.000000e+00> : vector<4x256xf32>
    %36 = tpu.matmul %2, %35, %cst_32 {dimension_numbers = #tpu.dot_dimension_numbers<[1], [0], [0], [1], [0, 0, 1, 1], [], []>} : vector<4x256xbf16>, vector<256x256xbf16>, vector<4x256xf32> -> vector<4x256xf32>
    %37 = arith.truncf %36 : vector<4x256xf32> to vector<4x256xbf16>
    %c4_33 = arith.constant 4 : index
    %c0_34 = arith.constant 0 : index
    %c0_35 = arith.constant 0 : index
    %38 = vector.load %arg2[%c4_33, %c0_34, %c0_35] : memref<9x8x4xbf16, #tpu.memory_space<vmem>>, vector<1x8x4xbf16>
    %39 = vector.shape_cast %38 : vector<1x8x4xbf16> to vector<8x4xbf16>
    %cst_36 = arith.constant dense<0.000000e+00> : vector<8x256xf32>
    %40 = tpu.matmul %39, %37, %cst_36 {dimension_numbers = #tpu.dot_dimension_numbers<[1], [0], [0], [1], [0, 0, 1, 1], [], []>} : vector<8x4xbf16>, vector<4x256xbf16>, vector<8x256xf32> -> vector<8x256xf32>
    %41 = arith.addf %33, %40 : vector<8x256xf32>
    %c5 = arith.constant 5 : index
    %c0_37 = arith.constant 0 : index
    %c0_38 = arith.constant 0 : index
    %42 = vector.load %arg4[%c5, %c0_37, %c0_38] : memref<9x256x256xbf16, #tpu.memory_space<vmem>>, vector<1x256x256xbf16>
    %43 = vector.shape_cast %42 : vector<1x256x256xbf16> to vector<256x256xbf16>
    %cst_39 = arith.constant dense<0.000000e+00> : vector<4x256xf32>
    %44 = tpu.matmul %2, %43, %cst_39 {dimension_numbers = #tpu.dot_dimension_numbers<[1], [0], [0], [1], [0, 0, 1, 1], [], []>} : vector<4x256xbf16>, vector<256x256xbf16>, vector<4x256xf32> -> vector<4x256xf32>
    %45 = arith.truncf %44 : vector<4x256xf32> to vector<4x256xbf16>
    %c5_40 = arith.constant 5 : index
    %c0_41 = arith.constant 0 : index
    %c0_42 = arith.constant 0 : index
    %46 = vector.load %arg2[%c5_40, %c0_41, %c0_42] : memref<9x8x4xbf16, #tpu.memory_space<vmem>>, vector<1x8x4xbf16>
    %47 = vector.shape_cast %46 : vector<1x8x4xbf16> to vector<8x4xbf16>
    %cst_43 = arith.constant dense<0.000000e+00> : vector<8x256xf32>
    %48 = tpu.matmul %47, %45, %cst_43 {dimension_numbers = #tpu.dot_dimension_numbers<[1], [0], [0], [1], [0, 0, 1, 1], [], []>} : vector<8x4xbf16>, vector<4x256xbf16>, vector<8x256xf32> -> vector<8x256xf32>
    %49 = arith.addf %41, %48 : vector<8x256xf32>
    %c6 = arith.constant 6 : index
    %c0_44 = arith.constant 0 : index
    %c0_45 = arith.constant 0 : index
    %50 = vector.load %arg4[%c6, %c0_44, %c0_45] : memref<9x256x256xbf16, #tpu.memory_space<vmem>>, vector<1x256x256xbf16>
    %51 = vector.shape_cast %50 : vector<1x256x256xbf16> to vector<256x256xbf16>
    %cst_46 = arith.constant dense<0.000000e+00> : vector<4x256xf32>
    %52 = tpu.matmul %2, %51, %cst_46 {dimension_numbers = #tpu.dot_dimension_numbers<[1], [0], [0], [1], [0, 0, 1, 1], [], []>} : vector<4x256xbf16>, vector<256x256xbf16>, vector<4x256xf32> -> vector<4x256xf32>
    %53 = arith.truncf %52 : vector<4x256xf32> to vector<4x256xbf16>
    %c6_47 = arith.constant 6 : index
    %c0_48 = arith.constant 0 : index
    %c0_49 = arith.constant 0 : index
    %54 = vector.load %arg2[%c6_47, %c0_48, %c0_49] : memref<9x8x4xbf16, #tpu.memory_space<vmem>>, vector<1x8x4xbf16>
    %55 = vector.shape_cast %54 : vector<1x8x4xbf16> to vector<8x4xbf16>
    %cst_50 = arith.constant dense<0.000000e+00> : vector<8x256xf32>
    %56 = tpu.matmul %55, %53, %cst_50 {dimension_numbers = #tpu.dot_dimension_numbers<[1], [0], [0], [1], [0, 0, 1, 1], [], []>} : vector<8x4xbf16>, vector<4x256xbf16>, vector<8x256xf32> -> vector<8x256xf32>
    %57 = arith.addf %49, %56 : vector<8x256xf32>
    %c7 = arith.constant 7 : index
    %c0_51 = arith.constant 0 : index
    %c0_52 = arith.constant 0 : index
    %58 = vector.load %arg4[%c7, %c0_51, %c0_52] : memref<9x256x256xbf16, #tpu.memory_space<vmem>>, vector<1x256x256xbf16>
    %59 = vector.shape_cast %58 : vector<1x256x256xbf16> to vector<256x256xbf16>
    %cst_53 = arith.constant dense<0.000000e+00> : vector<4x256xf32>
    %60 = tpu.matmul %2, %59, %cst_53 {dimension_numbers = #tpu.dot_dimension_numbers<[1], [0], [0], [1], [0, 0, 1, 1], [], []>} : vector<4x256xbf16>, vector<256x256xbf16>, vector<4x256xf32> -> vector<4x256xf32>
    %61 = arith.truncf %60 : vector<4x256xf32> to vector<4x256xbf16>
    %c7_54 = arith.constant 7 : index
    %c0_55 = arith.constant 0 : index
    %c0_56 = arith.constant 0 : index
    %62 = vector.load %arg2[%c7_54, %c0_55, %c0_56] : memref<9x8x4xbf16, #tpu.memory_space<vmem>>, vector<1x8x4xbf16>
    %63 = vector.shape_cast %62 : vector<1x8x4xbf16> to vector<8x4xbf16>
    %cst_57 = arith.constant dense<0.000000e+00> : vector<8x256xf32>
    %64 = tpu.matmul %63, %61, %cst_57 {dimension_numbers = #tpu.dot_dimension_numbers<[1], [0], [0], [1], [0, 0, 1, 1], [], []>} : vector<8x4xbf16>, vector<4x256xbf16>, vector<8x256xf32> -> vector<8x256xf32>
    %65 = arith.addf %57, %64 : vector<8x256xf32>
    %c8 = arith.constant 8 : index
    %c0_58 = arith.constant 0 : index
    %c0_59 = arith.constant 0 : index
    %66 = vector.load %arg4[%c8, %c0_58, %c0_59] : memref<9x256x256xbf16, #tpu.memory_space<vmem>>, vector<1x256x256xbf16>
    %67 = vector.shape_cast %66 : vector<1x256x256xbf16> to vector<256x256xbf16>
    %cst_60 = arith.constant dense<0.000000e+00> : vector<4x256xf32>
    %68 = tpu.matmul %2, %67, %cst_60 {dimension_numbers = #tpu.dot_dimension_numbers<[1], [0], [0], [1], [0, 0, 1, 1], [], []>} : vector<4x256xbf16>, vector<256x256xbf16>, vector<4x256xf32> -> vector<4x256xf32>
    %69 = arith.truncf %68 : vector<4x256xf32> to vector<4x256xbf16>
    %c8_61 = arith.constant 8 : index
    %c0_62 = arith.constant 0 : index
    %c0_63 = arith.constant 0 : index
    %70 = vector.load %arg2[%c8_61, %c0_62, %c0_63] : memref<9x8x4xbf16, #tpu.memory_space<vmem>>, vector<1x8x4xbf16>
    %71 = vector.shape_cast %70 : vector<1x8x4xbf16> to vector<8x4xbf16>
    %cst_64 = arith.constant dense<0.000000e+00> : vector<8x256xf32>
    %72 = tpu.matmul %71, %69, %cst_64 {dimension_numbers = #tpu.dot_dimension_numbers<[1], [0], [0], [1], [0, 0, 1, 1], [], []>} : vector<8x4xbf16>, vector<4x256xbf16>, vector<8x256xf32> -> vector<8x256xf32>
    %73 = arith.addf %65, %72 : vector<8x256xf32>
    %c0_65 = arith.constant 0 : index
    %c0_66 = arith.constant 0 : index
    %74 = vector.load %arg3[%c0_65, %c0_66] : memref<8x1xf32, #tpu.memory_space<vmem>>, vector<8x1xf32>
    %75 = vector.broadcast %74 : vector<8x1xf32> to vector<8x256xf32>
    %76 = arith.addf %73, %75 : vector<8x256xf32>
    %cst_67 = arith.constant 0.000000e+00 : f32
    %77 = vector.broadcast %cst_67 : f32 to vector<8x256xf32>
    %78 = arith.maximumf %76, %77 : vector<8x256xf32>
    %79 = arith.truncf %78 : vector<8x256xf32> to vector<8x256xbf16>
    %c0_68 = arith.constant 0 : index
    %c0_69 = arith.constant 0 : index
    %c0_70 = arith.constant 0 : index
    %80 = vector.load %arg7[%c0_68, %c0_69, %c0_70] : memref<9x256x256xbf16, #tpu.memory_space<vmem>>, vector<1x256x256xbf16>
    %81 = vector.shape_cast %80 : vector<1x256x256xbf16> to vector<256x256xbf16>
    %cst_71 = arith.constant dense<0.000000e+00> : vector<8x256xf32>
    %82 = tpu.matmul %79, %81, %cst_71 {dimension_numbers = #tpu.dot_dimension_numbers<[1], [0], [0], [1], [0, 0, 1, 1], [], []>} : vector<8x256xbf16>, vector<256x256xbf16>, vector<8x256xf32> -> vector<8x256xf32>
    %83 = arith.truncf %82 : vector<8x256xf32> to vector<8x256xbf16>
    %c0_72 = arith.constant 0 : index
    %c0_73 = arith.constant 0 : index
    %c0_74 = arith.constant 0 : index
    %84 = vector.load %arg5[%c0_72, %c0_73, %c0_74] : memref<9x8x8xbf16, #tpu.memory_space<vmem>>, vector<1x8x8xbf16>
    %85 = vector.shape_cast %84 : vector<1x8x8xbf16> to vector<8x8xbf16>
    %cst_75 = arith.constant dense<0.000000e+00> : vector<8x256xf32>
    %86 = tpu.matmul %85, %83, %cst_75 {dimension_numbers = #tpu.dot_dimension_numbers<[1], [0], [0], [1], [0, 0, 1, 1], [], []>} : vector<8x8xbf16>, vector<8x256xbf16>, vector<8x256xf32> -> vector<8x256xf32>
    %c1_76 = arith.constant 1 : index
    %c0_77 = arith.constant 0 : index
    %c0_78 = arith.constant 0 : index
    %87 = vector.load %arg7[%c1_76, %c0_77, %c0_78] : memref<9x256x256xbf16, #tpu.memory_space<vmem>>, vector<1x256x256xbf16>
    %88 = vector.shape_cast %87 : vector<1x256x256xbf16> to vector<256x256xbf16>
    %cst_79 = arith.constant dense<0.000000e+00> : vector<8x256xf32>
    %89 = tpu.matmul %79, %88, %cst_79 {dimension_numbers = #tpu.dot_dimension_numbers<[1], [0], [0], [1], [0, 0, 1, 1], [], []>} : vector<8x256xbf16>, vector<256x256xbf16>, vector<8x256xf32> -> vector<8x256xf32>
    %90 = arith.truncf %89 : vector<8x256xf32> to vector<8x256xbf16>
    %c1_80 = arith.constant 1 : index
    %c0_81 = arith.constant 0 : index
    %c0_82 = arith.constant 0 : index
    %91 = vector.load %arg5[%c1_80, %c0_81, %c0_82] : memref<9x8x8xbf16, #tpu.memory_space<vmem>>, vector<1x8x8xbf16>
    %92 = vector.shape_cast %91 : vector<1x8x8xbf16> to vector<8x8xbf16>
    %cst_83 = arith.constant dense<0.000000e+00> : vector<8x256xf32>
    %93 = tpu.matmul %92, %90, %cst_83 {dimension_numbers = #tpu.dot_dimension_numbers<[1], [0], [0], [1], [0, 0, 1, 1], [], []>} : vector<8x8xbf16>, vector<8x256xbf16>, vector<8x256xf32> -> vector<8x256xf32>
    %94 = arith.addf %86, %93 : vector<8x256xf32>
    %c2_84 = arith.constant 2 : index
    %c0_85 = arith.constant 0 : index
    %c0_86 = arith.constant 0 : index
    %95 = vector.load %arg7[%c2_84, %c0_85, %c0_86] : memref<9x256x256xbf16, #tpu.memory_space<vmem>>, vector<1x256x256xbf16>
    %96 = vector.shape_cast %95 : vector<1x256x256xbf16> to vector<256x256xbf16>
    %cst_87 = arith.constant dense<0.000000e+00> : vector<8x256xf32>
    %97 = tpu.matmul %79, %96, %cst_87 {dimension_numbers = #tpu.dot_dimension_numbers<[1], [0], [0], [1], [0, 0, 1, 1], [], []>} : vector<8x256xbf16>, vector<256x256xbf16>, vector<8x256xf32> -> vector<8x256xf32>
    %98 = arith.truncf %97 : vector<8x256xf32> to vector<8x256xbf16>
    %c2_88 = arith.constant 2 : index
    %c0_89 = arith.constant 0 : index
    %c0_90 = arith.constant 0 : index
    %99 = vector.load %arg5[%c2_88, %c0_89, %c0_90] : memref<9x8x8xbf16, #tpu.memory_space<vmem>>, vector<1x8x8xbf16>
    %100 = vector.shape_cast %99 : vector<1x8x8xbf16> to vector<8x8xbf16>
    %cst_91 = arith.constant dense<0.000000e+00> : vector<8x256xf32>
    %101 = tpu.matmul %100, %98, %cst_91 {dimension_numbers = #tpu.dot_dimension_numbers<[1], [0], [0], [1], [0, 0, 1, 1], [], []>} : vector<8x8xbf16>, vector<8x256xbf16>, vector<8x256xf32> -> vector<8x256xf32>
    %102 = arith.addf %94, %101 : vector<8x256xf32>
    %c3_92 = arith.constant 3 : index
    %c0_93 = arith.constant 0 : index
    %c0_94 = arith.constant 0 : index
    %103 = vector.load %arg7[%c3_92, %c0_93, %c0_94] : memref<9x256x256xbf16, #tpu.memory_space<vmem>>, vector<1x256x256xbf16>
    %104 = vector.shape_cast %103 : vector<1x256x256xbf16> to vector<256x256xbf16>
    %cst_95 = arith.constant dense<0.000000e+00> : vector<8x256xf32>
    %105 = tpu.matmul %79, %104, %cst_95 {dimension_numbers = #tpu.dot_dimension_numbers<[1], [0], [0], [1], [0, 0, 1, 1], [], []>} : vector<8x256xbf16>, vector<256x256xbf16>, vector<8x256xf32> -> vector<8x256xf32>
    %106 = arith.truncf %105 : vector<8x256xf32> to vector<8x256xbf16>
    %c3_96 = arith.constant 3 : index
    %c0_97 = arith.constant 0 : index
    %c0_98 = arith.constant 0 : index
    %107 = vector.load %arg5[%c3_96, %c0_97, %c0_98] : memref<9x8x8xbf16, #tpu.memory_space<vmem>>, vector<1x8x8xbf16>
    %108 = vector.shape_cast %107 : vector<1x8x8xbf16> to vector<8x8xbf16>
    %cst_99 = arith.constant dense<0.000000e+00> : vector<8x256xf32>
    %109 = tpu.matmul %108, %106, %cst_99 {dimension_numbers = #tpu.dot_dimension_numbers<[1], [0], [0], [1], [0, 0, 1, 1], [], []>} : vector<8x8xbf16>, vector<8x256xbf16>, vector<8x256xf32> -> vector<8x256xf32>
    %110 = arith.addf %102, %109 : vector<8x256xf32>
    %c4_100 = arith.constant 4 : index
    %c0_101 = arith.constant 0 : index
    %c0_102 = arith.constant 0 : index
    %111 = vector.load %arg7[%c4_100, %c0_101, %c0_102] : memref<9x256x256xbf16, #tpu.memory_space<vmem>>, vector<1x256x256xbf16>
    %112 = vector.shape_cast %111 : vector<1x256x256xbf16> to vector<256x256xbf16>
    %cst_103 = arith.constant dense<0.000000e+00> : vector<8x256xf32>
    %113 = tpu.matmul %79, %112, %cst_103 {dimension_numbers = #tpu.dot_dimension_numbers<[1], [0], [0], [1], [0, 0, 1, 1], [], []>} : vector<8x256xbf16>, vector<256x256xbf16>, vector<8x256xf32> -> vector<8x256xf32>
    %114 = arith.truncf %113 : vector<8x256xf32> to vector<8x256xbf16>
    %c4_104 = arith.constant 4 : index
    %c0_105 = arith.constant 0 : index
    %c0_106 = arith.constant 0 : index
    %115 = vector.load %arg5[%c4_104, %c0_105, %c0_106] : memref<9x8x8xbf16, #tpu.memory_space<vmem>>, vector<1x8x8xbf16>
    %116 = vector.shape_cast %115 : vector<1x8x8xbf16> to vector<8x8xbf16>
    %cst_107 = arith.constant dense<0.000000e+00> : vector<8x256xf32>
    %117 = tpu.matmul %116, %114, %cst_107 {dimension_numbers = #tpu.dot_dimension_numbers<[1], [0], [0], [1], [0, 0, 1, 1], [], []>} : vector<8x8xbf16>, vector<8x256xbf16>, vector<8x256xf32> -> vector<8x256xf32>
    %118 = arith.addf %110, %117 : vector<8x256xf32>
    %c5_108 = arith.constant 5 : index
    %c0_109 = arith.constant 0 : index
    %c0_110 = arith.constant 0 : index
    %119 = vector.load %arg7[%c5_108, %c0_109, %c0_110] : memref<9x256x256xbf16, #tpu.memory_space<vmem>>, vector<1x256x256xbf16>
    %120 = vector.shape_cast %119 : vector<1x256x256xbf16> to vector<256x256xbf16>
    %cst_111 = arith.constant dense<0.000000e+00> : vector<8x256xf32>
    %121 = tpu.matmul %79, %120, %cst_111 {dimension_numbers = #tpu.dot_dimension_numbers<[1], [0], [0], [1], [0, 0, 1, 1], [], []>} : vector<8x256xbf16>, vector<256x256xbf16>, vector<8x256xf32> -> vector<8x256xf32>
    %122 = arith.truncf %121 : vector<8x256xf32> to vector<8x256xbf16>
    %c5_112 = arith.constant 5 : index
    %c0_113 = arith.constant 0 : index
    %c0_114 = arith.constant 0 : index
    %123 = vector.load %arg5[%c5_112, %c0_113, %c0_114] : memref<9x8x8xbf16, #tpu.memory_space<vmem>>, vector<1x8x8xbf16>
    %124 = vector.shape_cast %123 : vector<1x8x8xbf16> to vector<8x8xbf16>
    %cst_115 = arith.constant dense<0.000000e+00> : vector<8x256xf32>
    %125 = tpu.matmul %124, %122, %cst_115 {dimension_numbers = #tpu.dot_dimension_numbers<[1], [0], [0], [1], [0, 0, 1, 1], [], []>} : vector<8x8xbf16>, vector<8x256xbf16>, vector<8x256xf32> -> vector<8x256xf32>
    %126 = arith.addf %118, %125 : vector<8x256xf32>
    %c6_116 = arith.constant 6 : index
    %c0_117 = arith.constant 0 : index
    %c0_118 = arith.constant 0 : index
    %127 = vector.load %arg7[%c6_116, %c0_117, %c0_118] : memref<9x256x256xbf16, #tpu.memory_space<vmem>>, vector<1x256x256xbf16>
    %128 = vector.shape_cast %127 : vector<1x256x256xbf16> to vector<256x256xbf16>
    %cst_119 = arith.constant dense<0.000000e+00> : vector<8x256xf32>
    %129 = tpu.matmul %79, %128, %cst_119 {dimension_numbers = #tpu.dot_dimension_numbers<[1], [0], [0], [1], [0, 0, 1, 1], [], []>} : vector<8x256xbf16>, vector<256x256xbf16>, vector<8x256xf32> -> vector<8x256xf32>
    %130 = arith.truncf %129 : vector<8x256xf32> to vector<8x256xbf16>
    %c6_120 = arith.constant 6 : index
    %c0_121 = arith.constant 0 : index
    %c0_122 = arith.constant 0 : index
    %131 = vector.load %arg5[%c6_120, %c0_121, %c0_122] : memref<9x8x8xbf16, #tpu.memory_space<vmem>>, vector<1x8x8xbf16>
    %132 = vector.shape_cast %131 : vector<1x8x8xbf16> to vector<8x8xbf16>
    %cst_123 = arith.constant dense<0.000000e+00> : vector<8x256xf32>
    %133 = tpu.matmul %132, %130, %cst_123 {dimension_numbers = #tpu.dot_dimension_numbers<[1], [0], [0], [1], [0, 0, 1, 1], [], []>} : vector<8x8xbf16>, vector<8x256xbf16>, vector<8x256xf32> -> vector<8x256xf32>
    %134 = arith.addf %126, %133 : vector<8x256xf32>
    %c7_124 = arith.constant 7 : index
    %c0_125 = arith.constant 0 : index
    %c0_126 = arith.constant 0 : index
    %135 = vector.load %arg7[%c7_124, %c0_125, %c0_126] : memref<9x256x256xbf16, #tpu.memory_space<vmem>>, vector<1x256x256xbf16>
    %136 = vector.shape_cast %135 : vector<1x256x256xbf16> to vector<256x256xbf16>
    %cst_127 = arith.constant dense<0.000000e+00> : vector<8x256xf32>
    %137 = tpu.matmul %79, %136, %cst_127 {dimension_numbers = #tpu.dot_dimension_numbers<[1], [0], [0], [1], [0, 0, 1, 1], [], []>} : vector<8x256xbf16>, vector<256x256xbf16>, vector<8x256xf32> -> vector<8x256xf32>
    %138 = arith.truncf %137 : vector<8x256xf32> to vector<8x256xbf16>
    %c7_128 = arith.constant 7 : index
    %c0_129 = arith.constant 0 : index
    %c0_130 = arith.constant 0 : index
    %139 = vector.load %arg5[%c7_128, %c0_129, %c0_130] : memref<9x8x8xbf16, #tpu.memory_space<vmem>>, vector<1x8x8xbf16>
    %140 = vector.shape_cast %139 : vector<1x8x8xbf16> to vector<8x8xbf16>
    %cst_131 = arith.constant dense<0.000000e+00> : vector<8x256xf32>
    %141 = tpu.matmul %140, %138, %cst_131 {dimension_numbers = #tpu.dot_dimension_numbers<[1], [0], [0], [1], [0, 0, 1, 1], [], []>} : vector<8x8xbf16>, vector<8x256xbf16>, vector<8x256xf32> -> vector<8x256xf32>
    %142 = arith.addf %134, %141 : vector<8x256xf32>
    %c8_132 = arith.constant 8 : index
    %c0_133 = arith.constant 0 : index
    %c0_134 = arith.constant 0 : index
    %143 = vector.load %arg7[%c8_132, %c0_133, %c0_134] : memref<9x256x256xbf16, #tpu.memory_space<vmem>>, vector<1x256x256xbf16>
    %144 = vector.shape_cast %143 : vector<1x256x256xbf16> to vector<256x256xbf16>
    %cst_135 = arith.constant dense<0.000000e+00> : vector<8x256xf32>
    %145 = tpu.matmul %79, %144, %cst_135 {dimension_numbers = #tpu.dot_dimension_numbers<[1], [0], [0], [1], [0, 0, 1, 1], [], []>} : vector<8x256xbf16>, vector<256x256xbf16>, vector<8x256xf32> -> vector<8x256xf32>
    %146 = arith.truncf %145 : vector<8x256xf32> to vector<8x256xbf16>
    %c8_136 = arith.constant 8 : index
    %c0_137 = arith.constant 0 : index
    %c0_138 = arith.constant 0 : index
    %147 = vector.load %arg5[%c8_136, %c0_137, %c0_138] : memref<9x8x8xbf16, #tpu.memory_space<vmem>>, vector<1x8x8xbf16>
    %148 = vector.shape_cast %147 : vector<1x8x8xbf16> to vector<8x8xbf16>
    %cst_139 = arith.constant dense<0.000000e+00> : vector<8x256xf32>
    %149 = tpu.matmul %148, %146, %cst_139 {dimension_numbers = #tpu.dot_dimension_numbers<[1], [0], [0], [1], [0, 0, 1, 1], [], []>} : vector<8x8xbf16>, vector<8x256xbf16>, vector<8x256xf32> -> vector<8x256xf32>
    %150 = arith.addf %142, %149 : vector<8x256xf32>
    %c0_140 = arith.constant 0 : index
    %c0_141 = arith.constant 0 : index
    %151 = vector.load %arg6[%c0_140, %c0_141] : memref<8x1xf32, #tpu.memory_space<vmem>>, vector<8x1xf32>
    %152 = vector.broadcast %151 : vector<8x1xf32> to vector<8x256xf32>
    %153 = arith.addf %150, %152 : vector<8x256xf32>
    %cst_142 = arith.constant 0.000000e+00 : f32
    %154 = vector.broadcast %cst_142 : f32 to vector<8x256xf32>
    %155 = arith.maximumf %153, %154 : vector<8x256xf32>
    %c0_143 = arith.constant 0 : index
    %c0_144 = arith.constant 0 : index
    %c0_145 = arith.constant 0 : index
    %156 = vector.load %arg10[%c0_143, %c0_144, %c0_145] : memref<1x8x256xf32, #tpu.memory_space<vmem>>, vector<1x8x256xf32>
    %157 = vector.shape_cast %156 : vector<1x8x256xf32> to vector<8x256xf32>
    %158 = vector.shape_cast %155 : vector<8x256xf32> to vector<1x8x256xf32>
    tpu.vector_store %arg10[%c0_143, %c0_144, %c0_145], %158 {strides = array<i32>} : memref<1x8x256xf32, #tpu.memory_space<vmem>>, vector<1x8x256xf32>,
    %159 = arith.truncf %155 : vector<8x256xf32> to vector<8x256xbf16>
    %c0_146 = arith.constant 0 : index
    %c0_147 = arith.constant 0 : index
    %c0_148 = arith.constant 0 : index
    %160 = vector.load %arg8[%c0_146, %c0_147, %c0_148] : memref<1x8x8xbf16, #tpu.memory_space<vmem>>, vector<1x8x8xbf16>
    %161 = vector.shape_cast %160 : vector<1x8x8xbf16> to vector<8x8xbf16>
    %cst_149 = arith.constant dense<0.000000e+00> : vector<8x256xf32>
    %162 = tpu.matmul %161, %159, %cst_149 {dimension_numbers = #tpu.dot_dimension_numbers<[1], [0], [0], [1], [0, 0, 1, 1], [], []>} : vector<8x8xbf16>, vector<8x256xbf16>, vector<8x256xf32> -> vector<8x256xf32>
    %c0_150 = arith.constant 0 : index
    %c0_151 = arith.constant 0 : index
    %163 = vector.load %arg9[%c0_150, %c0_151] : memref<8x1xf32, #tpu.memory_space<vmem>>, vector<8x1xf32>
    %164 = vector.broadcast %163 : vector<8x1xf32> to vector<8x256xf32>
    %165 = arith.addf %162, %164 : vector<8x256xf32>
    %cst_152 = arith.constant 0.000000e+00 : f32
    %166 = vector.broadcast %cst_152 : f32 to vector<8x256xf32>
    %167 = arith.maximumf %165, %166 : vector<8x256xf32>
    %c0_153 = arith.constant 0 : index
    %c0_154 = arith.constant 0 : index
    %c0_155 = arith.constant 0 : index
    %168 = vector.load %arg11[%c0_153, %c0_154, %c0_155] : memref<1x8x256xf32, #tpu.memory_space<vmem>>, vector<1x8x256xf32>
    %169 = vector.shape_cast %168 : vector<1x8x256xf32> to vector<8x256xf32>
    %170 = vector.shape_cast %167 : vector<8x256xf32> to vector<1x8x256xf32>
    tpu.vector_store %arg11[%c0_153, %c0_154, %c0_155], %170 {strides = array<i32>} : memref<1x8x256xf32, #tpu.memory_space<vmem>>, vector<1x8x256xf32>,
    return
  }
  func.func @transform_0(%arg0: i32) -> (i32, i32, i32) {
    %c0_i32 = arith.constant 0 : i32
    %c0_i32_0 = arith.constant 0 : i32
    %c0_i32_1 = arith.constant 0 : i32
    return %arg0, %c0_i32, %c0_i32_0 : i32, i32, i32
  }
  func.func @transform_1(%arg0: i32) -> (i32, i32, i32) {
    %c0_i32 = arith.constant 0 : i32
    %c0_i32_0 = arith.constant 0 : i32
    %c0_i32_1 = arith.constant 0 : i32
    %c0_i32_2 = arith.constant 0 : i32
    return %c0_i32, %c0_i32_0, %c0_i32_1 : i32, i32, i32
  }
  func.func @transform_2(%arg0: i32) -> (i32, i32) {
    %c0_i32 = arith.constant 0 : i32
    %c0_i32_0 = arith.constant 0 : i32
    %c0_i32_1 = arith.constant 0 : i32
    return %c0_i32, %c0_i32_0 : i32, i32
  }
  func.func @transform_3(%arg0: i32) -> (i32, i32, i32) {
    %c0_i32 = arith.constant 0 : i32
    %c0_i32_0 = arith.constant 0 : i32
    %c0_i32_1 = arith.constant 0 : i32
    %c0_i32_2 = arith.constant 0 : i32
    return %c0_i32, %c0_i32_0, %c0_i32_1 : i32, i32, i32
  }
  func.func @transform_4(%arg0: i32) -> (i32, i32, i32) {
    %c0_i32 = arith.constant 0 : i32
    %c0_i32_0 = arith.constant 0 : i32
    %c0_i32_1 = arith.constant 0 : i32
    %c0_i32_2 = arith.constant 0 : i32
    return %c0_i32, %c0_i32_0, %c0_i32_1 : i32, i32, i32
  }
  func.func @transform_5(%arg0: i32) -> (i32, i32) {
    %c0_i32 = arith.constant 0 : i32
    %c0_i32_0 = arith.constant 0 : i32
    %c0_i32_1 = arith.constant 0 : i32
    return %c0_i32, %c0_i32_0 : i32, i32
  }
  func.func @transform_6(%arg0: i32) -> (i32, i32, i32) {
    %c0_i32 = arith.constant 0 : i32
    %c0_i32_0 = arith.constant 0 : i32
    %c0_i32_1 = arith.constant 0 : i32
    %c0_i32_2 = arith.constant 0 : i32
    return %c0_i32, %c0_i32_0, %c0_i32_1 : i32, i32, i32
  }
  func.func @transform_7(%arg0: i32) -> (i32, i32, i32) {
    %c0_i32 = arith.constant 0 : i32
    %c0_i32_0 = arith.constant 0 : i32
    %c0_i32_1 = arith.constant 0 : i32
    %c0_i32_2 = arith.constant 0 : i32
    return %c0_i32, %c0_i32_0, %c0_i32_1 : i32, i32, i32
  }
  func.func @transform_8(%arg0: i32) -> (i32, i32) {
    %c0_i32 = arith.constant 0 : i32
    %c0_i32_0 = arith.constant 0 : i32
    %c0_i32_1 = arith.constant 0 : i32
    return %c0_i32, %c0_i32_0 : i32, i32
  }
  func.func @transform_9(%arg0: i32) -> (i32, i32, i32) {
    %c0_i32 = arith.constant 0 : i32
    %c0_i32_0 = arith.constant 0 : i32
    %c0_i32_1 = arith.constant 0 : i32
    return %arg0, %c0_i32, %c0_i32_0 : i32, i32, i32
  }
  func.func @transform_10(%arg0: i32) -> (i32, i32, i32) {
    %c0_i32 = arith.constant 0 : i32
    %c0_i32_0 = arith.constant 0 : i32
    %c0_i32_1 = arith.constant 0 : i32
    return %arg0, %c0_i32, %c0_i32_0 : i32, i32, i32
  }
}

module attributes {stable_mosaic.version = 11 : i64} {
  func.func @kernel(%arg0: i32, %arg1: memref<1x8x256xf32, #tpu.memory_space<vmem>>, %arg2: memref<9x16x8xbf16, #tpu.memory_space<vmem>>, %arg3: memref<16x1xf32, #tpu.memory_space<vmem>>, %arg4: memref<9x256x64xbf16, #tpu.memory_space<vmem>>, %arg5: memref<9x16x16xbf16, #tpu.memory_space<vmem>>, %arg6: memref<16x1xf32, #tpu.memory_space<vmem>>, %arg7: memref<9x64x64xbf16, #tpu.memory_space<vmem>>, %arg8: memref<4x8x16xbf16, #tpu.memory_space<vmem>>, %arg9: memref<8x1xf32, #tpu.memory_space<vmem>>, %arg10: memref<4x64x256xbf16, #tpu.memory_space<vmem>>, %arg11: memref<1x16x64xf32, #tpu.memory_space<vmem>>, %arg12: memref<1x8x256xf32, #tpu.memory_space<vmem>>) attributes {dimension_semantics = [#tpu.dimension_semantics<parallel>], iteration_bounds = array<i64: 2>, scalar_prefetch = 0 : i64, scratch_operands = 0 : i64, tpu.core_type = #tpu.core_type<tc>, window_params = [{transform_indices = @transform_0, window_bounds = array<i64: 1, 8, 256>}, {pipeline_mode = #tpu.pipeline_mode<synchronous>, transform_indices = @transform_1, window_bounds = array<i64: 9, 16, 8>}, {pipeline_mode = #tpu.pipeline_mode<synchronous>, transform_indices = @transform_2, window_bounds = array<i64: 16, 1>}, {pipeline_mode = #tpu.pipeline_mode<synchronous>, transform_indices = @transform_3, window_bounds = array<i64: 9, 256, 64>}, {pipeline_mode = #tpu.pipeline_mode<synchronous>, transform_indices = @transform_4, window_bounds = array<i64: 9, 16, 16>}, {pipeline_mode = #tpu.pipeline_mode<synchronous>, transform_indices = @transform_5, window_bounds = array<i64: 16, 1>}, {pipeline_mode = #tpu.pipeline_mode<synchronous>, transform_indices = @transform_6, window_bounds = array<i64: 9, 64, 64>}, {pipeline_mode = #tpu.pipeline_mode<synchronous>, transform_indices = @transform_7, window_bounds = array<i64: 4, 8, 16>}, {pipeline_mode = #tpu.pipeline_mode<synchronous>, transform_indices = @transform_8, window_bounds = array<i64: 8, 1>}, {pipeline_mode = #tpu.pipeline_mode<synchronous>, transform_indices = @transform_9, window_bounds = array<i64: 4, 64, 256>}, {transform_indices = @transform_10, window_bounds = array<i64: 1, 16, 64>}, {transform_indices = @transform_11, window_bounds = array<i64: 1, 8, 256>}]} {
    %c0 = arith.constant 0 : index
    %c0_0 = arith.constant 0 : index
    %c0_1 = arith.constant 0 : index
    %0 = vector.load %arg1[%c0, %c0_0, %c0_1] : memref<1x8x256xf32, #tpu.memory_space<vmem>>, vector<1x8x256xf32>
    %1 = vector.shape_cast %0 : vector<1x8x256xf32> to vector<8x256xf32>
    %2 = arith.truncf %1 : vector<8x256xf32> to vector<8x256xbf16>
    %c0_2 = arith.constant 0 : index
    %c0_3 = arith.constant 0 : index
    %c0_4 = arith.constant 0 : index
    %3 = vector.load %arg4[%c0_2, %c0_3, %c0_4] : memref<9x256x64xbf16, #tpu.memory_space<vmem>>, vector<1x256x64xbf16>
    %4 = vector.shape_cast %3 : vector<1x256x64xbf16> to vector<256x64xbf16>
    %cst = arith.constant dense<0.000000e+00> : vector<8x64xf32>
    %5 = tpu.matmul %2, %4, %cst {dimension_numbers = #tpu.dot_dimension_numbers<[1], [0], [0], [1], [0, 0, 1, 1], [], []>} : vector<8x256xbf16>, vector<256x64xbf16>, vector<8x64xf32> -> vector<8x64xf32>
    %6 = arith.truncf %5 : vector<8x64xf32> to vector<8x64xbf16>
    %c0_5 = arith.constant 0 : index
    %c0_6 = arith.constant 0 : index
    %c0_7 = arith.constant 0 : index
    %7 = vector.load %arg2[%c0_5, %c0_6, %c0_7] : memref<9x16x8xbf16, #tpu.memory_space<vmem>>, vector<1x16x8xbf16>
    %8 = vector.shape_cast %7 : vector<1x16x8xbf16> to vector<16x8xbf16>
    %cst_8 = arith.constant dense<0.000000e+00> : vector<16x64xf32>
    %9 = tpu.matmul %8, %6, %cst_8 {dimension_numbers = #tpu.dot_dimension_numbers<[1], [0], [0], [1], [0, 0, 1, 1], [], []>} : vector<16x8xbf16>, vector<8x64xbf16>, vector<16x64xf32> -> vector<16x64xf32>
    %c1 = arith.constant 1 : index
    %c0_9 = arith.constant 0 : index
    %c0_10 = arith.constant 0 : index
    %10 = vector.load %arg4[%c1, %c0_9, %c0_10] : memref<9x256x64xbf16, #tpu.memory_space<vmem>>, vector<1x256x64xbf16>
    %11 = vector.shape_cast %10 : vector<1x256x64xbf16> to vector<256x64xbf16>
    %cst_11 = arith.constant dense<0.000000e+00> : vector<8x64xf32>
    %12 = tpu.matmul %2, %11, %cst_11 {dimension_numbers = #tpu.dot_dimension_numbers<[1], [0], [0], [1], [0, 0, 1, 1], [], []>} : vector<8x256xbf16>, vector<256x64xbf16>, vector<8x64xf32> -> vector<8x64xf32>
    %13 = arith.truncf %12 : vector<8x64xf32> to vector<8x64xbf16>
    %c1_12 = arith.constant 1 : index
    %c0_13 = arith.constant 0 : index
    %c0_14 = arith.constant 0 : index
    %14 = vector.load %arg2[%c1_12, %c0_13, %c0_14] : memref<9x16x8xbf16, #tpu.memory_space<vmem>>, vector<1x16x8xbf16>
    %15 = vector.shape_cast %14 : vector<1x16x8xbf16> to vector<16x8xbf16>
    %cst_15 = arith.constant dense<0.000000e+00> : vector<16x64xf32>
    %16 = tpu.matmul %15, %13, %cst_15 {dimension_numbers = #tpu.dot_dimension_numbers<[1], [0], [0], [1], [0, 0, 1, 1], [], []>} : vector<16x8xbf16>, vector<8x64xbf16>, vector<16x64xf32> -> vector<16x64xf32>
    %17 = arith.addf %9, %16 : vector<16x64xf32>
    %c2 = arith.constant 2 : index
    %c0_16 = arith.constant 0 : index
    %c0_17 = arith.constant 0 : index
    %18 = vector.load %arg4[%c2, %c0_16, %c0_17] : memref<9x256x64xbf16, #tpu.memory_space<vmem>>, vector<1x256x64xbf16>
    %19 = vector.shape_cast %18 : vector<1x256x64xbf16> to vector<256x64xbf16>
    %cst_18 = arith.constant dense<0.000000e+00> : vector<8x64xf32>
    %20 = tpu.matmul %2, %19, %cst_18 {dimension_numbers = #tpu.dot_dimension_numbers<[1], [0], [0], [1], [0, 0, 1, 1], [], []>} : vector<8x256xbf16>, vector<256x64xbf16>, vector<8x64xf32> -> vector<8x64xf32>
    %21 = arith.truncf %20 : vector<8x64xf32> to vector<8x64xbf16>
    %c2_19 = arith.constant 2 : index
    %c0_20 = arith.constant 0 : index
    %c0_21 = arith.constant 0 : index
    %22 = vector.load %arg2[%c2_19, %c0_20, %c0_21] : memref<9x16x8xbf16, #tpu.memory_space<vmem>>, vector<1x16x8xbf16>
    %23 = vector.shape_cast %22 : vector<1x16x8xbf16> to vector<16x8xbf16>
    %cst_22 = arith.constant dense<0.000000e+00> : vector<16x64xf32>
    %24 = tpu.matmul %23, %21, %cst_22 {dimension_numbers = #tpu.dot_dimension_numbers<[1], [0], [0], [1], [0, 0, 1, 1], [], []>} : vector<16x8xbf16>, vector<8x64xbf16>, vector<16x64xf32> -> vector<16x64xf32>
    %25 = arith.addf %17, %24 : vector<16x64xf32>
    %c3 = arith.constant 3 : index
    %c0_23 = arith.constant 0 : index
    %c0_24 = arith.constant 0 : index
    %26 = vector.load %arg4[%c3, %c0_23, %c0_24] : memref<9x256x64xbf16, #tpu.memory_space<vmem>>, vector<1x256x64xbf16>
    %27 = vector.shape_cast %26 : vector<1x256x64xbf16> to vector<256x64xbf16>
    %cst_25 = arith.constant dense<0.000000e+00> : vector<8x64xf32>
    %28 = tpu.matmul %2, %27, %cst_25 {dimension_numbers = #tpu.dot_dimension_numbers<[1], [0], [0], [1], [0, 0, 1, 1], [], []>} : vector<8x256xbf16>, vector<256x64xbf16>, vector<8x64xf32> -> vector<8x64xf32>
    %29 = arith.truncf %28 : vector<8x64xf32> to vector<8x64xbf16>
    %c3_26 = arith.constant 3 : index
    %c0_27 = arith.constant 0 : index
    %c0_28 = arith.constant 0 : index
    %30 = vector.load %arg2[%c3_26, %c0_27, %c0_28] : memref<9x16x8xbf16, #tpu.memory_space<vmem>>, vector<1x16x8xbf16>
    %31 = vector.shape_cast %30 : vector<1x16x8xbf16> to vector<16x8xbf16>
    %cst_29 = arith.constant dense<0.000000e+00> : vector<16x64xf32>
    %32 = tpu.matmul %31, %29, %cst_29 {dimension_numbers = #tpu.dot_dimension_numbers<[1], [0], [0], [1], [0, 0, 1, 1], [], []>} : vector<16x8xbf16>, vector<8x64xbf16>, vector<16x64xf32> -> vector<16x64xf32>
    %33 = arith.addf %25, %32 : vector<16x64xf32>
    %c4 = arith.constant 4 : index
    %c0_30 = arith.constant 0 : index
    %c0_31 = arith.constant 0 : index
    %34 = vector.load %arg4[%c4, %c0_30, %c0_31] : memref<9x256x64xbf16, #tpu.memory_space<vmem>>, vector<1x256x64xbf16>
    %35 = vector.shape_cast %34 : vector<1x256x64xbf16> to vector<256x64xbf16>
    %cst_32 = arith.constant dense<0.000000e+00> : vector<8x64xf32>
    %36 = tpu.matmul %2, %35, %cst_32 {dimension_numbers = #tpu.dot_dimension_numbers<[1], [0], [0], [1], [0, 0, 1, 1], [], []>} : vector<8x256xbf16>, vector<256x64xbf16>, vector<8x64xf32> -> vector<8x64xf32>
    %37 = arith.truncf %36 : vector<8x64xf32> to vector<8x64xbf16>
    %c4_33 = arith.constant 4 : index
    %c0_34 = arith.constant 0 : index
    %c0_35 = arith.constant 0 : index
    %38 = vector.load %arg2[%c4_33, %c0_34, %c0_35] : memref<9x16x8xbf16, #tpu.memory_space<vmem>>, vector<1x16x8xbf16>
    %39 = vector.shape_cast %38 : vector<1x16x8xbf16> to vector<16x8xbf16>
    %cst_36 = arith.constant dense<0.000000e+00> : vector<16x64xf32>
    %40 = tpu.matmul %39, %37, %cst_36 {dimension_numbers = #tpu.dot_dimension_numbers<[1], [0], [0], [1], [0, 0, 1, 1], [], []>} : vector<16x8xbf16>, vector<8x64xbf16>, vector<16x64xf32> -> vector<16x64xf32>
    %41 = arith.addf %33, %40 : vector<16x64xf32>
    %c5 = arith.constant 5 : index
    %c0_37 = arith.constant 0 : index
    %c0_38 = arith.constant 0 : index
    %42 = vector.load %arg4[%c5, %c0_37, %c0_38] : memref<9x256x64xbf16, #tpu.memory_space<vmem>>, vector<1x256x64xbf16>
    %43 = vector.shape_cast %42 : vector<1x256x64xbf16> to vector<256x64xbf16>
    %cst_39 = arith.constant dense<0.000000e+00> : vector<8x64xf32>
    %44 = tpu.matmul %2, %43, %cst_39 {dimension_numbers = #tpu.dot_dimension_numbers<[1], [0], [0], [1], [0, 0, 1, 1], [], []>} : vector<8x256xbf16>, vector<256x64xbf16>, vector<8x64xf32> -> vector<8x64xf32>
    %45 = arith.truncf %44 : vector<8x64xf32> to vector<8x64xbf16>
    %c5_40 = arith.constant 5 : index
    %c0_41 = arith.constant 0 : index
    %c0_42 = arith.constant 0 : index
    %46 = vector.load %arg2[%c5_40, %c0_41, %c0_42] : memref<9x16x8xbf16, #tpu.memory_space<vmem>>, vector<1x16x8xbf16>
    %47 = vector.shape_cast %46 : vector<1x16x8xbf16> to vector<16x8xbf16>
    %cst_43 = arith.constant dense<0.000000e+00> : vector<16x64xf32>
    %48 = tpu.matmul %47, %45, %cst_43 {dimension_numbers = #tpu.dot_dimension_numbers<[1], [0], [0], [1], [0, 0, 1, 1], [], []>} : vector<16x8xbf16>, vector<8x64xbf16>, vector<16x64xf32> -> vector<16x64xf32>
    %49 = arith.addf %41, %48 : vector<16x64xf32>
    %c6 = arith.constant 6 : index
    %c0_44 = arith.constant 0 : index
    %c0_45 = arith.constant 0 : index
    %50 = vector.load %arg4[%c6, %c0_44, %c0_45] : memref<9x256x64xbf16, #tpu.memory_space<vmem>>, vector<1x256x64xbf16>
    %51 = vector.shape_cast %50 : vector<1x256x64xbf16> to vector<256x64xbf16>
    %cst_46 = arith.constant dense<0.000000e+00> : vector<8x64xf32>
    %52 = tpu.matmul %2, %51, %cst_46 {dimension_numbers = #tpu.dot_dimension_numbers<[1], [0], [0], [1], [0, 0, 1, 1], [], []>} : vector<8x256xbf16>, vector<256x64xbf16>, vector<8x64xf32> -> vector<8x64xf32>
    %53 = arith.truncf %52 : vector<8x64xf32> to vector<8x64xbf16>
    %c6_47 = arith.constant 6 : index
    %c0_48 = arith.constant 0 : index
    %c0_49 = arith.constant 0 : index
    %54 = vector.load %arg2[%c6_47, %c0_48, %c0_49] : memref<9x16x8xbf16, #tpu.memory_space<vmem>>, vector<1x16x8xbf16>
    %55 = vector.shape_cast %54 : vector<1x16x8xbf16> to vector<16x8xbf16>
    %cst_50 = arith.constant dense<0.000000e+00> : vector<16x64xf32>
    %56 = tpu.matmul %55, %53, %cst_50 {dimension_numbers = #tpu.dot_dimension_numbers<[1], [0], [0], [1], [0, 0, 1, 1], [], []>} : vector<16x8xbf16>, vector<8x64xbf16>, vector<16x64xf32> -> vector<16x64xf32>
    %57 = arith.addf %49, %56 : vector<16x64xf32>
    %c7 = arith.constant 7 : index
    %c0_51 = arith.constant 0 : index
    %c0_52 = arith.constant 0 : index
    %58 = vector.load %arg4[%c7, %c0_51, %c0_52] : memref<9x256x64xbf16, #tpu.memory_space<vmem>>, vector<1x256x64xbf16>
    %59 = vector.shape_cast %58 : vector<1x256x64xbf16> to vector<256x64xbf16>
    %cst_53 = arith.constant dense<0.000000e+00> : vector<8x64xf32>
    %60 = tpu.matmul %2, %59, %cst_53 {dimension_numbers = #tpu.dot_dimension_numbers<[1], [0], [0], [1], [0, 0, 1, 1], [], []>} : vector<8x256xbf16>, vector<256x64xbf16>, vector<8x64xf32> -> vector<8x64xf32>
    %61 = arith.truncf %60 : vector<8x64xf32> to vector<8x64xbf16>
    %c7_54 = arith.constant 7 : index
    %c0_55 = arith.constant 0 : index
    %c0_56 = arith.constant 0 : index
    %62 = vector.load %arg2[%c7_54, %c0_55, %c0_56] : memref<9x16x8xbf16, #tpu.memory_space<vmem>>, vector<1x16x8xbf16>
    %63 = vector.shape_cast %62 : vector<1x16x8xbf16> to vector<16x8xbf16>
    %cst_57 = arith.constant dense<0.000000e+00> : vector<16x64xf32>
    %64 = tpu.matmul %63, %61, %cst_57 {dimension_numbers = #tpu.dot_dimension_numbers<[1], [0], [0], [1], [0, 0, 1, 1], [], []>} : vector<16x8xbf16>, vector<8x64xbf16>, vector<16x64xf32> -> vector<16x64xf32>
    %65 = arith.addf %57, %64 : vector<16x64xf32>
    %c8 = arith.constant 8 : index
    %c0_58 = arith.constant 0 : index
    %c0_59 = arith.constant 0 : index
    %66 = vector.load %arg4[%c8, %c0_58, %c0_59] : memref<9x256x64xbf16, #tpu.memory_space<vmem>>, vector<1x256x64xbf16>
    %67 = vector.shape_cast %66 : vector<1x256x64xbf16> to vector<256x64xbf16>
    %cst_60 = arith.constant dense<0.000000e+00> : vector<8x64xf32>
    %68 = tpu.matmul %2, %67, %cst_60 {dimension_numbers = #tpu.dot_dimension_numbers<[1], [0], [0], [1], [0, 0, 1, 1], [], []>} : vector<8x256xbf16>, vector<256x64xbf16>, vector<8x64xf32> -> vector<8x64xf32>
    %69 = arith.truncf %68 : vector<8x64xf32> to vector<8x64xbf16>
    %c8_61 = arith.constant 8 : index
    %c0_62 = arith.constant 0 : index
    %c0_63 = arith.constant 0 : index
    %70 = vector.load %arg2[%c8_61, %c0_62, %c0_63] : memref<9x16x8xbf16, #tpu.memory_space<vmem>>, vector<1x16x8xbf16>
    %71 = vector.shape_cast %70 : vector<1x16x8xbf16> to vector<16x8xbf16>
    %cst_64 = arith.constant dense<0.000000e+00> : vector<16x64xf32>
    %72 = tpu.matmul %71, %69, %cst_64 {dimension_numbers = #tpu.dot_dimension_numbers<[1], [0], [0], [1], [0, 0, 1, 1], [], []>} : vector<16x8xbf16>, vector<8x64xbf16>, vector<16x64xf32> -> vector<16x64xf32>
    %73 = arith.addf %65, %72 : vector<16x64xf32>
    %c0_65 = arith.constant 0 : index
    %c0_66 = arith.constant 0 : index
    %74 = vector.load %arg3[%c0_65, %c0_66] : memref<16x1xf32, #tpu.memory_space<vmem>>, vector<16x1xf32>
    %75 = vector.broadcast %74 : vector<16x1xf32> to vector<16x64xf32>
    %76 = arith.addf %73, %75 : vector<16x64xf32>
    %cst_67 = arith.constant 0.000000e+00 : f32
    %77 = vector.broadcast %cst_67 : f32 to vector<16x64xf32>
    %78 = arith.maximumf %76, %77 : vector<16x64xf32>
    %79 = arith.truncf %78 : vector<16x64xf32> to vector<16x64xbf16>
    %c0_68 = arith.constant 0 : index
    %c0_69 = arith.constant 0 : index
    %c0_70 = arith.constant 0 : index
    %80 = vector.load %arg7[%c0_68, %c0_69, %c0_70] : memref<9x64x64xbf16, #tpu.memory_space<vmem>>, vector<1x64x64xbf16>
    %81 = vector.shape_cast %80 : vector<1x64x64xbf16> to vector<64x64xbf16>
    %cst_71 = arith.constant dense<0.000000e+00> : vector<16x64xf32>
    %82 = tpu.matmul %79, %81, %cst_71 {dimension_numbers = #tpu.dot_dimension_numbers<[1], [0], [0], [1], [0, 0, 1, 1], [], []>} : vector<16x64xbf16>, vector<64x64xbf16>, vector<16x64xf32> -> vector<16x64xf32>
    %83 = arith.truncf %82 : vector<16x64xf32> to vector<16x64xbf16>
    %c0_72 = arith.constant 0 : index
    %c0_73 = arith.constant 0 : index
    %c0_74 = arith.constant 0 : index
    %84 = vector.load %arg5[%c0_72, %c0_73, %c0_74] : memref<9x16x16xbf16, #tpu.memory_space<vmem>>, vector<1x16x16xbf16>
    %85 = vector.shape_cast %84 : vector<1x16x16xbf16> to vector<16x16xbf16>
    %cst_75 = arith.constant dense<0.000000e+00> : vector<16x64xf32>
    %86 = tpu.matmul %85, %83, %cst_75 {dimension_numbers = #tpu.dot_dimension_numbers<[1], [0], [0], [1], [0, 0, 1, 1], [], []>} : vector<16x16xbf16>, vector<16x64xbf16>, vector<16x64xf32> -> vector<16x64xf32>
    %c1_76 = arith.constant 1 : index
    %c0_77 = arith.constant 0 : index
    %c0_78 = arith.constant 0 : index
    %87 = vector.load %arg7[%c1_76, %c0_77, %c0_78] : memref<9x64x64xbf16, #tpu.memory_space<vmem>>, vector<1x64x64xbf16>
    %88 = vector.shape_cast %87 : vector<1x64x64xbf16> to vector<64x64xbf16>
    %cst_79 = arith.constant dense<0.000000e+00> : vector<16x64xf32>
    %89 = tpu.matmul %79, %88, %cst_79 {dimension_numbers = #tpu.dot_dimension_numbers<[1], [0], [0], [1], [0, 0, 1, 1], [], []>} : vector<16x64xbf16>, vector<64x64xbf16>, vector<16x64xf32> -> vector<16x64xf32>
    %90 = arith.truncf %89 : vector<16x64xf32> to vector<16x64xbf16>
    %c1_80 = arith.constant 1 : index
    %c0_81 = arith.constant 0 : index
    %c0_82 = arith.constant 0 : index
    %91 = vector.load %arg5[%c1_80, %c0_81, %c0_82] : memref<9x16x16xbf16, #tpu.memory_space<vmem>>, vector<1x16x16xbf16>
    %92 = vector.shape_cast %91 : vector<1x16x16xbf16> to vector<16x16xbf16>
    %cst_83 = arith.constant dense<0.000000e+00> : vector<16x64xf32>
    %93 = tpu.matmul %92, %90, %cst_83 {dimension_numbers = #tpu.dot_dimension_numbers<[1], [0], [0], [1], [0, 0, 1, 1], [], []>} : vector<16x16xbf16>, vector<16x64xbf16>, vector<16x64xf32> -> vector<16x64xf32>
    %94 = arith.addf %86, %93 : vector<16x64xf32>
    %c2_84 = arith.constant 2 : index
    %c0_85 = arith.constant 0 : index
    %c0_86 = arith.constant 0 : index
    %95 = vector.load %arg7[%c2_84, %c0_85, %c0_86] : memref<9x64x64xbf16, #tpu.memory_space<vmem>>, vector<1x64x64xbf16>
    %96 = vector.shape_cast %95 : vector<1x64x64xbf16> to vector<64x64xbf16>
    %cst_87 = arith.constant dense<0.000000e+00> : vector<16x64xf32>
    %97 = tpu.matmul %79, %96, %cst_87 {dimension_numbers = #tpu.dot_dimension_numbers<[1], [0], [0], [1], [0, 0, 1, 1], [], []>} : vector<16x64xbf16>, vector<64x64xbf16>, vector<16x64xf32> -> vector<16x64xf32>
    %98 = arith.truncf %97 : vector<16x64xf32> to vector<16x64xbf16>
    %c2_88 = arith.constant 2 : index
    %c0_89 = arith.constant 0 : index
    %c0_90 = arith.constant 0 : index
    %99 = vector.load %arg5[%c2_88, %c0_89, %c0_90] : memref<9x16x16xbf16, #tpu.memory_space<vmem>>, vector<1x16x16xbf16>
    %100 = vector.shape_cast %99 : vector<1x16x16xbf16> to vector<16x16xbf16>
    %cst_91 = arith.constant dense<0.000000e+00> : vector<16x64xf32>
    %101 = tpu.matmul %100, %98, %cst_91 {dimension_numbers = #tpu.dot_dimension_numbers<[1], [0], [0], [1], [0, 0, 1, 1], [], []>} : vector<16x16xbf16>, vector<16x64xbf16>, vector<16x64xf32> -> vector<16x64xf32>
    %102 = arith.addf %94, %101 : vector<16x64xf32>
    %c3_92 = arith.constant 3 : index
    %c0_93 = arith.constant 0 : index
    %c0_94 = arith.constant 0 : index
    %103 = vector.load %arg7[%c3_92, %c0_93, %c0_94] : memref<9x64x64xbf16, #tpu.memory_space<vmem>>, vector<1x64x64xbf16>
    %104 = vector.shape_cast %103 : vector<1x64x64xbf16> to vector<64x64xbf16>
    %cst_95 = arith.constant dense<0.000000e+00> : vector<16x64xf32>
    %105 = tpu.matmul %79, %104, %cst_95 {dimension_numbers = #tpu.dot_dimension_numbers<[1], [0], [0], [1], [0, 0, 1, 1], [], []>} : vector<16x64xbf16>, vector<64x64xbf16>, vector<16x64xf32> -> vector<16x64xf32>
    %106 = arith.truncf %105 : vector<16x64xf32> to vector<16x64xbf16>
    %c3_96 = arith.constant 3 : index
    %c0_97 = arith.constant 0 : index
    %c0_98 = arith.constant 0 : index
    %107 = vector.load %arg5[%c3_96, %c0_97, %c0_98] : memref<9x16x16xbf16, #tpu.memory_space<vmem>>, vector<1x16x16xbf16>
    %108 = vector.shape_cast %107 : vector<1x16x16xbf16> to vector<16x16xbf16>
    %cst_99 = arith.constant dense<0.000000e+00> : vector<16x64xf32>
    %109 = tpu.matmul %108, %106, %cst_99 {dimension_numbers = #tpu.dot_dimension_numbers<[1], [0], [0], [1], [0, 0, 1, 1], [], []>} : vector<16x16xbf16>, vector<16x64xbf16>, vector<16x64xf32> -> vector<16x64xf32>
    %110 = arith.addf %102, %109 : vector<16x64xf32>
    %c4_100 = arith.constant 4 : index
    %c0_101 = arith.constant 0 : index
    %c0_102 = arith.constant 0 : index
    %111 = vector.load %arg7[%c4_100, %c0_101, %c0_102] : memref<9x64x64xbf16, #tpu.memory_space<vmem>>, vector<1x64x64xbf16>
    %112 = vector.shape_cast %111 : vector<1x64x64xbf16> to vector<64x64xbf16>
    %cst_103 = arith.constant dense<0.000000e+00> : vector<16x64xf32>
    %113 = tpu.matmul %79, %112, %cst_103 {dimension_numbers = #tpu.dot_dimension_numbers<[1], [0], [0], [1], [0, 0, 1, 1], [], []>} : vector<16x64xbf16>, vector<64x64xbf16>, vector<16x64xf32> -> vector<16x64xf32>
    %114 = arith.truncf %113 : vector<16x64xf32> to vector<16x64xbf16>
    %c4_104 = arith.constant 4 : index
    %c0_105 = arith.constant 0 : index
    %c0_106 = arith.constant 0 : index
    %115 = vector.load %arg5[%c4_104, %c0_105, %c0_106] : memref<9x16x16xbf16, #tpu.memory_space<vmem>>, vector<1x16x16xbf16>
    %116 = vector.shape_cast %115 : vector<1x16x16xbf16> to vector<16x16xbf16>
    %cst_107 = arith.constant dense<0.000000e+00> : vector<16x64xf32>
    %117 = tpu.matmul %116, %114, %cst_107 {dimension_numbers = #tpu.dot_dimension_numbers<[1], [0], [0], [1], [0, 0, 1, 1], [], []>} : vector<16x16xbf16>, vector<16x64xbf16>, vector<16x64xf32> -> vector<16x64xf32>
    %118 = arith.addf %110, %117 : vector<16x64xf32>
    %c5_108 = arith.constant 5 : index
    %c0_109 = arith.constant 0 : index
    %c0_110 = arith.constant 0 : index
    %119 = vector.load %arg7[%c5_108, %c0_109, %c0_110] : memref<9x64x64xbf16, #tpu.memory_space<vmem>>, vector<1x64x64xbf16>
    %120 = vector.shape_cast %119 : vector<1x64x64xbf16> to vector<64x64xbf16>
    %cst_111 = arith.constant dense<0.000000e+00> : vector<16x64xf32>
    %121 = tpu.matmul %79, %120, %cst_111 {dimension_numbers = #tpu.dot_dimension_numbers<[1], [0], [0], [1], [0, 0, 1, 1], [], []>} : vector<16x64xbf16>, vector<64x64xbf16>, vector<16x64xf32> -> vector<16x64xf32>
    %122 = arith.truncf %121 : vector<16x64xf32> to vector<16x64xbf16>
    %c5_112 = arith.constant 5 : index
    %c0_113 = arith.constant 0 : index
    %c0_114 = arith.constant 0 : index
    %123 = vector.load %arg5[%c5_112, %c0_113, %c0_114] : memref<9x16x16xbf16, #tpu.memory_space<vmem>>, vector<1x16x16xbf16>
    %124 = vector.shape_cast %123 : vector<1x16x16xbf16> to vector<16x16xbf16>
    %cst_115 = arith.constant dense<0.000000e+00> : vector<16x64xf32>
    %125 = tpu.matmul %124, %122, %cst_115 {dimension_numbers = #tpu.dot_dimension_numbers<[1], [0], [0], [1], [0, 0, 1, 1], [], []>} : vector<16x16xbf16>, vector<16x64xbf16>, vector<16x64xf32> -> vector<16x64xf32>
    %126 = arith.addf %118, %125 : vector<16x64xf32>
    %c6_116 = arith.constant 6 : index
    %c0_117 = arith.constant 0 : index
    %c0_118 = arith.constant 0 : index
    %127 = vector.load %arg7[%c6_116, %c0_117, %c0_118] : memref<9x64x64xbf16, #tpu.memory_space<vmem>>, vector<1x64x64xbf16>
    %128 = vector.shape_cast %127 : vector<1x64x64xbf16> to vector<64x64xbf16>
    %cst_119 = arith.constant dense<0.000000e+00> : vector<16x64xf32>
    %129 = tpu.matmul %79, %128, %cst_119 {dimension_numbers = #tpu.dot_dimension_numbers<[1], [0], [0], [1], [0, 0, 1, 1], [], []>} : vector<16x64xbf16>, vector<64x64xbf16>, vector<16x64xf32> -> vector<16x64xf32>
    %130 = arith.truncf %129 : vector<16x64xf32> to vector<16x64xbf16>
    %c6_120 = arith.constant 6 : index
    %c0_121 = arith.constant 0 : index
    %c0_122 = arith.constant 0 : index
    %131 = vector.load %arg5[%c6_120, %c0_121, %c0_122] : memref<9x16x16xbf16, #tpu.memory_space<vmem>>, vector<1x16x16xbf16>
    %132 = vector.shape_cast %131 : vector<1x16x16xbf16> to vector<16x16xbf16>
    %cst_123 = arith.constant dense<0.000000e+00> : vector<16x64xf32>
    %133 = tpu.matmul %132, %130, %cst_123 {dimension_numbers = #tpu.dot_dimension_numbers<[1], [0], [0], [1], [0, 0, 1, 1], [], []>} : vector<16x16xbf16>, vector<16x64xbf16>, vector<16x64xf32> -> vector<16x64xf32>
    %134 = arith.addf %126, %133 : vector<16x64xf32>
    %c7_124 = arith.constant 7 : index
    %c0_125 = arith.constant 0 : index
    %c0_126 = arith.constant 0 : index
    %135 = vector.load %arg7[%c7_124, %c0_125, %c0_126] : memref<9x64x64xbf16, #tpu.memory_space<vmem>>, vector<1x64x64xbf16>
    %136 = vector.shape_cast %135 : vector<1x64x64xbf16> to vector<64x64xbf16>
    %cst_127 = arith.constant dense<0.000000e+00> : vector<16x64xf32>
    %137 = tpu.matmul %79, %136, %cst_127 {dimension_numbers = #tpu.dot_dimension_numbers<[1], [0], [0], [1], [0, 0, 1, 1], [], []>} : vector<16x64xbf16>, vector<64x64xbf16>, vector<16x64xf32> -> vector<16x64xf32>
    %138 = arith.truncf %137 : vector<16x64xf32> to vector<16x64xbf16>
    %c7_128 = arith.constant 7 : index
    %c0_129 = arith.constant 0 : index
    %c0_130 = arith.constant 0 : index
    %139 = vector.load %arg5[%c7_128, %c0_129, %c0_130] : memref<9x16x16xbf16, #tpu.memory_space<vmem>>, vector<1x16x16xbf16>
    %140 = vector.shape_cast %139 : vector<1x16x16xbf16> to vector<16x16xbf16>
    %cst_131 = arith.constant dense<0.000000e+00> : vector<16x64xf32>
    %141 = tpu.matmul %140, %138, %cst_131 {dimension_numbers = #tpu.dot_dimension_numbers<[1], [0], [0], [1], [0, 0, 1, 1], [], []>} : vector<16x16xbf16>, vector<16x64xbf16>, vector<16x64xf32> -> vector<16x64xf32>
    %142 = arith.addf %134, %141 : vector<16x64xf32>
    %c8_132 = arith.constant 8 : index
    %c0_133 = arith.constant 0 : index
    %c0_134 = arith.constant 0 : index
    %143 = vector.load %arg7[%c8_132, %c0_133, %c0_134] : memref<9x64x64xbf16, #tpu.memory_space<vmem>>, vector<1x64x64xbf16>
    %144 = vector.shape_cast %143 : vector<1x64x64xbf16> to vector<64x64xbf16>
    %cst_135 = arith.constant dense<0.000000e+00> : vector<16x64xf32>
    %145 = tpu.matmul %79, %144, %cst_135 {dimension_numbers = #tpu.dot_dimension_numbers<[1], [0], [0], [1], [0, 0, 1, 1], [], []>} : vector<16x64xbf16>, vector<64x64xbf16>, vector<16x64xf32> -> vector<16x64xf32>
    %146 = arith.truncf %145 : vector<16x64xf32> to vector<16x64xbf16>
    %c8_136 = arith.constant 8 : index
    %c0_137 = arith.constant 0 : index
    %c0_138 = arith.constant 0 : index
    %147 = vector.load %arg5[%c8_136, %c0_137, %c0_138] : memref<9x16x16xbf16, #tpu.memory_space<vmem>>, vector<1x16x16xbf16>
    %148 = vector.shape_cast %147 : vector<1x16x16xbf16> to vector<16x16xbf16>
    %cst_139 = arith.constant dense<0.000000e+00> : vector<16x64xf32>
    %149 = tpu.matmul %148, %146, %cst_139 {dimension_numbers = #tpu.dot_dimension_numbers<[1], [0], [0], [1], [0, 0, 1, 1], [], []>} : vector<16x16xbf16>, vector<16x64xbf16>, vector<16x64xf32> -> vector<16x64xf32>
    %150 = arith.addf %142, %149 : vector<16x64xf32>
    %c0_140 = arith.constant 0 : index
    %c0_141 = arith.constant 0 : index
    %151 = vector.load %arg6[%c0_140, %c0_141] : memref<16x1xf32, #tpu.memory_space<vmem>>, vector<16x1xf32>
    %152 = vector.broadcast %151 : vector<16x1xf32> to vector<16x64xf32>
    %153 = arith.addf %150, %152 : vector<16x64xf32>
    %cst_142 = arith.constant 0.000000e+00 : f32
    %154 = vector.broadcast %cst_142 : f32 to vector<16x64xf32>
    %155 = arith.maximumf %153, %154 : vector<16x64xf32>
    %c0_143 = arith.constant 0 : index
    %c0_144 = arith.constant 0 : index
    %c0_145 = arith.constant 0 : index
    %156 = vector.load %arg11[%c0_143, %c0_144, %c0_145] : memref<1x16x64xf32, #tpu.memory_space<vmem>>, vector<1x16x64xf32>
    %157 = vector.shape_cast %156 : vector<1x16x64xf32> to vector<16x64xf32>
    %158 = vector.shape_cast %155 : vector<16x64xf32> to vector<1x16x64xf32>
    tpu.vector_store %arg11[%c0_143, %c0_144, %c0_145], %158 {strides = array<i32>} : memref<1x16x64xf32, #tpu.memory_space<vmem>>, vector<1x16x64xf32>,
    %159 = arith.truncf %155 : vector<16x64xf32> to vector<16x64xbf16>
    %c0_146 = arith.constant 0 : index
    %c0_147 = arith.constant 0 : index
    %c0_148 = arith.constant 0 : index
    %160 = vector.load %arg10[%c0_146, %c0_147, %c0_148] : memref<4x64x256xbf16, #tpu.memory_space<vmem>>, vector<1x64x256xbf16>
    %161 = vector.shape_cast %160 : vector<1x64x256xbf16> to vector<64x256xbf16>
    %cst_149 = arith.constant dense<0.000000e+00> : vector<16x256xf32>
    %162 = tpu.matmul %159, %161, %cst_149 {dimension_numbers = #tpu.dot_dimension_numbers<[1], [0], [0], [1], [0, 0, 1, 1], [], []>} : vector<16x64xbf16>, vector<64x256xbf16>, vector<16x256xf32> -> vector<16x256xf32>
    %163 = arith.truncf %162 : vector<16x256xf32> to vector<16x256xbf16>
    %c0_150 = arith.constant 0 : index
    %c0_151 = arith.constant 0 : index
    %c0_152 = arith.constant 0 : index
    %164 = vector.load %arg8[%c0_150, %c0_151, %c0_152] : memref<4x8x16xbf16, #tpu.memory_space<vmem>>, vector<1x8x16xbf16>
    %165 = vector.shape_cast %164 : vector<1x8x16xbf16> to vector<8x16xbf16>
    %cst_153 = arith.constant dense<0.000000e+00> : vector<8x256xf32>
    %166 = tpu.matmul %165, %163, %cst_153 {dimension_numbers = #tpu.dot_dimension_numbers<[1], [0], [0], [1], [0, 0, 1, 1], [], []>} : vector<8x16xbf16>, vector<16x256xbf16>, vector<8x256xf32> -> vector<8x256xf32>
    %c1_154 = arith.constant 1 : index
    %c0_155 = arith.constant 0 : index
    %c0_156 = arith.constant 0 : index
    %167 = vector.load %arg10[%c1_154, %c0_155, %c0_156] : memref<4x64x256xbf16, #tpu.memory_space<vmem>>, vector<1x64x256xbf16>
    %168 = vector.shape_cast %167 : vector<1x64x256xbf16> to vector<64x256xbf16>
    %cst_157 = arith.constant dense<0.000000e+00> : vector<16x256xf32>
    %169 = tpu.matmul %159, %168, %cst_157 {dimension_numbers = #tpu.dot_dimension_numbers<[1], [0], [0], [1], [0, 0, 1, 1], [], []>} : vector<16x64xbf16>, vector<64x256xbf16>, vector<16x256xf32> -> vector<16x256xf32>
    %170 = arith.truncf %169 : vector<16x256xf32> to vector<16x256xbf16>
    %c1_158 = arith.constant 1 : index
    %c0_159 = arith.constant 0 : index
    %c0_160 = arith.constant 0 : index
    %171 = vector.load %arg8[%c1_158, %c0_159, %c0_160] : memref<4x8x16xbf16, #tpu.memory_space<vmem>>, vector<1x8x16xbf16>
    %172 = vector.shape_cast %171 : vector<1x8x16xbf16> to vector<8x16xbf16>
    %cst_161 = arith.constant dense<0.000000e+00> : vector<8x256xf32>
    %173 = tpu.matmul %172, %170, %cst_161 {dimension_numbers = #tpu.dot_dimension_numbers<[1], [0], [0], [1], [0, 0, 1, 1], [], []>} : vector<8x16xbf16>, vector<16x256xbf16>, vector<8x256xf32> -> vector<8x256xf32>
    %174 = arith.addf %166, %173 : vector<8x256xf32>
    %c2_162 = arith.constant 2 : index
    %c0_163 = arith.constant 0 : index
    %c0_164 = arith.constant 0 : index
    %175 = vector.load %arg10[%c2_162, %c0_163, %c0_164] : memref<4x64x256xbf16, #tpu.memory_space<vmem>>, vector<1x64x256xbf16>
    %176 = vector.shape_cast %175 : vector<1x64x256xbf16> to vector<64x256xbf16>
    %cst_165 = arith.constant dense<0.000000e+00> : vector<16x256xf32>
    %177 = tpu.matmul %159, %176, %cst_165 {dimension_numbers = #tpu.dot_dimension_numbers<[1], [0], [0], [1], [0, 0, 1, 1], [], []>} : vector<16x64xbf16>, vector<64x256xbf16>, vector<16x256xf32> -> vector<16x256xf32>
    %178 = arith.truncf %177 : vector<16x256xf32> to vector<16x256xbf16>
    %c2_166 = arith.constant 2 : index
    %c0_167 = arith.constant 0 : index
    %c0_168 = arith.constant 0 : index
    %179 = vector.load %arg8[%c2_166, %c0_167, %c0_168] : memref<4x8x16xbf16, #tpu.memory_space<vmem>>, vector<1x8x16xbf16>
    %180 = vector.shape_cast %179 : vector<1x8x16xbf16> to vector<8x16xbf16>
    %cst_169 = arith.constant dense<0.000000e+00> : vector<8x256xf32>
    %181 = tpu.matmul %180, %178, %cst_169 {dimension_numbers = #tpu.dot_dimension_numbers<[1], [0], [0], [1], [0, 0, 1, 1], [], []>} : vector<8x16xbf16>, vector<16x256xbf16>, vector<8x256xf32> -> vector<8x256xf32>
    %182 = arith.addf %174, %181 : vector<8x256xf32>
    %c3_170 = arith.constant 3 : index
    %c0_171 = arith.constant 0 : index
    %c0_172 = arith.constant 0 : index
    %183 = vector.load %arg10[%c3_170, %c0_171, %c0_172] : memref<4x64x256xbf16, #tpu.memory_space<vmem>>, vector<1x64x256xbf16>
    %184 = vector.shape_cast %183 : vector<1x64x256xbf16> to vector<64x256xbf16>
    %cst_173 = arith.constant dense<0.000000e+00> : vector<16x256xf32>
    %185 = tpu.matmul %159, %184, %cst_173 {dimension_numbers = #tpu.dot_dimension_numbers<[1], [0], [0], [1], [0, 0, 1, 1], [], []>} : vector<16x64xbf16>, vector<64x256xbf16>, vector<16x256xf32> -> vector<16x256xf32>
    %186 = arith.truncf %185 : vector<16x256xf32> to vector<16x256xbf16>
    %c3_174 = arith.constant 3 : index
    %c0_175 = arith.constant 0 : index
    %c0_176 = arith.constant 0 : index
    %187 = vector.load %arg8[%c3_174, %c0_175, %c0_176] : memref<4x8x16xbf16, #tpu.memory_space<vmem>>, vector<1x8x16xbf16>
    %188 = vector.shape_cast %187 : vector<1x8x16xbf16> to vector<8x16xbf16>
    %cst_177 = arith.constant dense<0.000000e+00> : vector<8x256xf32>
    %189 = tpu.matmul %188, %186, %cst_177 {dimension_numbers = #tpu.dot_dimension_numbers<[1], [0], [0], [1], [0, 0, 1, 1], [], []>} : vector<8x16xbf16>, vector<16x256xbf16>, vector<8x256xf32> -> vector<8x256xf32>
    %190 = arith.addf %182, %189 : vector<8x256xf32>
    %c0_178 = arith.constant 0 : index
    %c0_179 = arith.constant 0 : index
    %191 = vector.load %arg9[%c0_178, %c0_179] : memref<8x1xf32, #tpu.memory_space<vmem>>, vector<8x1xf32>
    %192 = vector.broadcast %191 : vector<8x1xf32> to vector<8x256xf32>
    %193 = arith.addf %190, %192 : vector<8x256xf32>
    %cst_180 = arith.constant 0.000000e+00 : f32
    %194 = vector.broadcast %cst_180 : f32 to vector<8x256xf32>
    %195 = arith.maximumf %193, %194 : vector<8x256xf32>
    %c0_181 = arith.constant 0 : index
    %c0_182 = arith.constant 0 : index
    %c0_183 = arith.constant 0 : index
    %196 = vector.load %arg12[%c0_181, %c0_182, %c0_183] : memref<1x8x256xf32, #tpu.memory_space<vmem>>, vector<1x8x256xf32>
    %197 = vector.shape_cast %196 : vector<1x8x256xf32> to vector<8x256xf32>
    %198 = vector.shape_cast %195 : vector<8x256xf32> to vector<1x8x256xf32>
    tpu.vector_store %arg12[%c0_181, %c0_182, %c0_183], %198 {strides = array<i32>} : memref<1x8x256xf32, #tpu.memory_space<vmem>>, vector<1x8x256xf32>,
    return
  }
  func.func @transform_0(%arg0: i32) -> (i32, i32, i32) {
    %c0_i32 = arith.constant 0 : i32
    %c0_i32_0 = arith.constant 0 : i32
    %c0_i32_1 = arith.constant 0 : i32
    return %arg0, %c0_i32, %c0_i32_0 : i32, i32, i32
  }
  func.func @transform_1(%arg0: i32) -> (i32, i32, i32) {
    %c0_i32 = arith.constant 0 : i32
    %c0_i32_0 = arith.constant 0 : i32
    %c0_i32_1 = arith.constant 0 : i32
    %c0_i32_2 = arith.constant 0 : i32
    return %c0_i32, %c0_i32_0, %c0_i32_1 : i32, i32, i32
  }
  func.func @transform_2(%arg0: i32) -> (i32, i32) {
    %c0_i32 = arith.constant 0 : i32
    %c0_i32_0 = arith.constant 0 : i32
    %c0_i32_1 = arith.constant 0 : i32
    return %c0_i32, %c0_i32_0 : i32, i32
  }
  func.func @transform_3(%arg0: i32) -> (i32, i32, i32) {
    %c0_i32 = arith.constant 0 : i32
    %c0_i32_0 = arith.constant 0 : i32
    %c0_i32_1 = arith.constant 0 : i32
    %c0_i32_2 = arith.constant 0 : i32
    return %c0_i32, %c0_i32_0, %c0_i32_1 : i32, i32, i32
  }
  func.func @transform_4(%arg0: i32) -> (i32, i32, i32) {
    %c0_i32 = arith.constant 0 : i32
    %c0_i32_0 = arith.constant 0 : i32
    %c0_i32_1 = arith.constant 0 : i32
    %c0_i32_2 = arith.constant 0 : i32
    return %c0_i32, %c0_i32_0, %c0_i32_1 : i32, i32, i32
  }
  func.func @transform_5(%arg0: i32) -> (i32, i32) {
    %c0_i32 = arith.constant 0 : i32
    %c0_i32_0 = arith.constant 0 : i32
    %c0_i32_1 = arith.constant 0 : i32
    return %c0_i32, %c0_i32_0 : i32, i32
  }
  func.func @transform_6(%arg0: i32) -> (i32, i32, i32) {
    %c0_i32 = arith.constant 0 : i32
    %c0_i32_0 = arith.constant 0 : i32
    %c0_i32_1 = arith.constant 0 : i32
    %c0_i32_2 = arith.constant 0 : i32
    return %c0_i32, %c0_i32_0, %c0_i32_1 : i32, i32, i32
  }
  func.func @transform_7(%arg0: i32) -> (i32, i32, i32) {
    %c0_i32 = arith.constant 0 : i32
    %c0_i32_0 = arith.constant 0 : i32
    %c0_i32_1 = arith.constant 0 : i32
    %c0_i32_2 = arith.constant 0 : i32
    return %c0_i32, %c0_i32_0, %c0_i32_1 : i32, i32, i32
  }
  func.func @transform_8(%arg0: i32) -> (i32, i32) {
    %c0_i32 = arith.constant 0 : i32
    %c0_i32_0 = arith.constant 0 : i32
    %c0_i32_1 = arith.constant 0 : i32
    return %c0_i32, %c0_i32_0 : i32, i32
  }
  func.func @transform_9(%arg0: i32) -> (i32, i32, i32) {
    %c0_i32 = arith.constant 0 : i32
    %c0_i32_0 = arith.constant 0 : i32
    %c0_i32_1 = arith.constant 0 : i32
    %c0_i32_2 = arith.constant 0 : i32
    return %c0_i32, %c0_i32_0, %c0_i32_1 : i32, i32, i32
  }
  func.func @transform_10(%arg0: i32) -> (i32, i32, i32) {
    %c0_i32 = arith.constant 0 : i32
    %c0_i32_0 = arith.constant 0 : i32
    %c0_i32_1 = arith.constant 0 : i32
    return %arg0, %c0_i32, %c0_i32_0 : i32, i32, i32
  }
  func.func @transform_11(%arg0: i32) -> (i32, i32, i32) {
    %c0_i32 = arith.constant 0 : i32
    %c0_i32_0 = arith.constant 0 : i32
    %c0_i32_1 = arith.constant 0 : i32
    return %arg0, %c0_i32, %c0_i32_0 : i32, i32, i32
  }
}

</mosaic_0001>

<llo_original>
// kernel: forward.3
$region0: #{forward.3}
  #allocation0 [shape = 'u32[]', space=smem, size = 0x4, offset = 0x4, fixed_abs, tag = 'smem constant byte address 0x4 - core index']
  #allocation1 [shape = 'u32[72,128]{1,0:T(1,128)}', space=vmem, size = 0x9000, scoped, tag = 'internal scratch']
  %s0 = inlined_call_operand.vmem [shape: f32[2,8,256], index: 0, kind: input, shape index: {}]
  %s1 = inlined_call_operand.vmem [shape: bf16[9,16,8], index: 1, kind: input, shape index: {}]
  %s2 = inlined_call_operand.vmem [shape: f32[16,1], index: 2, kind: input, shape index: {}]
  %s3 = inlined_call_operand.hbm [shape: bf16[9,256,64], index: 3, kind: input, shape index: {}]
  %s4 = inlined_call_operand.vmem [shape: bf16[9,16,16], index: 4, kind: input, shape index: {}]
  %s5 = inlined_call_operand.vmem [shape: f32[16,1], index: 5, kind: input, shape index: {}]
  %s6 = inlined_call_operand.hbm [shape: bf16[9,64,64], index: 6, kind: input, shape index: {}]
  %s7 = inlined_call_operand.vmem [shape: bf16[4,8,16], index: 7, kind: input, shape index: {}]
  %s8 = inlined_call_operand.vmem [shape: f32[8,1], index: 8, kind: input, shape index: {}]
  %s9 = inlined_call_operand.hbm [shape: bf16[4,64,256], index: 9, kind: input, shape index: {}]
  %s10 = inlined_call_operand.vmem [shape: f32[2,16,64], index: 10, kind: output, shape index: {0}]
  %s11 = inlined_call_operand.vmem [shape: f32[2,8,256], index: 11, kind: output, shape index: {1}]
  %12 = xla_tuple %s10, %s11
  %s13 = sld [smem:[#allocation0]]
  $region93: #{forward.3} parent=0
    _
  %s15 = ssub.s32 1, %s13
  %s16 = scalar_select 0, %s15, %s13
  $region1: #{forward.3} parent=0
    #allocation2 [shape = 'u8[589824]{0}', space=vmem, size = 0x90000, scoped, tag = 'input window, operand 3, single buffered']
    #allocation3 [shape = 's32[2]{0}', space=sflag, size = 0x8, scoped, tag = 'scoped memory for forward.3']
    #allocation4 [shape = 'u8[147456]{0}', space=vmem, size = 0x24000, scoped, tag = 'input window, operand 6, single buffered']
    #allocation5 [shape = 's32[1]{0}', space=sflag, size = 0x4, scoped, tag = 'scoped memory for forward.3']
    #allocation6 [shape = 'u8[131072]{0}', space=vmem, size = 0x20000, scoped, tag = 'input window, operand 9, single buffered']
    %17 = vsyncpa [#allocation3], 0
    %18 = vsyncpa [#allocation5], 0
    loop: start=0, step=1, limit=4
    $region2: #{forward.3} parent=1 // loop_pre_header
      _
    $region3: #{forward.3} parent=1 // loop_header
      %s20 = sphi 0, %s24
      %p21 = scmp.ge.s32.totalorder %s20, 4
      %s30 = sphi 0, %s32
      %s33 = sphi 0, %s30
      %s34 = sphi 0, %s33
      %s50 = sphi 0, %s34
      %s54 = sphi 0, %s54
      %s56 = sphi 0, %s54
      %s57 = sphi 0, %s56
      %s71 = sphi 0, %s57
      %s75 = sphi 0, %s75
      %s77 = sphi 0, %s75
      %s78 = sphi 0, %s77
      %s92 = sphi 0, %s78
      %s96 = sphi 0, %s96
      %s98 = sphi 0, %s96
      %s99 = sphi 0, %s98
      %s113 = sphi 0, %s99
      %s117 = sphi 0, %s117
      %s119 = sphi 0, %s117
      %s120 = sphi 0, %s119
      %s134 = sphi 0, %s120
      %s138 = sphi 0, %s138
      %s140 = sphi 0, %s138
      %s141 = sphi 0, %s140
      %s155 = sphi 0, %s141
      %s159 = sphi 0, %s159
      %s161 = sphi 0, %s159
      %s162 = sphi 0, %s161
      %s176 = sphi 0, %s162
      %s180 = sphi 0, %s180
      %s182 = sphi 0, %s180
      %s183 = sphi 0, %s182
      %s197 = sphi 0, %s183
      %s201 = sphi 0, %s201
      %s203 = sphi 0, %s201
      %s204 = sphi 0, %s203
      %s218 = sphi 0, %s204
      %s222 = sphi 0, %s222
      %s224 = sphi 0, %s222
      %s225 = sphi 0, %s224
      %s239 = sphi 0, %s225
      %s245 = sphi 0, %s247
      %s248 = sphi 0, %s245
      %s249 = sphi 0, %s248
      %s265 = sphi 0, %s249
      %s271 = sphi 0, %s273
      %s274 = sphi 0, %s271
      %s275 = sphi 0, %s274
      %s291 = sphi 0, %s275
    $region4: #{forward.3} parent=1 // loop_header_branch
      %23 = sbr.rel (%p21) target = $region8
    $region5: #{forward.3} parent=1 // loop_body
      %s25 = ssub.s32 %s20, 1
      %s26 = ssub.s32 %s20, 2
      %s27 = sadd.s32 %s20, 1
      %s28 = ssub.s32 %s20, %s27
      %p29 = scmp.eq.s32.totalorder %s28, 0
      %s31 = sadd.s32 %s30, 1
      %s32 = scalar_select %p29, %s30, %s31
      %p35 = pneg %p29
      %p36 = scmp.eq.s32.totalorder %s20, 1
      %p37 = por %p35, %p36
      %p38 = scmp.ne.s32.totalorder %s30, %s33
      %p39 = scmp.eq.s32.totalorder %s20, 0
      %p40 = por %p38, %p39
      %p41 = scmp.ne.s32.totalorder %s30, %s33
      %p42 = scmp.eq.s32.totalorder %s25, 1
      %p43 = por %p41, %p42
      %p44 = scmp.ne.s32.totalorder %s33, %s34
      %p45 = scmp.eq.s32.totalorder %s25, 0
      %p46 = por %p44, %p45
      %p47 = scmp.ne.s32.totalorder %s33, %s34
      %p48 = scmp.eq.s32.totalorder %s26, 1
      %p49 = por %p47, %p48
      %p51 = scmp.ne.s32.totalorder %s34, %s50
      %p52 = scmp.eq.s32.totalorder %s26, 0
      %p53 = por %p51, %p52
      %s55 = sadd.s32 %s54, 1
      %p58 = scmp.eq.s32.totalorder %s20, 1
      %p59 = scmp.ne.s32.totalorder %s54, %s56
      %p60 = scmp.eq.s32.totalorder %s20, 0
      %p61 = por %p59, %p60
      %p62 = scmp.ne.s32.totalorder %s54, %s56
      %p63 = scmp.eq.s32.totalorder %s25, 1
      %p64 = por %p62, %p63
      %p65 = scmp.ne.s32.totalorder %s56, %s57
      %p66 = scmp.eq.s32.totalorder %s25, 0
      %p67 = por %p65, %p66
      %p68 = scmp.ne.s32.totalorder %s56, %s57
      %p69 = scmp.eq.s32.totalorder %s26, 1
      %p70 = por %p68, %p69
      %p72 = scmp.ne.s32.totalorder %s57, %s71
      %p73 = scmp.eq.s32.totalorder %s26, 0
      %p74 = por %p72, %p73
      %s76 = sadd.s32 %s75, 1
      %p79 = scmp.eq.s32.totalorder %s20, 1
      %p80 = scmp.ne.s32.totalorder %s75, %s77
      %p81 = scmp.eq.s32.totalorder %s20, 0
      %p82 = por %p80, %p81
      %p83 = scmp.ne.s32.totalorder %s75, %s77
      %p84 = scmp.eq.s32.totalorder %s25, 1
      %p85 = por %p83, %p84
      %p86 = scmp.ne.s32.totalorder %s77, %s78
      %p87 = scmp.eq.s32.totalorder %s25, 0
      %p88 = por %p86, %p87
      %p89 = scmp.ne.s32.totalorder %s77, %s78
      %p90 = scmp.eq.s32.totalorder %s26, 1
      %p91 = por %p89, %p90
      %p93 = scmp.ne.s32.totalorder %s78, %s92
      %p94 = scmp.eq.s32.totalorder %s26, 0
      %p95 = por %p93, %p94
      %s97 = sadd.s32 %s96, 1
      %p100 = scmp.eq.s32.totalorder %s20, 1
      %p101 = scmp.ne.s32.totalorder %s96, %s98
      %p102 = scmp.eq.s32.totalorder %s20, 0
      %p103 = por %p101, %p102
      %p104 = scmp.ne.s32.totalorder %s96, %s98
      %p105 = scmp.eq.s32.totalorder %s25, 1
      %p106 = por %p104, %p105
      %p107 = scmp.ne.s32.totalorder %s98, %s99
      %p108 = scmp.eq.s32.totalorder %s25, 0
      %p109 = por %p107, %p108
      %p110 = scmp.ne.s32.totalorder %s98, %s99
      %p111 = scmp.eq.s32.totalorder %s26, 1
      %p112 = por %p110, %p111
      %p114 = scmp.ne.s32.totalorder %s99, %s113
      %p115 = scmp.eq.s32.totalorder %s26, 0
      %p116 = por %p114, %p115
      %s118 = sadd.s32 %s117, 1
      %p121 = scmp.eq.s32.totalorder %s20, 1
      %p122 = scmp.ne.s32.totalorder %s117, %s119
      %p123 = scmp.eq.s32.totalorder %s20, 0
      %p124 = por %p122, %p123
      %p125 = scmp.ne.s32.totalorder %s117, %s119
      %p126 = scmp.eq.s32.totalorder %s25, 1
      %p127 = por %p125, %p126
      %p128 = scmp.ne.s32.totalorder %s119, %s120
      %p129 = scmp.eq.s32.totalorder %s25, 0
      %p130 = por %p128, %p129
      %p131 = scmp.ne.s32.totalorder %s119, %s120
      %p132 = scmp.eq.s32.totalorder %s26, 1
      %p133 = por %p131, %p132
      %p135 = scmp.ne.s32.totalorder %s120, %s134
      %p136 = scmp.eq.s32.totalorder %s26, 0
      %p137 = por %p135, %p136
      %s139 = sadd.s32 %s138, 1
      %p142 = scmp.eq.s32.totalorder %s20, 1
      %p143 = scmp.ne.s32.totalorder %s138, %s140
      %p144 = scmp.eq.s32.totalorder %s20, 0
      %p145 = por %p143, %p144
      %p146 = scmp.ne.s32.totalorder %s138, %s140
      %p147 = scmp.eq.s32.totalorder %s25, 1
      %p148 = por %p146, %p147
      %p149 = scmp.ne.s32.totalorder %s140, %s141
      %p150 = scmp.eq.s32.totalorder %s25, 0
      %p151 = por %p149, %p150
      %p152 = scmp.ne.s32.totalorder %s140, %s141
      %p153 = scmp.eq.s32.totalorder %s26, 1
      %p154 = por %p152, %p153
      %p156 = scmp.ne.s32.totalorder %s141, %s155
      %p157 = scmp.eq.s32.totalorder %s26, 0
      %p158 = por %p156, %p157
      %s160 = sadd.s32 %s159, 1
      %p163 = scmp.eq.s32.totalorder %s20, 1
      %p164 = scmp.ne.s32.totalorder %s159, %s161
      %p165 = scmp.eq.s32.totalorder %s20, 0
      %p166 = por %p164, %p165
      %p167 = scmp.ne.s32.totalorder %s159, %s161
      %p168 = scmp.eq.s32.totalorder %s25, 1
      %p169 = por %p167, %p168
      %p170 = scmp.ne.s32.totalorder %s161, %s162
      %p171 = scmp.eq.s32.totalorder %s25, 0
      %p172 = por %p170, %p171
      %p173 = scmp.ne.s32.totalorder %s161, %s162
      %p174 = scmp.eq.s32.totalorder %s26, 1
      %p175 = por %p173, %p174
      %p177 = scmp.ne.s32.totalorder %s162, %s176
      %p178 = scmp.eq.s32.totalorder %s26, 0
      %p179 = por %p177, %p178
      %s181 = sadd.s32 %s180, 1
      %p184 = scmp.eq.s32.totalorder %s20, 1
      %p185 = scmp.ne.s32.totalorder %s180, %s182
      %p186 = scmp.eq.s32.totalorder %s20, 0
      %p187 = por %p185, %p186
      %p188 = scmp.ne.s32.totalorder %s180, %s182
      %p189 = scmp.eq.s32.totalorder %s25, 1
      %p190 = por %p188, %p189
      %p191 = scmp.ne.s32.totalorder %s182, %s183
      %p192 = scmp.eq.s32.totalorder %s25, 0
      %p193 = por %p191, %p192
      %p194 = scmp.ne.s32.totalorder %s182, %s183
      %p195 = scmp.eq.s32.totalorder %s26, 1
      %p196 = por %p194, %p195
      %p198 = scmp.ne.s32.totalorder %s183, %s197
      %p199 = scmp.eq.s32.totalorder %s26, 0
      %p200 = por %p198, %p199
      %s202 = sadd.s32 %s201, 1
      %p205 = scmp.eq.s32.totalorder %s20, 1
      %p206 = scmp.ne.s32.totalorder %s201, %s203
      %p207 = scmp.eq.s32.totalorder %s20, 0
      %p208 = por %p206, %p207
      %p209 = scmp.ne.s32.totalorder %s201, %s203
      %p210 = scmp.eq.s32.totalorder %s25, 1
      %p211 = por %p209, %p210
      %p212 = scmp.ne.s32.totalorder %s203, %s204
      %p213 = scmp.eq.s32.totalorder %s25, 0
      %p214 = por %p212, %p213
      %p215 = scmp.ne.s32.totalorder %s203, %s204
      %p216 = scmp.eq.s32.totalorder %s26, 1
      %p217 = por %p215, %p216
      %p219 = scmp.ne.s32.totalorder %s204, %s218
      %p220 = scmp.eq.s32.totalorder %s26, 0
      %p221 = por %p219, %p220
      %s223 = sadd.s32 %s222, 1
      %p226 = scmp.eq.s32.totalorder %s20, 1
      %p227 = scmp.ne.s32.totalorder %s222, %s224
      %p228 = scmp.eq.s32.totalorder %s20, 0
      %p229 = por %p227, %p228
      %p230 = scmp.ne.s32.totalorder %s222, %s224
      %p231 = scmp.eq.s32.totalorder %s25, 1
      %p232 = por %p230, %p231
      %p233 = scmp.ne.s32.totalorder %s224, %s225
      %p234 = scmp.eq.s32.totalorder %s25, 0
      %p235 = por %p233, %p234
      %p236 = scmp.ne.s32.totalorder %s224, %s225
      %p237 = scmp.eq.s32.totalorder %s26, 1
      %p238 = por %p236, %p237
      %p240 = scmp.ne.s32.totalorder %s225, %s239
      %p241 = scmp.eq.s32.totalorder %s26, 0
      %p242 = por %p240, %p241
      %s243 = ssub.s32 %s20, %s27
      %p244 = scmp.eq.s32.totalorder %s243, 0
      %s246 = sadd.s32 %s245, 1
      %s247 = scalar_select %p244, %s245, %s246
      %p250 = pneg %p244
      %p251 = scmp.eq.s32.totalorder %s20, 1
      %p252 = por %p250, %p251
      %p253 = scmp.ne.s32.totalorder %s245, %s248
      %p254 = scmp.eq.s32.totalorder %s20, 0
      %p255 = por %p253, %p254
      %p256 = scmp.ne.s32.totalorder %s245, %s248
      %p257 = scmp.eq.s32.totalorder %s25, 1
      %p258 = por %p256, %p257
      %p259 = scmp.ne.s32.totalorder %s248, %s249
      %p260 = scmp.eq.s32.totalorder %s25, 0
      %p261 = por %p259, %p260
      %p262 = scmp.ne.s32.totalorder %s248, %s249
      %p263 = scmp.eq.s32.totalorder %s26, 1
      %p264 = por %p262, %p263
      %p266 = scmp.ne.s32.totalorder %s249, %s265
      %p267 = scmp.eq.s32.totalorder %s26, 0
      %p268 = por %p266, %p267
      %s269 = ssub.s32 %s20, %s27
      %p270 = scmp.eq.s32.totalorder %s269, 0
      %s272 = sadd.s32 %s271, 1
      %s273 = scalar_select %p270, %s271, %s272
      %p276 = pneg %p270
      %p277 = scmp.eq.s32.totalorder %s20, 1
      %p278 = por %p276, %p277
      %p279 = scmp.ne.s32.totalorder %s271, %s274
      %p280 = scmp.eq.s32.totalorder %s20, 0
      %p281 = por %p279, %p280
      %p282 = scmp.ne.s32.totalorder %s271, %s274
      %p283 = scmp.eq.s32.totalorder %s25, 1
      %p284 = por %p282, %p283
      %p285 = scmp.ne.s32.totalorder %s274, %s275
      %p286 = scmp.eq.s32.totalorder %s25, 0
      %p287 = por %p285, %p286
      %p288 = scmp.ne.s32.totalorder %s274, %s275
      %p289 = scmp.eq.s32.totalorder %s26, 1
      %p290 = por %p288, %p289
      %p292 = scmp.ne.s32.totalorder %s275, %s291
      %p293 = scmp.eq.s32.totalorder %s26, 0
      %p294 = por %p292, %p293
      %p295 = scmp.le.s32.totalorder 1, %s20
      %p296 = scmp.lt.s32.totalorder %s20, 3
      %p297 = pnand %p295, %p296
      %p298 = pneg %p297
      // Predicated region
      $region9: #{forward.3} parent=5 // pred_check
        _
      $region10: #{forward.3} parent=5 // pred_check_branch
        %300 = sbr.rel (%p297) target = $region12
      $region11: #{forward.3} parent=5 // pred_region
        %s301 = ssub.s32 %s20, 1
        // Predicated region
        $region13: #{forward.3} parent=11 // pred_check
          %p302 = pneg %p67
        $region14: #{forward.3} parent=11 // pred_check_branch
          %304 = sbr.rel (%p302) target = $region16
        $region15: #{forward.3} parent=11 // pred_region
          _
        $region16: #{forward.3} parent=11 // pred_fallthru
          _
        // Predicated region
        $region17: #{forward.3} parent=11 // pred_check
          %p305 = pneg %p88
        $region18: #{forward.3} parent=11 // pred_check_branch
          %307 = sbr.rel (%p305) target = $region20
        $region19: #{forward.3} parent=11 // pred_region
          _
        $region20: #{forward.3} parent=11 // pred_fallthru
          _
        // Predicated region
        $region21: #{forward.3} parent=11 // pred_check
          %p308 = pneg %p109
        $region22: #{forward.3} parent=11 // pred_check_branch
          %310 = sbr.rel (%p308) target = $region24
        $region23: #{forward.3} parent=11 // pred_region
          %312 = vsyncadd [#allocation3], 0
          %s313 = sshll.u32 %s3, 4
          %s314 = int_to_ptr.hbm [resolvable:$true] %s313
          %s315 = sshll.u32 [#allocation2], 4
          %s316 = int_to_ptr.vmem [resolvable:$true] %s315
          %321 = dma.hbm_to_vmem [thread:$0]  %s314, 18432, %s316, [#allocation3], 64, 64, 4
        $region24: #{forward.3} parent=11 // pred_fallthru
          _
        // Predicated region
        $region25: #{forward.3} parent=11 // pred_check
          %p322 = pneg %p130
        $region26: #{forward.3} parent=11 // pred_check_branch
          %324 = sbr.rel (%p322) target = $region28
        $region27: #{forward.3} parent=11 // pred_region
          _
        $region28: #{forward.3} parent=11 // pred_fallthru
          _
        // Predicated region
        $region29: #{forward.3} parent=11 // pred_check
          %p325 = pneg %p151
        $region30: #{forward.3} parent=11 // pred_check_branch
          %327 = sbr.rel (%p325) target = $region32
        $region31: #{forward.3} parent=11 // pred_region
          _
        $region32: #{forward.3} parent=11 // pred_fallthru
          _
        // Predicated region
        $region33: #{forward.3} parent=11 // pred_check
          %p328 = pneg %p172
        $region34: #{forward.3} parent=11 // pred_check_branch
          %330 = sbr.rel (%p328) target = $region36
        $region35: #{forward.3} parent=11 // pred_region
          %332 = vsyncadd [#allocation5], 0
          %s333 = sshll.u32 %s6, 4
          %s334 = int_to_ptr.hbm [resolvable:$true] %s333
          %s335 = sshll.u32 [#allocation4], 4
          %s336 = int_to_ptr.vmem [resolvable:$true] %s335
          %341 = dma.hbm_to_vmem [thread:$0]  %s334, 4608, %s336, [#allocation5], 64, 64, 4
        $region36: #{forward.3} parent=11 // pred_fallthru
          _
        // Predicated region
        $region37: #{forward.3} parent=11 // pred_check
          %p342 = pneg %p193
        $region38: #{forward.3} parent=11 // pred_check_branch
          %344 = sbr.rel (%p342) target = $region40
        $region39: #{forward.3} parent=11 // pred_region
          _
        $region40: #{forward.3} parent=11 // pred_fallthru
          _
        // Predicated region
        $region41: #{forward.3} parent=11 // pred_check
          %p345 = pneg %p214
        $region42: #{forward.3} parent=11 // pred_check_branch
          %347 = sbr.rel (%p345) target = $region44
        $region43: #{forward.3} parent=11 // pred_region
          _
        $region44: #{forward.3} parent=11 // pred_fallthru
          _
        // Predicated region
        $region45: #{forward.3} parent=11 // pred_check
          %p348 = pneg %p235
        $region46: #{forward.3} parent=11 // pred_check_branch
          %350 = sbr.rel (%p348) target = $region48
        $region47: #{forward.3} parent=11 // pred_region
          %352 = vsyncadd [#allocation5], 0
          %s353 = sshll.u32 %s9, 4
          %s354 = int_to_ptr.hbm [resolvable:$true] %s353
          %s355 = sshll.u32 [#allocation6], 4
          %s356 = int_to_ptr.vmem [resolvable:$true] %s355
          %361 = dma.hbm_to_vmem [thread:$0]  %s354, 4096, %s356, [#allocation5], 128, 128, 8
        $region48: #{forward.3} parent=11 // pred_fallthru
          _
      $region12: #{forward.3} parent=5 // pred_fallthru
        _
      %p362 = scmp.lt.s32.totalorder %s20, 2
      // Predicated region
      $region49: #{forward.3} parent=5 // pred_check
        %p363 = pneg %p362
      $region50: #{forward.3} parent=5 // pred_check_branch
        %365 = sbr.rel (%p363) target = $region52
      $region51: #{forward.3} parent=5 // pred_region
        // Predicated region
        $region53: #{forward.3} parent=51 // pred_check
          %p366 = pneg %p40
        $region54: #{forward.3} parent=51 // pred_check_branch
          %368 = sbr.rel (%p366) target = $region56
        $region55: #{forward.3} parent=51 // pred_region
          %p369 = scmp.lt.s32.totalorder %s20, 1
          %s370 = scalar_select %p369, %s20, 1
          %s371 = smul.addr %s370, 2
          %s372 = smul.addr %s371, 8
          %s373 = scalar_lea.vmem %s0, %s372
        $region56: #{forward.3} parent=51 // pred_fallthru
          _
      $region52: #{forward.3} parent=5 // pred_fallthru
        _
      %p374 = scmp.le.s32.totalorder 1, %s20
      %p375 = scmp.lt.s32.totalorder %s20, 3
      %p376 = pnand %p374, %p375
      %p377 = pneg %p376
      // Predicated region
      $region57: #{forward.3} parent=5 // pred_check
        _
      $region58: #{forward.3} parent=5 // pred_check_branch
        %379 = sbr.rel (%p376) target = $region60
      $region59: #{forward.3} parent=5 // pred_region
        %s380 = ssub.s32 %s20, 1
        // Predicated region
        $region61: #{forward.3} parent=59 // pred_check
          %p381 = pneg %p109
        $region62: #{forward.3} parent=59 // pred_check_branch
          %383 = sbr.rel (%p381) target = $region64
        $region63: #{forward.3} parent=59 // pred_region
          %385 = dma.done [#allocation3], 18432
        $region64: #{forward.3} parent=59 // pred_fallthru
          _
        // Predicated region
        $region65: #{forward.3} parent=59 // pred_check
          %p386 = pneg %p172
        $region66: #{forward.3} parent=59 // pred_check_branch
          %388 = sbr.rel (%p386) target = $region68
        $region67: #{forward.3} parent=59 // pred_region
          %390 = dma.done [#allocation5], 4608
        $region68: #{forward.3} parent=59 // pred_fallthru
          _
        // Predicated region
        $region69: #{forward.3} parent=59 // pred_check
          %p391 = pneg %p235
        $region70: #{forward.3} parent=59 // pred_check_branch
          %393 = sbr.rel (%p391) target = $region72
        $region71: #{forward.3} parent=59 // pred_region
          %395 = dma.done [#allocation5], 4096
        $region72: #{forward.3} parent=59 // pred_fallthru
          _
        %p396 = scmp.lt.s32.totalorder %s25, 1
        %s397 = scalar_select %p396, %s25, 1
        %s398 = smul.addr %s397, 2
        %s399 = smul.addr %s398, 8
        %s400 = scalar_lea.vmem %s0, %s399
        %p401 = pneg %p46
        %p402 = pneg %p43
        %p403 = pneg %p67
        %p404 = pneg %p64
        %p405 = pneg %p88
        %p406 = pneg %p85
        %p407 = pneg %p109
        %p408 = pneg %p106
        %p409 = pneg %p130
        %p410 = pneg %p127
        %p411 = pneg %p151
        %p412 = pneg %p148
        %p413 = pneg %p172
        %p414 = pneg %p169
        %p415 = pneg %p193
        %p416 = pneg %p190
        %p417 = pneg %p214
        %p418 = pneg %p211
        %p419 = pneg %p235
        %p420 = pneg %p232
        %p421 = pneg %p261
        %p422 = pneg %p258
        %p423 = scmp.lt.s32.totalorder %s25, 1
        %s424 = scalar_select %p423, %s25, 1
        %s425 = smul.addr %s424, 2
        %s426 = smul.addr %s425, 8
        %s427 = scalar_lea.vmem %s10, %s426
        %p428 = pneg %p287
        %p429 = pneg %p284
        %p430 = scmp.lt.s32.totalorder %s25, 1
        %s431 = scalar_select %p430, %s25, 1
        %s432 = smul.addr %s431, 2
        %s433 = smul.addr %s432, 8
        %s434 = scalar_lea.vmem %s11, %s433
        %p435 = scmp.lt.s32.totalorder %s25, 1
        %s436 = scalar_select %p435, %s25, 1
        %s437 = smul.addr %s436, 2
        %s438 = smul.addr %s437, 8
        %s439 = scalar_lea.vmem %s0, %s438
        %p440 = scmp.lt.s32.totalorder %s25, 1
        %s441 = scalar_select %p440, %s25, 1
        %s442 = smul.addr %s441, 2
        %s443 = smul.addr %s442, 8
        %s444 = scalar_lea.vmem %s10, %s443
        %p445 = scmp.lt.s32.totalorder %s25, 1
        %s446 = scalar_select %p445, %s25, 1
        %s447 = smul.addr %s446, 2
        %s448 = smul.addr %s447, 8
        %s449 = scalar_lea.vmem %s11, %s448
        %v451 = vld [vmem:[%s439] sm:$0xff]
        %v452 = vld [vmem:[%s439 + $0x8] sm:$0xff]
        %v453 = vpack.c.bf16 %v451, %v451
        %v454 = vpack.c.bf16 %v452, %v452
        %v455 = vld [vmem:[#allocation2] sm:$0xf]
        %v456 = vld [vmem:[#allocation2 + $0x4] sm:$0xf]
        %v457 = vld [vmem:[#allocation2 + $0x8] sm:$0xf]
        %v458 = vld [vmem:[#allocation2 + $0xc] sm:$0xf]
        %v459 = vld [vmem:[#allocation2 + $0x10] sm:$0xf]
        %v460 = vld [vmem:[#allocation2 + $0x14] sm:$0xf]
        %v461 = vld [vmem:[#allocation2 + $0x18] sm:$0xf]
        %v462 = vld [vmem:[#allocation2 + $0x1c] sm:$0xf]
        %v463 = vld [vmem:[#allocation2 + $0x20] sm:$0xf]
        %v464 = vld [vmem:[#allocation2 + $0x24] sm:$0xf]
        %v465 = vld [vmem:[#allocation2 + $0x28] sm:$0xf]
        %v466 = vld [vmem:[#allocation2 + $0x2c] sm:$0xf]
        %v467 = vld [vmem:[#allocation2 + $0x30] sm:$0xf]
        %v468 = vld [vmem:[#allocation2 + $0x34] sm:$0xf]
        %v469 = vld [vmem:[#allocation2 + $0x38] sm:$0xf]
        %v470 = vld [vmem:[#allocation2 + $0x3c] sm:$0xf]
        %v471 = vld [vmem:[#allocation2 + $0x40] sm:$0xf]
        %v472 = vld [vmem:[#allocation2 + $0x44] sm:$0xf]
        %v473 = vld [vmem:[#allocation2 + $0x48] sm:$0xf]
        %v474 = vld [vmem:[#allocation2 + $0x4c] sm:$0xf]
        %v475 = vld [vmem:[#allocation2 + $0x50] sm:$0xf]
        %v476 = vld [vmem:[#allocation2 + $0x54] sm:$0xf]
        %v477 = vld [vmem:[#allocation2 + $0x58] sm:$0xf]
        %v478 = vld [vmem:[#allocation2 + $0x5c] sm:$0xf]
        %v479 = vld [vmem:[#allocation2 + $0x60] sm:$0xf]
        %v480 = vld [vmem:[#allocation2 + $0x64] sm:$0xf]
        %v481 = vld [vmem:[#allocation2 + $0x68] sm:$0xf]
        %v482 = vld [vmem:[#allocation2 + $0x6c] sm:$0xf]
        %v483 = vld [vmem:[#allocation2 + $0x70] sm:$0xf]
        %v484 = vld [vmem:[#allocation2 + $0x74] sm:$0xf]
        %v485 = vld [vmem:[#allocation2 + $0x78] sm:$0xf]
        %v486 = vld [vmem:[#allocation2 + $0x7c] sm:$0xf]
        %v519 = vunpack.c.l.b16 %v455
        %v520 = vunpack.c.l.b16 %v456
        %v521 = vunpack.c.l.b16 %v457
        %v522 = vunpack.c.l.b16 %v458
        %v523 = vunpack.c.l.b16 %v459
        %v524 = vunpack.c.l.b16 %v460
        %v525 = vunpack.c.l.b16 %v461
        %v526 = vunpack.c.l.b16 %v462
        %v527 = vunpack.c.l.b16 %v463
        %v528 = vunpack.c.l.b16 %v464
        %v529 = vunpack.c.l.b16 %v465
        %v530 = vunpack.c.l.b16 %v466
        %v531 = vunpack.c.l.b16 %v467
        %v532 = vunpack.c.l.b16 %v468
        %v533 = vunpack.c.l.b16 %v469
        %v534 = vunpack.c.l.b16 %v470
        %v535 = vunpack.c.l.b16 %v471
        %v536 = vunpack.c.l.b16 %v472
        %v537 = vunpack.c.l.b16 %v473
        %v538 = vunpack.c.l.b16 %v474
        %v539 = vunpack.c.l.b16 %v475
        %v540 = vunpack.c.l.b16 %v476
        %v541 = vunpack.c.l.b16 %v477
        %v542 = vunpack.c.l.b16 %v478
        %v543 = vunpack.c.l.b16 %v479
        %v544 = vunpack.c.l.b16 %v480
        %v545 = vunpack.c.l.b16 %v481
        %v546 = vunpack.c.l.b16 %v482
        %v547 = vunpack.c.l.b16 %v483
        %v548 = vunpack.c.l.b16 %v484
        %v549 = vunpack.c.l.b16 %v485
        %v550 = vunpack.c.l.b16 %v486
        %v551 = vpack.c.b16 %v520, %v519
        %v552 = vpack.c.b16 %v522, %v521
        %v553 = vpack.c.b16 %v524, %v523
        %v554 = vpack.c.b16 %v526, %v525
        %v555 = vpack.c.b16 %v528, %v527
        %v556 = vpack.c.b16 %v530, %v529
        %v557 = vpack.c.b16 %v532, %v531
        %v558 = vpack.c.b16 %v534, %v533
        %v559 = vpack.c.b16 %v536, %v535
        %v560 = vpack.c.b16 %v538, %v537
        %v561 = vpack.c.b16 %v540, %v539
        %v562 = vpack.c.b16 %v542, %v541
        %v563 = vpack.c.b16 %v544, %v543
        %v564 = vpack.c.b16 %v546, %v545
        %v565 = vpack.c.b16 %v548, %v547
        %v566 = vpack.c.b16 %v550, %v549
        %583 = vmatpush.bf16.msra.mxu0 %v558
        %584 = vmatpush.bf16.msra.mxu0 %v557
        %585 = vmatpush.bf16.msra.mxu0 %v556
        %586 = vmatpush.bf16.msra.mxu0 %v555
        %587 = vmatpush.bf16.msra.mxu0 %v554
        %588 = vmatpush.bf16.msra.mxu0 %v553
        %589 = vmatpush.bf16.msra.mxu0 %v552
        %590 = vmatpush.bf16.msra.mxu0 %v551
        %591 = vmatmul.bf16.gmra.mxu0 %v453
        %v592 = vpop.f32.mrf.mxu0
        %v593 = vadd.f32 0.0, %v592
        %v594 = vpop.f32.mrf.mxu0
        %595 = vdwg.mxu0
        %596 = vmatpush.bf16.msra.mxu0 %v566
        %597 = vmatpush.bf16.msra.mxu0 %v565
        %598 = vmatpush.bf16.msra.mxu0 %v564
        %599 = vmatpush.bf16.msra.mxu0 %v563
        %600 = vmatpush.bf16.msra.mxu0 %v562
        %601 = vmatpush.bf16.msra.mxu0 %v561
        %602 = vmatpush.bf16.msra.mxu0 %v560
        %603 = vmatpush.bf16.msra.mxu0 %v559
        %604 = vmatmul.bf16.gmra.mxu0 %v454
        %v605 = vpop.f32.mrf.mxu0
        %v606 = vadd.f32 %v593, %v605
        %v607 = vpop.f32.mrf.mxu0
        %608 = vdwg.mxu0
        %v609 = vpack.c.bf16 %v606, %v606
        %v610 = vld [vmem:[%s1] sm:$0xf]
        %v611 = vld [vmem:[%s1 + $0x4] sm:$0xf]
        %s612 = scalar_lea.vmem [#allocation2], 128
        %v613 = vld [vmem:[%s612] sm:$0xf]
        %v614 = vld [vmem:[%s612 + $0x4] sm:$0xf]
        %v615 = vld [vmem:[%s612 + $0x8] sm:$0xf]
        %v616 = vld [vmem:[%s612 + $0xc] sm:$0xf]
        %v617 = vld [vmem:[%s612 + $0x10] sm:$0xf]
        %v618 = vld [vmem:[%s612 + $0x14] sm:$0xf]
        %v619 = vld [vmem:[%s612 + $0x18] sm:$0xf]
        %v620 = vld [vmem:[%s612 + $0x1c] sm:$0xf]
        %v621 = vld [vmem:[%s612 + $0x20] sm:$0xf]
        %v622 = vld [vmem:[%s612 + $0x24] sm:$0xf]
        %v623 = vld [vmem:[%s612 + $0x28] sm:$0xf]
        %v624 = vld [vmem:[%s612 + $0x2c] sm:$0xf]
        %v625 = vld [vmem:[%s612 + $0x30] sm:$0xf]
        %v626 = vld [vmem:[%s612 + $0x34] sm:$0xf]
        %v627 = vld [vmem:[%s612 + $0x38] sm:$0xf]
        %v628 = vld [vmem:[%s612 + $0x3c] sm:$0xf]
        %v629 = vld [vmem:[%s612 + $0x40] sm:$0xf]
        %v630 = vld [vmem:[%s612 + $0x44] sm:$0xf]
        %v631 = vld [vmem:[%s612 + $0x48] sm:$0xf]
        %v632 = vld [vmem:[%s612 + $0x4c] sm:$0xf]
        %v633 = vld [vmem:[%s612 + $0x50] sm:$0xf]
        %v634 = vld [vmem:[%s612 + $0x54] sm:$0xf]
        %v635 = vld [vmem:[%s612 + $0x58] sm:$0xf]
        %v636 = vld [vmem:[%s612 + $0x5c] sm:$0xf]
        %v637 = vld [vmem:[%s612 + $0x60] sm:$0xf]
        %v638 = vld [vmem:[%s612 + $0x64] sm:$0xf]
        %v639 = vld [vmem:[%s612 + $0x68] sm:$0xf]
        %v640 = vld [vmem:[%s612 + $0x6c] sm:$0xf]
        %v641 = vld [vmem:[%s612 + $0x70] sm:$0xf]
        %v642 = vld [vmem:[%s612 + $0x74] sm:$0xf]
        %v643 = vld [vmem:[%s612 + $0x78] sm:$0xf]
        %v644 = vld [vmem:[%s612 + $0x7c] sm:$0xf]
        %v677 = vunpack.c.l.b16 %v613
        %v678 = vunpack.c.l.b16 %v614
        %v679 = vunpack.c.l.b16 %v615
        %v680 = vunpack.c.l.b16 %v616
        %v681 = vunpack.c.l.b16 %v617
        %v682 = vunpack.c.l.b16 %v618
        %v683 = vunpack.c.l.b16 %v619
        %v684 = vunpack.c.l.b16 %v620
        %v685 = vunpack.c.l.b16 %v621
        %v686 = vunpack.c.l.b16 %v622
        %v687 = vunpack.c.l.b16 %v623
        %v688 = vunpack.c.l.b16 %v624
        %v689 = vunpack.c.l.b16 %v625
        %v690 = vunpack.c.l.b16 %v626
        %v691 = vunpack.c.l.b16 %v627
        %v692 = vunpack.c.l.b16 %v628
        %v693 = vunpack.c.l.b16 %v629
        %v694 = vunpack.c.l.b16 %v630
        %v695 = vunpack.c.l.b16 %v631
        %v696 = vunpack.c.l.b16 %v632
        %v697 = vunpack.c.l.b16 %v633
        %v698 = vunpack.c.l.b16 %v634
        %v699 = vunpack.c.l.b16 %v635
        %v700 = vunpack.c.l.b16 %v636
        %v701 = vunpack.c.l.b16 %v637
        %v702 = vunpack.c.l.b16 %v638
        %v703 = vunpack.c.l.b16 %v639
        %v704 = vunpack.c.l.b16 %v640
        %v705 = vunpack.c.l.b16 %v641
        %v706 = vunpack.c.l.b16 %v642
        %v707 = vunpack.c.l.b16 %v643
        %v708 = vunpack.c.l.b16 %v644
        %v709 = vpack.c.b16 %v678, %v677
        %v710 = vpack.c.b16 %v680, %v679
        %v711 = vpack.c.b16 %v682, %v681
        %v712 = vpack.c.b16 %v684, %v683
        %v713 = vpack.c.b16 %v686, %v685
        %v714 = vpack.c.b16 %v688, %v687
        %v715 = vpack.c.b16 %v690, %v689
        %v716 = vpack.c.b16 %v692, %v691
        %v717 = vpack.c.b16 %v694, %v693
        %v718 = vpack.c.b16 %v696, %v695
        %v719 = vpack.c.b16 %v698, %v697
        %v720 = vpack.c.b16 %v700, %v699
        %v721 = vpack.c.b16 %v702, %v701
        %v722 = vpack.c.b16 %v704, %v703
        %v723 = vpack.c.b16 %v706, %v705
        %v724 = vpack.c.b16 %v708, %v707
        %741 = vmatpush.bf16.msra.mxu0 %v716
        %742 = vmatpush.bf16.msra.mxu0 %v715
        %743 = vmatpush.bf16.msra.mxu0 %v714
        %744 = vmatpush.bf16.msra.mxu0 %v713
        %745 = vmatpush.bf16.msra.mxu0 %v712
        %746 = vmatpush.bf16.msra.mxu0 %v711
        %747 = vmatpush.bf16.msra.mxu0 %v710
        %748 = vmatpush.bf16.msra.mxu0 %v709
        %749 = vmatmul.bf16.gmra.mxu0 %v453
        %v750 = vpop.f32.mrf.mxu0
        %v751 = vadd.f32 0.0, %v750
        %v752 = vpop.f32.mrf.mxu0
        %753 = vdwg.mxu0
        %754 = vmatpush.bf16.msra.mxu0 %v724
        %755 = vmatpush.bf16.msra.mxu0 %v723
        %756 = vmatpush.bf16.msra.mxu0 %v722
        %757 = vmatpush.bf16.msra.mxu0 %v721
        %758 = vmatpush.bf16.msra.mxu0 %v720
        %759 = vmatpush.bf16.msra.mxu0 %v719
        %760 = vmatpush.bf16.msra.mxu0 %v718
        %761 = vmatpush.bf16.msra.mxu0 %v717
        %762 = vmatmul.bf16.gmra.mxu0 %v454
        %v763 = vpop.f32.mrf.mxu0
        %v764 = vadd.f32 %v751, %v763
        %v765 = vpop.f32.mrf.mxu0
        %766 = vdwg.mxu0
        %v767 = vpack.c.bf16 %v764, %v764
        %s768 = scalar_lea.vmem %s1, 8
        %v769 = vld [vmem:[%s768] sm:$0xf]
        %v770 = vld [vmem:[%s768 + $0x4] sm:$0xf]
        %v773 = vunpack.c.l.b16 %v769
        %v774 = vunpack.c.l.b16 %v770
        %v775 = vpack.c.b16 %v774, %v773
        %vm776 = vcmask 64512
        %v778 = vsel %vm776, %v775, 0
        %vm780 = vcmask 1043456
        %v782 = vsel %vm780, %v767, 0
        %784 = vmatpush.bf16.msra.mxu0 0
        %785 = vmatpush.bf16.msra.mxu0 0
        %786 = vmatpush.bf16.msra.mxu0 0
        %787 = vmatpush.bf16.msra.mxu0 0
        %788 = vmatpush.bf16.msra.mxu0 0
        %789 = vmatpush.bf16.msra.mxu0 0
        %790 = vmatpush.bf16.msra.mxu0 0
        %791 = vmatpush.bf16.msra.mxu0 %v782
        %792 = vmatmul.bf16.gmra.mxu0 %v778
        %v793 = vpop.f32.mrf.mxu0
        %v794 = vadd.f32 0.0, %v793
        %v795 = vpop.f32.mrf.mxu0
        %v796 = vadd.f32 0.0, %v795
        %797 = vdwg.mxu0
        %v800 = vunpack.c.l.b16 %v610
        %v801 = vunpack.c.l.b16 %v611
        %v802 = vpack.c.b16 %v801, %v800
        %v804 = vsel %vm776, %v802, 0
        %v807 = vsel %vm780, %v609, 0
        %809 = vmatpush.bf16.msra.mxu0 0
        %810 = vmatpush.bf16.msra.mxu0 0
        %811 = vmatpush.bf16.msra.mxu0 0
        %812 = vmatpush.bf16.msra.mxu0 0
        %813 = vmatpush.bf16.msra.mxu0 0
        %814 = vmatpush.bf16.msra.mxu0 0
        %815 = vmatpush.bf16.msra.mxu0 0
        %816 = vmatpush.bf16.msra.mxu0 %v807
        %817 = vmatmul.bf16.gmra.mxu0 %v804
        %v818 = vpop.f32.mrf.mxu0
        %v819 = vadd.f32 %v794, %v818
        %v820 = vpop.f32.mrf.mxu0
        %v821 = vadd.f32 %v796, %v820
        %822 = vdwg.mxu0
        %s823 = scalar_lea.vmem [#allocation2], 256
        %v824 = vld [vmem:[%s823] sm:$0xf]
        %v825 = vld [vmem:[%s823 + $0x4] sm:$0xf]
        %v826 = vld [vmem:[%s823 + $0x8] sm:$0xf]
        %v827 = vld [vmem:[%s823 + $0xc] sm:$0xf]
        %v828 = vld [vmem:[%s823 + $0x10] sm:$0xf]
        %v829 = vld [vmem:[%s823 + $0x14] sm:$0xf]
        %v830 = vld [vmem:[%s823 + $0x18] sm:$0xf]
        %v831 = vld [vmem:[%s823 + $0x1c] sm:$0xf]
        %v832 = vld [vmem:[%s823 + $0x20] sm:$0xf]
        %v833 = vld [vmem:[%s823 + $0x24] sm:$0xf]
        %v834 = vld [vmem:[%s823 + $0x28] sm:$0xf]
        %v835 = vld [vmem:[%s823 + $0x2c] sm:$0xf]
        %v836 = vld [vmem:[%s823 + $0x30] sm:$0xf]
        %v837 = vld [vmem:[%s823 + $0x34] sm:$0xf]
        %v838 = vld [vmem:[%s823 + $0x38] sm:$0xf]
        %v839 = vld [vmem:[%s823 + $0x3c] sm:$0xf]
        %v840 = vld [vmem:[%s823 + $0x40] sm:$0xf]
        %v841 = vld [vmem:[%s823 + $0x44] sm:$0xf]
        %v842 = vld [vmem:[%s823 + $0x48] sm:$0xf]
        %v843 = vld [vmem:[%s823 + $0x4c] sm:$0xf]
        %v844 = vld [vmem:[%s823 + $0x50] sm:$0xf]
        %v845 = vld [vmem:[%s823 + $0x54] sm:$0xf]
        %v846 = vld [vmem:[%s823 + $0x58] sm:$0xf]
        %v847 = vld [vmem:[%s823 + $0x5c] sm:$0xf]
        %v848 = vld [vmem:[%s823 + $0x60] sm:$0xf]
        %v849 = vld [vmem:[%s823 + $0x64] sm:$0xf]
        %v850 = vld [vmem:[%s823 + $0x68] sm:$0xf]
        %v851 = vld [vmem:[%s823 + $0x6c] sm:$0xf]
        %v852 = vld [vmem:[%s823 + $0x70] sm:$0xf]
        %v853 = vld [vmem:[%s823 + $0x74] sm:$0xf]
        %v854 = vld [vmem:[%s823 + $0x78] sm:$0xf]
        %v855 = vld [vmem:[%s823 + $0x7c] sm:$0xf]
        %v888 = vunpack.c.l.b16 %v824
        %v889 = vunpack.c.l.b16 %v825
        %v890 = vunpack.c.l.b16 %v826
        %v891 = vunpack.c.l.b16 %v827
        %v892 = vunpack.c.l.b16 %v828
        %v893 = vunpack.c.l.b16 %v829
        %v894 = vunpack.c.l.b16 %v830
        %v895 = vunpack.c.l.b16 %v831
        %v896 = vunpack.c.l.b16 %v832
        %v897 = vunpack.c.l.b16 %v833
        %v898 = vunpack.c.l.b16 %v834
        %v899 = vunpack.c.l.b16 %v835
        %v900 = vunpack.c.l.b16 %v836
        %v901 = vunpack.c.l.b16 %v837
        %v902 = vunpack.c.l.b16 %v838
        %v903 = vunpack.c.l.b16 %v839
        %v904 = vunpack.c.l.b16 %v840
        %v905 = vunpack.c.l.b16 %v841
        %v906 = vunpack.c.l.b16 %v842
        %v907 = vunpack.c.l.b16 %v843
        %v908 = vunpack.c.l.b16 %v844
        %v909 = vunpack.c.l.b16 %v845
        %v910 = vunpack.c.l.b16 %v846
        %v911 = vunpack.c.l.b16 %v847
        %v912 = vunpack.c.l.b16 %v848
        %v913 = vunpack.c.l.b16 %v849
        %v914 = vunpack.c.l.b16 %v850
        %v915 = vunpack.c.l.b16 %v851
        %v916 = vunpack.c.l.b16 %v852
        %v917 = vunpack.c.l.b16 %v853
        %v918 = vunpack.c.l.b16 %v854
        %v919 = vunpack.c.l.b16 %v855
        %v920 = vpack.c.b16 %v889, %v888
        %v921 = vpack.c.b16 %v891, %v890
        %v922 = vpack.c.b16 %v893, %v892
        %v923 = vpack.c.b16 %v895, %v894
        %v924 = vpack.c.b16 %v897, %v896
        %v925 = vpack.c.b16 %v899, %v898
        %v926 = vpack.c.b16 %v901, %v900
        %v927 = vpack.c.b16 %v903, %v902
        %v928 = vpack.c.b16 %v905, %v904
        %v929 = vpack.c.b16 %v907, %v906
        %v930 = vpack.c.b16 %v909, %v908
        %v931 = vpack.c.b16 %v911, %v910
        %v932 = vpack.c.b16 %v913, %v912
        %v933 = vpack.c.b16 %v915, %v914
        %v934 = vpack.c.b16 %v917, %v916
        %v935 = vpack.c.b16 %v919, %v918
        %952 = vmatpush.bf16.msra.mxu0 %v927
        %953 = vmatpush.bf16.msra.mxu0 %v926
        %954 = vmatpush.bf16.msra.mxu0 %v925
        %955 = vmatpush.bf16.msra.mxu0 %v924
        %956 = vmatpush.bf16.msra.mxu0 %v923
        %957 = vmatpush.bf16.msra.mxu0 %v922
        %958 = vmatpush.bf16.msra.mxu0 %v921
        %959 = vmatpush.bf16.msra.mxu0 %v920
        %960 = vmatmul.bf16.gmra.mxu0 %v453
        %v961 = vpop.f32.mrf.mxu0
        %v962 = vadd.f32 0.0, %v961
        %v963 = vpop.f32.mrf.mxu0
        %964 = vdwg.mxu0
        %965 = vmatpush.bf16.msra.mxu0 %v935
        %966 = vmatpush.bf16.msra.mxu0 %v934
        %967 = vmatpush.bf16.msra.mxu0 %v933
        %968 = vmatpush.bf16.msra.mxu0 %v932
        %969 = vmatpush.bf16.msra.mxu0 %v931
        %970 = vmatpush.bf16.msra.mxu0 %v930
        %971 = vmatpush.bf16.msra.mxu0 %v929
        %972 = vmatpush.bf16.msra.mxu0 %v928
        %973 = vmatmul.bf16.gmra.mxu0 %v454
        %v974 = vpop.f32.mrf.mxu0
        %v975 = vadd.f32 %v962, %v974
        %v976 = vpop.f32.mrf.mxu0
        %977 = vdwg.mxu0
        %v978 = vpack.c.bf16 %v975, %v975
        %s979 = scalar_lea.vmem %s1, 16
        %v980 = vld [vmem:[%s979] sm:$0xf]
        %v981 = vld [vmem:[%s979 + $0x4] sm:$0xf]
        %v984 = vunpack.c.l.b16 %v980
        %v985 = vunpack.c.l.b16 %v981
        %v986 = vpack.c.b16 %v985, %v984
        %v988 = vsel %vm776, %v986, 0
        %v991 = vsel %vm780, %v978, 0
        %993 = vmatpush.bf16.msra.mxu0 0
        %994 = vmatpush.bf16.msra.mxu0 0
        %995 = vmatpush.bf16.msra.mxu0 0
        %996 = vmatpush.bf16.msra.mxu0 0
        %997 = vmatpush.bf16.msra.mxu0 0
        %998 = vmatpush.bf16.msra.mxu0 0
        %999 = vmatpush.bf16.msra.mxu0 0
        %1000 = vmatpush.bf16.msra.mxu0 %v991
        %1001 = vmatmul.bf16.gmra.mxu0 %v988
        %v1002 = vpop.f32.mrf.mxu0
        %v1003 = vadd.f32 0.0, %v1002
        %v1004 = vpop.f32.mrf.mxu0
        %v1005 = vadd.f32 0.0, %v1004
        %1006 = vdwg.mxu0
        %v1007 = vadd.f32 %v819, %v1003
        %v1008 = vadd.f32 %v821, %v1005
        %s1009 = scalar_lea.vmem [#allocation2], 384
        %v1010 = vld [vmem:[%s1009] sm:$0xf]
        %v1011 = vld [vmem:[%s1009 + $0x4] sm:$0xf]
        %v1012 = vld [vmem:[%s1009 + $0x8] sm:$0xf]
        %v1013 = vld [vmem:[%s1009 + $0xc] sm:$0xf]
        %v1014 = vld [vmem:[%s1009 + $0x10] sm:$0xf]
        %v1015 = vld [vmem:[%s1009 + $0x14] sm:$0xf]
        %v1016 = vld [vmem:[%s1009 + $0x18] sm:$0xf]
        %v1017 = vld [vmem:[%s1009 + $0x1c] sm:$0xf]
        %v1018 = vld [vmem:[%s1009 + $0x20] sm:$0xf]
        %v1019 = vld [vmem:[%s1009 + $0x24] sm:$0xf]
        %v1020 = vld [vmem:[%s1009 + $0x28] sm:$0xf]
        %v1021 = vld [vmem:[%s1009 + $0x2c] sm:$0xf]
        %v1022 = vld [vmem:[%s1009 + $0x30] sm:$0xf]
        %v1023 = vld [vmem:[%s1009 + $0x34] sm:$0xf]
        %v1024 = vld [vmem:[%s1009 + $0x38] sm:$0xf]
        %v1025 = vld [vmem:[%s1009 + $0x3c] sm:$0xf]
        %v1026 = vld [vmem:[%s1009 + $0x40] sm:$0xf]
        %v1027 = vld [vmem:[%s1009 + $0x44] sm:$0xf]
        %v1028 = vld [vmem:[%s1009 + $0x48] sm:$0xf]
        %v1029 = vld [vmem:[%s1009 + $0x4c] sm:$0xf]
        %v1030 = vld [vmem:[%s1009 + $0x50] sm:$0xf]
        %v1031 = vld [vmem:[%s1009 + $0x54] sm:$0xf]
        %v1032 = vld [vmem:[%s1009 + $0x58] sm:$0xf]
        %v1033 = vld [vmem:[%s1009 + $0x5c] sm:$0xf]
        %v1034 = vld [vmem:[%s1009 + $0x60] sm:$0xf]
        %v1035 = vld [vmem:[%s1009 + $0x64] sm:$0xf]
        %v1036 = vld [vmem:[%s1009 + $0x68] sm:$0xf]
        %v1037 = vld [vmem:[%s1009 + $0x6c] sm:$0xf]
        %v1038 = vld [vmem:[%s1009 + $0x70] sm:$0xf]
        %v1039 = vld [vmem:[%s1009 + $0x74] sm:$0xf]
        %v1040 = vld [vmem:[%s1009 + $0x78] sm:$0xf]
        %v1041 = vld [vmem:[%s1009 + $0x7c] sm:$0xf]
        %v1074 = vunpack.c.l.b16 %v1010
        %v1075 = vunpack.c.l.b16 %v1011
        %v1076 = vunpack.c.l.b16 %v1012
        %v1077 = vunpack.c.l.b16 %v1013
        %v1078 = vunpack.c.l.b16 %v1014
        %v1079 = vunpack.c.l.b16 %v1015
        %v1080 = vunpack.c.l.b16 %v1016
        %v1081 = vunpack.c.l.b16 %v1017
        %v1082 = vunpack.c.l.b16 %v1018
        %v1083 = vunpack.c.l.b16 %v1019
        %v1084 = vunpack.c.l.b16 %v1020
        %v1085 = vunpack.c.l.b16 %v1021
        %v1086 = vunpack.c.l.b16 %v1022
        %v1087 = vunpack.c.l.b16 %v1023
        %v1088 = vunpack.c.l.b16 %v1024
        %v1089 = vunpack.c.l.b16 %v1025
        %v1090 = vunpack.c.l.b16 %v1026
        %v1091 = vunpack.c.l.b16 %v1027
        %v1092 = vunpack.c.l.b16 %v1028
        %v1093 = vunpack.c.l.b16 %v1029
        %v1094 = vunpack.c.l.b16 %v1030
        %v1095 = vunpack.c.l.b16 %v1031
        %v1096 = vunpack.c.l.b16 %v1032
        %v1097 = vunpack.c.l.b16 %v1033
        %v1098 = vunpack.c.l.b16 %v1034
        %v1099 = vunpack.c.l.b16 %v1035
        %v1100 = vunpack.c.l.b16 %v1036
        %v1101 = vunpack.c.l.b16 %v1037
        %v1102 = vunpack.c.l.b16 %v1038
        %v1103 = vunpack.c.l.b16 %v1039
        %v1104 = vunpack.c.l.b16 %v1040
        %v1105 = vunpack.c.l.b16 %v1041
        %v1106 = vpack.c.b16 %v1075, %v1074
        %v1107 = vpack.c.b16 %v1077, %v1076
        %v1108 = vpack.c.b16 %v1079, %v1078
        %v1109 = vpack.c.b16 %v1081, %v1080
        %v1110 = vpack.c.b16 %v1083, %v1082
        %v1111 = vpack.c.b16 %v1085, %v1084
        %v1112 = vpack.c.b16 %v1087, %v1086
        %v1113 = vpack.c.b16 %v1089, %v1088
        %v1114 = vpack.c.b16 %v1091, %v1090
        %v1115 = vpack.c.b16 %v1093, %v1092
        %v1116 = vpack.c.b16 %v1095, %v1094
        %v1117 = vpack.c.b16 %v1097, %v1096
        %v1118 = vpack.c.b16 %v1099, %v1098
        %v1119 = vpack.c.b16 %v1101, %v1100
        %v1120 = vpack.c.b16 %v1103, %v1102
        %v1121 = vpack.c.b16 %v1105, %v1104
        %1138 = vmatpush.bf16.msra.mxu0 %v1113
        %1139 = vmatpush.bf16.msra.mxu0 %v1112
        %1140 = vmatpush.bf16.msra.mxu0 %v1111
        %1141 = vmatpush.bf16.msra.mxu0 %v1110
        %1142 = vmatpush.bf16.msra.mxu0 %v1109
        %1143 = vmatpush.bf16.msra.mxu0 %v1108
        %1144 = vmatpush.bf16.msra.mxu0 %v1107
        %1145 = vmatpush.bf16.msra.mxu0 %v1106
        %1146 = vmatmul.bf16.gmra.mxu0 %v453
        %v1147 = vpop.f32.mrf.mxu0
        %v1148 = vadd.f32 0.0, %v1147
        %v1149 = vpop.f32.mrf.mxu0
        %1150 = vdwg.mxu0
        %1151 = vmatpush.bf16.msra.mxu0 %v1121
        %1152 = vmatpush.bf16.msra.mxu0 %v1120
        %1153 = vmatpush.bf16.msra.mxu0 %v1119
        %1154 = vmatpush.bf16.msra.mxu0 %v1118
        %1155 = vmatpush.bf16.msra.mxu0 %v1117
        %1156 = vmatpush.bf16.msra.mxu0 %v1116
        %1157 = vmatpush.bf16.msra.mxu0 %v1115
        %1158 = vmatpush.bf16.msra.mxu0 %v1114
        %1159 = vmatmul.bf16.gmra.mxu0 %v454
        %v1160 = vpop.f32.mrf.mxu0
        %v1161 = vadd.f32 %v1148, %v1160
        %v1162 = vpop.f32.mrf.mxu0
        %1163 = vdwg.mxu0
        %v1164 = vpack.c.bf16 %v1161, %v1161
        %s1165 = scalar_lea.vmem %s1, 24
        %v1166 = vld [vmem:[%s1165] sm:$0xf]
        %v1167 = vld [vmem:[%s1165 + $0x4] sm:$0xf]
        %v1170 = vunpack.c.l.b16 %v1166
        %v1171 = vunpack.c.l.b16 %v1167
        %v1172 = vpack.c.b16 %v1171, %v1170
        %v1174 = vsel %vm776, %v1172, 0
        %v1177 = vsel %vm780, %v1164, 0
        %1179 = vmatpush.bf16.msra.mxu0 0
        %1180 = vmatpush.bf16.msra.mxu0 0
        %1181 = vmatpush.bf16.msra.mxu0 0
        %1182 = vmatpush.bf16.msra.mxu0 0
        %1183 = vmatpush.bf16.msra.mxu0 0
        %1184 = vmatpush.bf16.msra.mxu0 0
        %1185 = vmatpush.bf16.msra.mxu0 0
        %1186 = vmatpush.bf16.msra.mxu0 %v1177
        %1187 = vmatmul.bf16.gmra.mxu0 %v1174
        %v1188 = vpop.f32.mrf.mxu0
        %v1189 = vadd.f32 0.0, %v1188
        %v1190 = vpop.f32.mrf.mxu0
        %v1191 = vadd.f32 0.0, %v1190
        %1192 = vdwg.mxu0
        %v1193 = vadd.f32 %v1007, %v1189
        %v1194 = vadd.f32 %v1008, %v1191
        %s1195 = scalar_lea.vmem [#allocation2], 512
        %v1196 = vld [vmem:[%s1195] sm:$0xf]
        %v1197 = vld [vmem:[%s1195 + $0x4] sm:$0xf]
        %v1198 = vld [vmem:[%s1195 + $0x8] sm:$0xf]
        %v1199 = vld [vmem:[%s1195 + $0xc] sm:$0xf]
        %v1200 = vld [vmem:[%s1195 + $0x10] sm:$0xf]
        %v1201 = vld [vmem:[%s1195 + $0x14] sm:$0xf]
        %v1202 = vld [vmem:[%s1195 + $0x18] sm:$0xf]
        %v1203 = vld [vmem:[%s1195 + $0x1c] sm:$0xf]
        %v1204 = vld [vmem:[%s1195 + $0x20] sm:$0xf]
        %v1205 = vld [vmem:[%s1195 + $0x24] sm:$0xf]
        %v1206 = vld [vmem:[%s1195 + $0x28] sm:$0xf]
        %v1207 = vld [vmem:[%s1195 + $0x2c] sm:$0xf]
        %v1208 = vld [vmem:[%s1195 + $0x30] sm:$0xf]
        %v1209 = vld [vmem:[%s1195 + $0x34] sm:$0xf]
        %v1210 = vld [vmem:[%s1195 + $0x38] sm:$0xf]
        %v1211 = vld [vmem:[%s1195 + $0x3c] sm:$0xf]
        %v1212 = vld [vmem:[%s1195 + $0x40] sm:$0xf]
        %v1213 = vld [vmem:[%s1195 + $0x44] sm:$0xf]
        %v1214 = vld [vmem:[%s1195 + $0x48] sm:$0xf]
        %v1215 = vld [vmem:[%s1195 + $0x4c] sm:$0xf]
        %v1216 = vld [vmem:[%s1195 + $0x50] sm:$0xf]
        %v1217 = vld [vmem:[%s1195 + $0x54] sm:$0xf]
        %v1218 = vld [vmem:[%s1195 + $0x58] sm:$0xf]
        %v1219 = vld [vmem:[%s1195 + $0x5c] sm:$0xf]
        %v1220 = vld [vmem:[%s1195 + $0x60] sm:$0xf]
        %v1221 = vld [vmem:[%s1195 + $0x64] sm:$0xf]
        %v1222 = vld [vmem:[%s1195 + $0x68] sm:$0xf]
        %v1223 = vld [vmem:[%s1195 + $0x6c] sm:$0xf]
        %v1224 = vld [vmem:[%s1195 + $0x70] sm:$0xf]
        %v1225 = vld [vmem:[%s1195 + $0x74] sm:$0xf]
        %v1226 = vld [vmem:[%s1195 + $0x78] sm:$0xf]
        %v1227 = vld [vmem:[%s1195 + $0x7c] sm:$0xf]
        %v1260 = vunpack.c.l.b16 %v1196
        %v1261 = vunpack.c.l.b16 %v1197
        %v1262 = vunpack.c.l.b16 %v1198
        %v1263 = vunpack.c.l.b16 %v1199
        %v1264 = vunpack.c.l.b16 %v1200
        %v1265 = vunpack.c.l.b16 %v1201
        %v1266 = vunpack.c.l.b16 %v1202
        %v1267 = vunpack.c.l.b16 %v1203
        %v1268 = vunpack.c.l.b16 %v1204
        %v1269 = vunpack.c.l.b16 %v1205
        %v1270 = vunpack.c.l.b16 %v1206
        %v1271 = vunpack.c.l.b16 %v1207
        %v1272 = vunpack.c.l.b16 %v1208
        %v1273 = vunpack.c.l.b16 %v1209
        %v1274 = vunpack.c.l.b16 %v1210
        %v1275 = vunpack.c.l.b16 %v1211
        %v1276 = vunpack.c.l.b16 %v1212
        %v1277 = vunpack.c.l.b16 %v1213
        %v1278 = vunpack.c.l.b16 %v1214
        %v1279 = vunpack.c.l.b16 %v1215
        %v1280 = vunpack.c.l.b16 %v1216
        %v1281 = vunpack.c.l.b16 %v1217
        %v1282 = vunpack.c.l.b16 %v1218
        %v1283 = vunpack.c.l.b16 %v1219
        %v1284 = vunpack.c.l.b16 %v1220
        %v1285 = vunpack.c.l.b16 %v1221
        %v1286 = vunpack.c.l.b16 %v1222
        %v1287 = vunpack.c.l.b16 %v1223
        %v1288 = vunpack.c.l.b16 %v1224
        %v1289 = vunpack.c.l.b16 %v1225
        %v1290 = vunpack.c.l.b16 %v1226
        %v1291 = vunpack.c.l.b16 %v1227
        %v1292 = vpack.c.b16 %v1261, %v1260
        %v1293 = vpack.c.b16 %v1263, %v1262
        %v1294 = vpack.c.b16 %v1265, %v1264
        %v1295 = vpack.c.b16 %v1267, %v1266
        %v1296 = vpack.c.b16 %v1269, %v1268
        %v1297 = vpack.c.b16 %v1271, %v1270
        %v1298 = vpack.c.b16 %v1273, %v1272
        %v1299 = vpack.c.b16 %v1275, %v1274
        %v1300 = vpack.c.b16 %v1277, %v1276
        %v1301 = vpack.c.b16 %v1279, %v1278
        %v1302 = vpack.c.b16 %v1281, %v1280
        %v1303 = vpack.c.b16 %v1283, %v1282
        %v1304 = vpack.c.b16 %v1285, %v1284
        %v1305 = vpack.c.b16 %v1287, %v1286
        %v1306 = vpack.c.b16 %v1289, %v1288
        %v1307 = vpack.c.b16 %v1291, %v1290
        %1324 = vmatpush.bf16.msra.mxu0 %v1299
        %1325 = vmatpush.bf16.msra.mxu0 %v1298
        %1326 = vmatpush.bf16.msra.mxu0 %v1297
        %1327 = vmatpush.bf16.msra.mxu0 %v1296
        %1328 = vmatpush.bf16.msra.mxu0 %v1295
        %1329 = vmatpush.bf16.msra.mxu0 %v1294
        %1330 = vmatpush.bf16.msra.mxu0 %v1293
        %1331 = vmatpush.bf16.msra.mxu0 %v1292
        %1332 = vmatmul.bf16.gmra.mxu0 %v453
        %v1333 = vpop.f32.mrf.mxu0
        %v1334 = vadd.f32 0.0, %v1333
        %v1335 = vpop.f32.mrf.mxu0
        %1336 = vdwg.mxu0
        %1337 = vmatpush.bf16.msra.mxu0 %v1307
        %1338 = vmatpush.bf16.msra.mxu0 %v1306
        %1339 = vmatpush.bf16.msra.mxu0 %v1305
        %1340 = vmatpush.bf16.msra.mxu0 %v1304
        %1341 = vmatpush.bf16.msra.mxu0 %v1303
        %1342 = vmatpush.bf16.msra.mxu0 %v1302
        %1343 = vmatpush.bf16.msra.mxu0 %v1301
        %1344 = vmatpush.bf16.msra.mxu0 %v1300
        %1345 = vmatmul.bf16.gmra.mxu0 %v454
        %v1346 = vpop.f32.mrf.mxu0
        %v1347 = vadd.f32 %v1334, %v1346
        %v1348 = vpop.f32.mrf.mxu0
        %1349 = vdwg.mxu0
        %v1350 = vpack.c.bf16 %v1347, %v1347
        %s1351 = scalar_lea.vmem %s1, 32
        %v1352 = vld [vmem:[%s1351] sm:$0xf]
        %v1353 = vld [vmem:[%s1351 + $0x4] sm:$0xf]
        %v1356 = vunpack.c.l.b16 %v1352
        %v1357 = vunpack.c.l.b16 %v1353
        %v1358 = vpack.c.b16 %v1357, %v1356
        %v1360 = vsel %vm776, %v1358, 0
        %v1363 = vsel %vm780, %v1350, 0
        %1365 = vmatpush.bf16.msra.mxu0 0
        %1366 = vmatpush.bf16.msra.mxu0 0
        %1367 = vmatpush.bf16.msra.mxu0 0
        %1368 = vmatpush.bf16.msra.mxu0 0
        %1369 = vmatpush.bf16.msra.mxu0 0
        %1370 = vmatpush.bf16.msra.mxu0 0
        %1371 = vmatpush.bf16.msra.mxu0 0
        %1372 = vmatpush.bf16.msra.mxu0 %v1363
        %1373 = vmatmul.bf16.gmra.mxu0 %v1360
        %v1374 = vpop.f32.mrf.mxu0
        %v1375 = vadd.f32 0.0, %v1374
        %v1376 = vpop.f32.mrf.mxu0
        %v1377 = vadd.f32 0.0, %v1376
        %1378 = vdwg.mxu0
        %v1379 = vadd.f32 %v1193, %v1375
        %v1380 = vadd.f32 %v1194, %v1377
        %s1381 = scalar_lea.vmem [#allocation2], 640
        %v1382 = vld [vmem:[%s1381] sm:$0xf]
        %v1383 = vld [vmem:[%s1381 + $0x4] sm:$0xf]
        %v1384 = vld [vmem:[%s1381 + $0x8] sm:$0xf]
        %v1385 = vld [vmem:[%s1381 + $0xc] sm:$0xf]
        %v1386 = vld [vmem:[%s1381 + $0x10] sm:$0xf]
        %v1387 = vld [vmem:[%s1381 + $0x14] sm:$0xf]
        %v1388 = vld [vmem:[%s1381 + $0x18] sm:$0xf]
        %v1389 = vld [vmem:[%s1381 + $0x1c] sm:$0xf]
        %v1390 = vld [vmem:[%s1381 + $0x20] sm:$0xf]
        %v1391 = vld [vmem:[%s1381 + $0x24] sm:$0xf]
        %v1392 = vld [vmem:[%s1381 + $0x28] sm:$0xf]
        %v1393 = vld [vmem:[%s1381 + $0x2c] sm:$0xf]
        %v1394 = vld [vmem:[%s1381 + $0x30] sm:$0xf]
        %v1395 = vld [vmem:[%s1381 + $0x34] sm:$0xf]
        %v1396 = vld [vmem:[%s1381 + $0x38] sm:$0xf]
        %v1397 = vld [vmem:[%s1381 + $0x3c] sm:$0xf]
        %v1398 = vld [vmem:[%s1381 + $0x40] sm:$0xf]
        %v1399 = vld [vmem:[%s1381 + $0x44] sm:$0xf]
        %v1400 = vld [vmem:[%s1381 + $0x48] sm:$0xf]
        %v1401 = vld [vmem:[%s1381 + $0x4c] sm:$0xf]
        %v1402 = vld [vmem:[%s1381 + $0x50] sm:$0xf]
        %v1403 = vld [vmem:[%s1381 + $0x54] sm:$0xf]
        %v1404 = vld [vmem:[%s1381 + $0x58] sm:$0xf]
        %v1405 = vld [vmem:[%s1381 + $0x5c] sm:$0xf]
        %v1406 = vld [vmem:[%s1381 + $0x60] sm:$0xf]
        %v1407 = vld [vmem:[%s1381 + $0x64] sm:$0xf]
        %v1408 = vld [vmem:[%s1381 + $0x68] sm:$0xf]
        %v1409 = vld [vmem:[%s1381 + $0x6c] sm:$0xf]
        %v1410 = vld [vmem:[%s1381 + $0x70] sm:$0xf]
        %v1411 = vld [vmem:[%s1381 + $0x74] sm:$0xf]
        %v1412 = vld [vmem:[%s1381 + $0x78] sm:$0xf]
        %v1413 = vld [vmem:[%s1381 + $0x7c] sm:$0xf]
        %v1446 = vunpack.c.l.b16 %v1382
        %v1447 = vunpack.c.l.b16 %v1383
        %v1448 = vunpack.c.l.b16 %v1384
        %v1449 = vunpack.c.l.b16 %v1385
        %v1450 = vunpack.c.l.b16 %v1386
        %v1451 = vunpack.c.l.b16 %v1387
        %v1452 = vunpack.c.l.b16 %v1388
        %v1453 = vunpack.c.l.b16 %v1389
        %v1454 = vunpack.c.l.b16 %v1390
        %v1455 = vunpack.c.l.b16 %v1391
        %v1456 = vunpack.c.l.b16 %v1392
        %v1457 = vunpack.c.l.b16 %v1393
        %v1458 = vunpack.c.l.b16 %v1394
        %v1459 = vunpack.c.l.b16 %v1395
        %v1460 = vunpack.c.l.b16 %v1396
        %v1461 = vunpack.c.l.b16 %v1397
        %v1462 = vunpack.c.l.b16 %v1398
        %v1463 = vunpack.c.l.b16 %v1399
        %v1464 = vunpack.c.l.b16 %v1400
        %v1465 = vunpack.c.l.b16 %v1401
        %v1466 = vunpack.c.l.b16 %v1402
        %v1467 = vunpack.c.l.b16 %v1403
        %v1468 = vunpack.c.l.b16 %v1404
        %v1469 = vunpack.c.l.b16 %v1405
        %v1470 = vunpack.c.l.b16 %v1406
        %v1471 = vunpack.c.l.b16 %v1407
        %v1472 = vunpack.c.l.b16 %v1408
        %v1473 = vunpack.c.l.b16 %v1409
        %v1474 = vunpack.c.l.b16 %v1410
        %v1475 = vunpack.c.l.b16 %v1411
        %v1476 = vunpack.c.l.b16 %v1412
        %v1477 = vunpack.c.l.b16 %v1413
        %v1478 = vpack.c.b16 %v1447, %v1446
        %v1479 = vpack.c.b16 %v1449, %v1448
        %v1480 = vpack.c.b16 %v1451, %v1450
        %v1481 = vpack.c.b16 %v1453, %v1452
        %v1482 = vpack.c.b16 %v1455, %v1454
        %v1483 = vpack.c.b16 %v1457, %v1456
        %v1484 = vpack.c.b16 %v1459, %v1458
        %v1485 = vpack.c.b16 %v1461, %v1460
        %v1486 = vpack.c.b16 %v1463, %v1462
        %v1487 = vpack.c.b16 %v1465, %v1464
        %v1488 = vpack.c.b16 %v1467, %v1466
        %v1489 = vpack.c.b16 %v1469, %v1468
        %v1490 = vpack.c.b16 %v1471, %v1470
        %v1491 = vpack.c.b16 %v1473, %v1472
        %v1492 = vpack.c.b16 %v1475, %v1474
        %v1493 = vpack.c.b16 %v1477, %v1476
        %1510 = vmatpush.bf16.msra.mxu0 %v1485
        %1511 = vmatpush.bf16.msra.mxu0 %v1484
        %1512 = vmatpush.bf16.msra.mxu0 %v1483
        %1513 = vmatpush.bf16.msra.mxu0 %v1482
        %1514 = vmatpush.bf16.msra.mxu0 %v1481
        %1515 = vmatpush.bf16.msra.mxu0 %v1480
        %1516 = vmatpush.bf16.msra.mxu0 %v1479
        %1517 = vmatpush.bf16.msra.mxu0 %v1478
        %1518 = vmatmul.bf16.gmra.mxu0 %v453
        %v1519 = vpop.f32.mrf.mxu0
        %v1520 = vadd.f32 0.0, %v1519
        %v1521 = vpop.f32.mrf.mxu0
        %1522 = vdwg.mxu0
        %1523 = vmatpush.bf16.msra.mxu0 %v1493
        %1524 = vmatpush.bf16.msra.mxu0 %v1492
        %1525 = vmatpush.bf16.msra.mxu0 %v1491
        %1526 = vmatpush.bf16.msra.mxu0 %v1490
        %1527 = vmatpush.bf16.msra.mxu0 %v1489
        %1528 = vmatpush.bf16.msra.mxu0 %v1488
        %1529 = vmatpush.bf16.msra.mxu0 %v1487
        %1530 = vmatpush.bf16.msra.mxu0 %v1486
        %1531 = vmatmul.bf16.gmra.mxu0 %v454
        %v1532 = vpop.f32.mrf.mxu0
        %v1533 = vadd.f32 %v1520, %v1532
        %v1534 = vpop.f32.mrf.mxu0
        %1535 = vdwg.mxu0
        %v1536 = vpack.c.bf16 %v1533, %v1533
        %s1537 = scalar_lea.vmem %s1, 40
        %v1538 = vld [vmem:[%s1537] sm:$0xf]
        %v1539 = vld [vmem:[%s1537 + $0x4] sm:$0xf]
        %v1542 = vunpack.c.l.b16 %v1538
        %v1543 = vunpack.c.l.b16 %v1539
        %v1544 = vpack.c.b16 %v1543, %v1542
        %v1546 = vsel %vm776, %v1544, 0
        %v1549 = vsel %vm780, %v1536, 0
        %1551 = vmatpush.bf16.msra.mxu0 0
        %1552 = vmatpush.bf16.msra.mxu0 0
        %1553 = vmatpush.bf16.msra.mxu0 0
        %1554 = vmatpush.bf16.msra.mxu0 0
        %1555 = vmatpush.bf16.msra.mxu0 0
        %1556 = vmatpush.bf16.msra.mxu0 0
        %1557 = vmatpush.bf16.msra.mxu0 0
        %1558 = vmatpush.bf16.msra.mxu0 %v1549
        %1559 = vmatmul.bf16.gmra.mxu0 %v1546
        %v1560 = vpop.f32.mrf.mxu0
        %v1561 = vadd.f32 0.0, %v1560
        %v1562 = vpop.f32.mrf.mxu0
        %v1563 = vadd.f32 0.0, %v1562
        %1564 = vdwg.mxu0
        %v1565 = vadd.f32 %v1379, %v1561
        %v1566 = vadd.f32 %v1380, %v1563
        %s1567 = scalar_lea.vmem [#allocation2], 768
        %v1568 = vld [vmem:[%s1567] sm:$0xf]
        %v1569 = vld [vmem:[%s1567 + $0x4] sm:$0xf]
        %v1570 = vld [vmem:[%s1567 + $0x8] sm:$0xf]
        %v1571 = vld [vmem:[%s1567 + $0xc] sm:$0xf]
        %v1572 = vld [vmem:[%s1567 + $0x10] sm:$0xf]
        %v1573 = vld [vmem:[%s1567 + $0x14] sm:$0xf]
        %v1574 = vld [vmem:[%s1567 + $0x18] sm:$0xf]
        %v1575 = vld [vmem:[%s1567 + $0x1c] sm:$0xf]
        %v1576 = vld [vmem:[%s1567 + $0x20] sm:$0xf]
        %v1577 = vld [vmem:[%s1567 + $0x24] sm:$0xf]
        %v1578 = vld [vmem:[%s1567 + $0x28] sm:$0xf]
        %v1579 = vld [vmem:[%s1567 + $0x2c] sm:$0xf]
        %v1580 = vld [vmem:[%s1567 + $0x30] sm:$0xf]
        %v1581 = vld [vmem:[%s1567 + $0x34] sm:$0xf]
        %v1582 = vld [vmem:[%s1567 + $0x38] sm:$0xf]
        %v1583 = vld [vmem:[%s1567 + $0x3c] sm:$0xf]
        %v1584 = vld [vmem:[%s1567 + $0x40] sm:$0xf]
        %v1585 = vld [vmem:[%s1567 + $0x44] sm:$0xf]
        %v1586 = vld [vmem:[%s1567 + $0x48] sm:$0xf]
        %v1587 = vld [vmem:[%s1567 + $0x4c] sm:$0xf]
        %v1588 = vld [vmem:[%s1567 + $0x50] sm:$0xf]
        %v1589 = vld [vmem:[%s1567 + $0x54] sm:$0xf]
        %v1590 = vld [vmem:[%s1567 + $0x58] sm:$0xf]
        %v1591 = vld [vmem:[%s1567 + $0x5c] sm:$0xf]
        %v1592 = vld [vmem:[%s1567 + $0x60] sm:$0xf]
        %v1593 = vld [vmem:[%s1567 + $0x64] sm:$0xf]
        %v1594 = vld [vmem:[%s1567 + $0x68] sm:$0xf]
        %v1595 = vld [vmem:[%s1567 + $0x6c] sm:$0xf]
        %v1596 = vld [vmem:[%s1567 + $0x70] sm:$0xf]
        %v1597 = vld [vmem:[%s1567 + $0x74] sm:$0xf]
        %v1598 = vld [vmem:[%s1567 + $0x78] sm:$0xf]
        %v1599 = vld [vmem:[%s1567 + $0x7c] sm:$0xf]
        %v1632 = vunpack.c.l.b16 %v1568
        %v1633 = vunpack.c.l.b16 %v1569
        %v1634 = vunpack.c.l.b16 %v1570
        %v1635 = vunpack.c.l.b16 %v1571
        %v1636 = vunpack.c.l.b16 %v1572
        %v1637 = vunpack.c.l.b16 %v1573
        %v1638 = vunpack.c.l.b16 %v1574
        %v1639 = vunpack.c.l.b16 %v1575
        %v1640 = vunpack.c.l.b16 %v1576
        %v1641 = vunpack.c.l.b16 %v1577
        %v1642 = vunpack.c.l.b16 %v1578
        %v1643 = vunpack.c.l.b16 %v1579
        %v1644 = vunpack.c.l.b16 %v1580
        %v1645 = vunpack.c.l.b16 %v1581
        %v1646 = vunpack.c.l.b16 %v1582
        %v1647 = vunpack.c.l.b16 %v1583
        %v1648 = vunpack.c.l.b16 %v1584
        %v1649 = vunpack.c.l.b16 %v1585
        %v1650 = vunpack.c.l.b16 %v1586
        %v1651 = vunpack.c.l.b16 %v1587
        %v1652 = vunpack.c.l.b16 %v1588
        %v1653 = vunpack.c.l.b16 %v1589
        %v1654 = vunpack.c.l.b16 %v1590
        %v1655 = vunpack.c.l.b16 %v1591
        %v1656 = vunpack.c.l.b16 %v1592
        %v1657 = vunpack.c.l.b16 %v1593
        %v1658 = vunpack.c.l.b16 %v1594
        %v1659 = vunpack.c.l.b16 %v1595
        %v1660 = vunpack.c.l.b16 %v1596
        %v1661 = vunpack.c.l.b16 %v1597
        %v1662 = vunpack.c.l.b16 %v1598
        %v1663 = vunpack.c.l.b16 %v1599
        %v1664 = vpack.c.b16 %v1633, %v1632
        %v1665 = vpack.c.b16 %v1635, %v1634
        %v1666 = vpack.c.b16 %v1637, %v1636
        %v1667 = vpack.c.b16 %v1639, %v1638
        %v1668 = vpack.c.b16 %v1641, %v1640
        %v1669 = vpack.c.b16 %v1643, %v1642
        %v1670 = vpack.c.b16 %v1645, %v1644
        %v1671 = vpack.c.b16 %v1647, %v1646
        %v1672 = vpack.c.b16 %v1649, %v1648
        %v1673 = vpack.c.b16 %v1651, %v1650
        %v1674 = vpack.c.b16 %v1653, %v1652
        %v1675 = vpack.c.b16 %v1655, %v1654
        %v1676 = vpack.c.b16 %v1657, %v1656
        %v1677 = vpack.c.b16 %v1659, %v1658
        %v1678 = vpack.c.b16 %v1661, %v1660
        %v1679 = vpack.c.b16 %v1663, %v1662
        %1696 = vmatpush.bf16.msra.mxu0 %v1671
        %1697 = vmatpush.bf16.msra.mxu0 %v1670
        %1698 = vmatpush.bf16.msra.mxu0 %v1669
        %1699 = vmatpush.bf16.msra.mxu0 %v1668
        %1700 = vmatpush.bf16.msra.mxu0 %v1667
        %1701 = vmatpush.bf16.msra.mxu0 %v1666
        %1702 = vmatpush.bf16.msra.mxu0 %v1665
        %1703 = vmatpush.bf16.msra.mxu0 %v1664
        %1704 = vmatmul.bf16.gmra.mxu0 %v453
        %v1705 = vpop.f32.mrf.mxu0
        %v1706 = vadd.f32 0.0, %v1705
        %v1707 = vpop.f32.mrf.mxu0
        %1708 = vdwg.mxu0
        %1709 = vmatpush.bf16.msra.mxu0 %v1679
        %1710 = vmatpush.bf16.msra.mxu0 %v1678
        %1711 = vmatpush.bf16.msra.mxu0 %v1677
        %1712 = vmatpush.bf16.msra.mxu0 %v1676
        %1713 = vmatpush.bf16.msra.mxu0 %v1675
        %1714 = vmatpush.bf16.msra.mxu0 %v1674
        %1715 = vmatpush.bf16.msra.mxu0 %v1673
        %1716 = vmatpush.bf16.msra.mxu0 %v1672
        %1717 = vmatmul.bf16.gmra.mxu0 %v454
        %v1718 = vpop.f32.mrf.mxu0
        %v1719 = vadd.f32 %v1706, %v1718
        %v1720 = vpop.f32.mrf.mxu0
        %1721 = vdwg.mxu0
        %v1722 = vpack.c.bf16 %v1719, %v1719
        %s1723 = scalar_lea.vmem %s1, 48
        %v1724 = vld [vmem:[%s1723] sm:$0xf]
        %v1725 = vld [vmem:[%s1723 + $0x4] sm:$0xf]
        %v1728 = vunpack.c.l.b16 %v1724
        %v1729 = vunpack.c.l.b16 %v1725
        %v1730 = vpack.c.b16 %v1729, %v1728
        %v1732 = vsel %vm776, %v1730, 0
        %v1735 = vsel %vm780, %v1722, 0
        %1737 = vmatpush.bf16.msra.mxu0 0
        %1738 = vmatpush.bf16.msra.mxu0 0
        %1739 = vmatpush.bf16.msra.mxu0 0
        %1740 = vmatpush.bf16.msra.mxu0 0
        %1741 = vmatpush.bf16.msra.mxu0 0
        %1742 = vmatpush.bf16.msra.mxu0 0
        %1743 = vmatpush.bf16.msra.mxu0 0
        %1744 = vmatpush.bf16.msra.mxu0 %v1735
        %1745 = vmatmul.bf16.gmra.mxu0 %v1732
        %v1746 = vpop.f32.mrf.mxu0
        %v1747 = vadd.f32 0.0, %v1746
        %v1748 = vpop.f32.mrf.mxu0
        %v1749 = vadd.f32 0.0, %v1748
        %1750 = vdwg.mxu0
        %v1751 = vadd.f32 %v1565, %v1747
        %v1752 = vadd.f32 %v1566, %v1749
        %s1753 = scalar_lea.vmem [#allocation2], 896
        %v1754 = vld [vmem:[%s1753] sm:$0xf]
        %v1755 = vld [vmem:[%s1753 + $0x4] sm:$0xf]
        %v1756 = vld [vmem:[%s1753 + $0x8] sm:$0xf]
        %v1757 = vld [vmem:[%s1753 + $0xc] sm:$0xf]
        %v1758 = vld [vmem:[%s1753 + $0x10] sm:$0xf]
        %v1759 = vld [vmem:[%s1753 + $0x14] sm:$0xf]
        %v1760 = vld [vmem:[%s1753 + $0x18] sm:$0xf]
        %v1761 = vld [vmem:[%s1753 + $0x1c] sm:$0xf]
        %v1762 = vld [vmem:[%s1753 + $0x20] sm:$0xf]
        %v1763 = vld [vmem:[%s1753 + $0x24] sm:$0xf]
        %v1764 = vld [vmem:[%s1753 + $0x28] sm:$0xf]
        %v1765 = vld [vmem:[%s1753 + $0x2c] sm:$0xf]
        %v1766 = vld [vmem:[%s1753 + $0x30] sm:$0xf]
        %v1767 = vld [vmem:[%s1753 + $0x34] sm:$0xf]
        %v1768 = vld [vmem:[%s1753 + $0x38] sm:$0xf]
        %v1769 = vld [vmem:[%s1753 + $0x3c] sm:$0xf]
        %v1770 = vld [vmem:[%s1753 + $0x40] sm:$0xf]
        %v1771 = vld [vmem:[%s1753 + $0x44] sm:$0xf]
        %v1772 = vld [vmem:[%s1753 + $0x48] sm:$0xf]
        %v1773 = vld [vmem:[%s1753 + $0x4c] sm:$0xf]
        %v1774 = vld [vmem:[%s1753 + $0x50] sm:$0xf]
        %v1775 = vld [vmem:[%s1753 + $0x54] sm:$0xf]
        %v1776 = vld [vmem:[%s1753 + $0x58] sm:$0xf]
        %v1777 = vld [vmem:[%s1753 + $0x5c] sm:$0xf]
        %v1778 = vld [vmem:[%s1753 + $0x60] sm:$0xf]
        %v1779 = vld [vmem:[%s1753 + $0x64] sm:$0xf]
        %v1780 = vld [vmem:[%s1753 + $0x68] sm:$0xf]
        %v1781 = vld [vmem:[%s1753 + $0x6c] sm:$0xf]
        %v1782 = vld [vmem:[%s1753 + $0x70] sm:$0xf]
        %v1783 = vld [vmem:[%s1753 + $0x74] sm:$0xf]
        %v1784 = vld [vmem:[%s1753 + $0x78] sm:$0xf]
        %v1785 = vld [vmem:[%s1753 + $0x7c] sm:$0xf]
        %v1818 = vunpack.c.l.b16 %v1754
        %v1819 = vunpack.c.l.b16 %v1755
        %v1820 = vunpack.c.l.b16 %v1756
        %v1821 = vunpack.c.l.b16 %v1757
        %v1822 = vunpack.c.l.b16 %v1758
        %v1823 = vunpack.c.l.b16 %v1759
        %v1824 = vunpack.c.l.b16 %v1760
        %v1825 = vunpack.c.l.b16 %v1761
        %v1826 = vunpack.c.l.b16 %v1762
        %v1827 = vunpack.c.l.b16 %v1763
        %v1828 = vunpack.c.l.b16 %v1764
        %v1829 = vunpack.c.l.b16 %v1765
        %v1830 = vunpack.c.l.b16 %v1766
        %v1831 = vunpack.c.l.b16 %v1767
        %v1832 = vunpack.c.l.b16 %v1768
        %v1833 = vunpack.c.l.b16 %v1769
        %v1834 = vunpack.c.l.b16 %v1770
        %v1835 = vunpack.c.l.b16 %v1771
        %v1836 = vunpack.c.l.b16 %v1772
        %v1837 = vunpack.c.l.b16 %v1773
        %v1838 = vunpack.c.l.b16 %v1774
        %v1839 = vunpack.c.l.b16 %v1775
        %v1840 = vunpack.c.l.b16 %v1776
        %v1841 = vunpack.c.l.b16 %v1777
        %v1842 = vunpack.c.l.b16 %v1778
        %v1843 = vunpack.c.l.b16 %v1779
        %v1844 = vunpack.c.l.b16 %v1780
        %v1845 = vunpack.c.l.b16 %v1781
        %v1846 = vunpack.c.l.b16 %v1782
        %v1847 = vunpack.c.l.b16 %v1783
        %v1848 = vunpack.c.l.b16 %v1784
        %v1849 = vunpack.c.l.b16 %v1785
        %v1850 = vpack.c.b16 %v1819, %v1818
        %v1851 = vpack.c.b16 %v1821, %v1820
        %v1852 = vpack.c.b16 %v1823, %v1822
        %v1853 = vpack.c.b16 %v1825, %v1824
        %v1854 = vpack.c.b16 %v1827, %v1826
        %v1855 = vpack.c.b16 %v1829, %v1828
        %v1856 = vpack.c.b16 %v1831, %v1830
        %v1857 = vpack.c.b16 %v1833, %v1832
        %v1858 = vpack.c.b16 %v1835, %v1834
        %v1859 = vpack.c.b16 %v1837, %v1836
        %v1860 = vpack.c.b16 %v1839, %v1838
        %v1861 = vpack.c.b16 %v1841, %v1840
        %v1862 = vpack.c.b16 %v1843, %v1842
        %v1863 = vpack.c.b16 %v1845, %v1844
        %v1864 = vpack.c.b16 %v1847, %v1846
        %v1865 = vpack.c.b16 %v1849, %v1848
        %1882 = vmatpush.bf16.msra.mxu0 %v1857
        %1883 = vmatpush.bf16.msra.mxu0 %v1856
        %1884 = vmatpush.bf16.msra.mxu0 %v1855
        %1885 = vmatpush.bf16.msra.mxu0 %v1854
        %1886 = vmatpush.bf16.msra.mxu0 %v1853
        %1887 = vmatpush.bf16.msra.mxu0 %v1852
        %1888 = vmatpush.bf16.msra.mxu0 %v1851
        %1889 = vmatpush.bf16.msra.mxu0 %v1850
        %1890 = vmatmul.bf16.gmra.mxu0 %v453
        %v1891 = vpop.f32.mrf.mxu0
        %v1892 = vadd.f32 0.0, %v1891
        %v1893 = vpop.f32.mrf.mxu0
        %1894 = vdwg.mxu0
        %1895 = vmatpush.bf16.msra.mxu0 %v1865
        %1896 = vmatpush.bf16.msra.mxu0 %v1864
        %1897 = vmatpush.bf16.msra.mxu0 %v1863
        %1898 = vmatpush.bf16.msra.mxu0 %v1862
        %1899 = vmatpush.bf16.msra.mxu0 %v1861
        %1900 = vmatpush.bf16.msra.mxu0 %v1860
        %1901 = vmatpush.bf16.msra.mxu0 %v1859
        %1902 = vmatpush.bf16.msra.mxu0 %v1858
        %1903 = vmatmul.bf16.gmra.mxu0 %v454
        %v1904 = vpop.f32.mrf.mxu0
        %v1905 = vadd.f32 %v1892, %v1904
        %v1906 = vpop.f32.mrf.mxu0
        %1907 = vdwg.mxu0
        %v1908 = vpack.c.bf16 %v1905, %v1905
        %s1909 = scalar_lea.vmem %s1, 56
        %v1910 = vld [vmem:[%s1909] sm:$0xf]
        %v1911 = vld [vmem:[%s1909 + $0x4] sm:$0xf]
        %v1914 = vunpack.c.l.b16 %v1910
        %v1915 = vunpack.c.l.b16 %v1911
        %v1916 = vpack.c.b16 %v1915, %v1914
        %v1918 = vsel %vm776, %v1916, 0
        %v1921 = vsel %vm780, %v1908, 0
        %1923 = vmatpush.bf16.msra.mxu0 0
        %1924 = vmatpush.bf16.msra.mxu0 0
        %1925 = vmatpush.bf16.msra.mxu0 0
        %1926 = vmatpush.bf16.msra.mxu0 0
        %1927 = vmatpush.bf16.msra.mxu0 0
        %1928 = vmatpush.bf16.msra.mxu0 0
        %1929 = vmatpush.bf16.msra.mxu0 0
        %1930 = vmatpush.bf16.msra.mxu0 %v1921
        %1931 = vmatmul.bf16.gmra.mxu0 %v1918
        %v1932 = vpop.f32.mrf.mxu0
        %v1933 = vadd.f32 0.0, %v1932
        %v1934 = vpop.f32.mrf.mxu0
        %v1935 = vadd.f32 0.0, %v1934
        %1936 = vdwg.mxu0
        %v1937 = vadd.f32 %v1751, %v1933
        %v1938 = vadd.f32 %v1752, %v1935
        %s1939 = scalar_lea.vmem [#allocation2], 1024
        %v1940 = vld [vmem:[%s1939] sm:$0xf]
        %v1941 = vld [vmem:[%s1939 + $0x4] sm:$0xf]
        %v1942 = vld [vmem:[%s1939 + $0x8] sm:$0xf]
        %v1943 = vld [vmem:[%s1939 + $0xc] sm:$0xf]
        %v1944 = vld [vmem:[%s1939 + $0x10] sm:$0xf]
        %v1945 = vld [vmem:[%s1939 + $0x14] sm:$0xf]
        %v1946 = vld [vmem:[%s1939 + $0x18] sm:$0xf]
        %v1947 = vld [vmem:[%s1939 + $0x1c] sm:$0xf]
        %v1948 = vld [vmem:[%s1939 + $0x20] sm:$0xf]
        %v1949 = vld [vmem:[%s1939 + $0x24] sm:$0xf]
        %v1950 = vld [vmem:[%s1939 + $0x28] sm:$0xf]
        %v1951 = vld [vmem:[%s1939 + $0x2c] sm:$0xf]
        %v1952 = vld [vmem:[%s1939 + $0x30] sm:$0xf]
        %v1953 = vld [vmem:[%s1939 + $0x34] sm:$0xf]
        %v1954 = vld [vmem:[%s1939 + $0x38] sm:$0xf]
        %v1955 = vld [vmem:[%s1939 + $0x3c] sm:$0xf]
        %v1956 = vld [vmem:[%s1939 + $0x40] sm:$0xf]
        %v1957 = vld [vmem:[%s1939 + $0x44] sm:$0xf]
        %v1958 = vld [vmem:[%s1939 + $0x48] sm:$0xf]
        %v1959 = vld [vmem:[%s1939 + $0x4c] sm:$0xf]
        %v1960 = vld [vmem:[%s1939 + $0x50] sm:$0xf]
        %v1961 = vld [vmem:[%s1939 + $0x54] sm:$0xf]
        %v1962 = vld [vmem:[%s1939 + $0x58] sm:$0xf]
        %v1963 = vld [vmem:[%s1939 + $0x5c] sm:$0xf]
        %v1964 = vld [vmem:[%s1939 + $0x60] sm:$0xf]
        %v1965 = vld [vmem:[%s1939 + $0x64] sm:$0xf]
        %v1966 = vld [vmem:[%s1939 + $0x68] sm:$0xf]
        %v1967 = vld [vmem:[%s1939 + $0x6c] sm:$0xf]
        %v1968 = vld [vmem:[%s1939 + $0x70] sm:$0xf]
        %v1969 = vld [vmem:[%s1939 + $0x74] sm:$0xf]
        %v1970 = vld [vmem:[%s1939 + $0x78] sm:$0xf]
        %v1971 = vld [vmem:[%s1939 + $0x7c] sm:$0xf]
        %v2004 = vunpack.c.l.b16 %v1940
        %v2005 = vunpack.c.l.b16 %v1941
        %v2006 = vunpack.c.l.b16 %v1942
        %v2007 = vunpack.c.l.b16 %v1943
        %v2008 = vunpack.c.l.b16 %v1944
        %v2009 = vunpack.c.l.b16 %v1945
        %v2010 = vunpack.c.l.b16 %v1946
        %v2011 = vunpack.c.l.b16 %v1947
        %v2012 = vunpack.c.l.b16 %v1948
        %v2013 = vunpack.c.l.b16 %v1949
        %v2014 = vunpack.c.l.b16 %v1950
        %v2015 = vunpack.c.l.b16 %v1951
        %v2016 = vunpack.c.l.b16 %v1952
        %v2017 = vunpack.c.l.b16 %v1953
        %v2018 = vunpack.c.l.b16 %v1954
        %v2019 = vunpack.c.l.b16 %v1955
        %v2020 = vunpack.c.l.b16 %v1956
        %v2021 = vunpack.c.l.b16 %v1957
        %v2022 = vunpack.c.l.b16 %v1958
        %v2023 = vunpack.c.l.b16 %v1959
        %v2024 = vunpack.c.l.b16 %v1960
        %v2025 = vunpack.c.l.b16 %v1961
        %v2026 = vunpack.c.l.b16 %v1962
        %v2027 = vunpack.c.l.b16 %v1963
        %v2028 = vunpack.c.l.b16 %v1964
        %v2029 = vunpack.c.l.b16 %v1965
        %v2030 = vunpack.c.l.b16 %v1966
        %v2031 = vunpack.c.l.b16 %v1967
        %v2032 = vunpack.c.l.b16 %v1968
        %v2033 = vunpack.c.l.b16 %v1969
        %v2034 = vunpack.c.l.b16 %v1970
        %v2035 = vunpack.c.l.b16 %v1971
        %v2036 = vpack.c.b16 %v2005, %v2004
        %v2037 = vpack.c.b16 %v2007, %v2006
        %v2038 = vpack.c.b16 %v2009, %v2008
        %v2039 = vpack.c.b16 %v2011, %v2010
        %v2040 = vpack.c.b16 %v2013, %v2012
        %v2041 = vpack.c.b16 %v2015, %v2014
        %v2042 = vpack.c.b16 %v2017, %v2016
        %v2043 = vpack.c.b16 %v2019, %v2018
        %v2044 = vpack.c.b16 %v2021, %v2020
        %v2045 = vpack.c.b16 %v2023, %v2022
        %v2046 = vpack.c.b16 %v2025, %v2024
        %v2047 = vpack.c.b16 %v2027, %v2026
        %v2048 = vpack.c.b16 %v2029, %v2028
        %v2049 = vpack.c.b16 %v2031, %v2030
        %v2050 = vpack.c.b16 %v2033, %v2032
        %v2051 = vpack.c.b16 %v2035, %v2034
        %2068 = vmatpush.bf16.msra.mxu0 %v2043
        %2069 = vmatpush.bf16.msra.mxu0 %v2042
        %2070 = vmatpush.bf16.msra.mxu0 %v2041
        %2071 = vmatpush.bf16.msra.mxu0 %v2040
        %2072 = vmatpush.bf16.msra.mxu0 %v2039
        %2073 = vmatpush.bf16.msra.mxu0 %v2038
        %2074 = vmatpush.bf16.msra.mxu0 %v2037
        %2075 = vmatpush.bf16.msra.mxu0 %v2036
        %2076 = vmatmul.bf16.gmra.mxu0 %v453
        %v2077 = vpop.f32.mrf.mxu0
        %v2078 = vadd.f32 0.0, %v2077
        %v2079 = vpop.f32.mrf.mxu0
        %2080 = vdwg.mxu0
        %2081 = vmatpush.bf16.msra.mxu0 %v2051
        %2082 = vmatpush.bf16.msra.mxu0 %v2050
        %2083 = vmatpush.bf16.msra.mxu0 %v2049
        %2084 = vmatpush.bf16.msra.mxu0 %v2048
        %2085 = vmatpush.bf16.msra.mxu0 %v2047
        %2086 = vmatpush.bf16.msra.mxu0 %v2046
        %2087 = vmatpush.bf16.msra.mxu0 %v2045
        %2088 = vmatpush.bf16.msra.mxu0 %v2044
        %2089 = vmatmul.bf16.gmra.mxu0 %v454
        %v2090 = vpop.f32.mrf.mxu0
        %v2091 = vadd.f32 %v2078, %v2090
        %v2092 = vpop.f32.mrf.mxu0
        %2093 = vdwg.mxu0
        %v2094 = vpack.c.bf16 %v2091, %v2091
        %s2095 = scalar_lea.vmem %s1, 64
        %v2096 = vld [vmem:[%s2095] sm:$0xf]
        %v2097 = vld [vmem:[%s2095 + $0x4] sm:$0xf]
        %v2100 = vunpack.c.l.b16 %v2096
        %v2101 = vunpack.c.l.b16 %v2097
        %v2102 = vpack.c.b16 %v2101, %v2100
        %v2104 = vsel %vm776, %v2102, 0
        %v2107 = vsel %vm780, %v2094, 0
        %2109 = vmatpush.bf16.msra.mxu0 0
        %2110 = vmatpush.bf16.msra.mxu0 0
        %2111 = vmatpush.bf16.msra.mxu0 0
        %2112 = vmatpush.bf16.msra.mxu0 0
        %2113 = vmatpush.bf16.msra.mxu0 0
        %2114 = vmatpush.bf16.msra.mxu0 0
        %2115 = vmatpush.bf16.msra.mxu0 0
        %2116 = vmatpush.bf16.msra.mxu0 %v2107
        %2117 = vmatmul.bf16.gmra.mxu0 %v2104
        %v2118 = vpop.f32.mrf.mxu0
        %v2119 = vadd.f32 0.0, %v2118
        %v2120 = vpop.f32.mrf.mxu0
        %v2121 = vadd.f32 0.0, %v2120
        %2122 = vdwg.mxu0
        %v2123 = vadd.f32 %v1937, %v2119
        %v2124 = vadd.f32 %v1938, %v2121
        %v2125 = vld [vmem:[%s2] sm:$0xff]
        %v2126 = vld [vmem:[%s2 + $0x8] sm:$0xff]
        %2128 = vset.pattern.permute.xlu0 0
        %2129 = vperm.xlu0 %2128, %v2125
        %v2130 = vpop.permute.xlu0 %2129
        %2133 = vset.pattern.permute.xlu0 0
        %2134 = vperm.xlu0 %2133, %v2126
        %v2135 = vpop.permute.xlu0 %2134
        %v2137 = vadd.f32 %v2123, %v2130
        %v2138 = vadd.f32 %v2124, %v2135
        %v2139 = vmax.f32 %v2137, 0.0
        %v2140 = vmax.f32 %v2138, 0.0
        %v2141 = vpack.c.bf16 %v2140, %v2139
        %v2142 = vld [vmem:[#allocation4] sm:$0xf]
        %v2143 = vld [vmem:[#allocation4 + $0x4] sm:$0xf]
        %v2144 = vld [vmem:[#allocation4 + $0x8] sm:$0xf]
        %v2145 = vld [vmem:[#allocation4 + $0xc] sm:$0xf]
        %v2146 = vld [vmem:[#allocation4 + $0x10] sm:$0xf]
        %v2147 = vld [vmem:[#allocation4 + $0x14] sm:$0xf]
        %v2148 = vld [vmem:[#allocation4 + $0x18] sm:$0xf]
        %v2149 = vld [vmem:[#allocation4 + $0x1c] sm:$0xf]
        %v2158 = vunpack.c.l.b16 %v2142
        %v2159 = vunpack.c.l.b16 %v2143
        %v2160 = vunpack.c.l.b16 %v2144
        %v2161 = vunpack.c.l.b16 %v2145
        %v2162 = vunpack.c.l.b16 %v2146
        %v2163 = vunpack.c.l.b16 %v2147
        %v2164 = vunpack.c.l.b16 %v2148
        %v2165 = vunpack.c.l.b16 %v2149
        %v2166 = vpack.c.b16 %v2159, %v2158
        %v2167 = vpack.c.b16 %v2161, %v2160
        %v2168 = vpack.c.b16 %v2163, %v2162
        %v2169 = vpack.c.b16 %v2165, %v2164
        %vm2174 = vcmask 523264
        %v2176 = vsel %vm2174, %v2141, 0
        %2178 = vmatpush.bf16.msra.mxu0 0
        %2179 = vmatpush.bf16.msra.mxu0 0
        %2180 = vmatpush.bf16.msra.mxu0 0
        %2181 = vmatpush.bf16.msra.mxu0 0
        %2182 = vmatpush.bf16.msra.mxu0 %v2169
        %2183 = vmatpush.bf16.msra.mxu0 %v2168
        %2184 = vmatpush.bf16.msra.mxu0 %v2167
        %2185 = vmatpush.bf16.msra.mxu0 %v2166
        %2186 = vmatmul.bf16.gmra.mxu0 %v2176
        %v2187 = vpop.f32.mrf.mxu0
        %v2188 = vadd.f32 0.0, %v2187
        %v2189 = vpop.f32.mrf.mxu0
        %v2190 = vadd.f32 0.0, %v2189
        %2191 = vdwg.mxu0
        %v2192 = vpack.c.bf16 %v2190, %v2188
        %v2193 = vld [vmem:[%s4] sm:$0xf]
        %v2194 = vld [vmem:[%s4 + $0x4] sm:$0xf]
        %s2195 = scalar_lea.vmem [#allocation4], 32
        %v2196 = vld [vmem:[%s2195] sm:$0xf]
        %v2197 = vld [vmem:[%s2195 + $0x4] sm:$0xf]
        %v2198 = vld [vmem:[%s2195 + $0x8] sm:$0xf]
        %v2199 = vld [vmem:[%s2195 + $0xc] sm:$0xf]
        %v2200 = vld [vmem:[%s2195 + $0x10] sm:$0xf]
        %v2201 = vld [vmem:[%s2195 + $0x14] sm:$0xf]
        %v2202 = vld [vmem:[%s2195 + $0x18] sm:$0xf]
        %v2203 = vld [vmem:[%s2195 + $0x1c] sm:$0xf]
        %v2212 = vunpack.c.l.b16 %v2196
        %v2213 = vunpack.c.l.b16 %v2197
        %v2214 = vunpack.c.l.b16 %v2198
        %v2215 = vunpack.c.l.b16 %v2199
        %v2216 = vunpack.c.l.b16 %v2200
        %v2217 = vunpack.c.l.b16 %v2201
        %v2218 = vunpack.c.l.b16 %v2202
        %v2219 = vunpack.c.l.b16 %v2203
        %v2220 = vpack.c.b16 %v2213, %v2212
        %v2221 = vpack.c.b16 %v2215, %v2214
        %v2222 = vpack.c.b16 %v2217, %v2216
        %v2223 = vpack.c.b16 %v2219, %v2218
        %2228 = vmatpush.bf16.msra.mxu0 0
        %2229 = vmatpush.bf16.msra.mxu0 0
        %2230 = vmatpush.bf16.msra.mxu0 0
        %2231 = vmatpush.bf16.msra.mxu0 0
        %2232 = vmatpush.bf16.msra.mxu0 %v2223
        %2233 = vmatpush.bf16.msra.mxu0 %v2222
        %2234 = vmatpush.bf16.msra.mxu0 %v2221
        %2235 = vmatpush.bf16.msra.mxu0 %v2220
        %2236 = vmatmul.bf16.gmra.mxu0 %v2176
        %v2237 = vpop.f32.mrf.mxu0
        %v2238 = vadd.f32 0.0, %v2237
        %v2239 = vpop.f32.mrf.mxu0
        %v2240 = vadd.f32 0.0, %v2239
        %2241 = vdwg.mxu0
        %v2242 = vpack.c.bf16 %v2240, %v2238
        %s2243 = scalar_lea.vmem %s4, 8
        %v2244 = vld [vmem:[%s2243] sm:$0xf]
        %v2245 = vld [vmem:[%s2243 + $0x4] sm:$0xf]
        %v2248 = vunpack.c.l.b16 %v2244
        %v2249 = vunpack.c.l.b16 %v2245
        %v2250 = vpack.c.b16 %v2249, %v2248
        %vm2251 = vcmask 130048
        %v2253 = vsel %vm2251, %v2250, 0
        %2255 = vmatpush.bf16.msra.mxu0 0
        %2256 = vmatpush.bf16.msra.mxu0 0
        %2257 = vmatpush.bf16.msra.mxu0 0
        %2258 = vmatpush.bf16.msra.mxu0 0
        %2259 = vmatpush.bf16.msra.mxu0 0
        %2260 = vmatpush.bf16.msra.mxu0 0
        %2261 = vmatpush.bf16.msra.mxu0 0
        %2262 = vmatpush.bf16.msra.mxu0 %v2242
        %2263 = vmatmul.bf16.gmra.mxu0 %v2253
        %v2264 = vpop.f32.mrf.mxu0
        %v2265 = vadd.f32 0.0, %v2264
        %v2266 = vpop.f32.mrf.mxu0
        %v2267 = vadd.f32 0.0, %v2266
        %2268 = vdwg.mxu0
        %v2271 = vunpack.c.l.b16 %v2193
        %v2272 = vunpack.c.l.b16 %v2194
        %v2273 = vpack.c.b16 %v2272, %v2271
        %v2275 = vsel %vm2251, %v2273, 0
        %2277 = vmatpush.bf16.msra.mxu0 0
        %2278 = vmatpush.bf16.msra.mxu0 0
        %2279 = vmatpush.bf16.msra.mxu0 0
        %2280 = vmatpush.bf16.msra.mxu0 0
        %2281 = vmatpush.bf16.msra.mxu0 0
        %2282 = vmatpush.bf16.msra.mxu0 0
        %2283 = vmatpush.bf16.msra.mxu0 0
        %2284 = vmatpush.bf16.msra.mxu0 %v2192
        %2285 = vmatmul.bf16.gmra.mxu0 %v2275
        %v2286 = vpop.f32.mrf.mxu0
        %v2287 = vadd.f32 %v2265, %v2286
        %v2288 = vpop.f32.mrf.mxu0
        %v2289 = vadd.f32 %v2267, %v2288
        %2290 = vdwg.mxu0
        %s2291 = scalar_lea.vmem [#allocation4], 64
        %v2292 = vld [vmem:[%s2291] sm:$0xf]
        %v2293 = vld [vmem:[%s2291 + $0x4] sm:$0xf]
        %v2294 = vld [vmem:[%s2291 + $0x8] sm:$0xf]
        %v2295 = vld [vmem:[%s2291 + $0xc] sm:$0xf]
        %v2296 = vld [vmem:[%s2291 + $0x10] sm:$0xf]
        %v2297 = vld [vmem:[%s2291 + $0x14] sm:$0xf]
        %v2298 = vld [vmem:[%s2291 + $0x18] sm:$0xf]
        %v2299 = vld [vmem:[%s2291 + $0x1c] sm:$0xf]
        %v2308 = vunpack.c.l.b16 %v2292
        %v2309 = vunpack.c.l.b16 %v2293
        %v2310 = vunpack.c.l.b16 %v2294
        %v2311 = vunpack.c.l.b16 %v2295
        %v2312 = vunpack.c.l.b16 %v2296
        %v2313 = vunpack.c.l.b16 %v2297
        %v2314 = vunpack.c.l.b16 %v2298
        %v2315 = vunpack.c.l.b16 %v2299
        %v2316 = vpack.c.b16 %v2309, %v2308
        %v2317 = vpack.c.b16 %v2311, %v2310
        %v2318 = vpack.c.b16 %v2313, %v2312
        %v2319 = vpack.c.b16 %v2315, %v2314
        %2324 = vmatpush.bf16.msra.mxu0 0
        %2325 = vmatpush.bf16.msra.mxu0 0
        %2326 = vmatpush.bf16.msra.mxu0 0
        %2327 = vmatpush.bf16.msra.mxu0 0
        %2328 = vmatpush.bf16.msra.mxu0 %v2319
        %2329 = vmatpush.bf16.msra.mxu0 %v2318
        %2330 = vmatpush.bf16.msra.mxu0 %v2317
        %2331 = vmatpush.bf16.msra.mxu0 %v2316
        %2332 = vmatmul.bf16.gmra.mxu0 %v2176
        %v2333 = vpop.f32.mrf.mxu0
        %v2334 = vadd.f32 0.0, %v2333
        %v2335 = vpop.f32.mrf.mxu0
        %v2336 = vadd.f32 0.0, %v2335
        %2337 = vdwg.mxu0
        %v2338 = vpack.c.bf16 %v2336, %v2334
        %s2339 = scalar_lea.vmem %s4, 16
        %v2340 = vld [vmem:[%s2339] sm:$0xf]
        %v2341 = vld [vmem:[%s2339 + $0x4] sm:$0xf]
        %v2344 = vunpack.c.l.b16 %v2340
        %v2345 = vunpack.c.l.b16 %v2341
        %v2346 = vpack.c.b16 %v2345, %v2344
        %v2348 = vsel %vm2251, %v2346, 0
        %2350 = vmatpush.bf16.msra.mxu0 0
        %2351 = vmatpush.bf16.msra.mxu0 0
        %2352 = vmatpush.bf16.msra.mxu0 0
        %2353 = vmatpush.bf16.msra.mxu0 0
        %2354 = vmatpush.bf16.msra.mxu0 0
        %2355 = vmatpush.bf16.msra.mxu0 0
        %2356 = vmatpush.bf16.msra.mxu0 0
        %2357 = vmatpush.bf16.msra.mxu0 %v2338
        %2358 = vmatmul.bf16.gmra.mxu0 %v2348
        %v2359 = vpop.f32.mrf.mxu0
        %v2360 = vadd.f32 0.0, %v2359
        %v2361 = vpop.f32.mrf.mxu0
        %v2362 = vadd.f32 0.0, %v2361
        %2363 = vdwg.mxu0
        %v2364 = vadd.f32 %v2287, %v2360
        %v2365 = vadd.f32 %v2289, %v2362
        %s2366 = scalar_lea.vmem [#allocation4], 96
        %v2367 = vld [vmem:[%s2366] sm:$0xf]
        %v2368 = vld [vmem:[%s2366 + $0x4] sm:$0xf]
        %v2369 = vld [vmem:[%s2366 + $0x8] sm:$0xf]
        %v2370 = vld [vmem:[%s2366 + $0xc] sm:$0xf]
        %v2371 = vld [vmem:[%s2366 + $0x10] sm:$0xf]
        %v2372 = vld [vmem:[%s2366 + $0x14] sm:$0xf]
        %v2373 = vld [vmem:[%s2366 + $0x18] sm:$0xf]
        %v2374 = vld [vmem:[%s2366 + $0x1c] sm:$0xf]
        %v2383 = vunpack.c.l.b16 %v2367
        %v2384 = vunpack.c.l.b16 %v2368
        %v2385 = vunpack.c.l.b16 %v2369
        %v2386 = vunpack.c.l.b16 %v2370
        %v2387 = vunpack.c.l.b16 %v2371
        %v2388 = vunpack.c.l.b16 %v2372
        %v2389 = vunpack.c.l.b16 %v2373
        %v2390 = vunpack.c.l.b16 %v2374
        %v2391 = vpack.c.b16 %v2384, %v2383
        %v2392 = vpack.c.b16 %v2386, %v2385
        %v2393 = vpack.c.b16 %v2388, %v2387
        %v2394 = vpack.c.b16 %v2390, %v2389
        %2399 = vmatpush.bf16.msra.mxu0 0
        %2400 = vmatpush.bf16.msra.mxu0 0
        %2401 = vmatpush.bf16.msra.mxu0 0
        %2402 = vmatpush.bf16.msra.mxu0 0
        %2403 = vmatpush.bf16.msra.mxu0 %v2394
        %2404 = vmatpush.bf16.msra.mxu0 %v2393
        %2405 = vmatpush.bf16.msra.mxu0 %v2392
        %2406 = vmatpush.bf16.msra.mxu0 %v2391
        %2407 = vmatmul.bf16.gmra.mxu0 %v2176
        %v2408 = vpop.f32.mrf.mxu0
        %v2409 = vadd.f32 0.0, %v2408
        %v2410 = vpop.f32.mrf.mxu0
        %v2411 = vadd.f32 0.0, %v2410
        %2412 = vdwg.mxu0
        %v2413 = vpack.c.bf16 %v2411, %v2409
        %s2414 = scalar_lea.vmem %s4, 24
        %v2415 = vld [vmem:[%s2414] sm:$0xf]
        %v2416 = vld [vmem:[%s2414 + $0x4] sm:$0xf]
        %v2419 = vunpack.c.l.b16 %v2415
        %v2420 = vunpack.c.l.b16 %v2416
        %v2421 = vpack.c.b16 %v2420, %v2419
        %v2423 = vsel %vm2251, %v2421, 0
        %2425 = vmatpush.bf16.msra.mxu0 0
        %2426 = vmatpush.bf16.msra.mxu0 0
        %2427 = vmatpush.bf16.msra.mxu0 0
        %2428 = vmatpush.bf16.msra.mxu0 0
        %2429 = vmatpush.bf16.msra.mxu0 0
        %2430 = vmatpush.bf16.msra.mxu0 0
        %2431 = vmatpush.bf16.msra.mxu0 0
        %2432 = vmatpush.bf16.msra.mxu0 %v2413
        %2433 = vmatmul.bf16.gmra.mxu0 %v2423
        %v2434 = vpop.f32.mrf.mxu0
        %v2435 = vadd.f32 0.0, %v2434
        %v2436 = vpop.f32.mrf.mxu0
        %v2437 = vadd.f32 0.0, %v2436
        %2438 = vdwg.mxu0
        %v2439 = vadd.f32 %v2364, %v2435
        %v2440 = vadd.f32 %v2365, %v2437
        %s2441 = scalar_lea.vmem [#allocation4], 128
        %v2442 = vld [vmem:[%s2441] sm:$0xf]
        %v2443 = vld [vmem:[%s2441 + $0x4] sm:$0xf]
        %v2444 = vld [vmem:[%s2441 + $0x8] sm:$0xf]
        %v2445 = vld [vmem:[%s2441 + $0xc] sm:$0xf]
        %v2446 = vld [vmem:[%s2441 + $0x10] sm:$0xf]
        %v2447 = vld [vmem:[%s2441 + $0x14] sm:$0xf]
        %v2448 = vld [vmem:[%s2441 + $0x18] sm:$0xf]
        %v2449 = vld [vmem:[%s2441 + $0x1c] sm:$0xf]
        %v2458 = vunpack.c.l.b16 %v2442
        %v2459 = vunpack.c.l.b16 %v2443
        %v2460 = vunpack.c.l.b16 %v2444
        %v2461 = vunpack.c.l.b16 %v2445
        %v2462 = vunpack.c.l.b16 %v2446
        %v2463 = vunpack.c.l.b16 %v2447
        %v2464 = vunpack.c.l.b16 %v2448
        %v2465 = vunpack.c.l.b16 %v2449
        %v2466 = vpack.c.b16 %v2459, %v2458
        %v2467 = vpack.c.b16 %v2461, %v2460
        %v2468 = vpack.c.b16 %v2463, %v2462
        %v2469 = vpack.c.b16 %v2465, %v2464
        %2474 = vmatpush.bf16.msra.mxu0 0
        %2475 = vmatpush.bf16.msra.mxu0 0
        %2476 = vmatpush.bf16.msra.mxu0 0
        %2477 = vmatpush.bf16.msra.mxu0 0
        %2478 = vmatpush.bf16.msra.mxu0 %v2469
        %2479 = vmatpush.bf16.msra.mxu0 %v2468
        %2480 = vmatpush.bf16.msra.mxu0 %v2467
        %2481 = vmatpush.bf16.msra.mxu0 %v2466
        %2482 = vmatmul.bf16.gmra.mxu0 %v2176
        %v2483 = vpop.f32.mrf.mxu0
        %v2484 = vadd.f32 0.0, %v2483
        %v2485 = vpop.f32.mrf.mxu0
        %v2486 = vadd.f32 0.0, %v2485
        %2487 = vdwg.mxu0
        %v2488 = vpack.c.bf16 %v2486, %v2484
        %s2489 = scalar_lea.vmem %s4, 32
        %v2490 = vld [vmem:[%s2489] sm:$0xf]
        %v2491 = vld [vmem:[%s2489 + $0x4] sm:$0xf]
        %v2494 = vunpack.c.l.b16 %v2490
        %v2495 = vunpack.c.l.b16 %v2491
        %v2496 = vpack.c.b16 %v2495, %v2494
        %v2498 = vsel %vm2251, %v2496, 0
        %2500 = vmatpush.bf16.msra.mxu0 0
        %2501 = vmatpush.bf16.msra.mxu0 0
        %2502 = vmatpush.bf16.msra.mxu0 0
        %2503 = vmatpush.bf16.msra.mxu0 0
        %2504 = vmatpush.bf16.msra.mxu0 0
        %2505 = vmatpush.bf16.msra.mxu0 0
        %2506 = vmatpush.bf16.msra.mxu0 0
        %2507 = vmatpush.bf16.msra.mxu0 %v2488
        %2508 = vmatmul.bf16.gmra.mxu0 %v2498
        %v2509 = vpop.f32.mrf.mxu0
        %v2510 = vadd.f32 0.0, %v2509
        %v2511 = vpop.f32.mrf.mxu0
        %v2512 = vadd.f32 0.0, %v2511
        %2513 = vdwg.mxu0
        %v2514 = vadd.f32 %v2439, %v2510
        %v2515 = vadd.f32 %v2440, %v2512
        %s2516 = scalar_lea.vmem [#allocation4], 160
        %v2517 = vld [vmem:[%s2516] sm:$0xf]
        %v2518 = vld [vmem:[%s2516 + $0x4] sm:$0xf]
        %v2519 = vld [vmem:[%s2516 + $0x8] sm:$0xf]
        %v2520 = vld [vmem:[%s2516 + $0xc] sm:$0xf]
        %v2521 = vld [vmem:[%s2516 + $0x10] sm:$0xf]
        %v2522 = vld [vmem:[%s2516 + $0x14] sm:$0xf]
        %v2523 = vld [vmem:[%s2516 + $0x18] sm:$0xf]
        %v2524 = vld [vmem:[%s2516 + $0x1c] sm:$0xf]
        %v2533 = vunpack.c.l.b16 %v2517
        %v2534 = vunpack.c.l.b16 %v2518
        %v2535 = vunpack.c.l.b16 %v2519
        %v2536 = vunpack.c.l.b16 %v2520
        %v2537 = vunpack.c.l.b16 %v2521
        %v2538 = vunpack.c.l.b16 %v2522
        %v2539 = vunpack.c.l.b16 %v2523
        %v2540 = vunpack.c.l.b16 %v2524
        %v2541 = vpack.c.b16 %v2534, %v2533
        %v2542 = vpack.c.b16 %v2536, %v2535
        %v2543 = vpack.c.b16 %v2538, %v2537
        %v2544 = vpack.c.b16 %v2540, %v2539
        %2549 = vmatpush.bf16.msra.mxu0 0
        %2550 = vmatpush.bf16.msra.mxu0 0
        %2551 = vmatpush.bf16.msra.mxu0 0
        %2552 = vmatpush.bf16.msra.mxu0 0
        %2553 = vmatpush.bf16.msra.mxu0 %v2544
        %2554 = vmatpush.bf16.msra.mxu0 %v2543
        %2555 = vmatpush.bf16.msra.mxu0 %v2542
        %2556 = vmatpush.bf16.msra.mxu0 %v2541
        %2557 = vmatmul.bf16.gmra.mxu0 %v2176
        %v2558 = vpop.f32.mrf.mxu0
        %v2559 = vadd.f32 0.0, %v2558
        %v2560 = vpop.f32.mrf.mxu0
        %v2561 = vadd.f32 0.0, %v2560
        %2562 = vdwg.mxu0
        %v2563 = vpack.c.bf16 %v2561, %v2559
        %s2564 = scalar_lea.vmem %s4, 40
        %v2565 = vld [vmem:[%s2564] sm:$0xf]
        %v2566 = vld [vmem:[%s2564 + $0x4] sm:$0xf]
        %v2569 = vunpack.c.l.b16 %v2565
        %v2570 = vunpack.c.l.b16 %v2566
        %v2571 = vpack.c.b16 %v2570, %v2569
        %v2573 = vsel %vm2251, %v2571, 0
        %2575 = vmatpush.bf16.msra.mxu0 0
        %2576 = vmatpush.bf16.msra.mxu0 0
        %2577 = vmatpush.bf16.msra.mxu0 0
        %2578 = vmatpush.bf16.msra.mxu0 0
        %2579 = vmatpush.bf16.msra.mxu0 0
        %2580 = vmatpush.bf16.msra.mxu0 0
        %2581 = vmatpush.bf16.msra.mxu0 0
        %2582 = vmatpush.bf16.msra.mxu0 %v2563
        %2583 = vmatmul.bf16.gmra.mxu0 %v2573
        %v2584 = vpop.f32.mrf.mxu0
        %v2585 = vadd.f32 0.0, %v2584
        %v2586 = vpop.f32.mrf.mxu0
        %v2587 = vadd.f32 0.0, %v2586
        %2588 = vdwg.mxu0
        %v2589 = vadd.f32 %v2514, %v2585
        %v2590 = vadd.f32 %v2515, %v2587
        %s2591 = scalar_lea.vmem [#allocation4], 192
        %v2592 = vld [vmem:[%s2591] sm:$0xf]
        %v2593 = vld [vmem:[%s2591 + $0x4] sm:$0xf]
        %v2594 = vld [vmem:[%s2591 + $0x8] sm:$0xf]
        %v2595 = vld [vmem:[%s2591 + $0xc] sm:$0xf]
        %v2596 = vld [vmem:[%s2591 + $0x10] sm:$0xf]
        %v2597 = vld [vmem:[%s2591 + $0x14] sm:$0xf]
        %v2598 = vld [vmem:[%s2591 + $0x18] sm:$0xf]
        %v2599 = vld [vmem:[%s2591 + $0x1c] sm:$0xf]
        %v2608 = vunpack.c.l.b16 %v2592
        %v2609 = vunpack.c.l.b16 %v2593
        %v2610 = vunpack.c.l.b16 %v2594
        %v2611 = vunpack.c.l.b16 %v2595
        %v2612 = vunpack.c.l.b16 %v2596
        %v2613 = vunpack.c.l.b16 %v2597
        %v2614 = vunpack.c.l.b16 %v2598
        %v2615 = vunpack.c.l.b16 %v2599
        %v2616 = vpack.c.b16 %v2609, %v2608
        %v2617 = vpack.c.b16 %v2611, %v2610
        %v2618 = vpack.c.b16 %v2613, %v2612
        %v2619 = vpack.c.b16 %v2615, %v2614
        %2624 = vmatpush.bf16.msra.mxu0 0
        %2625 = vmatpush.bf16.msra.mxu0 0
        %2626 = vmatpush.bf16.msra.mxu0 0
        %2627 = vmatpush.bf16.msra.mxu0 0
        %2628 = vmatpush.bf16.msra.mxu0 %v2619
        %2629 = vmatpush.bf16.msra.mxu0 %v2618
        %2630 = vmatpush.bf16.msra.mxu0 %v2617
        %2631 = vmatpush.bf16.msra.mxu0 %v2616
        %2632 = vmatmul.bf16.gmra.mxu0 %v2176
        %v2633 = vpop.f32.mrf.mxu0
        %v2634 = vadd.f32 0.0, %v2633
        %v2635 = vpop.f32.mrf.mxu0
        %v2636 = vadd.f32 0.0, %v2635
        %2637 = vdwg.mxu0
        %v2638 = vpack.c.bf16 %v2636, %v2634
        %s2639 = scalar_lea.vmem %s4, 48
        %v2640 = vld [vmem:[%s2639] sm:$0xf]
        %v2641 = vld [vmem:[%s2639 + $0x4] sm:$0xf]
        %v2644 = vunpack.c.l.b16 %v2640
        %v2645 = vunpack.c.l.b16 %v2641
        %v2646 = vpack.c.b16 %v2645, %v2644
        %v2648 = vsel %vm2251, %v2646, 0
        %2650 = vmatpush.bf16.msra.mxu0 0
        %2651 = vmatpush.bf16.msra.mxu0 0
        %2652 = vmatpush.bf16.msra.mxu0 0
        %2653 = vmatpush.bf16.msra.mxu0 0
        %2654 = vmatpush.bf16.msra.mxu0 0
        %2655 = vmatpush.bf16.msra.mxu0 0
        %2656 = vmatpush.bf16.msra.mxu0 0
        %2657 = vmatpush.bf16.msra.mxu0 %v2638
        %2658 = vmatmul.bf16.gmra.mxu0 %v2648
        %v2659 = vpop.f32.mrf.mxu0
        %v2660 = vadd.f32 0.0, %v2659
        %v2661 = vpop.f32.mrf.mxu0
        %v2662 = vadd.f32 0.0, %v2661
        %2663 = vdwg.mxu0
        %v2664 = vadd.f32 %v2589, %v2660
        %v2665 = vadd.f32 %v2590, %v2662
        %s2666 = scalar_lea.vmem [#allocation4], 224
        %v2667 = vld [vmem:[%s2666] sm:$0xf]
        %v2668 = vld [vmem:[%s2666 + $0x4] sm:$0xf]
        %v2669 = vld [vmem:[%s2666 + $0x8] sm:$0xf]
        %v2670 = vld [vmem:[%s2666 + $0xc] sm:$0xf]
        %v2671 = vld [vmem:[%s2666 + $0x10] sm:$0xf]
        %v2672 = vld [vmem:[%s2666 + $0x14] sm:$0xf]
        %v2673 = vld [vmem:[%s2666 + $0x18] sm:$0xf]
        %v2674 = vld [vmem:[%s2666 + $0x1c] sm:$0xf]
        %v2683 = vunpack.c.l.b16 %v2667
        %v2684 = vunpack.c.l.b16 %v2668
        %v2685 = vunpack.c.l.b16 %v2669
        %v2686 = vunpack.c.l.b16 %v2670
        %v2687 = vunpack.c.l.b16 %v2671
        %v2688 = vunpack.c.l.b16 %v2672
        %v2689 = vunpack.c.l.b16 %v2673
        %v2690 = vunpack.c.l.b16 %v2674
        %v2691 = vpack.c.b16 %v2684, %v2683
        %v2692 = vpack.c.b16 %v2686, %v2685
        %v2693 = vpack.c.b16 %v2688, %v2687
        %v2694 = vpack.c.b16 %v2690, %v2689
        %2699 = vmatpush.bf16.msra.mxu0 0
        %2700 = vmatpush.bf16.msra.mxu0 0
        %2701 = vmatpush.bf16.msra.mxu0 0
        %2702 = vmatpush.bf16.msra.mxu0 0
        %2703 = vmatpush.bf16.msra.mxu0 %v2694
        %2704 = vmatpush.bf16.msra.mxu0 %v2693
        %2705 = vmatpush.bf16.msra.mxu0 %v2692
        %2706 = vmatpush.bf16.msra.mxu0 %v2691
        %2707 = vmatmul.bf16.gmra.mxu0 %v2176
        %v2708 = vpop.f32.mrf.mxu0
        %v2709 = vadd.f32 0.0, %v2708
        %v2710 = vpop.f32.mrf.mxu0
        %v2711 = vadd.f32 0.0, %v2710
        %2712 = vdwg.mxu0
        %v2713 = vpack.c.bf16 %v2711, %v2709
        %s2714 = scalar_lea.vmem %s4, 56
        %v2715 = vld [vmem:[%s2714] sm:$0xf]
        %v2716 = vld [vmem:[%s2714 + $0x4] sm:$0xf]
        %v2719 = vunpack.c.l.b16 %v2715
        %v2720 = vunpack.c.l.b16 %v2716
        %v2721 = vpack.c.b16 %v2720, %v2719
        %v2723 = vsel %vm2251, %v2721, 0
        %2725 = vmatpush.bf16.msra.mxu0 0
        %2726 = vmatpush.bf16.msra.mxu0 0
        %2727 = vmatpush.bf16.msra.mxu0 0
        %2728 = vmatpush.bf16.msra.mxu0 0
        %2729 = vmatpush.bf16.msra.mxu0 0
        %2730 = vmatpush.bf16.msra.mxu0 0
        %2731 = vmatpush.bf16.msra.mxu0 0
        %2732 = vmatpush.bf16.msra.mxu0 %v2713
        %2733 = vmatmul.bf16.gmra.mxu0 %v2723
        %v2734 = vpop.f32.mrf.mxu0
        %v2735 = vadd.f32 0.0, %v2734
        %v2736 = vpop.f32.mrf.mxu0
        %v2737 = vadd.f32 0.0, %v2736
        %2738 = vdwg.mxu0
        %v2739 = vadd.f32 %v2664, %v2735
        %v2740 = vadd.f32 %v2665, %v2737
        %s2741 = scalar_lea.vmem [#allocation4], 256
        %v2742 = vld [vmem:[%s2741] sm:$0xf]
        %v2743 = vld [vmem:[%s2741 + $0x4] sm:$0xf]
        %v2744 = vld [vmem:[%s2741 + $0x8] sm:$0xf]
        %v2745 = vld [vmem:[%s2741 + $0xc] sm:$0xf]
        %v2746 = vld [vmem:[%s2741 + $0x10] sm:$0xf]
        %v2747 = vld [vmem:[%s2741 + $0x14] sm:$0xf]
        %v2748 = vld [vmem:[%s2741 + $0x18] sm:$0xf]
        %v2749 = vld [vmem:[%s2741 + $0x1c] sm:$0xf]
        %v2758 = vunpack.c.l.b16 %v2742
        %v2759 = vunpack.c.l.b16 %v2743
        %v2760 = vunpack.c.l.b16 %v2744
        %v2761 = vunpack.c.l.b16 %v2745
        %v2762 = vunpack.c.l.b16 %v2746
        %v2763 = vunpack.c.l.b16 %v2747
        %v2764 = vunpack.c.l.b16 %v2748
        %v2765 = vunpack.c.l.b16 %v2749
        %v2766 = vpack.c.b16 %v2759, %v2758
        %v2767 = vpack.c.b16 %v2761, %v2760
        %v2768 = vpack.c.b16 %v2763, %v2762
        %v2769 = vpack.c.b16 %v2765, %v2764
        %2774 = vmatpush.bf16.msra.mxu0 0
        %2775 = vmatpush.bf16.msra.mxu0 0
        %2776 = vmatpush.bf16.msra.mxu0 0
        %2777 = vmatpush.bf16.msra.mxu0 0
        %2778 = vmatpush.bf16.msra.mxu0 %v2769
        %2779 = vmatpush.bf16.msra.mxu0 %v2768
        %2780 = vmatpush.bf16.msra.mxu0 %v2767
        %2781 = vmatpush.bf16.msra.mxu0 %v2766
        %2782 = vmatmul.bf16.gmra.mxu0 %v2176
        %v2783 = vpop.f32.mrf.mxu0
        %v2784 = vadd.f32 0.0, %v2783
        %v2785 = vpop.f32.mrf.mxu0
        %v2786 = vadd.f32 0.0, %v2785
        %2787 = vdwg.mxu0
        %v2788 = vpack.c.bf16 %v2786, %v2784
        %s2789 = scalar_lea.vmem %s4, 64
        %v2790 = vld [vmem:[%s2789] sm:$0xf]
        %v2791 = vld [vmem:[%s2789 + $0x4] sm:$0xf]
        %v2794 = vunpack.c.l.b16 %v2790
        %v2795 = vunpack.c.l.b16 %v2791
        %v2796 = vpack.c.b16 %v2795, %v2794
        %v2798 = vsel %vm2251, %v2796, 0
        %2800 = vmatpush.bf16.msra.mxu0 0
        %2801 = vmatpush.bf16.msra.mxu0 0
        %2802 = vmatpush.bf16.msra.mxu0 0
        %2803 = vmatpush.bf16.msra.mxu0 0
        %2804 = vmatpush.bf16.msra.mxu0 0
        %2805 = vmatpush.bf16.msra.mxu0 0
        %2806 = vmatpush.bf16.msra.mxu0 0
        %2807 = vmatpush.bf16.msra.mxu0 %v2788
        %2808 = vmatmul.bf16.gmra.mxu0 %v2798
        %v2809 = vpop.f32.mrf.mxu0
        %v2810 = vadd.f32 0.0, %v2809
        %v2811 = vpop.f32.mrf.mxu0
        %v2812 = vadd.f32 0.0, %v2811
        %2813 = vdwg.mxu0
        %v2814 = vadd.f32 %v2739, %v2810
        %v2815 = vadd.f32 %v2740, %v2812
        %v2816 = vld [vmem:[%s5] sm:$0xff]
        %v2817 = vld [vmem:[%s5 + $0x8] sm:$0xff]
        %2819 = vset.pattern.permute.xlu0 0
        %2820 = vperm.xlu0 %2819, %v2816
        %v2821 = vpop.permute.xlu0 %2820
        %2824 = vset.pattern.permute.xlu0 0
        %2825 = vperm.xlu0 %2824, %v2817
        %v2826 = vpop.permute.xlu0 %2825
        %v2828 = vadd.f32 %v2814, %v2821
        %v2829 = vadd.f32 %v2815, %v2826
        %v2830 = vmax.f32 %v2828, 0.0
        %v2831 = vmax.f32 %v2829, 0.0
        %2832 = vst.msk [vmem:[%s444] sm:$0xff] %vm2174, %v2830
        %2833 = vst.msk [vmem:[%s444 + $0x8] sm:$0xff] %vm2174, %v2831
        %v2834 = vpack.c.bf16 %v2831, %v2830
        %v2835 = vld [vmem:[#allocation6] sm:$0xff]
        %v2836 = vld [vmem:[#allocation6 + $0x8] sm:$0xff]
        %v2837 = vld [vmem:[#allocation6 + $0x10] sm:$0xff]
        %v2838 = vld [vmem:[#allocation6 + $0x18] sm:$0xff]
        %v2839 = vld [vmem:[#allocation6 + $0x20] sm:$0xff]
        %v2840 = vld [vmem:[#allocation6 + $0x28] sm:$0xff]
        %v2841 = vld [vmem:[#allocation6 + $0x30] sm:$0xff]
        %v2842 = vld [vmem:[#allocation6 + $0x38] sm:$0xff]
        %v2851 = vunpack.c.l.b16 %v2835
        %v2852 = vunpack.c.h.b16 %v2835
        %v2853 = vunpack.c.l.b16 %v2836
        %v2854 = vunpack.c.h.b16 %v2836
        %v2855 = vunpack.c.l.b16 %v2837
        %v2856 = vunpack.c.h.b16 %v2837
        %v2857 = vunpack.c.l.b16 %v2838
        %v2858 = vunpack.c.h.b16 %v2838
        %v2859 = vunpack.c.l.b16 %v2839
        %v2860 = vunpack.c.h.b16 %v2839
        %v2861 = vunpack.c.l.b16 %v2840
        %v2862 = vunpack.c.h.b16 %v2840
        %v2863 = vunpack.c.l.b16 %v2841
        %v2864 = vunpack.c.h.b16 %v2841
        %v2865 = vunpack.c.l.b16 %v2842
        %v2866 = vunpack.c.h.b16 %v2842
        %v2867 = vpack.c.b16 %v2853, %v2851
        %v2868 = vpack.c.b16 %v2854, %v2852
        %v2869 = vpack.c.b16 %v2857, %v2855
        %v2870 = vpack.c.b16 %v2858, %v2856
        %v2871 = vpack.c.b16 %v2861, %v2859
        %v2872 = vpack.c.b16 %v2862, %v2860
        %v2873 = vpack.c.b16 %v2865, %v2863
        %v2874 = vpack.c.b16 %v2866, %v2864
        %v2884 = vsel %vm2174, %v2834, 0
        %2886 = vmatpush.bf16.msra.mxu0 0
        %2887 = vmatpush.bf16.msra.mxu0 0
        %2888 = vmatpush.bf16.msra.mxu0 0
        %2889 = vmatpush.bf16.msra.mxu0 0
        %2890 = vmatpush.bf16.msra.mxu0 %v2873
        %2891 = vmatpush.bf16.msra.mxu0 %v2871
        %2892 = vmatpush.bf16.msra.mxu0 %v2869
        %2893 = vmatpush.bf16.msra.mxu0 %v2867
        %2894 = vmatmul.bf16.gmra.mxu0 %v2884
        %v2895 = vpop.f32.mrf.mxu0
        %v2896 = vadd.f32 0.0, %v2895
        %v2897 = vpop.f32.mrf.mxu0
        %v2898 = vadd.f32 0.0, %v2897
        %2899 = vdwg.mxu0
        %2900 = vmatpush.bf16.msra.mxu0 0
        %2901 = vmatpush.bf16.msra.mxu0 0
        %2902 = vmatpush.bf16.msra.mxu0 0
        %2903 = vmatpush.bf16.msra.mxu0 0
        %2904 = vmatpush.bf16.msra.mxu0 %v2874
        %2905 = vmatpush.bf16.msra.mxu0 %v2872
        %2906 = vmatpush.bf16.msra.mxu0 %v2870
        %2907 = vmatpush.bf16.msra.mxu0 %v2868
        %2908 = vmatmul.bf16.gmra.mxu0 %v2884
        %v2909 = vpop.f32.mrf.mxu0
        %v2910 = vadd.f32 0.0, %v2909
        %v2911 = vpop.f32.mrf.mxu0
        %v2912 = vadd.f32 0.0, %v2911
        %2913 = vdwg.mxu0
        %v2914 = vpack.c.bf16 %v2898, %v2896
        %v2915 = vpack.c.bf16 %v2912, %v2910
        %v2916 = vld [vmem:[%s7] sm:$0xf]
        %s2917 = scalar_lea.vmem [#allocation6], 64
        %v2918 = vld [vmem:[%s2917] sm:$0xff]
        %v2919 = vld [vmem:[%s2917 + $0x8] sm:$0xff]
        %v2920 = vld [vmem:[%s2917 + $0x10] sm:$0xff]
        %v2921 = vld [vmem:[%s2917 + $0x18] sm:$0xff]
        %v2922 = vld [vmem:[%s2917 + $0x20] sm:$0xff]
        %v2923 = vld [vmem:[%s2917 + $0x28] sm:$0xff]
        %v2924 = vld [vmem:[%s2917 + $0x30] sm:$0xff]
        %v2925 = vld [vmem:[%s2917 + $0x38] sm:$0xff]
        %v2934 = vunpack.c.l.b16 %v2918
        %v2935 = vunpack.c.h.b16 %v2918
        %v2936 = vunpack.c.l.b16 %v2919
        %v2937 = vunpack.c.h.b16 %v2919
        %v2938 = vunpack.c.l.b16 %v2920
        %v2939 = vunpack.c.h.b16 %v2920
        %v2940 = vunpack.c.l.b16 %v2921
        %v2941 = vunpack.c.h.b16 %v2921
        %v2942 = vunpack.c.l.b16 %v2922
        %v2943 = vunpack.c.h.b16 %v2922
        %v2944 = vunpack.c.l.b16 %v2923
        %v2945 = vunpack.c.h.b16 %v2923
        %v2946 = vunpack.c.l.b16 %v2924
        %v2947 = vunpack.c.h.b16 %v2924
        %v2948 = vunpack.c.l.b16 %v2925
        %v2949 = vunpack.c.h.b16 %v2925
        %v2950 = vpack.c.b16 %v2936, %v2934
        %v2951 = vpack.c.b16 %v2937, %v2935
        %v2952 = vpack.c.b16 %v2940, %v2938
        %v2953 = vpack.c.b16 %v2941, %v2939
        %v2954 = vpack.c.b16 %v2944, %v2942
        %v2955 = vpack.c.b16 %v2945, %v2943
        %v2956 = vpack.c.b16 %v2948, %v2946
        %v2957 = vpack.c.b16 %v2949, %v2947
        %2966 = vmatpush.bf16.msra.mxu0 0
        %2967 = vmatpush.bf16.msra.mxu0 0
        %2968 = vmatpush.bf16.msra.mxu0 0
        %2969 = vmatpush.bf16.msra.mxu0 0
        %2970 = vmatpush.bf16.msra.mxu0 %v2956
        %2971 = vmatpush.bf16.msra.mxu0 %v2954
        %2972 = vmatpush.bf16.msra.mxu0 %v2952
        %2973 = vmatpush.bf16.msra.mxu0 %v2950
        %2974 = vmatmul.bf16.gmra.mxu0 %v2884
        %v2975 = vpop.f32.mrf.mxu0
        %v2976 = vadd.f32 0.0, %v2975
        %v2977 = vpop.f32.mrf.mxu0
        %v2978 = vadd.f32 0.0, %v2977
        %2979 = vdwg.mxu0
        %2980 = vmatpush.bf16.msra.mxu0 0
        %2981 = vmatpush.bf16.msra.mxu0 0
        %2982 = vmatpush.bf16.msra.mxu0 0
        %2983 = vmatpush.bf16.msra.mxu0 0
        %2984 = vmatpush.bf16.msra.mxu0 %v2957
        %2985 = vmatpush.bf16.msra.mxu0 %v2955
        %2986 = vmatpush.bf16.msra.mxu0 %v2953
        %2987 = vmatpush.bf16.msra.mxu0 %v2951
        %2988 = vmatmul.bf16.gmra.mxu0 %v2884
        %v2989 = vpop.f32.mrf.mxu0
        %v2990 = vadd.f32 0.0, %v2989
        %v2991 = vpop.f32.mrf.mxu0
        %v2992 = vadd.f32 0.0, %v2991
        %2993 = vdwg.mxu0
        %v2994 = vpack.c.bf16 %v2978, %v2976
        %v2995 = vpack.c.bf16 %v2992, %v2990
        %s2996 = scalar_lea.vmem %s7, 4
        %v2997 = vld [vmem:[%s2996] sm:$0xf]
        %v2999 = vsel %vm2251, %v2997, 0
        %3001 = vmatpush.bf16.msra.mxu0 0
        %3002 = vmatpush.bf16.msra.mxu0 0
        %3003 = vmatpush.bf16.msra.mxu0 0
        %3004 = vmatpush.bf16.msra.mxu0 0
        %3005 = vmatpush.bf16.msra.mxu0 0
        %3006 = vmatpush.bf16.msra.mxu0 0
        %3007 = vmatpush.bf16.msra.mxu0 0
        %3008 = vmatpush.bf16.msra.mxu0 %v2994
        %3009 = vmatmul.bf16.gmra.mxu0 %v2999
        %v3010 = vpop.f32.mrf.mxu0
        %v3011 = vadd.f32 0.0, %v3010
        %v3012 = vpop.f32.mrf.mxu0
        %3013 = vdwg.mxu0
        %3014 = vmatpush.bf16.msra.mxu0 0
        %3015 = vmatpush.bf16.msra.mxu0 0
        %3016 = vmatpush.bf16.msra.mxu0 0
        %3017 = vmatpush.bf16.msra.mxu0 0
        %3018 = vmatpush.bf16.msra.mxu0 0
        %3019 = vmatpush.bf16.msra.mxu0 0
        %3020 = vmatpush.bf16.msra.mxu0 0
        %3021 = vmatpush.bf16.msra.mxu0 %v2995
        %3022 = vmatmul.bf16.gmra.mxu0 %v2999
        %v3023 = vpop.f32.mrf.mxu0
        %v3024 = vadd.f32 0.0, %v3023
        %v3025 = vpop.f32.mrf.mxu0
        %3026 = vdwg.mxu0
        %v3028 = vsel %vm2251, %v2916, 0
        %3030 = vmatpush.bf16.msra.mxu0 0
        %3031 = vmatpush.bf16.msra.mxu0 0
        %3032 = vmatpush.bf16.msra.mxu0 0
        %3033 = vmatpush.bf16.msra.mxu0 0
        %3034 = vmatpush.bf16.msra.mxu0 0
        %3035 = vmatpush.bf16.msra.mxu0 0
        %3036 = vmatpush.bf16.msra.mxu0 0
        %3037 = vmatpush.bf16.msra.mxu0 %v2914
        %3038 = vmatmul.bf16.gmra.mxu0 %v3028
        %v3039 = vpop.f32.mrf.mxu0
        %v3040 = vadd.f32 %v3011, %v3039
        %v3041 = vpop.f32.mrf.mxu0
        %3042 = vdwg.mxu0
        %3043 = vmatpush.bf16.msra.mxu0 0
        %3044 = vmatpush.bf16.msra.mxu0 0
        %3045 = vmatpush.bf16.msra.mxu0 0
        %3046 = vmatpush.bf16.msra.mxu0 0
        %3047 = vmatpush.bf16.msra.mxu0 0
        %3048 = vmatpush.bf16.msra.mxu0 0
        %3049 = vmatpush.bf16.msra.mxu0 0
        %3050 = vmatpush.bf16.msra.mxu0 %v2915
        %3051 = vmatmul.bf16.gmra.mxu0 %v3028
        %v3052 = vpop.f32.mrf.mxu0
        %v3053 = vadd.f32 %v3024, %v3052
        %v3054 = vpop.f32.mrf.mxu0
        %3055 = vdwg.mxu0
        %s3056 = scalar_lea.vmem [#allocation6], 128
        %v3057 = vld [vmem:[%s3056] sm:$0xff]
        %v3058 = vld [vmem:[%s3056 + $0x8] sm:$0xff]
        %v3059 = vld [vmem:[%s3056 + $0x10] sm:$0xff]
        %v3060 = vld [vmem:[%s3056 + $0x18] sm:$0xff]
        %v3061 = vld [vmem:[%s3056 + $0x20] sm:$0xff]
        %v3062 = vld [vmem:[%s3056 + $0x28] sm:$0xff]
        %v3063 = vld [vmem:[%s3056 + $0x30] sm:$0xff]
        %v3064 = vld [vmem:[%s3056 + $0x38] sm:$0xff]
        %v3073 = vunpack.c.l.b16 %v3057
        %v3074 = vunpack.c.h.b16 %v3057
        %v3075 = vunpack.c.l.b16 %v3058
        %v3076 = vunpack.c.h.b16 %v3058
        %v3077 = vunpack.c.l.b16 %v3059
        %v3078 = vunpack.c.h.b16 %v3059
        %v3079 = vunpack.c.l.b16 %v3060
        %v3080 = vunpack.c.h.b16 %v3060
        %v3081 = vunpack.c.l.b16 %v3061
        %v3082 = vunpack.c.h.b16 %v3061
        %v3083 = vunpack.c.l.b16 %v3062
        %v3084 = vunpack.c.h.b16 %v3062
        %v3085 = vunpack.c.l.b16 %v3063
        %v3086 = vunpack.c.h.b16 %v3063
        %v3087 = vunpack.c.l.b16 %v3064
        %v3088 = vunpack.c.h.b16 %v3064
        %v3089 = vpack.c.b16 %v3075, %v3073
        %v3090 = vpack.c.b16 %v3076, %v3074
        %v3091 = vpack.c.b16 %v3079, %v3077
        %v3092 = vpack.c.b16 %v3080, %v3078
        %v3093 = vpack.c.b16 %v3083, %v3081
        %v3094 = vpack.c.b16 %v3084, %v3082
        %v3095 = vpack.c.b16 %v3087, %v3085
        %v3096 = vpack.c.b16 %v3088, %v3086
        %3105 = vmatpush.bf16.msra.mxu0 0
        %3106 = vmatpush.bf16.msra.mxu0 0
        %3107 = vmatpush.bf16.msra.mxu0 0
        %3108 = vmatpush.bf16.msra.mxu0 0
        %3109 = vmatpush.bf16.msra.mxu0 %v3095
        %3110 = vmatpush.bf16.msra.mxu0 %v3093
        %3111 = vmatpush.bf16.msra.mxu0 %v3091
        %3112 = vmatpush.bf16.msra.mxu0 %v3089
        %3113 = vmatmul.bf16.gmra.mxu0 %v2884
        %v3114 = vpop.f32.mrf.mxu0
        %v3115 = vadd.f32 0.0, %v3114
        %v3116 = vpop.f32.mrf.mxu0
        %v3117 = vadd.f32 0.0, %v3116
        %3118 = vdwg.mxu0
        %3119 = vmatpush.bf16.msra.mxu0 0
        %3120 = vmatpush.bf16.msra.mxu0 0
        %3121 = vmatpush.bf16.msra.mxu0 0
        %3122 = vmatpush.bf16.msra.mxu0 0
        %3123 = vmatpush.bf16.msra.mxu0 %v3096
        %3124 = vmatpush.bf16.msra.mxu0 %v3094
        %3125 = vmatpush.bf16.msra.mxu0 %v3092
        %3126 = vmatpush.bf16.msra.mxu0 %v3090
        %3127 = vmatmul.bf16.gmra.mxu0 %v2884
        %v3128 = vpop.f32.mrf.mxu0
        %v3129 = vadd.f32 0.0, %v3128
        %v3130 = vpop.f32.mrf.mxu0
        %v3131 = vadd.f32 0.0, %v3130
        %3132 = vdwg.mxu0
        %v3133 = vpack.c.bf16 %v3117, %v3115
        %v3134 = vpack.c.bf16 %v3131, %v3129
        %s3135 = scalar_lea.vmem %s7, 8
        %v3136 = vld [vmem:[%s3135] sm:$0xf]
        %v3138 = vsel %vm2251, %v3136, 0
        %3140 = vmatpush.bf16.msra.mxu0 0
        %3141 = vmatpush.bf16.msra.mxu0 0
        %3142 = vmatpush.bf16.msra.mxu0 0
        %3143 = vmatpush.bf16.msra.mxu0 0
        %3144 = vmatpush.bf16.msra.mxu0 0
        %3145 = vmatpush.bf16.msra.mxu0 0
        %3146 = vmatpush.bf16.msra.mxu0 0
        %3147 = vmatpush.bf16.msra.mxu0 %v3133
        %3148 = vmatmul.bf16.gmra.mxu0 %v3138
        %v3149 = vpop.f32.mrf.mxu0
        %v3150 = vadd.f32 0.0, %v3149
        %v3151 = vpop.f32.mrf.mxu0
        %3152 = vdwg.mxu0
        %3153 = vmatpush.bf16.msra.mxu0 0
        %3154 = vmatpush.bf16.msra.mxu0 0
        %3155 = vmatpush.bf16.msra.mxu0 0
        %3156 = vmatpush.bf16.msra.mxu0 0
        %3157 = vmatpush.bf16.msra.mxu0 0
        %3158 = vmatpush.bf16.msra.mxu0 0
        %3159 = vmatpush.bf16.msra.mxu0 0
        %3160 = vmatpush.bf16.msra.mxu0 %v3134
        %3161 = vmatmul.bf16.gmra.mxu0 %v3138
        %v3162 = vpop.f32.mrf.mxu0
        %v3163 = vadd.f32 0.0, %v3162
        %v3164 = vpop.f32.mrf.mxu0
        %3165 = vdwg.mxu0
        %v3166 = vadd.f32 %v3040, %v3150
        %v3167 = vadd.f32 %v3053, %v3163
        %s3168 = scalar_lea.vmem [#allocation6], 192
        %v3169 = vld [vmem:[%s3168] sm:$0xff]
        %v3170 = vld [vmem:[%s3168 + $0x8] sm:$0xff]
        %v3171 = vld [vmem:[%s3168 + $0x10] sm:$0xff]
        %v3172 = vld [vmem:[%s3168 + $0x18] sm:$0xff]
        %v3173 = vld [vmem:[%s3168 + $0x20] sm:$0xff]
        %v3174 = vld [vmem:[%s3168 + $0x28] sm:$0xff]
        %v3175 = vld [vmem:[%s3168 + $0x30] sm:$0xff]
        %v3176 = vld [vmem:[%s3168 + $0x38] sm:$0xff]
        %v3185 = vunpack.c.l.b16 %v3169
        %v3186 = vunpack.c.h.b16 %v3169
        %v3187 = vunpack.c.l.b16 %v3170
        %v3188 = vunpack.c.h.b16 %v3170
        %v3189 = vunpack.c.l.b16 %v3171
        %v3190 = vunpack.c.h.b16 %v3171
        %v3191 = vunpack.c.l.b16 %v3172
        %v3192 = vunpack.c.h.b16 %v3172
        %v3193 = vunpack.c.l.b16 %v3173
        %v3194 = vunpack.c.h.b16 %v3173
        %v3195 = vunpack.c.l.b16 %v3174
        %v3196 = vunpack.c.h.b16 %v3174
        %v3197 = vunpack.c.l.b16 %v3175
        %v3198 = vunpack.c.h.b16 %v3175
        %v3199 = vunpack.c.l.b16 %v3176
        %v3200 = vunpack.c.h.b16 %v3176
        %v3201 = vpack.c.b16 %v3187, %v3185
        %v3202 = vpack.c.b16 %v3188, %v3186
        %v3203 = vpack.c.b16 %v3191, %v3189
        %v3204 = vpack.c.b16 %v3192, %v3190
        %v3205 = vpack.c.b16 %v3195, %v3193
        %v3206 = vpack.c.b16 %v3196, %v3194
        %v3207 = vpack.c.b16 %v3199, %v3197
        %v3208 = vpack.c.b16 %v3200, %v3198
        %3217 = vmatpush.bf16.msra.mxu0 0
        %3218 = vmatpush.bf16.msra.mxu0 0
        %3219 = vmatpush.bf16.msra.mxu0 0
        %3220 = vmatpush.bf16.msra.mxu0 0
        %3221 = vmatpush.bf16.msra.mxu0 %v3207
        %3222 = vmatpush.bf16.msra.mxu0 %v3205
        %3223 = vmatpush.bf16.msra.mxu0 %v3203
        %3224 = vmatpush.bf16.msra.mxu0 %v3201
        %3225 = vmatmul.bf16.gmra.mxu0 %v2884
        %v3226 = vpop.f32.mrf.mxu0
        %v3227 = vadd.f32 0.0, %v3226
        %v3228 = vpop.f32.mrf.mxu0
        %v3229 = vadd.f32 0.0, %v3228
        %3230 = vdwg.mxu0
        %3231 = vmatpush.bf16.msra.mxu0 0
        %3232 = vmatpush.bf16.msra.mxu0 0
        %3233 = vmatpush.bf16.msra.mxu0 0
        %3234 = vmatpush.bf16.msra.mxu0 0
        %3235 = vmatpush.bf16.msra.mxu0 %v3208
        %3236 = vmatpush.bf16.msra.mxu0 %v3206
        %3237 = vmatpush.bf16.msra.mxu0 %v3204
        %3238 = vmatpush.bf16.msra.mxu0 %v3202
        %3239 = vmatmul.bf16.gmra.mxu0 %v2884
        %v3240 = vpop.f32.mrf.mxu0
        %v3241 = vadd.f32 0.0, %v3240
        %v3242 = vpop.f32.mrf.mxu0
        %v3243 = vadd.f32 0.0, %v3242
        %3244 = vdwg.mxu0
        %v3245 = vpack.c.bf16 %v3229, %v3227
        %v3246 = vpack.c.bf16 %v3243, %v3241
        %s3247 = scalar_lea.vmem %s7, 12
        %v3248 = vld [vmem:[%s3247] sm:$0xf]
        %v3250 = vsel %vm2251, %v3248, 0
        %3252 = vmatpush.bf16.msra.mxu0 0
        %3253 = vmatpush.bf16.msra.mxu0 0
        %3254 = vmatpush.bf16.msra.mxu0 0
        %3255 = vmatpush.bf16.msra.mxu0 0
        %3256 = vmatpush.bf16.msra.mxu0 0
        %3257 = vmatpush.bf16.msra.mxu0 0
        %3258 = vmatpush.bf16.msra.mxu0 0
        %3259 = vmatpush.bf16.msra.mxu0 %v3245
        %3260 = vmatmul.bf16.gmra.mxu0 %v3250
        %v3261 = vpop.f32.mrf.mxu0
        %v3262 = vadd.f32 0.0, %v3261
        %v3263 = vpop.f32.mrf.mxu0
        %3264 = vdwg.mxu0
        %3265 = vmatpush.bf16.msra.mxu0 0
        %3266 = vmatpush.bf16.msra.mxu0 0
        %3267 = vmatpush.bf16.msra.mxu0 0
        %3268 = vmatpush.bf16.msra.mxu0 0
        %3269 = vmatpush.bf16.msra.mxu0 0
        %3270 = vmatpush.bf16.msra.mxu0 0
        %3271 = vmatpush.bf16.msra.mxu0 0
        %3272 = vmatpush.bf16.msra.mxu0 %v3246
        %3273 = vmatmul.bf16.gmra.mxu0 %v3250
        %v3274 = vpop.f32.mrf.mxu0
        %v3275 = vadd.f32 0.0, %v3274
        %v3276 = vpop.f32.mrf.mxu0
        %3277 = vdwg.mxu0
        %v3278 = vadd.f32 %v3166, %v3262
        %v3279 = vadd.f32 %v3167, %v3275
        %v3280 = vld [vmem:[%s8] sm:$0xff]
        %3282 = vset.pattern.permute.xlu0 0
        %3283 = vperm.xlu0 %3282, %v3280
        %v3284 = vpop.permute.xlu0 %3283
        %v3286 = vadd.f32 %v3278, %v3284
        %v3287 = vadd.f32 %v3279, %v3284
        %v3288 = vmax.f32 %v3286, 0.0
        %v3289 = vmax.f32 %v3287, 0.0
        %3290 = vst [vmem:[%s449] sm:$0xff] %v3288
        %3291 = vst [vmem:[%s449 + $0x8] sm:$0xff] %v3289
        %p3292 = scmp.lt.s32.totalorder %s25, 1
        %s3293 = scalar_select %p3292, %s25, 1
        %s3294 = smul.addr %s3293, 2
        %s3295 = smul.addr %s3294, 8
        %s3296 = scalar_lea.vmem %s10, %s3295
        %p3297 = scmp.lt.s32.totalorder %s25, 1
        %s3298 = scalar_select %p3297, %s25, 1
        %s3299 = smul.addr %s3298, 2
        %s3300 = smul.addr %s3299, 8
        %s3301 = scalar_lea.vmem %s11, %s3300
        // Predicated region
        $region73: #{forward.3} parent=59 // pred_check
          %p3302 = pneg %p258
        $region74: #{forward.3} parent=59 // pred_check_branch
          %3304 = sbr.rel (%p3302) target = $region76
        $region75: #{forward.3} parent=59 // pred_region
          _
        $region76: #{forward.3} parent=59 // pred_fallthru
          _
        // Predicated region
        $region77: #{forward.3} parent=59 // pred_check
          %p3305 = pneg %p284
        $region78: #{forward.3} parent=59 // pred_check_branch
          %3307 = sbr.rel (%p3305) target = $region80
        $region79: #{forward.3} parent=59 // pred_region
          _
        $region80: #{forward.3} parent=59 // pred_fallthru
          _
      $region60: #{forward.3} parent=5 // pred_fallthru
        _
      %p3308 = scmp.le.s32.totalorder 2, %s20
      // Predicated region
      $region81: #{forward.3} parent=5 // pred_check
        %p3309 = pneg %p3308
      $region82: #{forward.3} parent=5 // pred_check_branch
        %3311 = sbr.rel (%p3309) target = $region84
      $region83: #{forward.3} parent=5 // pred_region
        %s3312 = ssub.s32 %s20, 2
        // Predicated region
        $region85: #{forward.3} parent=83 // pred_check
          %p3313 = pneg %p264
        $region86: #{forward.3} parent=83 // pred_check_branch
          %3315 = sbr.rel (%p3313) target = $region88
        $region87: #{forward.3} parent=83 // pred_region
          %p3316 = scmp.lt.s32.totalorder %s26, 1
          %s3317 = scalar_select %p3316, %s26, 1
          %s3318 = smul.addr %s3317, 2
          %s3319 = smul.addr %s3318, 8
          %s3320 = scalar_lea.vmem %s10, %s3319
        $region88: #{forward.3} parent=83 // pred_fallthru
          _
        // Predicated region
        $region89: #{forward.3} parent=83 // pred_check
          %p3321 = pneg %p290
        $region90: #{forward.3} parent=83 // pred_check_branch
          %3323 = sbr.rel (%p3321) target = $region92
        $region91: #{forward.3} parent=83 // pred_region
          %p3324 = scmp.lt.s32.totalorder %s26, 1
          %s3325 = scalar_select %p3324, %s26, 1
          %s3326 = smul.addr %s3325, 2
          %s3327 = smul.addr %s3326, 8
          %s3328 = scalar_lea.vmem %s11, %s3327
        $region92: #{forward.3} parent=83 // pred_fallthru
          _
      $region84: #{forward.3} parent=5 // pred_fallthru
        _
    $region6: #{forward.3} parent=1 // loop_footer
      %s24 = sadd.s32 1, %s20
    $region7: #{forward.3} parent=1 // loop_footer_branch
      %19 = sbr.rel target = $region3
    $region8: #{forward.3} parent=1 // loop_exit
      _
    %3329 = vsyncpa [#allocation3], 1
    %s3330 = scalar_lea.sflag [#allocation3], 1
    %3331 = vsyncpa %s3330, 1
    %3332 = vsyncpa [#allocation5], 1

// kernel: forward.2
$region0: #{forward.2}
  #allocation0 [shape = 'u32[]', space=smem, size = 0x4, offset = 0x4, fixed_abs, tag = 'smem constant byte address 0x4 - core index']
  #allocation1 [shape = 'u32[72,128]{1,0:T(1,128)}', space=vmem, size = 0x9000, scoped, tag = 'internal scratch']
  %s0 = inlined_call_operand.vmem [shape: f32[2,4,256], index: 0, kind: input, shape index: {}]
  %s1 = inlined_call_operand.vmem [shape: bf16[9,8,4], index: 1, kind: input, shape index: {}]
  %s2 = inlined_call_operand.vmem [shape: f32[8,1], index: 2, kind: input, shape index: {}]
  %s3 = inlined_call_operand.hbm [shape: bf16[9,256,256], index: 3, kind: input, shape index: {}, may-alias: {3,6}]
  %s4 = inlined_call_operand.vmem [shape: bf16[9,8,8], index: 4, kind: input, shape index: {}]
  %s5 = inlined_call_operand.vmem [shape: f32[8,1], index: 5, kind: input, shape index: {}]
  %s6 = inlined_call_operand.hbm [shape: bf16[9,256,256], index: 6, kind: input, shape index: {}, may-alias: {3,6}]
  %s7 = inlined_call_operand.vmem [shape: bf16[1,8,8], index: 7, kind: input, shape index: {}]
  %s8 = inlined_call_operand.vmem [shape: f32[8,1], index: 8, kind: input, shape index: {}]
  %s9 = inlined_call_operand.vmem [shape: f32[2,8,256], index: 9, kind: output, shape index: {0}]
  %s10 = inlined_call_operand.vmem [shape: f32[2,8,256], index: 10, kind: output, shape index: {1}]
  %11 = xla_tuple %s9, %s10
  %s12 = sld [smem:[#allocation0]]
  $region85: #{forward.2} parent=0
    _
  %s14 = ssub.s32 1, %s12
  %s15 = scalar_select 0, %s14, %s12
  $region1: #{forward.2} parent=0
    #allocation2 [shape = 'u8[1179648]{0}', space=vmem, size = 0x120000, scoped, tag = 'input window, operand 3, single buffered']
    #allocation3 [shape = 's32[2]{0}', space=sflag, size = 0x8, scoped, tag = 'scoped memory for forward.2']
    #allocation4 [shape = 'u8[1179648]{0}', space=vmem, size = 0x120000, scoped, tag = 'input window, operand 6, single buffered']
    #allocation5 [shape = 's32[1]{0}', space=sflag, size = 0x4, scoped, tag = 'scoped memory for forward.2']
    %16 = vsyncpa [#allocation3], 0
    %17 = vsyncpa [#allocation5], 0
    loop: start=0, step=1, limit=4
    $region2: #{forward.2} parent=1 // loop_pre_header
      _
    $region3: #{forward.2} parent=1 // loop_header
      %s19 = sphi 0, %s23
      %p20 = scmp.ge.s32.totalorder %s19, 4
      %s29 = sphi 0, %s31
      %s32 = sphi 0, %s29
      %s33 = sphi 0, %s32
      %s49 = sphi 0, %s33
      %s53 = sphi 0, %s53
      %s55 = sphi 0, %s53
      %s56 = sphi 0, %s55
      %s70 = sphi 0, %s56
      %s74 = sphi 0, %s74
      %s76 = sphi 0, %s74
      %s77 = sphi 0, %s76
      %s91 = sphi 0, %s77
      %s95 = sphi 0, %s95
      %s97 = sphi 0, %s95
      %s98 = sphi 0, %s97
      %s112 = sphi 0, %s98
      %s116 = sphi 0, %s116
      %s118 = sphi 0, %s116
      %s119 = sphi 0, %s118
      %s133 = sphi 0, %s119
      %s137 = sphi 0, %s137
      %s139 = sphi 0, %s137
      %s140 = sphi 0, %s139
      %s154 = sphi 0, %s140
      %s158 = sphi 0, %s158
      %s160 = sphi 0, %s158
      %s161 = sphi 0, %s160
      %s175 = sphi 0, %s161
      %s179 = sphi 0, %s179
      %s181 = sphi 0, %s179
      %s182 = sphi 0, %s181
      %s196 = sphi 0, %s182
      %s200 = sphi 0, %s200
      %s202 = sphi 0, %s200
      %s203 = sphi 0, %s202
      %s217 = sphi 0, %s203
      %s223 = sphi 0, %s225
      %s226 = sphi 0, %s223
      %s227 = sphi 0, %s226
      %s243 = sphi 0, %s227
      %s249 = sphi 0, %s251
      %s252 = sphi 0, %s249
      %s253 = sphi 0, %s252
      %s269 = sphi 0, %s253
    $region4: #{forward.2} parent=1 // loop_header_branch
      %22 = sbr.rel (%p20) target = $region8
    $region5: #{forward.2} parent=1 // loop_body
      %s24 = ssub.s32 %s19, 1
      %s25 = ssub.s32 %s19, 2
      %s26 = sadd.s32 %s19, 1
      %s27 = ssub.s32 %s19, %s26
      %p28 = scmp.eq.s32.totalorder %s27, 0
      %s30 = sadd.s32 %s29, 1
      %s31 = scalar_select %p28, %s29, %s30
      %p34 = pneg %p28
      %p35 = scmp.eq.s32.totalorder %s19, 1
      %p36 = por %p34, %p35
      %p37 = scmp.ne.s32.totalorder %s29, %s32
      %p38 = scmp.eq.s32.totalorder %s19, 0
      %p39 = por %p37, %p38
      %p40 = scmp.ne.s32.totalorder %s29, %s32
      %p41 = scmp.eq.s32.totalorder %s24, 1
      %p42 = por %p40, %p41
      %p43 = scmp.ne.s32.totalorder %s32, %s33
      %p44 = scmp.eq.s32.totalorder %s24, 0
      %p45 = por %p43, %p44
      %p46 = scmp.ne.s32.totalorder %s32, %s33
      %p47 = scmp.eq.s32.totalorder %s25, 1
      %p48 = por %p46, %p47
      %p50 = scmp.ne.s32.totalorder %s33, %s49
      %p51 = scmp.eq.s32.totalorder %s25, 0
      %p52 = por %p50, %p51
      %s54 = sadd.s32 %s53, 1
      %p57 = scmp.eq.s32.totalorder %s19, 1
      %p58 = scmp.ne.s32.totalorder %s53, %s55
      %p59 = scmp.eq.s32.totalorder %s19, 0
      %p60 = por %p58, %p59
      %p61 = scmp.ne.s32.totalorder %s53, %s55
      %p62 = scmp.eq.s32.totalorder %s24, 1
      %p63 = por %p61, %p62
      %p64 = scmp.ne.s32.totalorder %s55, %s56
      %p65 = scmp.eq.s32.totalorder %s24, 0
      %p66 = por %p64, %p65
      %p67 = scmp.ne.s32.totalorder %s55, %s56
      %p68 = scmp.eq.s32.totalorder %s25, 1
      %p69 = por %p67, %p68
      %p71 = scmp.ne.s32.totalorder %s56, %s70
      %p72 = scmp.eq.s32.totalorder %s25, 0
      %p73 = por %p71, %p72
      %s75 = sadd.s32 %s74, 1
      %p78 = scmp.eq.s32.totalorder %s19, 1
      %p79 = scmp.ne.s32.totalorder %s74, %s76
      %p80 = scmp.eq.s32.totalorder %s19, 0
      %p81 = por %p79, %p80
      %p82 = scmp.ne.s32.totalorder %s74, %s76
      %p83 = scmp.eq.s32.totalorder %s24, 1
      %p84 = por %p82, %p83
      %p85 = scmp.ne.s32.totalorder %s76, %s77
      %p86 = scmp.eq.s32.totalorder %s24, 0
      %p87 = por %p85, %p86
      %p88 = scmp.ne.s32.totalorder %s76, %s77
      %p89 = scmp.eq.s32.totalorder %s25, 1
      %p90 = por %p88, %p89
      %p92 = scmp.ne.s32.totalorder %s77, %s91
      %p93 = scmp.eq.s32.totalorder %s25, 0
      %p94 = por %p92, %p93
      %s96 = sadd.s32 %s95, 1
      %p99 = scmp.eq.s32.totalorder %s19, 1
      %p100 = scmp.ne.s32.totalorder %s95, %s97
      %p101 = scmp.eq.s32.totalorder %s19, 0
      %p102 = por %p100, %p101
      %p103 = scmp.ne.s32.totalorder %s95, %s97
      %p104 = scmp.eq.s32.totalorder %s24, 1
      %p105 = por %p103, %p104
      %p106 = scmp.ne.s32.totalorder %s97, %s98
      %p107 = scmp.eq.s32.totalorder %s24, 0
      %p108 = por %p106, %p107
      %p109 = scmp.ne.s32.totalorder %s97, %s98
      %p110 = scmp.eq.s32.totalorder %s25, 1
      %p111 = por %p109, %p110
      %p113 = scmp.ne.s32.totalorder %s98, %s112
      %p114 = scmp.eq.s32.totalorder %s25, 0
      %p115 = por %p113, %p114
      %s117 = sadd.s32 %s116, 1
      %p120 = scmp.eq.s32.totalorder %s19, 1
      %p121 = scmp.ne.s32.totalorder %s116, %s118
      %p122 = scmp.eq.s32.totalorder %s19, 0
      %p123 = por %p121, %p122
      %p124 = scmp.ne.s32.totalorder %s116, %s118
      %p125 = scmp.eq.s32.totalorder %s24, 1
      %p126 = por %p124, %p125
      %p127 = scmp.ne.s32.totalorder %s118, %s119
      %p128 = scmp.eq.s32.totalorder %s24, 0
      %p129 = por %p127, %p128
      %p130 = scmp.ne.s32.totalorder %s118, %s119
      %p131 = scmp.eq.s32.totalorder %s25, 1
      %p132 = por %p130, %p131
      %p134 = scmp.ne.s32.totalorder %s119, %s133
      %p135 = scmp.eq.s32.totalorder %s25, 0
      %p136 = por %p134, %p135
      %s138 = sadd.s32 %s137, 1
      %p141 = scmp.eq.s32.totalorder %s19, 1
      %p142 = scmp.ne.s32.totalorder %s137, %s139
      %p143 = scmp.eq.s32.totalorder %s19, 0
      %p144 = por %p142, %p143
      %p145 = scmp.ne.s32.totalorder %s137, %s139
      %p146 = scmp.eq.s32.totalorder %s24, 1
      %p147 = por %p145, %p146
      %p148 = scmp.ne.s32.totalorder %s139, %s140
      %p149 = scmp.eq.s32.totalorder %s24, 0
      %p150 = por %p148, %p149
      %p151 = scmp.ne.s32.totalorder %s139, %s140
      %p152 = scmp.eq.s32.totalorder %s25, 1
      %p153 = por %p151, %p152
      %p155 = scmp.ne.s32.totalorder %s140, %s154
      %p156 = scmp.eq.s32.totalorder %s25, 0
      %p157 = por %p155, %p156
      %s159 = sadd.s32 %s158, 1
      %p162 = scmp.eq.s32.totalorder %s19, 1
      %p163 = scmp.ne.s32.totalorder %s158, %s160
      %p164 = scmp.eq.s32.totalorder %s19, 0
      %p165 = por %p163, %p164
      %p166 = scmp.ne.s32.totalorder %s158, %s160
      %p167 = scmp.eq.s32.totalorder %s24, 1
      %p168 = por %p166, %p167
      %p169 = scmp.ne.s32.totalorder %s160, %s161
      %p170 = scmp.eq.s32.totalorder %s24, 0
      %p171 = por %p169, %p170
      %p172 = scmp.ne.s32.totalorder %s160, %s161
      %p173 = scmp.eq.s32.totalorder %s25, 1
      %p174 = por %p172, %p173
      %p176 = scmp.ne.s32.totalorder %s161, %s175
      %p177 = scmp.eq.s32.totalorder %s25, 0
      %p178 = por %p176, %p177
      %s180 = sadd.s32 %s179, 1
      %p183 = scmp.eq.s32.totalorder %s19, 1
      %p184 = scmp.ne.s32.totalorder %s179, %s181
      %p185 = scmp.eq.s32.totalorder %s19, 0
      %p186 = por %p184, %p185
      %p187 = scmp.ne.s32.totalorder %s179, %s181
      %p188 = scmp.eq.s32.totalorder %s24, 1
      %p189 = por %p187, %p188
      %p190 = scmp.ne.s32.totalorder %s181, %s182
      %p191 = scmp.eq.s32.totalorder %s24, 0
      %p192 = por %p190, %p191
      %p193 = scmp.ne.s32.totalorder %s181, %s182
      %p194 = scmp.eq.s32.totalorder %s25, 1
      %p195 = por %p193, %p194
      %p197 = scmp.ne.s32.totalorder %s182, %s196
      %p198 = scmp.eq.s32.totalorder %s25, 0
      %p199 = por %p197, %p198
      %s201 = sadd.s32 %s200, 1
      %p204 = scmp.eq.s32.totalorder %s19, 1
      %p205 = scmp.ne.s32.totalorder %s200, %s202
      %p206 = scmp.eq.s32.totalorder %s19, 0
      %p207 = por %p205, %p206
      %p208 = scmp.ne.s32.totalorder %s200, %s202
      %p209 = scmp.eq.s32.totalorder %s24, 1
      %p210 = por %p208, %p209
      %p211 = scmp.ne.s32.totalorder %s202, %s203
      %p212 = scmp.eq.s32.totalorder %s24, 0
      %p213 = por %p211, %p212
      %p214 = scmp.ne.s32.totalorder %s202, %s203
      %p215 = scmp.eq.s32.totalorder %s25, 1
      %p216 = por %p214, %p215
      %p218 = scmp.ne.s32.totalorder %s203, %s217
      %p219 = scmp.eq.s32.totalorder %s25, 0
      %p220 = por %p218, %p219
      %s221 = ssub.s32 %s19, %s26
      %p222 = scmp.eq.s32.totalorder %s221, 0
      %s224 = sadd.s32 %s223, 1
      %s225 = scalar_select %p222, %s223, %s224
      %p228 = pneg %p222
      %p229 = scmp.eq.s32.totalorder %s19, 1
      %p230 = por %p228, %p229
      %p231 = scmp.ne.s32.totalorder %s223, %s226
      %p232 = scmp.eq.s32.totalorder %s19, 0
      %p233 = por %p231, %p232
      %p234 = scmp.ne.s32.totalorder %s223, %s226
      %p235 = scmp.eq.s32.totalorder %s24, 1
      %p236 = por %p234, %p235
      %p237 = scmp.ne.s32.totalorder %s226, %s227
      %p238 = scmp.eq.s32.totalorder %s24, 0
      %p239 = por %p237, %p238
      %p240 = scmp.ne.s32.totalorder %s226, %s227
      %p241 = scmp.eq.s32.totalorder %s25, 1
      %p242 = por %p240, %p241
      %p244 = scmp.ne.s32.totalorder %s227, %s243
      %p245 = scmp.eq.s32.totalorder %s25, 0
      %p246 = por %p244, %p245
      %s247 = ssub.s32 %s19, %s26
      %p248 = scmp.eq.s32.totalorder %s247, 0
      %s250 = sadd.s32 %s249, 1
      %s251 = scalar_select %p248, %s249, %s250
      %p254 = pneg %p248
      %p255 = scmp.eq.s32.totalorder %s19, 1
      %p256 = por %p254, %p255
      %p257 = scmp.ne.s32.totalorder %s249, %s252
      %p258 = scmp.eq.s32.totalorder %s19, 0
      %p259 = por %p257, %p258
      %p260 = scmp.ne.s32.totalorder %s249, %s252
      %p261 = scmp.eq.s32.totalorder %s24, 1
      %p262 = por %p260, %p261
      %p263 = scmp.ne.s32.totalorder %s252, %s253
      %p264 = scmp.eq.s32.totalorder %s24, 0
      %p265 = por %p263, %p264
      %p266 = scmp.ne.s32.totalorder %s252, %s253
      %p267 = scmp.eq.s32.totalorder %s25, 1
      %p268 = por %p266, %p267
      %p270 = scmp.ne.s32.totalorder %s253, %s269
      %p271 = scmp.eq.s32.totalorder %s25, 0
      %p272 = por %p270, %p271
      %p273 = scmp.le.s32.totalorder 1, %s19
      %p274 = scmp.lt.s32.totalorder %s19, 3
      %p275 = pnand %p273, %p274
      %p276 = pneg %p275
      // Predicated region
      $region9: #{forward.2} parent=5 // pred_check
        _
      $region10: #{forward.2} parent=5 // pred_check_branch
        %278 = sbr.rel (%p275) target = $region12
      $region11: #{forward.2} parent=5 // pred_region
        %s279 = ssub.s32 %s19, 1
        // Predicated region
        $region13: #{forward.2} parent=11 // pred_check
          %p280 = pneg %p66
        $region14: #{forward.2} parent=11 // pred_check_branch
          %282 = sbr.rel (%p280) target = $region16
        $region15: #{forward.2} parent=11 // pred_region
          _
        $region16: #{forward.2} parent=11 // pred_fallthru
          _
        // Predicated region
        $region17: #{forward.2} parent=11 // pred_check
          %p283 = pneg %p87
        $region18: #{forward.2} parent=11 // pred_check_branch
          %285 = sbr.rel (%p283) target = $region20
        $region19: #{forward.2} parent=11 // pred_region
          _
        $region20: #{forward.2} parent=11 // pred_fallthru
          _
        // Predicated region
        $region21: #{forward.2} parent=11 // pred_check
          %p286 = pneg %p108
        $region22: #{forward.2} parent=11 // pred_check_branch
          %288 = sbr.rel (%p286) target = $region24
        $region23: #{forward.2} parent=11 // pred_region
          %290 = vsyncadd [#allocation3], 0
          %s291 = sshll.u32 %s3, 4
          %s292 = int_to_ptr.hbm [resolvable:$true] %s291
          %s293 = sshll.u32 [#allocation2], 4
          %s294 = int_to_ptr.vmem [resolvable:$true] %s293
          %299 = dma.hbm_to_vmem [thread:$0]  %s292, 36864, %s294, [#allocation3], 128, 128, 8
        $region24: #{forward.2} parent=11 // pred_fallthru
          _
        // Predicated region
        $region25: #{forward.2} parent=11 // pred_check
          %p300 = pneg %p129
        $region26: #{forward.2} parent=11 // pred_check_branch
          %302 = sbr.rel (%p300) target = $region28
        $region27: #{forward.2} parent=11 // pred_region
          _
        $region28: #{forward.2} parent=11 // pred_fallthru
          _
        // Predicated region
        $region29: #{forward.2} parent=11 // pred_check
          %p303 = pneg %p150
        $region30: #{forward.2} parent=11 // pred_check_branch
          %305 = sbr.rel (%p303) target = $region32
        $region31: #{forward.2} parent=11 // pred_region
          _
        $region32: #{forward.2} parent=11 // pred_fallthru
          _
        // Predicated region
        $region33: #{forward.2} parent=11 // pred_check
          %p306 = pneg %p171
        $region34: #{forward.2} parent=11 // pred_check_branch
          %308 = sbr.rel (%p306) target = $region36
        $region35: #{forward.2} parent=11 // pred_region
          %310 = vsyncadd [#allocation5], 0
          %s311 = sshll.u32 %s6, 4
          %s312 = int_to_ptr.hbm [resolvable:$true] %s311
          %s313 = sshll.u32 [#allocation4], 4
          %s314 = int_to_ptr.vmem [resolvable:$true] %s313
          %319 = dma.hbm_to_vmem [thread:$0]  %s312, 36864, %s314, [#allocation5], 128, 128, 8
        $region36: #{forward.2} parent=11 // pred_fallthru
          _
        // Predicated region
        $region37: #{forward.2} parent=11 // pred_check
          %p320 = pneg %p192
        $region38: #{forward.2} parent=11 // pred_check_branch
          %322 = sbr.rel (%p320) target = $region40
        $region39: #{forward.2} parent=11 // pred_region
          _
        $region40: #{forward.2} parent=11 // pred_fallthru
          _
        // Predicated region
        $region41: #{forward.2} parent=11 // pred_check
          %p323 = pneg %p213
        $region42: #{forward.2} parent=11 // pred_check_branch
          %325 = sbr.rel (%p323) target = $region44
        $region43: #{forward.2} parent=11 // pred_region
          _
        $region44: #{forward.2} parent=11 // pred_fallthru
          _
      $region12: #{forward.2} parent=5 // pred_fallthru
        _
      %p326 = scmp.lt.s32.totalorder %s19, 2
      // Predicated region
      $region45: #{forward.2} parent=5 // pred_check
        %p327 = pneg %p326
      $region46: #{forward.2} parent=5 // pred_check_branch
        %329 = sbr.rel (%p327) target = $region48
      $region47: #{forward.2} parent=5 // pred_region
        // Predicated region
        $region49: #{forward.2} parent=47 // pred_check
          %p330 = pneg %p39
        $region50: #{forward.2} parent=47 // pred_check_branch
          %332 = sbr.rel (%p330) target = $region52
        $region51: #{forward.2} parent=47 // pred_region
          %p333 = scmp.lt.s32.totalorder %s19, 1
          %s334 = scalar_select %p333, %s19, 1
          %s335 = smul.addr %s334, 2
          %s336 = smul.addr %s335, 4
          %s337 = scalar_lea.vmem %s0, %s336
        $region52: #{forward.2} parent=47 // pred_fallthru
          _
      $region48: #{forward.2} parent=5 // pred_fallthru
        _
      %p338 = scmp.le.s32.totalorder 1, %s19
      %p339 = scmp.lt.s32.totalorder %s19, 3
      %p340 = pnand %p338, %p339
      %p341 = pneg %p340
      // Predicated region
      $region53: #{forward.2} parent=5 // pred_check
        _
      $region54: #{forward.2} parent=5 // pred_check_branch
        %343 = sbr.rel (%p340) target = $region56
      $region55: #{forward.2} parent=5 // pred_region
        %s344 = ssub.s32 %s19, 1
        // Predicated region
        $region57: #{forward.2} parent=55 // pred_check
          %p345 = pneg %p108
        $region58: #{forward.2} parent=55 // pred_check_branch
          %347 = sbr.rel (%p345) target = $region60
        $region59: #{forward.2} parent=55 // pred_region
          %349 = dma.done [#allocation3], 36864
        $region60: #{forward.2} parent=55 // pred_fallthru
          _
        // Predicated region
        $region61: #{forward.2} parent=55 // pred_check
          %p350 = pneg %p171
        $region62: #{forward.2} parent=55 // pred_check_branch
          %352 = sbr.rel (%p350) target = $region64
        $region63: #{forward.2} parent=55 // pred_region
          %354 = dma.done [#allocation5], 36864
        $region64: #{forward.2} parent=55 // pred_fallthru
          _
        %p355 = scmp.lt.s32.totalorder %s24, 1
        %s356 = scalar_select %p355, %s24, 1
        %s357 = smul.addr %s356, 2
        %s358 = smul.addr %s357, 4
        %s359 = scalar_lea.vmem %s0, %s358
        %p360 = pneg %p45
        %p361 = pneg %p42
        %p362 = pneg %p66
        %p363 = pneg %p63
        %p364 = pneg %p87
        %p365 = pneg %p84
        %p366 = pneg %p108
        %p367 = pneg %p105
        %p368 = pneg %p129
        %p369 = pneg %p126
        %p370 = pneg %p150
        %p371 = pneg %p147
        %p372 = pneg %p171
        %p373 = pneg %p168
        %p374 = pneg %p192
        %p375 = pneg %p189
        %p376 = pneg %p213
        %p377 = pneg %p210
        %p378 = pneg %p239
        %p379 = pneg %p236
        %p380 = scmp.lt.s32.totalorder %s24, 1
        %s381 = scalar_select %p380, %s24, 1
        %s382 = smul.addr %s381, 2
        %s383 = smul.addr %s382, 8
        %s384 = scalar_lea.vmem %s9, %s383
        %p385 = pneg %p265
        %p386 = pneg %p262
        %p387 = scmp.lt.s32.totalorder %s24, 1
        %s388 = scalar_select %p387, %s24, 1
        %s389 = smul.addr %s388, 2
        %s390 = smul.addr %s389, 8
        %s391 = scalar_lea.vmem %s10, %s390
        %p392 = scmp.lt.s32.totalorder %s24, 1
        %s393 = scalar_select %p392, %s24, 1
        %s394 = smul.addr %s393, 2
        %s395 = smul.addr %s394, 4
        %s396 = scalar_lea.vmem %s0, %s395
        %p397 = scmp.lt.s32.totalorder %s24, 1
        %s398 = scalar_select %p397, %s24, 1
        %s399 = smul.addr %s398, 2
        %s400 = smul.addr %s399, 8
        %s401 = scalar_lea.vmem %s9, %s400
        %p402 = scmp.lt.s32.totalorder %s24, 1
        %s403 = scalar_select %p402, %s24, 1
        %s404 = smul.addr %s403, 2
        %s405 = smul.addr %s404, 8
        %s406 = scalar_lea.vmem %s10, %s405
        %v408 = vld [vmem:[%s396] sm:$0xff]
        %410 = vst [vmem:[#allocation1] ss:$2 sm:$0xff] %v408
        %v411 = vld.sshfl [vmem:[#allocation1] sm:$0xff pattern:$0x75316420]
        %v412 = vld.sshfl [vmem:[#allocation1 + $0x8] sm:$0xff pattern:$0x75316420]
        %v415 = vpack.c.bf16 %v411, %v411
        %v416 = vpack.c.bf16 %v412, %v412
        %v417 = vld [vmem:[#allocation2] sm:$0xff]
        %v418 = vld [vmem:[#allocation2 + $0x8] sm:$0xff]
        %v419 = vld [vmem:[#allocation2 + $0x10] sm:$0xff]
        %v420 = vld [vmem:[#allocation2 + $0x18] sm:$0xff]
        %v421 = vld [vmem:[#allocation2 + $0x20] sm:$0xff]
        %v422 = vld [vmem:[#allocation2 + $0x28] sm:$0xff]
        %v423 = vld [vmem:[#allocation2 + $0x30] sm:$0xff]
        %v424 = vld [vmem:[#allocation2 + $0x38] sm:$0xff]
        %v425 = vld [vmem:[#allocation2 + $0x40] sm:$0xff]
        %v426 = vld [vmem:[#allocation2 + $0x48] sm:$0xff]
        %v427 = vld [vmem:[#allocation2 + $0x50] sm:$0xff]
        %v428 = vld [vmem:[#allocation2 + $0x58] sm:$0xff]
        %v429 = vld [vmem:[#allocation2 + $0x60] sm:$0xff]
        %v430 = vld [vmem:[#allocation2 + $0x68] sm:$0xff]
        %v431 = vld [vmem:[#allocation2 + $0x70] sm:$0xff]
        %v432 = vld [vmem:[#allocation2 + $0x78] sm:$0xff]
        %v433 = vld [vmem:[#allocation2 + $0x80] sm:$0xff]
        %v434 = vld [vmem:[#allocation2 + $0x88] sm:$0xff]
        %v435 = vld [vmem:[#allocation2 + $0x90] sm:$0xff]
        %v436 = vld [vmem:[#allocation2 + $0x98] sm:$0xff]
        %v437 = vld [vmem:[#allocation2 + $0xa0] sm:$0xff]
        %v438 = vld [vmem:[#allocation2 + $0xa8] sm:$0xff]
        %v439 = vld [vmem:[#allocation2 + $0xb0] sm:$0xff]
        %v440 = vld [vmem:[#allocation2 + $0xb8] sm:$0xff]
        %v441 = vld [vmem:[#allocation2 + $0xc0] sm:$0xff]
        %v442 = vld [vmem:[#allocation2 + $0xc8] sm:$0xff]
        %v443 = vld [vmem:[#allocation2 + $0xd0] sm:$0xff]
        %v444 = vld [vmem:[#allocation2 + $0xd8] sm:$0xff]
        %v445 = vld [vmem:[#allocation2 + $0xe0] sm:$0xff]
        %v446 = vld [vmem:[#allocation2 + $0xe8] sm:$0xff]
        %v447 = vld [vmem:[#allocation2 + $0xf0] sm:$0xff]
        %v448 = vld [vmem:[#allocation2 + $0xf8] sm:$0xff]
        %v481 = vunpack.c.l.b16 %v417
        %v482 = vunpack.c.h.b16 %v417
        %v483 = vunpack.c.l.b16 %v418
        %v484 = vunpack.c.h.b16 %v418
        %v485 = vunpack.c.l.b16 %v419
        %v486 = vunpack.c.h.b16 %v419
        %v487 = vunpack.c.l.b16 %v420
        %v488 = vunpack.c.h.b16 %v420
        %v489 = vunpack.c.l.b16 %v421
        %v490 = vunpack.c.h.b16 %v421
        %v491 = vunpack.c.l.b16 %v422
        %v492 = vunpack.c.h.b16 %v422
        %v493 = vunpack.c.l.b16 %v423
        %v494 = vunpack.c.h.b16 %v423
        %v495 = vunpack.c.l.b16 %v424
        %v496 = vunpack.c.h.b16 %v424
        %v497 = vunpack.c.l.b16 %v425
        %v498 = vunpack.c.h.b16 %v425
        %v499 = vunpack.c.l.b16 %v426
        %v500 = vunpack.c.h.b16 %v426
        %v501 = vunpack.c.l.b16 %v427
        %v502 = vunpack.c.h.b16 %v427
        %v503 = vunpack.c.l.b16 %v428
        %v504 = vunpack.c.h.b16 %v428
        %v505 = vunpack.c.l.b16 %v429
        %v506 = vunpack.c.h.b16 %v429
        %v507 = vunpack.c.l.b16 %v430
        %v508 = vunpack.c.h.b16 %v430
        %v509 = vunpack.c.l.b16 %v431
        %v510 = vunpack.c.h.b16 %v431
        %v511 = vunpack.c.l.b16 %v432
        %v512 = vunpack.c.h.b16 %v432
        %v513 = vunpack.c.l.b16 %v433
        %v514 = vunpack.c.h.b16 %v433
        %v515 = vunpack.c.l.b16 %v434
        %v516 = vunpack.c.h.b16 %v434
        %v517 = vunpack.c.l.b16 %v435
        %v518 = vunpack.c.h.b16 %v435
        %v519 = vunpack.c.l.b16 %v436
        %v520 = vunpack.c.h.b16 %v436
        %v521 = vunpack.c.l.b16 %v437
        %v522 = vunpack.c.h.b16 %v437
        %v523 = vunpack.c.l.b16 %v438
        %v524 = vunpack.c.h.b16 %v438
        %v525 = vunpack.c.l.b16 %v439
        %v526 = vunpack.c.h.b16 %v439
        %v527 = vunpack.c.l.b16 %v440
        %v528 = vunpack.c.h.b16 %v440
        %v529 = vunpack.c.l.b16 %v441
        %v530 = vunpack.c.h.b16 %v441
        %v531 = vunpack.c.l.b16 %v442
        %v532 = vunpack.c.h.b16 %v442
        %v533 = vunpack.c.l.b16 %v443
        %v534 = vunpack.c.h.b16 %v443
        %v535 = vunpack.c.l.b16 %v444
        %v536 = vunpack.c.h.b16 %v444
        %v537 = vunpack.c.l.b16 %v445
        %v538 = vunpack.c.h.b16 %v445
        %v539 = vunpack.c.l.b16 %v446
        %v540 = vunpack.c.h.b16 %v446
        %v541 = vunpack.c.l.b16 %v447
        %v542 = vunpack.c.h.b16 %v447
        %v543 = vunpack.c.l.b16 %v448
        %v544 = vunpack.c.h.b16 %v448
        %v545 = vpack.c.b16 %v483, %v481
        %v546 = vpack.c.b16 %v484, %v482
        %v547 = vpack.c.b16 %v487, %v485
        %v548 = vpack.c.b16 %v488, %v486
        %v549 = vpack.c.b16 %v491, %v489
        %v550 = vpack.c.b16 %v492, %v490
        %v551 = vpack.c.b16 %v495, %v493
        %v552 = vpack.c.b16 %v496, %v494
        %v553 = vpack.c.b16 %v499, %v497
        %v554 = vpack.c.b16 %v500, %v498
        %v555 = vpack.c.b16 %v503, %v501
        %v556 = vpack.c.b16 %v504, %v502
        %v557 = vpack.c.b16 %v507, %v505
        %v558 = vpack.c.b16 %v508, %v506
        %v559 = vpack.c.b16 %v511, %v509
        %v560 = vpack.c.b16 %v512, %v510
        %v561 = vpack.c.b16 %v515, %v513
        %v562 = vpack.c.b16 %v516, %v514
        %v563 = vpack.c.b16 %v519, %v517
        %v564 = vpack.c.b16 %v520, %v518
        %v565 = vpack.c.b16 %v523, %v521
        %v566 = vpack.c.b16 %v524, %v522
        %v567 = vpack.c.b16 %v527, %v525
        %v568 = vpack.c.b16 %v528, %v526
        %v569 = vpack.c.b16 %v531, %v529
        %v570 = vpack.c.b16 %v532, %v530
        %v571 = vpack.c.b16 %v535, %v533
        %v572 = vpack.c.b16 %v536, %v534
        %v573 = vpack.c.b16 %v539, %v537
        %v574 = vpack.c.b16 %v540, %v538
        %v575 = vpack.c.b16 %v543, %v541
        %v576 = vpack.c.b16 %v544, %v542
        %609 = vmatpush.bf16.msra.mxu0 %v559
        %610 = vmatpush.bf16.msra.mxu0 %v557
        %611 = vmatpush.bf16.msra.mxu0 %v555
        %612 = vmatpush.bf16.msra.mxu0 %v553
        %613 = vmatpush.bf16.msra.mxu0 %v551
        %614 = vmatpush.bf16.msra.mxu0 %v549
        %615 = vmatpush.bf16.msra.mxu0 %v547
        %616 = vmatpush.bf16.msra.mxu0 %v545
        %617 = vmatmul.bf16.gmra.mxu0 %v415
        %v618 = vpop.f32.mrf.mxu0
        %v619 = vadd.f32 0.0, %v618
        %v620 = vpop.f32.mrf.mxu0
        %621 = vdwg.mxu0
        %622 = vmatpush.bf16.msra.mxu0 %v575
        %623 = vmatpush.bf16.msra.mxu0 %v573
        %624 = vmatpush.bf16.msra.mxu0 %v571
        %625 = vmatpush.bf16.msra.mxu0 %v569
        %626 = vmatpush.bf16.msra.mxu0 %v567
        %627 = vmatpush.bf16.msra.mxu0 %v565
        %628 = vmatpush.bf16.msra.mxu0 %v563
        %629 = vmatpush.bf16.msra.mxu0 %v561
        %630 = vmatmul.bf16.gmra.mxu0 %v416
        %v631 = vpop.f32.mrf.mxu0
        %v632 = vadd.f32 %v619, %v631
        %v633 = vpop.f32.mrf.mxu0
        %634 = vdwg.mxu0
        %635 = vmatpush.bf16.msra.mxu0 %v560
        %636 = vmatpush.bf16.msra.mxu0 %v558
        %637 = vmatpush.bf16.msra.mxu0 %v556
        %638 = vmatpush.bf16.msra.mxu0 %v554
        %639 = vmatpush.bf16.msra.mxu0 %v552
        %640 = vmatpush.bf16.msra.mxu0 %v550
        %641 = vmatpush.bf16.msra.mxu0 %v548
        %642 = vmatpush.bf16.msra.mxu0 %v546
        %643 = vmatmul.bf16.gmra.mxu0 %v415
        %v644 = vpop.f32.mrf.mxu0
        %v645 = vadd.f32 0.0, %v644
        %v646 = vpop.f32.mrf.mxu0
        %647 = vdwg.mxu0
        %648 = vmatpush.bf16.msra.mxu0 %v576
        %649 = vmatpush.bf16.msra.mxu0 %v574
        %650 = vmatpush.bf16.msra.mxu0 %v572
        %651 = vmatpush.bf16.msra.mxu0 %v570
        %652 = vmatpush.bf16.msra.mxu0 %v568
        %653 = vmatpush.bf16.msra.mxu0 %v566
        %654 = vmatpush.bf16.msra.mxu0 %v564
        %655 = vmatpush.bf16.msra.mxu0 %v562
        %656 = vmatmul.bf16.gmra.mxu0 %v416
        %v657 = vpop.f32.mrf.mxu0
        %v658 = vadd.f32 %v645, %v657
        %v659 = vpop.f32.mrf.mxu0
        %660 = vdwg.mxu0
        %v661 = vpack.c.bf16 %v632, %v632
        %v662 = vpack.c.bf16 %v658, %v658
        %v663 = vld [vmem:[%s1] sm:$0xf]
        %s664 = scalar_lea.vmem [#allocation2], 256
        %v665 = vld [vmem:[%s664] sm:$0xff]
        %v666 = vld [vmem:[%s664 + $0x8] sm:$0xff]
        %v667 = vld [vmem:[%s664 + $0x10] sm:$0xff]
        %v668 = vld [vmem:[%s664 + $0x18] sm:$0xff]
        %v669 = vld [vmem:[%s664 + $0x20] sm:$0xff]
        %v670 = vld [vmem:[%s664 + $0x28] sm:$0xff]
        %v671 = vld [vmem:[%s664 + $0x30] sm:$0xff]
        %v672 = vld [vmem:[%s664 + $0x38] sm:$0xff]
        %v673 = vld [vmem:[%s664 + $0x40] sm:$0xff]
        %v674 = vld [vmem:[%s664 + $0x48] sm:$0xff]
        %v675 = vld [vmem:[%s664 + $0x50] sm:$0xff]
        %v676 = vld [vmem:[%s664 + $0x58] sm:$0xff]
        %v677 = vld [vmem:[%s664 + $0x60] sm:$0xff]
        %v678 = vld [vmem:[%s664 + $0x68] sm:$0xff]
        %v679 = vld [vmem:[%s664 + $0x70] sm:$0xff]
        %v680 = vld [vmem:[%s664 + $0x78] sm:$0xff]
        %v681 = vld [vmem:[%s664 + $0x80] sm:$0xff]
        %v682 = vld [vmem:[%s664 + $0x88] sm:$0xff]
        %v683 = vld [vmem:[%s664 + $0x90] sm:$0xff]
        %v684 = vld [vmem:[%s664 + $0x98] sm:$0xff]
        %v685 = vld [vmem:[%s664 + $0xa0] sm:$0xff]
        %v686 = vld [vmem:[%s664 + $0xa8] sm:$0xff]
        %v687 = vld [vmem:[%s664 + $0xb0] sm:$0xff]
        %v688 = vld [vmem:[%s664 + $0xb8] sm:$0xff]
        %v689 = vld [vmem:[%s664 + $0xc0] sm:$0xff]
        %v690 = vld [vmem:[%s664 + $0xc8] sm:$0xff]
        %v691 = vld [vmem:[%s664 + $0xd0] sm:$0xff]
        %v692 = vld [vmem:[%s664 + $0xd8] sm:$0xff]
        %v693 = vld [vmem:[%s664 + $0xe0] sm:$0xff]
        %v694 = vld [vmem:[%s664 + $0xe8] sm:$0xff]
        %v695 = vld [vmem:[%s664 + $0xf0] sm:$0xff]
        %v696 = vld [vmem:[%s664 + $0xf8] sm:$0xff]
        %v729 = vunpack.c.l.b16 %v665
        %v730 = vunpack.c.h.b16 %v665
        %v731 = vunpack.c.l.b16 %v666
        %v732 = vunpack.c.h.b16 %v666
        %v733 = vunpack.c.l.b16 %v667
        %v734 = vunpack.c.h.b16 %v667
        %v735 = vunpack.c.l.b16 %v668
        %v736 = vunpack.c.h.b16 %v668
        %v737 = vunpack.c.l.b16 %v669
        %v738 = vunpack.c.h.b16 %v669
        %v739 = vunpack.c.l.b16 %v670
        %v740 = vunpack.c.h.b16 %v670
        %v741 = vunpack.c.l.b16 %v671
        %v742 = vunpack.c.h.b16 %v671
        %v743 = vunpack.c.l.b16 %v672
        %v744 = vunpack.c.h.b16 %v672
        %v745 = vunpack.c.l.b16 %v673
        %v746 = vunpack.c.h.b16 %v673
        %v747 = vunpack.c.l.b16 %v674
        %v748 = vunpack.c.h.b16 %v674
        %v749 = vunpack.c.l.b16 %v675
        %v750 = vunpack.c.h.b16 %v675
        %v751 = vunpack.c.l.b16 %v676
        %v752 = vunpack.c.h.b16 %v676
        %v753 = vunpack.c.l.b16 %v677
        %v754 = vunpack.c.h.b16 %v677
        %v755 = vunpack.c.l.b16 %v678
        %v756 = vunpack.c.h.b16 %v678
        %v757 = vunpack.c.l.b16 %v679
        %v758 = vunpack.c.h.b16 %v679
        %v759 = vunpack.c.l.b16 %v680
        %v760 = vunpack.c.h.b16 %v680
        %v761 = vunpack.c.l.b16 %v681
        %v762 = vunpack.c.h.b16 %v681
        %v763 = vunpack.c.l.b16 %v682
        %v764 = vunpack.c.h.b16 %v682
        %v765 = vunpack.c.l.b16 %v683
        %v766 = vunpack.c.h.b16 %v683
        %v767 = vunpack.c.l.b16 %v684
        %v768 = vunpack.c.h.b16 %v684
        %v769 = vunpack.c.l.b16 %v685
        %v770 = vunpack.c.h.b16 %v685
        %v771 = vunpack.c.l.b16 %v686
        %v772 = vunpack.c.h.b16 %v686
        %v773 = vunpack.c.l.b16 %v687
        %v774 = vunpack.c.h.b16 %v687
        %v775 = vunpack.c.l.b16 %v688
        %v776 = vunpack.c.h.b16 %v688
        %v777 = vunpack.c.l.b16 %v689
        %v778 = vunpack.c.h.b16 %v689
        %v779 = vunpack.c.l.b16 %v690
        %v780 = vunpack.c.h.b16 %v690
        %v781 = vunpack.c.l.b16 %v691
        %v782 = vunpack.c.h.b16 %v691
        %v783 = vunpack.c.l.b16 %v692
        %v784 = vunpack.c.h.b16 %v692
        %v785 = vunpack.c.l.b16 %v693
        %v786 = vunpack.c.h.b16 %v693
        %v787 = vunpack.c.l.b16 %v694
        %v788 = vunpack.c.h.b16 %v694
        %v789 = vunpack.c.l.b16 %v695
        %v790 = vunpack.c.h.b16 %v695
        %v791 = vunpack.c.l.b16 %v696
        %v792 = vunpack.c.h.b16 %v696
        %v793 = vpack.c.b16 %v731, %v729
        %v794 = vpack.c.b16 %v732, %v730
        %v795 = vpack.c.b16 %v735, %v733
        %v796 = vpack.c.b16 %v736, %v734
        %v797 = vpack.c.b16 %v739, %v737
        %v798 = vpack.c.b16 %v740, %v738
        %v799 = vpack.c.b16 %v743, %v741
        %v800 = vpack.c.b16 %v744, %v742
        %v801 = vpack.c.b16 %v747, %v745
        %v802 = vpack.c.b16 %v748, %v746
        %v803 = vpack.c.b16 %v751, %v749
        %v804 = vpack.c.b16 %v752, %v750
        %v805 = vpack.c.b16 %v755, %v753
        %v806 = vpack.c.b16 %v756, %v754
        %v807 = vpack.c.b16 %v759, %v757
        %v808 = vpack.c.b16 %v760, %v758
        %v809 = vpack.c.b16 %v763, %v761
        %v810 = vpack.c.b16 %v764, %v762
        %v811 = vpack.c.b16 %v767, %v765
        %v812 = vpack.c.b16 %v768, %v766
        %v813 = vpack.c.b16 %v771, %v769
        %v814 = vpack.c.b16 %v772, %v770
        %v815 = vpack.c.b16 %v775, %v773
        %v816 = vpack.c.b16 %v776, %v774
        %v817 = vpack.c.b16 %v779, %v777
        %v818 = vpack.c.b16 %v780, %v778
        %v819 = vpack.c.b16 %v783, %v781
        %v820 = vpack.c.b16 %v784, %v782
        %v821 = vpack.c.b16 %v787, %v785
        %v822 = vpack.c.b16 %v788, %v786
        %v823 = vpack.c.b16 %v791, %v789
        %v824 = vpack.c.b16 %v792, %v790
        %857 = vmatpush.bf16.msra.mxu0 %v807
        %858 = vmatpush.bf16.msra.mxu0 %v805
        %859 = vmatpush.bf16.msra.mxu0 %v803
        %860 = vmatpush.bf16.msra.mxu0 %v801
        %861 = vmatpush.bf16.msra.mxu0 %v799
        %862 = vmatpush.bf16.msra.mxu0 %v797
        %863 = vmatpush.bf16.msra.mxu0 %v795
        %864 = vmatpush.bf16.msra.mxu0 %v793
        %865 = vmatmul.bf16.gmra.mxu0 %v415
        %v866 = vpop.f32.mrf.mxu0
        %v867 = vadd.f32 0.0, %v866
        %v868 = vpop.f32.mrf.mxu0
        %869 = vdwg.mxu0
        %870 = vmatpush.bf16.msra.mxu0 %v823
        %871 = vmatpush.bf16.msra.mxu0 %v821
        %872 = vmatpush.bf16.msra.mxu0 %v819
        %873 = vmatpush.bf16.msra.mxu0 %v817
        %874 = vmatpush.bf16.msra.mxu0 %v815
        %875 = vmatpush.bf16.msra.mxu0 %v813
        %876 = vmatpush.bf16.msra.mxu0 %v811
        %877 = vmatpush.bf16.msra.mxu0 %v809
        %878 = vmatmul.bf16.gmra.mxu0 %v416
        %v879 = vpop.f32.mrf.mxu0
        %v880 = vadd.f32 %v867, %v879
        %v881 = vpop.f32.mrf.mxu0
        %882 = vdwg.mxu0
        %883 = vmatpush.bf16.msra.mxu0 %v808
        %884 = vmatpush.bf16.msra.mxu0 %v806
        %885 = vmatpush.bf16.msra.mxu0 %v804
        %886 = vmatpush.bf16.msra.mxu0 %v802
        %887 = vmatpush.bf16.msra.mxu0 %v800
        %888 = vmatpush.bf16.msra.mxu0 %v798
        %889 = vmatpush.bf16.msra.mxu0 %v796
        %890 = vmatpush.bf16.msra.mxu0 %v794
        %891 = vmatmul.bf16.gmra.mxu0 %v415
        %v892 = vpop.f32.mrf.mxu0
        %v893 = vadd.f32 0.0, %v892
        %v894 = vpop.f32.mrf.mxu0
        %895 = vdwg.mxu0
        %896 = vmatpush.bf16.msra.mxu0 %v824
        %897 = vmatpush.bf16.msra.mxu0 %v822
        %898 = vmatpush.bf16.msra.mxu0 %v820
        %899 = vmatpush.bf16.msra.mxu0 %v818
        %900 = vmatpush.bf16.msra.mxu0 %v816
        %901 = vmatpush.bf16.msra.mxu0 %v814
        %902 = vmatpush.bf16.msra.mxu0 %v812
        %903 = vmatpush.bf16.msra.mxu0 %v810
        %904 = vmatmul.bf16.gmra.mxu0 %v416
        %v905 = vpop.f32.mrf.mxu0
        %v906 = vadd.f32 %v893, %v905
        %v907 = vpop.f32.mrf.mxu0
        %908 = vdwg.mxu0
        %v909 = vpack.c.bf16 %v880, %v880
        %v910 = vpack.c.bf16 %v906, %v906
        %s911 = scalar_lea.vmem %s1, 4
        %v912 = vld [vmem:[%s911] sm:$0xf]
        %vm913 = vcmask 31744
        %v915 = vsel %vm913, %v912, 0
        %vm917 = vcmask 1041408
        %v919 = vsel %vm917, %v909, 0
        %v922 = vsel %vm917, %v910, 0
        %924 = vmatpush.bf16.msra.mxu0 0
        %925 = vmatpush.bf16.msra.mxu0 0
        %926 = vmatpush.bf16.msra.mxu0 0
        %927 = vmatpush.bf16.msra.mxu0 0
        %928 = vmatpush.bf16.msra.mxu0 0
        %929 = vmatpush.bf16.msra.mxu0 0
        %930 = vmatpush.bf16.msra.mxu0 0
        %931 = vmatpush.bf16.msra.mxu0 %v919
        %932 = vmatmul.bf16.gmra.mxu0 %v915
        %v933 = vpop.f32.mrf.mxu0
        %v934 = vadd.f32 0.0, %v933
        %v935 = vpop.f32.mrf.mxu0
        %936 = vdwg.mxu0
        %937 = vmatpush.bf16.msra.mxu0 0
        %938 = vmatpush.bf16.msra.mxu0 0
        %939 = vmatpush.bf16.msra.mxu0 0
        %940 = vmatpush.bf16.msra.mxu0 0
        %941 = vmatpush.bf16.msra.mxu0 0
        %942 = vmatpush.bf16.msra.mxu0 0
        %943 = vmatpush.bf16.msra.mxu0 0
        %944 = vmatpush.bf16.msra.mxu0 %v922
        %945 = vmatmul.bf16.gmra.mxu0 %v915
        %v946 = vpop.f32.mrf.mxu0
        %v947 = vadd.f32 0.0, %v946
        %v948 = vpop.f32.mrf.mxu0
        %949 = vdwg.mxu0
        %v951 = vsel %vm913, %v663, 0
        %v954 = vsel %vm917, %v661, 0
        %v957 = vsel %vm917, %v662, 0
        %959 = vmatpush.bf16.msra.mxu0 0
        %960 = vmatpush.bf16.msra.mxu0 0
        %961 = vmatpush.bf16.msra.mxu0 0
        %962 = vmatpush.bf16.msra.mxu0 0
        %963 = vmatpush.bf16.msra.mxu0 0
        %964 = vmatpush.bf16.msra.mxu0 0
        %965 = vmatpush.bf16.msra.mxu0 0
        %966 = vmatpush.bf16.msra.mxu0 %v954
        %967 = vmatmul.bf16.gmra.mxu0 %v951
        %v968 = vpop.f32.mrf.mxu0
        %v969 = vadd.f32 %v934, %v968
        %v970 = vpop.f32.mrf.mxu0
        %971 = vdwg.mxu0
        %972 = vmatpush.bf16.msra.mxu0 0
        %973 = vmatpush.bf16.msra.mxu0 0
        %974 = vmatpush.bf16.msra.mxu0 0
        %975 = vmatpush.bf16.msra.mxu0 0
        %976 = vmatpush.bf16.msra.mxu0 0
        %977 = vmatpush.bf16.msra.mxu0 0
        %978 = vmatpush.bf16.msra.mxu0 0
        %979 = vmatpush.bf16.msra.mxu0 %v957
        %980 = vmatmul.bf16.gmra.mxu0 %v951
        %v981 = vpop.f32.mrf.mxu0
        %v982 = vadd.f32 %v947, %v981
        %v983 = vpop.f32.mrf.mxu0
        %984 = vdwg.mxu0
        %s985 = scalar_lea.vmem [#allocation2], 512
        %v986 = vld [vmem:[%s985] sm:$0xff]
        %v987 = vld [vmem:[%s985 + $0x8] sm:$0xff]
        %v988 = vld [vmem:[%s985 + $0x10] sm:$0xff]
        %v989 = vld [vmem:[%s985 + $0x18] sm:$0xff]
        %v990 = vld [vmem:[%s985 + $0x20] sm:$0xff]
        %v991 = vld [vmem:[%s985 + $0x28] sm:$0xff]
        %v992 = vld [vmem:[%s985 + $0x30] sm:$0xff]
        %v993 = vld [vmem:[%s985 + $0x38] sm:$0xff]
        %v994 = vld [vmem:[%s985 + $0x40] sm:$0xff]
        %v995 = vld [vmem:[%s985 + $0x48] sm:$0xff]
        %v996 = vld [vmem:[%s985 + $0x50] sm:$0xff]
        %v997 = vld [vmem:[%s985 + $0x58] sm:$0xff]
        %v998 = vld [vmem:[%s985 + $0x60] sm:$0xff]
        %v999 = vld [vmem:[%s985 + $0x68] sm:$0xff]
        %v1000 = vld [vmem:[%s985 + $0x70] sm:$0xff]
        %v1001 = vld [vmem:[%s985 + $0x78] sm:$0xff]
        %v1002 = vld [vmem:[%s985 + $0x80] sm:$0xff]
        %v1003 = vld [vmem:[%s985 + $0x88] sm:$0xff]
        %v1004 = vld [vmem:[%s985 + $0x90] sm:$0xff]
        %v1005 = vld [vmem:[%s985 + $0x98] sm:$0xff]
        %v1006 = vld [vmem:[%s985 + $0xa0] sm:$0xff]
        %v1007 = vld [vmem:[%s985 + $0xa8] sm:$0xff]
        %v1008 = vld [vmem:[%s985 + $0xb0] sm:$0xff]
        %v1009 = vld [vmem:[%s985 + $0xb8] sm:$0xff]
        %v1010 = vld [vmem:[%s985 + $0xc0] sm:$0xff]
        %v1011 = vld [vmem:[%s985 + $0xc8] sm:$0xff]
        %v1012 = vld [vmem:[%s985 + $0xd0] sm:$0xff]
        %v1013 = vld [vmem:[%s985 + $0xd8] sm:$0xff]
        %v1014 = vld [vmem:[%s985 + $0xe0] sm:$0xff]
        %v1015 = vld [vmem:[%s985 + $0xe8] sm:$0xff]
        %v1016 = vld [vmem:[%s985 + $0xf0] sm:$0xff]
        %v1017 = vld [vmem:[%s985 + $0xf8] sm:$0xff]
        %v1050 = vunpack.c.l.b16 %v986
        %v1051 = vunpack.c.h.b16 %v986
        %v1052 = vunpack.c.l.b16 %v987
        %v1053 = vunpack.c.h.b16 %v987
        %v1054 = vunpack.c.l.b16 %v988
        %v1055 = vunpack.c.h.b16 %v988
        %v1056 = vunpack.c.l.b16 %v989
        %v1057 = vunpack.c.h.b16 %v989
        %v1058 = vunpack.c.l.b16 %v990
        %v1059 = vunpack.c.h.b16 %v990
        %v1060 = vunpack.c.l.b16 %v991
        %v1061 = vunpack.c.h.b16 %v991
        %v1062 = vunpack.c.l.b16 %v992
        %v1063 = vunpack.c.h.b16 %v992
        %v1064 = vunpack.c.l.b16 %v993
        %v1065 = vunpack.c.h.b16 %v993
        %v1066 = vunpack.c.l.b16 %v994
        %v1067 = vunpack.c.h.b16 %v994
        %v1068 = vunpack.c.l.b16 %v995
        %v1069 = vunpack.c.h.b16 %v995
        %v1070 = vunpack.c.l.b16 %v996
        %v1071 = vunpack.c.h.b16 %v996
        %v1072 = vunpack.c.l.b16 %v997
        %v1073 = vunpack.c.h.b16 %v997
        %v1074 = vunpack.c.l.b16 %v998
        %v1075 = vunpack.c.h.b16 %v998
        %v1076 = vunpack.c.l.b16 %v999
        %v1077 = vunpack.c.h.b16 %v999
        %v1078 = vunpack.c.l.b16 %v1000
        %v1079 = vunpack.c.h.b16 %v1000
        %v1080 = vunpack.c.l.b16 %v1001
        %v1081 = vunpack.c.h.b16 %v1001
        %v1082 = vunpack.c.l.b16 %v1002
        %v1083 = vunpack.c.h.b16 %v1002
        %v1084 = vunpack.c.l.b16 %v1003
        %v1085 = vunpack.c.h.b16 %v1003
        %v1086 = vunpack.c.l.b16 %v1004
        %v1087 = vunpack.c.h.b16 %v1004
        %v1088 = vunpack.c.l.b16 %v1005
        %v1089 = vunpack.c.h.b16 %v1005
        %v1090 = vunpack.c.l.b16 %v1006
        %v1091 = vunpack.c.h.b16 %v1006
        %v1092 = vunpack.c.l.b16 %v1007
        %v1093 = vunpack.c.h.b16 %v1007
        %v1094 = vunpack.c.l.b16 %v1008
        %v1095 = vunpack.c.h.b16 %v1008
        %v1096 = vunpack.c.l.b16 %v1009
        %v1097 = vunpack.c.h.b16 %v1009
        %v1098 = vunpack.c.l.b16 %v1010
        %v1099 = vunpack.c.h.b16 %v1010
        %v1100 = vunpack.c.l.b16 %v1011
        %v1101 = vunpack.c.h.b16 %v1011
        %v1102 = vunpack.c.l.b16 %v1012
        %v1103 = vunpack.c.h.b16 %v1012
        %v1104 = vunpack.c.l.b16 %v1013
        %v1105 = vunpack.c.h.b16 %v1013
        %v1106 = vunpack.c.l.b16 %v1014
        %v1107 = vunpack.c.h.b16 %v1014
        %v1108 = vunpack.c.l.b16 %v1015
        %v1109 = vunpack.c.h.b16 %v1015
        %v1110 = vunpack.c.l.b16 %v1016
        %v1111 = vunpack.c.h.b16 %v1016
        %v1112 = vunpack.c.l.b16 %v1017
        %v1113 = vunpack.c.h.b16 %v1017
        %v1114 = vpack.c.b16 %v1052, %v1050
        %v1115 = vpack.c.b16 %v1053, %v1051
        %v1116 = vpack.c.b16 %v1056, %v1054
        %v1117 = vpack.c.b16 %v1057, %v1055
        %v1118 = vpack.c.b16 %v1060, %v1058
        %v1119 = vpack.c.b16 %v1061, %v1059
        %v1120 = vpack.c.b16 %v1064, %v1062
        %v1121 = vpack.c.b16 %v1065, %v1063
        %v1122 = vpack.c.b16 %v1068, %v1066
        %v1123 = vpack.c.b16 %v1069, %v1067
        %v1124 = vpack.c.b16 %v1072, %v1070
        %v1125 = vpack.c.b16 %v1073, %v1071
        %v1126 = vpack.c.b16 %v1076, %v1074
        %v1127 = vpack.c.b16 %v1077, %v1075
        %v1128 = vpack.c.b16 %v1080, %v1078
        %v1129 = vpack.c.b16 %v1081, %v1079
        %v1130 = vpack.c.b16 %v1084, %v1082
        %v1131 = vpack.c.b16 %v1085, %v1083
        %v1132 = vpack.c.b16 %v1088, %v1086
        %v1133 = vpack.c.b16 %v1089, %v1087
        %v1134 = vpack.c.b16 %v1092, %v1090
        %v1135 = vpack.c.b16 %v1093, %v1091
        %v1136 = vpack.c.b16 %v1096, %v1094
        %v1137 = vpack.c.b16 %v1097, %v1095
        %v1138 = vpack.c.b16 %v1100, %v1098
        %v1139 = vpack.c.b16 %v1101, %v1099
        %v1140 = vpack.c.b16 %v1104, %v1102
        %v1141 = vpack.c.b16 %v1105, %v1103
        %v1142 = vpack.c.b16 %v1108, %v1106
        %v1143 = vpack.c.b16 %v1109, %v1107
        %v1144 = vpack.c.b16 %v1112, %v1110
        %v1145 = vpack.c.b16 %v1113, %v1111
        %1178 = vmatpush.bf16.msra.mxu0 %v1128
        %1179 = vmatpush.bf16.msra.mxu0 %v1126
        %1180 = vmatpush.bf16.msra.mxu0 %v1124
        %1181 = vmatpush.bf16.msra.mxu0 %v1122
        %1182 = vmatpush.bf16.msra.mxu0 %v1120
        %1183 = vmatpush.bf16.msra.mxu0 %v1118
        %1184 = vmatpush.bf16.msra.mxu0 %v1116
        %1185 = vmatpush.bf16.msra.mxu0 %v1114
        %1186 = vmatmul.bf16.gmra.mxu0 %v415
        %v1187 = vpop.f32.mrf.mxu0
        %v1188 = vadd.f32 0.0, %v1187
        %v1189 = vpop.f32.mrf.mxu0
        %1190 = vdwg.mxu0
        %1191 = vmatpush.bf16.msra.mxu0 %v1144
        %1192 = vmatpush.bf16.msra.mxu0 %v1142
        %1193 = vmatpush.bf16.msra.mxu0 %v1140
        %1194 = vmatpush.bf16.msra.mxu0 %v1138
        %1195 = vmatpush.bf16.msra.mxu0 %v1136
        %1196 = vmatpush.bf16.msra.mxu0 %v1134
        %1197 = vmatpush.bf16.msra.mxu0 %v1132
        %1198 = vmatpush.bf16.msra.mxu0 %v1130
        %1199 = vmatmul.bf16.gmra.mxu0 %v416
        %v1200 = vpop.f32.mrf.mxu0
        %v1201 = vadd.f32 %v1188, %v1200
        %v1202 = vpop.f32.mrf.mxu0
        %1203 = vdwg.mxu0
        %1204 = vmatpush.bf16.msra.mxu0 %v1129
        %1205 = vmatpush.bf16.msra.mxu0 %v1127
        %1206 = vmatpush.bf16.msra.mxu0 %v1125
        %1207 = vmatpush.bf16.msra.mxu0 %v1123
        %1208 = vmatpush.bf16.msra.mxu0 %v1121
        %1209 = vmatpush.bf16.msra.mxu0 %v1119
        %1210 = vmatpush.bf16.msra.mxu0 %v1117
        %1211 = vmatpush.bf16.msra.mxu0 %v1115
        %1212 = vmatmul.bf16.gmra.mxu0 %v415
        %v1213 = vpop.f32.mrf.mxu0
        %v1214 = vadd.f32 0.0, %v1213
        %v1215 = vpop.f32.mrf.mxu0
        %1216 = vdwg.mxu0
        %1217 = vmatpush.bf16.msra.mxu0 %v1145
        %1218 = vmatpush.bf16.msra.mxu0 %v1143
        %1219 = vmatpush.bf16.msra.mxu0 %v1141
        %1220 = vmatpush.bf16.msra.mxu0 %v1139
        %1221 = vmatpush.bf16.msra.mxu0 %v1137
        %1222 = vmatpush.bf16.msra.mxu0 %v1135
        %1223 = vmatpush.bf16.msra.mxu0 %v1133
        %1224 = vmatpush.bf16.msra.mxu0 %v1131
        %1225 = vmatmul.bf16.gmra.mxu0 %v416
        %v1226 = vpop.f32.mrf.mxu0
        %v1227 = vadd.f32 %v1214, %v1226
        %v1228 = vpop.f32.mrf.mxu0
        %1229 = vdwg.mxu0
        %v1230 = vpack.c.bf16 %v1201, %v1201
        %v1231 = vpack.c.bf16 %v1227, %v1227
        %s1232 = scalar_lea.vmem %s1, 8
        %v1233 = vld [vmem:[%s1232] sm:$0xf]
        %v1235 = vsel %vm913, %v1233, 0
        %v1238 = vsel %vm917, %v1230, 0
        %v1241 = vsel %vm917, %v1231, 0
        %1243 = vmatpush.bf16.msra.mxu0 0
        %1244 = vmatpush.bf16.msra.mxu0 0
        %1245 = vmatpush.bf16.msra.mxu0 0
        %1246 = vmatpush.bf16.msra.mxu0 0
        %1247 = vmatpush.bf16.msra.mxu0 0
        %1248 = vmatpush.bf16.msra.mxu0 0
        %1249 = vmatpush.bf16.msra.mxu0 0
        %1250 = vmatpush.bf16.msra.mxu0 %v1238
        %1251 = vmatmul.bf16.gmra.mxu0 %v1235
        %v1252 = vpop.f32.mrf.mxu0
        %v1253 = vadd.f32 0.0, %v1252
        %v1254 = vpop.f32.mrf.mxu0
        %1255 = vdwg.mxu0
        %1256 = vmatpush.bf16.msra.mxu0 0
        %1257 = vmatpush.bf16.msra.mxu0 0
        %1258 = vmatpush.bf16.msra.mxu0 0
        %1259 = vmatpush.bf16.msra.mxu0 0
        %1260 = vmatpush.bf16.msra.mxu0 0
        %1261 = vmatpush.bf16.msra.mxu0 0
        %1262 = vmatpush.bf16.msra.mxu0 0
        %1263 = vmatpush.bf16.msra.mxu0 %v1241
        %1264 = vmatmul.bf16.gmra.mxu0 %v1235
        %v1265 = vpop.f32.mrf.mxu0
        %v1266 = vadd.f32 0.0, %v1265
        %v1267 = vpop.f32.mrf.mxu0
        %1268 = vdwg.mxu0
        %v1269 = vadd.f32 %v969, %v1253
        %v1270 = vadd.f32 %v982, %v1266
        %s1271 = scalar_lea.vmem [#allocation2], 768
        %v1272 = vld [vmem:[%s1271] sm:$0xff]
        %v1273 = vld [vmem:[%s1271 + $0x8] sm:$0xff]
        %v1274 = vld [vmem:[%s1271 + $0x10] sm:$0xff]
        %v1275 = vld [vmem:[%s1271 + $0x18] sm:$0xff]
        %v1276 = vld [vmem:[%s1271 + $0x20] sm:$0xff]
        %v1277 = vld [vmem:[%s1271 + $0x28] sm:$0xff]
        %v1278 = vld [vmem:[%s1271 + $0x30] sm:$0xff]
        %v1279 = vld [vmem:[%s1271 + $0x38] sm:$0xff]
        %v1280 = vld [vmem:[%s1271 + $0x40] sm:$0xff]
        %v1281 = vld [vmem:[%s1271 + $0x48] sm:$0xff]
        %v1282 = vld [vmem:[%s1271 + $0x50] sm:$0xff]
        %v1283 = vld [vmem:[%s1271 + $0x58] sm:$0xff]
        %v1284 = vld [vmem:[%s1271 + $0x60] sm:$0xff]
        %v1285 = vld [vmem:[%s1271 + $0x68] sm:$0xff]
        %v1286 = vld [vmem:[%s1271 + $0x70] sm:$0xff]
        %v1287 = vld [vmem:[%s1271 + $0x78] sm:$0xff]
        %v1288 = vld [vmem:[%s1271 + $0x80] sm:$0xff]
        %v1289 = vld [vmem:[%s1271 + $0x88] sm:$0xff]
        %v1290 = vld [vmem:[%s1271 + $0x90] sm:$0xff]
        %v1291 = vld [vmem:[%s1271 + $0x98] sm:$0xff]
        %v1292 = vld [vmem:[%s1271 + $0xa0] sm:$0xff]
        %v1293 = vld [vmem:[%s1271 + $0xa8] sm:$0xff]
        %v1294 = vld [vmem:[%s1271 + $0xb0] sm:$0xff]
        %v1295 = vld [vmem:[%s1271 + $0xb8] sm:$0xff]
        %v1296 = vld [vmem:[%s1271 + $0xc0] sm:$0xff]
        %v1297 = vld [vmem:[%s1271 + $0xc8] sm:$0xff]
        %v1298 = vld [vmem:[%s1271 + $0xd0] sm:$0xff]
        %v1299 = vld [vmem:[%s1271 + $0xd8] sm:$0xff]
        %v1300 = vld [vmem:[%s1271 + $0xe0] sm:$0xff]
        %v1301 = vld [vmem:[%s1271 + $0xe8] sm:$0xff]
        %v1302 = vld [vmem:[%s1271 + $0xf0] sm:$0xff]
        %v1303 = vld [vmem:[%s1271 + $0xf8] sm:$0xff]
        %v1336 = vunpack.c.l.b16 %v1272
        %v1337 = vunpack.c.h.b16 %v1272
        %v1338 = vunpack.c.l.b16 %v1273
        %v1339 = vunpack.c.h.b16 %v1273
        %v1340 = vunpack.c.l.b16 %v1274
        %v1341 = vunpack.c.h.b16 %v1274
        %v1342 = vunpack.c.l.b16 %v1275
        %v1343 = vunpack.c.h.b16 %v1275
        %v1344 = vunpack.c.l.b16 %v1276
        %v1345 = vunpack.c.h.b16 %v1276
        %v1346 = vunpack.c.l.b16 %v1277
        %v1347 = vunpack.c.h.b16 %v1277
        %v1348 = vunpack.c.l.b16 %v1278
        %v1349 = vunpack.c.h.b16 %v1278
        %v1350 = vunpack.c.l.b16 %v1279
        %v1351 = vunpack.c.h.b16 %v1279
        %v1352 = vunpack.c.l.b16 %v1280
        %v1353 = vunpack.c.h.b16 %v1280
        %v1354 = vunpack.c.l.b16 %v1281
        %v1355 = vunpack.c.h.b16 %v1281
        %v1356 = vunpack.c.l.b16 %v1282
        %v1357 = vunpack.c.h.b16 %v1282
        %v1358 = vunpack.c.l.b16 %v1283
        %v1359 = vunpack.c.h.b16 %v1283
        %v1360 = vunpack.c.l.b16 %v1284
        %v1361 = vunpack.c.h.b16 %v1284
        %v1362 = vunpack.c.l.b16 %v1285
        %v1363 = vunpack.c.h.b16 %v1285
        %v1364 = vunpack.c.l.b16 %v1286
        %v1365 = vunpack.c.h.b16 %v1286
        %v1366 = vunpack.c.l.b16 %v1287
        %v1367 = vunpack.c.h.b16 %v1287
        %v1368 = vunpack.c.l.b16 %v1288
        %v1369 = vunpack.c.h.b16 %v1288
        %v1370 = vunpack.c.l.b16 %v1289
        %v1371 = vunpack.c.h.b16 %v1289
        %v1372 = vunpack.c.l.b16 %v1290
        %v1373 = vunpack.c.h.b16 %v1290
        %v1374 = vunpack.c.l.b16 %v1291
        %v1375 = vunpack.c.h.b16 %v1291
        %v1376 = vunpack.c.l.b16 %v1292
        %v1377 = vunpack.c.h.b16 %v1292
        %v1378 = vunpack.c.l.b16 %v1293
        %v1379 = vunpack.c.h.b16 %v1293
        %v1380 = vunpack.c.l.b16 %v1294
        %v1381 = vunpack.c.h.b16 %v1294
        %v1382 = vunpack.c.l.b16 %v1295
        %v1383 = vunpack.c.h.b16 %v1295
        %v1384 = vunpack.c.l.b16 %v1296
        %v1385 = vunpack.c.h.b16 %v1296
        %v1386 = vunpack.c.l.b16 %v1297
        %v1387 = vunpack.c.h.b16 %v1297
        %v1388 = vunpack.c.l.b16 %v1298
        %v1389 = vunpack.c.h.b16 %v1298
        %v1390 = vunpack.c.l.b16 %v1299
        %v1391 = vunpack.c.h.b16 %v1299
        %v1392 = vunpack.c.l.b16 %v1300
        %v1393 = vunpack.c.h.b16 %v1300
        %v1394 = vunpack.c.l.b16 %v1301
        %v1395 = vunpack.c.h.b16 %v1301
        %v1396 = vunpack.c.l.b16 %v1302
        %v1397 = vunpack.c.h.b16 %v1302
        %v1398 = vunpack.c.l.b16 %v1303
        %v1399 = vunpack.c.h.b16 %v1303
        %v1400 = vpack.c.b16 %v1338, %v1336
        %v1401 = vpack.c.b16 %v1339, %v1337
        %v1402 = vpack.c.b16 %v1342, %v1340
        %v1403 = vpack.c.b16 %v1343, %v1341
        %v1404 = vpack.c.b16 %v1346, %v1344
        %v1405 = vpack.c.b16 %v1347, %v1345
        %v1406 = vpack.c.b16 %v1350, %v1348
        %v1407 = vpack.c.b16 %v1351, %v1349
        %v1408 = vpack.c.b16 %v1354, %v1352
        %v1409 = vpack.c.b16 %v1355, %v1353
        %v1410 = vpack.c.b16 %v1358, %v1356
        %v1411 = vpack.c.b16 %v1359, %v1357
        %v1412 = vpack.c.b16 %v1362, %v1360
        %v1413 = vpack.c.b16 %v1363, %v1361
        %v1414 = vpack.c.b16 %v1366, %v1364
        %v1415 = vpack.c.b16 %v1367, %v1365
        %v1416 = vpack.c.b16 %v1370, %v1368
        %v1417 = vpack.c.b16 %v1371, %v1369
        %v1418 = vpack.c.b16 %v1374, %v1372
        %v1419 = vpack.c.b16 %v1375, %v1373
        %v1420 = vpack.c.b16 %v1378, %v1376
        %v1421 = vpack.c.b16 %v1379, %v1377
        %v1422 = vpack.c.b16 %v1382, %v1380
        %v1423 = vpack.c.b16 %v1383, %v1381
        %v1424 = vpack.c.b16 %v1386, %v1384
        %v1425 = vpack.c.b16 %v1387, %v1385
        %v1426 = vpack.c.b16 %v1390, %v1388
        %v1427 = vpack.c.b16 %v1391, %v1389
        %v1428 = vpack.c.b16 %v1394, %v1392
        %v1429 = vpack.c.b16 %v1395, %v1393
        %v1430 = vpack.c.b16 %v1398, %v1396
        %v1431 = vpack.c.b16 %v1399, %v1397
        %1464 = vmatpush.bf16.msra.mxu0 %v1414
        %1465 = vmatpush.bf16.msra.mxu0 %v1412
        %1466 = vmatpush.bf16.msra.mxu0 %v1410
        %1467 = vmatpush.bf16.msra.mxu0 %v1408
        %1468 = vmatpush.bf16.msra.mxu0 %v1406
        %1469 = vmatpush.bf16.msra.mxu0 %v1404
        %1470 = vmatpush.bf16.msra.mxu0 %v1402
        %1471 = vmatpush.bf16.msra.mxu0 %v1400
        %1472 = vmatmul.bf16.gmra.mxu0 %v415
        %v1473 = vpop.f32.mrf.mxu0
        %v1474 = vadd.f32 0.0, %v1473
        %v1475 = vpop.f32.mrf.mxu0
        %1476 = vdwg.mxu0
        %1477 = vmatpush.bf16.msra.mxu0 %v1430
        %1478 = vmatpush.bf16.msra.mxu0 %v1428
        %1479 = vmatpush.bf16.msra.mxu0 %v1426
        %1480 = vmatpush.bf16.msra.mxu0 %v1424
        %1481 = vmatpush.bf16.msra.mxu0 %v1422
        %1482 = vmatpush.bf16.msra.mxu0 %v1420
        %1483 = vmatpush.bf16.msra.mxu0 %v1418
        %1484 = vmatpush.bf16.msra.mxu0 %v1416
        %1485 = vmatmul.bf16.gmra.mxu0 %v416
        %v1486 = vpop.f32.mrf.mxu0
        %v1487 = vadd.f32 %v1474, %v1486
        %v1488 = vpop.f32.mrf.mxu0
        %1489 = vdwg.mxu0
        %1490 = vmatpush.bf16.msra.mxu0 %v1415
        %1491 = vmatpush.bf16.msra.mxu0 %v1413
        %1492 = vmatpush.bf16.msra.mxu0 %v1411
        %1493 = vmatpush.bf16.msra.mxu0 %v1409
        %1494 = vmatpush.bf16.msra.mxu0 %v1407
        %1495 = vmatpush.bf16.msra.mxu0 %v1405
        %1496 = vmatpush.bf16.msra.mxu0 %v1403
        %1497 = vmatpush.bf16.msra.mxu0 %v1401
        %1498 = vmatmul.bf16.gmra.mxu0 %v415
        %v1499 = vpop.f32.mrf.mxu0
        %v1500 = vadd.f32 0.0, %v1499
        %v1501 = vpop.f32.mrf.mxu0
        %1502 = vdwg.mxu0
        %1503 = vmatpush.bf16.msra.mxu0 %v1431
        %1504 = vmatpush.bf16.msra.mxu0 %v1429
        %1505 = vmatpush.bf16.msra.mxu0 %v1427
        %1506 = vmatpush.bf16.msra.mxu0 %v1425
        %1507 = vmatpush.bf16.msra.mxu0 %v1423
        %1508 = vmatpush.bf16.msra.mxu0 %v1421
        %1509 = vmatpush.bf16.msra.mxu0 %v1419
        %1510 = vmatpush.bf16.msra.mxu0 %v1417
        %1511 = vmatmul.bf16.gmra.mxu0 %v416
        %v1512 = vpop.f32.mrf.mxu0
        %v1513 = vadd.f32 %v1500, %v1512
        %v1514 = vpop.f32.mrf.mxu0
        %1515 = vdwg.mxu0
        %v1516 = vpack.c.bf16 %v1487, %v1487
        %v1517 = vpack.c.bf16 %v1513, %v1513
        %s1518 = scalar_lea.vmem %s1, 12
        %v1519 = vld [vmem:[%s1518] sm:$0xf]
        %v1521 = vsel %vm913, %v1519, 0
        %v1524 = vsel %vm917, %v1516, 0
        %v1527 = vsel %vm917, %v1517, 0
        %1529 = vmatpush.bf16.msra.mxu0 0
        %1530 = vmatpush.bf16.msra.mxu0 0
        %1531 = vmatpush.bf16.msra.mxu0 0
        %1532 = vmatpush.bf16.msra.mxu0 0
        %1533 = vmatpush.bf16.msra.mxu0 0
        %1534 = vmatpush.bf16.msra.mxu0 0
        %1535 = vmatpush.bf16.msra.mxu0 0
        %1536 = vmatpush.bf16.msra.mxu0 %v1524
        %1537 = vmatmul.bf16.gmra.mxu0 %v1521
        %v1538 = vpop.f32.mrf.mxu0
        %v1539 = vadd.f32 0.0, %v1538
        %v1540 = vpop.f32.mrf.mxu0
        %1541 = vdwg.mxu0
        %1542 = vmatpush.bf16.msra.mxu0 0
        %1543 = vmatpush.bf16.msra.mxu0 0
        %1544 = vmatpush.bf16.msra.mxu0 0
        %1545 = vmatpush.bf16.msra.mxu0 0
        %1546 = vmatpush.bf16.msra.mxu0 0
        %1547 = vmatpush.bf16.msra.mxu0 0
        %1548 = vmatpush.bf16.msra.mxu0 0
        %1549 = vmatpush.bf16.msra.mxu0 %v1527
        %1550 = vmatmul.bf16.gmra.mxu0 %v1521
        %v1551 = vpop.f32.mrf.mxu0
        %v1552 = vadd.f32 0.0, %v1551
        %v1553 = vpop.f32.mrf.mxu0
        %1554 = vdwg.mxu0
        %v1555 = vadd.f32 %v1269, %v1539
        %v1556 = vadd.f32 %v1270, %v1552
        %s1557 = scalar_lea.vmem [#allocation2], 1024
        %v1558 = vld [vmem:[%s1557] sm:$0xff]
        %v1559 = vld [vmem:[%s1557 + $0x8] sm:$0xff]
        %v1560 = vld [vmem:[%s1557 + $0x10] sm:$0xff]
        %v1561 = vld [vmem:[%s1557 + $0x18] sm:$0xff]
        %v1562 = vld [vmem:[%s1557 + $0x20] sm:$0xff]
        %v1563 = vld [vmem:[%s1557 + $0x28] sm:$0xff]
        %v1564 = vld [vmem:[%s1557 + $0x30] sm:$0xff]
        %v1565 = vld [vmem:[%s1557 + $0x38] sm:$0xff]
        %v1566 = vld [vmem:[%s1557 + $0x40] sm:$0xff]
        %v1567 = vld [vmem:[%s1557 + $0x48] sm:$0xff]
        %v1568 = vld [vmem:[%s1557 + $0x50] sm:$0xff]
        %v1569 = vld [vmem:[%s1557 + $0x58] sm:$0xff]
        %v1570 = vld [vmem:[%s1557 + $0x60] sm:$0xff]
        %v1571 = vld [vmem:[%s1557 + $0x68] sm:$0xff]
        %v1572 = vld [vmem:[%s1557 + $0x70] sm:$0xff]
        %v1573 = vld [vmem:[%s1557 + $0x78] sm:$0xff]
        %v1574 = vld [vmem:[%s1557 + $0x80] sm:$0xff]
        %v1575 = vld [vmem:[%s1557 + $0x88] sm:$0xff]
        %v1576 = vld [vmem:[%s1557 + $0x90] sm:$0xff]
        %v1577 = vld [vmem:[%s1557 + $0x98] sm:$0xff]
        %v1578 = vld [vmem:[%s1557 + $0xa0] sm:$0xff]
        %v1579 = vld [vmem:[%s1557 + $0xa8] sm:$0xff]
        %v1580 = vld [vmem:[%s1557 + $0xb0] sm:$0xff]
        %v1581 = vld [vmem:[%s1557 + $0xb8] sm:$0xff]
        %v1582 = vld [vmem:[%s1557 + $0xc0] sm:$0xff]
        %v1583 = vld [vmem:[%s1557 + $0xc8] sm:$0xff]
        %v1584 = vld [vmem:[%s1557 + $0xd0] sm:$0xff]
        %v1585 = vld [vmem:[%s1557 + $0xd8] sm:$0xff]
        %v1586 = vld [vmem:[%s1557 + $0xe0] sm:$0xff]
        %v1587 = vld [vmem:[%s1557 + $0xe8] sm:$0xff]
        %v1588 = vld [vmem:[%s1557 + $0xf0] sm:$0xff]
        %v1589 = vld [vmem:[%s1557 + $0xf8] sm:$0xff]
        %v1622 = vunpack.c.l.b16 %v1558
        %v1623 = vunpack.c.h.b16 %v1558
        %v1624 = vunpack.c.l.b16 %v1559
        %v1625 = vunpack.c.h.b16 %v1559
        %v1626 = vunpack.c.l.b16 %v1560
        %v1627 = vunpack.c.h.b16 %v1560
        %v1628 = vunpack.c.l.b16 %v1561
        %v1629 = vunpack.c.h.b16 %v1561
        %v1630 = vunpack.c.l.b16 %v1562
        %v1631 = vunpack.c.h.b16 %v1562
        %v1632 = vunpack.c.l.b16 %v1563
        %v1633 = vunpack.c.h.b16 %v1563
        %v1634 = vunpack.c.l.b16 %v1564
        %v1635 = vunpack.c.h.b16 %v1564
        %v1636 = vunpack.c.l.b16 %v1565
        %v1637 = vunpack.c.h.b16 %v1565
        %v1638 = vunpack.c.l.b16 %v1566
        %v1639 = vunpack.c.h.b16 %v1566
        %v1640 = vunpack.c.l.b16 %v1567
        %v1641 = vunpack.c.h.b16 %v1567
        %v1642 = vunpack.c.l.b16 %v1568
        %v1643 = vunpack.c.h.b16 %v1568
        %v1644 = vunpack.c.l.b16 %v1569
        %v1645 = vunpack.c.h.b16 %v1569
        %v1646 = vunpack.c.l.b16 %v1570
        %v1647 = vunpack.c.h.b16 %v1570
        %v1648 = vunpack.c.l.b16 %v1571
        %v1649 = vunpack.c.h.b16 %v1571
        %v1650 = vunpack.c.l.b16 %v1572
        %v1651 = vunpack.c.h.b16 %v1572
        %v1652 = vunpack.c.l.b16 %v1573
        %v1653 = vunpack.c.h.b16 %v1573
        %v1654 = vunpack.c.l.b16 %v1574
        %v1655 = vunpack.c.h.b16 %v1574
        %v1656 = vunpack.c.l.b16 %v1575
        %v1657 = vunpack.c.h.b16 %v1575
        %v1658 = vunpack.c.l.b16 %v1576
        %v1659 = vunpack.c.h.b16 %v1576
        %v1660 = vunpack.c.l.b16 %v1577
        %v1661 = vunpack.c.h.b16 %v1577
        %v1662 = vunpack.c.l.b16 %v1578
        %v1663 = vunpack.c.h.b16 %v1578
        %v1664 = vunpack.c.l.b16 %v1579
        %v1665 = vunpack.c.h.b16 %v1579
        %v1666 = vunpack.c.l.b16 %v1580
        %v1667 = vunpack.c.h.b16 %v1580
        %v1668 = vunpack.c.l.b16 %v1581
        %v1669 = vunpack.c.h.b16 %v1581
        %v1670 = vunpack.c.l.b16 %v1582
        %v1671 = vunpack.c.h.b16 %v1582
        %v1672 = vunpack.c.l.b16 %v1583
        %v1673 = vunpack.c.h.b16 %v1583
        %v1674 = vunpack.c.l.b16 %v1584
        %v1675 = vunpack.c.h.b16 %v1584
        %v1676 = vunpack.c.l.b16 %v1585
        %v1677 = vunpack.c.h.b16 %v1585
        %v1678 = vunpack.c.l.b16 %v1586
        %v1679 = vunpack.c.h.b16 %v1586
        %v1680 = vunpack.c.l.b16 %v1587
        %v1681 = vunpack.c.h.b16 %v1587
        %v1682 = vunpack.c.l.b16 %v1588
        %v1683 = vunpack.c.h.b16 %v1588
        %v1684 = vunpack.c.l.b16 %v1589
        %v1685 = vunpack.c.h.b16 %v1589
        %v1686 = vpack.c.b16 %v1624, %v1622
        %v1687 = vpack.c.b16 %v1625, %v1623
        %v1688 = vpack.c.b16 %v1628, %v1626
        %v1689 = vpack.c.b16 %v1629, %v1627
        %v1690 = vpack.c.b16 %v1632, %v1630
        %v1691 = vpack.c.b16 %v1633, %v1631
        %v1692 = vpack.c.b16 %v1636, %v1634
        %v1693 = vpack.c.b16 %v1637, %v1635
        %v1694 = vpack.c.b16 %v1640, %v1638
        %v1695 = vpack.c.b16 %v1641, %v1639
        %v1696 = vpack.c.b16 %v1644, %v1642
        %v1697 = vpack.c.b16 %v1645, %v1643
        %v1698 = vpack.c.b16 %v1648, %v1646
        %v1699 = vpack.c.b16 %v1649, %v1647
        %v1700 = vpack.c.b16 %v1652, %v1650
        %v1701 = vpack.c.b16 %v1653, %v1651
        %v1702 = vpack.c.b16 %v1656, %v1654
        %v1703 = vpack.c.b16 %v1657, %v1655
        %v1704 = vpack.c.b16 %v1660, %v1658
        %v1705 = vpack.c.b16 %v1661, %v1659
        %v1706 = vpack.c.b16 %v1664, %v1662
        %v1707 = vpack.c.b16 %v1665, %v1663
        %v1708 = vpack.c.b16 %v1668, %v1666
        %v1709 = vpack.c.b16 %v1669, %v1667
        %v1710 = vpack.c.b16 %v1672, %v1670
        %v1711 = vpack.c.b16 %v1673, %v1671
        %v1712 = vpack.c.b16 %v1676, %v1674
        %v1713 = vpack.c.b16 %v1677, %v1675
        %v1714 = vpack.c.b16 %v1680, %v1678
        %v1715 = vpack.c.b16 %v1681, %v1679
        %v1716 = vpack.c.b16 %v1684, %v1682
        %v1717 = vpack.c.b16 %v1685, %v1683
        %1750 = vmatpush.bf16.msra.mxu0 %v1700
        %1751 = vmatpush.bf16.msra.mxu0 %v1698
        %1752 = vmatpush.bf16.msra.mxu0 %v1696
        %1753 = vmatpush.bf16.msra.mxu0 %v1694
        %1754 = vmatpush.bf16.msra.mxu0 %v1692
        %1755 = vmatpush.bf16.msra.mxu0 %v1690
        %1756 = vmatpush.bf16.msra.mxu0 %v1688
        %1757 = vmatpush.bf16.msra.mxu0 %v1686
        %1758 = vmatmul.bf16.gmra.mxu0 %v415
        %v1759 = vpop.f32.mrf.mxu0
        %v1760 = vadd.f32 0.0, %v1759
        %v1761 = vpop.f32.mrf.mxu0
        %1762 = vdwg.mxu0
        %1763 = vmatpush.bf16.msra.mxu0 %v1716
        %1764 = vmatpush.bf16.msra.mxu0 %v1714
        %1765 = vmatpush.bf16.msra.mxu0 %v1712
        %1766 = vmatpush.bf16.msra.mxu0 %v1710
        %1767 = vmatpush.bf16.msra.mxu0 %v1708
        %1768 = vmatpush.bf16.msra.mxu0 %v1706
        %1769 = vmatpush.bf16.msra.mxu0 %v1704
        %1770 = vmatpush.bf16.msra.mxu0 %v1702
        %1771 = vmatmul.bf16.gmra.mxu0 %v416
        %v1772 = vpop.f32.mrf.mxu0
        %v1773 = vadd.f32 %v1760, %v1772
        %v1774 = vpop.f32.mrf.mxu0
        %1775 = vdwg.mxu0
        %1776 = vmatpush.bf16.msra.mxu0 %v1701
        %1777 = vmatpush.bf16.msra.mxu0 %v1699
        %1778 = vmatpush.bf16.msra.mxu0 %v1697
        %1779 = vmatpush.bf16.msra.mxu0 %v1695
        %1780 = vmatpush.bf16.msra.mxu0 %v1693
        %1781 = vmatpush.bf16.msra.mxu0 %v1691
        %1782 = vmatpush.bf16.msra.mxu0 %v1689
        %1783 = vmatpush.bf16.msra.mxu0 %v1687
        %1784 = vmatmul.bf16.gmra.mxu0 %v415
        %v1785 = vpop.f32.mrf.mxu0
        %v1786 = vadd.f32 0.0, %v1785
        %v1787 = vpop.f32.mrf.mxu0
        %1788 = vdwg.mxu0
        %1789 = vmatpush.bf16.msra.mxu0 %v1717
        %1790 = vmatpush.bf16.msra.mxu0 %v1715
        %1791 = vmatpush.bf16.msra.mxu0 %v1713
        %1792 = vmatpush.bf16.msra.mxu0 %v1711
        %1793 = vmatpush.bf16.msra.mxu0 %v1709
        %1794 = vmatpush.bf16.msra.mxu0 %v1707
        %1795 = vmatpush.bf16.msra.mxu0 %v1705
        %1796 = vmatpush.bf16.msra.mxu0 %v1703
        %1797 = vmatmul.bf16.gmra.mxu0 %v416
        %v1798 = vpop.f32.mrf.mxu0
        %v1799 = vadd.f32 %v1786, %v1798
        %v1800 = vpop.f32.mrf.mxu0
        %1801 = vdwg.mxu0
        %v1802 = vpack.c.bf16 %v1773, %v1773
        %v1803 = vpack.c.bf16 %v1799, %v1799
        %s1804 = scalar_lea.vmem %s1, 16
        %v1805 = vld [vmem:[%s1804] sm:$0xf]
        %v1807 = vsel %vm913, %v1805, 0
        %v1810 = vsel %vm917, %v1802, 0
        %v1813 = vsel %vm917, %v1803, 0
        %1815 = vmatpush.bf16.msra.mxu0 0
        %1816 = vmatpush.bf16.msra.mxu0 0
        %1817 = vmatpush.bf16.msra.mxu0 0
        %1818 = vmatpush.bf16.msra.mxu0 0
        %1819 = vmatpush.bf16.msra.mxu0 0
        %1820 = vmatpush.bf16.msra.mxu0 0
        %1821 = vmatpush.bf16.msra.mxu0 0
        %1822 = vmatpush.bf16.msra.mxu0 %v1810
        %1823 = vmatmul.bf16.gmra.mxu0 %v1807
        %v1824 = vpop.f32.mrf.mxu0
        %v1825 = vadd.f32 0.0, %v1824
        %v1826 = vpop.f32.mrf.mxu0
        %1827 = vdwg.mxu0
        %1828 = vmatpush.bf16.msra.mxu0 0
        %1829 = vmatpush.bf16.msra.mxu0 0
        %1830 = vmatpush.bf16.msra.mxu0 0
        %1831 = vmatpush.bf16.msra.mxu0 0
        %1832 = vmatpush.bf16.msra.mxu0 0
        %1833 = vmatpush.bf16.msra.mxu0 0
        %1834 = vmatpush.bf16.msra.mxu0 0
        %1835 = vmatpush.bf16.msra.mxu0 %v1813
        %1836 = vmatmul.bf16.gmra.mxu0 %v1807
        %v1837 = vpop.f32.mrf.mxu0
        %v1838 = vadd.f32 0.0, %v1837
        %v1839 = vpop.f32.mrf.mxu0
        %1840 = vdwg.mxu0
        %v1841 = vadd.f32 %v1555, %v1825
        %v1842 = vadd.f32 %v1556, %v1838
        %s1843 = scalar_lea.vmem [#allocation2], 1280
        %v1844 = vld [vmem:[%s1843] sm:$0xff]
        %v1845 = vld [vmem:[%s1843 + $0x8] sm:$0xff]
        %v1846 = vld [vmem:[%s1843 + $0x10] sm:$0xff]
        %v1847 = vld [vmem:[%s1843 + $0x18] sm:$0xff]
        %v1848 = vld [vmem:[%s1843 + $0x20] sm:$0xff]
        %v1849 = vld [vmem:[%s1843 + $0x28] sm:$0xff]
        %v1850 = vld [vmem:[%s1843 + $0x30] sm:$0xff]
        %v1851 = vld [vmem:[%s1843 + $0x38] sm:$0xff]
        %v1852 = vld [vmem:[%s1843 + $0x40] sm:$0xff]
        %v1853 = vld [vmem:[%s1843 + $0x48] sm:$0xff]
        %v1854 = vld [vmem:[%s1843 + $0x50] sm:$0xff]
        %v1855 = vld [vmem:[%s1843 + $0x58] sm:$0xff]
        %v1856 = vld [vmem:[%s1843 + $0x60] sm:$0xff]
        %v1857 = vld [vmem:[%s1843 + $0x68] sm:$0xff]
        %v1858 = vld [vmem:[%s1843 + $0x70] sm:$0xff]
        %v1859 = vld [vmem:[%s1843 + $0x78] sm:$0xff]
        %v1860 = vld [vmem:[%s1843 + $0x80] sm:$0xff]
        %v1861 = vld [vmem:[%s1843 + $0x88] sm:$0xff]
        %v1862 = vld [vmem:[%s1843 + $0x90] sm:$0xff]
        %v1863 = vld [vmem:[%s1843 + $0x98] sm:$0xff]
        %v1864 = vld [vmem:[%s1843 + $0xa0] sm:$0xff]
        %v1865 = vld [vmem:[%s1843 + $0xa8] sm:$0xff]
        %v1866 = vld [vmem:[%s1843 + $0xb0] sm:$0xff]
        %v1867 = vld [vmem:[%s1843 + $0xb8] sm:$0xff]
        %v1868 = vld [vmem:[%s1843 + $0xc0] sm:$0xff]
        %v1869 = vld [vmem:[%s1843 + $0xc8] sm:$0xff]
        %v1870 = vld [vmem:[%s1843 + $0xd0] sm:$0xff]
        %v1871 = vld [vmem:[%s1843 + $0xd8] sm:$0xff]
        %v1872 = vld [vmem:[%s1843 + $0xe0] sm:$0xff]
        %v1873 = vld [vmem:[%s1843 + $0xe8] sm:$0xff]
        %v1874 = vld [vmem:[%s1843 + $0xf0] sm:$0xff]
        %v1875 = vld [vmem:[%s1843 + $0xf8] sm:$0xff]
        %v1908 = vunpack.c.l.b16 %v1844
        %v1909 = vunpack.c.h.b16 %v1844
        %v1910 = vunpack.c.l.b16 %v1845
        %v1911 = vunpack.c.h.b16 %v1845
        %v1912 = vunpack.c.l.b16 %v1846
        %v1913 = vunpack.c.h.b16 %v1846
        %v1914 = vunpack.c.l.b16 %v1847
        %v1915 = vunpack.c.h.b16 %v1847
        %v1916 = vunpack.c.l.b16 %v1848
        %v1917 = vunpack.c.h.b16 %v1848
        %v1918 = vunpack.c.l.b16 %v1849
        %v1919 = vunpack.c.h.b16 %v1849
        %v1920 = vunpack.c.l.b16 %v1850
        %v1921 = vunpack.c.h.b16 %v1850
        %v1922 = vunpack.c.l.b16 %v1851
        %v1923 = vunpack.c.h.b16 %v1851
        %v1924 = vunpack.c.l.b16 %v1852
        %v1925 = vunpack.c.h.b16 %v1852
        %v1926 = vunpack.c.l.b16 %v1853
        %v1927 = vunpack.c.h.b16 %v1853
        %v1928 = vunpack.c.l.b16 %v1854
        %v1929 = vunpack.c.h.b16 %v1854
        %v1930 = vunpack.c.l.b16 %v1855
        %v1931 = vunpack.c.h.b16 %v1855
        %v1932 = vunpack.c.l.b16 %v1856
        %v1933 = vunpack.c.h.b16 %v1856
        %v1934 = vunpack.c.l.b16 %v1857
        %v1935 = vunpack.c.h.b16 %v1857
        %v1936 = vunpack.c.l.b16 %v1858
        %v1937 = vunpack.c.h.b16 %v1858
        %v1938 = vunpack.c.l.b16 %v1859
        %v1939 = vunpack.c.h.b16 %v1859
        %v1940 = vunpack.c.l.b16 %v1860
        %v1941 = vunpack.c.h.b16 %v1860
        %v1942 = vunpack.c.l.b16 %v1861
        %v1943 = vunpack.c.h.b16 %v1861
        %v1944 = vunpack.c.l.b16 %v1862
        %v1945 = vunpack.c.h.b16 %v1862
        %v1946 = vunpack.c.l.b16 %v1863
        %v1947 = vunpack.c.h.b16 %v1863
        %v1948 = vunpack.c.l.b16 %v1864
        %v1949 = vunpack.c.h.b16 %v1864
        %v1950 = vunpack.c.l.b16 %v1865
        %v1951 = vunpack.c.h.b16 %v1865
        %v1952 = vunpack.c.l.b16 %v1866
        %v1953 = vunpack.c.h.b16 %v1866
        %v1954 = vunpack.c.l.b16 %v1867
        %v1955 = vunpack.c.h.b16 %v1867
        %v1956 = vunpack.c.l.b16 %v1868
        %v1957 = vunpack.c.h.b16 %v1868
        %v1958 = vunpack.c.l.b16 %v1869
        %v1959 = vunpack.c.h.b16 %v1869
        %v1960 = vunpack.c.l.b16 %v1870
        %v1961 = vunpack.c.h.b16 %v1870
        %v1962 = vunpack.c.l.b16 %v1871
        %v1963 = vunpack.c.h.b16 %v1871
        %v1964 = vunpack.c.l.b16 %v1872
        %v1965 = vunpack.c.h.b16 %v1872
        %v1966 = vunpack.c.l.b16 %v1873
        %v1967 = vunpack.c.h.b16 %v1873
        %v1968 = vunpack.c.l.b16 %v1874
        %v1969 = vunpack.c.h.b16 %v1874
        %v1970 = vunpack.c.l.b16 %v1875
        %v1971 = vunpack.c.h.b16 %v1875
        %v1972 = vpack.c.b16 %v1910, %v1908
        %v1973 = vpack.c.b16 %v1911, %v1909
        %v1974 = vpack.c.b16 %v1914, %v1912
        %v1975 = vpack.c.b16 %v1915, %v1913
        %v1976 = vpack.c.b16 %v1918, %v1916
        %v1977 = vpack.c.b16 %v1919, %v1917
        %v1978 = vpack.c.b16 %v1922, %v1920
        %v1979 = vpack.c.b16 %v1923, %v1921
        %v1980 = vpack.c.b16 %v1926, %v1924
        %v1981 = vpack.c.b16 %v1927, %v1925
        %v1982 = vpack.c.b16 %v1930, %v1928
        %v1983 = vpack.c.b16 %v1931, %v1929
        %v1984 = vpack.c.b16 %v1934, %v1932
        %v1985 = vpack.c.b16 %v1935, %v1933
        %v1986 = vpack.c.b16 %v1938, %v1936
        %v1987 = vpack.c.b16 %v1939, %v1937
        %v1988 = vpack.c.b16 %v1942, %v1940
        %v1989 = vpack.c.b16 %v1943, %v1941
        %v1990 = vpack.c.b16 %v1946, %v1944
        %v1991 = vpack.c.b16 %v1947, %v1945
        %v1992 = vpack.c.b16 %v1950, %v1948
        %v1993 = vpack.c.b16 %v1951, %v1949
        %v1994 = vpack.c.b16 %v1954, %v1952
        %v1995 = vpack.c.b16 %v1955, %v1953
        %v1996 = vpack.c.b16 %v1958, %v1956
        %v1997 = vpack.c.b16 %v1959, %v1957
        %v1998 = vpack.c.b16 %v1962, %v1960
        %v1999 = vpack.c.b16 %v1963, %v1961
        %v2000 = vpack.c.b16 %v1966, %v1964
        %v2001 = vpack.c.b16 %v1967, %v1965
        %v2002 = vpack.c.b16 %v1970, %v1968
        %v2003 = vpack.c.b16 %v1971, %v1969
        %2036 = vmatpush.bf16.msra.mxu0 %v1986
        %2037 = vmatpush.bf16.msra.mxu0 %v1984
        %2038 = vmatpush.bf16.msra.mxu0 %v1982
        %2039 = vmatpush.bf16.msra.mxu0 %v1980
        %2040 = vmatpush.bf16.msra.mxu0 %v1978
        %2041 = vmatpush.bf16.msra.mxu0 %v1976
        %2042 = vmatpush.bf16.msra.mxu0 %v1974
        %2043 = vmatpush.bf16.msra.mxu0 %v1972
        %2044 = vmatmul.bf16.gmra.mxu0 %v415
        %v2045 = vpop.f32.mrf.mxu0
        %v2046 = vadd.f32 0.0, %v2045
        %v2047 = vpop.f32.mrf.mxu0
        %2048 = vdwg.mxu0
        %2049 = vmatpush.bf16.msra.mxu0 %v2002
        %2050 = vmatpush.bf16.msra.mxu0 %v2000
        %2051 = vmatpush.bf16.msra.mxu0 %v1998
        %2052 = vmatpush.bf16.msra.mxu0 %v1996
        %2053 = vmatpush.bf16.msra.mxu0 %v1994
        %2054 = vmatpush.bf16.msra.mxu0 %v1992
        %2055 = vmatpush.bf16.msra.mxu0 %v1990
        %2056 = vmatpush.bf16.msra.mxu0 %v1988
        %2057 = vmatmul.bf16.gmra.mxu0 %v416
        %v2058 = vpop.f32.mrf.mxu0
        %v2059 = vadd.f32 %v2046, %v2058
        %v2060 = vpop.f32.mrf.mxu0
        %2061 = vdwg.mxu0
        %2062 = vmatpush.bf16.msra.mxu0 %v1987
        %2063 = vmatpush.bf16.msra.mxu0 %v1985
        %2064 = vmatpush.bf16.msra.mxu0 %v1983
        %2065 = vmatpush.bf16.msra.mxu0 %v1981
        %2066 = vmatpush.bf16.msra.mxu0 %v1979
        %2067 = vmatpush.bf16.msra.mxu0 %v1977
        %2068 = vmatpush.bf16.msra.mxu0 %v1975
        %2069 = vmatpush.bf16.msra.mxu0 %v1973
        %2070 = vmatmul.bf16.gmra.mxu0 %v415
        %v2071 = vpop.f32.mrf.mxu0
        %v2072 = vadd.f32 0.0, %v2071
        %v2073 = vpop.f32.mrf.mxu0
        %2074 = vdwg.mxu0
        %2075 = vmatpush.bf16.msra.mxu0 %v2003
        %2076 = vmatpush.bf16.msra.mxu0 %v2001
        %2077 = vmatpush.bf16.msra.mxu0 %v1999
        %2078 = vmatpush.bf16.msra.mxu0 %v1997
        %2079 = vmatpush.bf16.msra.mxu0 %v1995
        %2080 = vmatpush.bf16.msra.mxu0 %v1993
        %2081 = vmatpush.bf16.msra.mxu0 %v1991
        %2082 = vmatpush.bf16.msra.mxu0 %v1989
        %2083 = vmatmul.bf16.gmra.mxu0 %v416
        %v2084 = vpop.f32.mrf.mxu0
        %v2085 = vadd.f32 %v2072, %v2084
        %v2086 = vpop.f32.mrf.mxu0
        %2087 = vdwg.mxu0
        %v2088 = vpack.c.bf16 %v2059, %v2059
        %v2089 = vpack.c.bf16 %v2085, %v2085
        %s2090 = scalar_lea.vmem %s1, 20
        %v2091 = vld [vmem:[%s2090] sm:$0xf]
        %v2093 = vsel %vm913, %v2091, 0
        %v2096 = vsel %vm917, %v2088, 0
        %v2099 = vsel %vm917, %v2089, 0
        %2101 = vmatpush.bf16.msra.mxu0 0
        %2102 = vmatpush.bf16.msra.mxu0 0
        %2103 = vmatpush.bf16.msra.mxu0 0
        %2104 = vmatpush.bf16.msra.mxu0 0
        %2105 = vmatpush.bf16.msra.mxu0 0
        %2106 = vmatpush.bf16.msra.mxu0 0
        %2107 = vmatpush.bf16.msra.mxu0 0
        %2108 = vmatpush.bf16.msra.mxu0 %v2096
        %2109 = vmatmul.bf16.gmra.mxu0 %v2093
        %v2110 = vpop.f32.mrf.mxu0
        %v2111 = vadd.f32 0.0, %v2110
        %v2112 = vpop.f32.mrf.mxu0
        %2113 = vdwg.mxu0
        %2114 = vmatpush.bf16.msra.mxu0 0
        %2115 = vmatpush.bf16.msra.mxu0 0
        %2116 = vmatpush.bf16.msra.mxu0 0
        %2117 = vmatpush.bf16.msra.mxu0 0
        %2118 = vmatpush.bf16.msra.mxu0 0
        %2119 = vmatpush.bf16.msra.mxu0 0
        %2120 = vmatpush.bf16.msra.mxu0 0
        %2121 = vmatpush.bf16.msra.mxu0 %v2099
        %2122 = vmatmul.bf16.gmra.mxu0 %v2093
        %v2123 = vpop.f32.mrf.mxu0
        %v2124 = vadd.f32 0.0, %v2123
        %v2125 = vpop.f32.mrf.mxu0
        %2126 = vdwg.mxu0
        %v2127 = vadd.f32 %v1841, %v2111
        %v2128 = vadd.f32 %v1842, %v2124
        %s2129 = scalar_lea.vmem [#allocation2], 1536
        %v2130 = vld [vmem:[%s2129] sm:$0xff]
        %v2131 = vld [vmem:[%s2129 + $0x8] sm:$0xff]
        %v2132 = vld [vmem:[%s2129 + $0x10] sm:$0xff]
        %v2133 = vld [vmem:[%s2129 + $0x18] sm:$0xff]
        %v2134 = vld [vmem:[%s2129 + $0x20] sm:$0xff]
        %v2135 = vld [vmem:[%s2129 + $0x28] sm:$0xff]
        %v2136 = vld [vmem:[%s2129 + $0x30] sm:$0xff]
        %v2137 = vld [vmem:[%s2129 + $0x38] sm:$0xff]
        %v2138 = vld [vmem:[%s2129 + $0x40] sm:$0xff]
        %v2139 = vld [vmem:[%s2129 + $0x48] sm:$0xff]
        %v2140 = vld [vmem:[%s2129 + $0x50] sm:$0xff]
        %v2141 = vld [vmem:[%s2129 + $0x58] sm:$0xff]
        %v2142 = vld [vmem:[%s2129 + $0x60] sm:$0xff]
        %v2143 = vld [vmem:[%s2129 + $0x68] sm:$0xff]
        %v2144 = vld [vmem:[%s2129 + $0x70] sm:$0xff]
        %v2145 = vld [vmem:[%s2129 + $0x78] sm:$0xff]
        %v2146 = vld [vmem:[%s2129 + $0x80] sm:$0xff]
        %v2147 = vld [vmem:[%s2129 + $0x88] sm:$0xff]
        %v2148 = vld [vmem:[%s2129 + $0x90] sm:$0xff]
        %v2149 = vld [vmem:[%s2129 + $0x98] sm:$0xff]
        %v2150 = vld [vmem:[%s2129 + $0xa0] sm:$0xff]
        %v2151 = vld [vmem:[%s2129 + $0xa8] sm:$0xff]
        %v2152 = vld [vmem:[%s2129 + $0xb0] sm:$0xff]
        %v2153 = vld [vmem:[%s2129 + $0xb8] sm:$0xff]
        %v2154 = vld [vmem:[%s2129 + $0xc0] sm:$0xff]
        %v2155 = vld [vmem:[%s2129 + $0xc8] sm:$0xff]
        %v2156 = vld [vmem:[%s2129 + $0xd0] sm:$0xff]
        %v2157 = vld [vmem:[%s2129 + $0xd8] sm:$0xff]
        %v2158 = vld [vmem:[%s2129 + $0xe0] sm:$0xff]
        %v2159 = vld [vmem:[%s2129 + $0xe8] sm:$0xff]
        %v2160 = vld [vmem:[%s2129 + $0xf0] sm:$0xff]
        %v2161 = vld [vmem:[%s2129 + $0xf8] sm:$0xff]
        %v2194 = vunpack.c.l.b16 %v2130
        %v2195 = vunpack.c.h.b16 %v2130
        %v2196 = vunpack.c.l.b16 %v2131
        %v2197 = vunpack.c.h.b16 %v2131
        %v2198 = vunpack.c.l.b16 %v2132
        %v2199 = vunpack.c.h.b16 %v2132
        %v2200 = vunpack.c.l.b16 %v2133
        %v2201 = vunpack.c.h.b16 %v2133
        %v2202 = vunpack.c.l.b16 %v2134
        %v2203 = vunpack.c.h.b16 %v2134
        %v2204 = vunpack.c.l.b16 %v2135
        %v2205 = vunpack.c.h.b16 %v2135
        %v2206 = vunpack.c.l.b16 %v2136
        %v2207 = vunpack.c.h.b16 %v2136
        %v2208 = vunpack.c.l.b16 %v2137
        %v2209 = vunpack.c.h.b16 %v2137
        %v2210 = vunpack.c.l.b16 %v2138
        %v2211 = vunpack.c.h.b16 %v2138
        %v2212 = vunpack.c.l.b16 %v2139
        %v2213 = vunpack.c.h.b16 %v2139
        %v2214 = vunpack.c.l.b16 %v2140
        %v2215 = vunpack.c.h.b16 %v2140
        %v2216 = vunpack.c.l.b16 %v2141
        %v2217 = vunpack.c.h.b16 %v2141
        %v2218 = vunpack.c.l.b16 %v2142
        %v2219 = vunpack.c.h.b16 %v2142
        %v2220 = vunpack.c.l.b16 %v2143
        %v2221 = vunpack.c.h.b16 %v2143
        %v2222 = vunpack.c.l.b16 %v2144
        %v2223 = vunpack.c.h.b16 %v2144
        %v2224 = vunpack.c.l.b16 %v2145
        %v2225 = vunpack.c.h.b16 %v2145
        %v2226 = vunpack.c.l.b16 %v2146
        %v2227 = vunpack.c.h.b16 %v2146
        %v2228 = vunpack.c.l.b16 %v2147
        %v2229 = vunpack.c.h.b16 %v2147
        %v2230 = vunpack.c.l.b16 %v2148
        %v2231 = vunpack.c.h.b16 %v2148
        %v2232 = vunpack.c.l.b16 %v2149
        %v2233 = vunpack.c.h.b16 %v2149
        %v2234 = vunpack.c.l.b16 %v2150
        %v2235 = vunpack.c.h.b16 %v2150
        %v2236 = vunpack.c.l.b16 %v2151
        %v2237 = vunpack.c.h.b16 %v2151
        %v2238 = vunpack.c.l.b16 %v2152
        %v2239 = vunpack.c.h.b16 %v2152
        %v2240 = vunpack.c.l.b16 %v2153
        %v2241 = vunpack.c.h.b16 %v2153
        %v2242 = vunpack.c.l.b16 %v2154
        %v2243 = vunpack.c.h.b16 %v2154
        %v2244 = vunpack.c.l.b16 %v2155
        %v2245 = vunpack.c.h.b16 %v2155
        %v2246 = vunpack.c.l.b16 %v2156
        %v2247 = vunpack.c.h.b16 %v2156
        %v2248 = vunpack.c.l.b16 %v2157
        %v2249 = vunpack.c.h.b16 %v2157
        %v2250 = vunpack.c.l.b16 %v2158
        %v2251 = vunpack.c.h.b16 %v2158
        %v2252 = vunpack.c.l.b16 %v2159
        %v2253 = vunpack.c.h.b16 %v2159
        %v2254 = vunpack.c.l.b16 %v2160
        %v2255 = vunpack.c.h.b16 %v2160
        %v2256 = vunpack.c.l.b16 %v2161
        %v2257 = vunpack.c.h.b16 %v2161
        %v2258 = vpack.c.b16 %v2196, %v2194
        %v2259 = vpack.c.b16 %v2197, %v2195
        %v2260 = vpack.c.b16 %v2200, %v2198
        %v2261 = vpack.c.b16 %v2201, %v2199
        %v2262 = vpack.c.b16 %v2204, %v2202
        %v2263 = vpack.c.b16 %v2205, %v2203
        %v2264 = vpack.c.b16 %v2208, %v2206
        %v2265 = vpack.c.b16 %v2209, %v2207
        %v2266 = vpack.c.b16 %v2212, %v2210
        %v2267 = vpack.c.b16 %v2213, %v2211
        %v2268 = vpack.c.b16 %v2216, %v2214
        %v2269 = vpack.c.b16 %v2217, %v2215
        %v2270 = vpack.c.b16 %v2220, %v2218
        %v2271 = vpack.c.b16 %v2221, %v2219
        %v2272 = vpack.c.b16 %v2224, %v2222
        %v2273 = vpack.c.b16 %v2225, %v2223
        %v2274 = vpack.c.b16 %v2228, %v2226
        %v2275 = vpack.c.b16 %v2229, %v2227
        %v2276 = vpack.c.b16 %v2232, %v2230
        %v2277 = vpack.c.b16 %v2233, %v2231
        %v2278 = vpack.c.b16 %v2236, %v2234
        %v2279 = vpack.c.b16 %v2237, %v2235
        %v2280 = vpack.c.b16 %v2240, %v2238
        %v2281 = vpack.c.b16 %v2241, %v2239
        %v2282 = vpack.c.b16 %v2244, %v2242
        %v2283 = vpack.c.b16 %v2245, %v2243
        %v2284 = vpack.c.b16 %v2248, %v2246
        %v2285 = vpack.c.b16 %v2249, %v2247
        %v2286 = vpack.c.b16 %v2252, %v2250
        %v2287 = vpack.c.b16 %v2253, %v2251
        %v2288 = vpack.c.b16 %v2256, %v2254
        %v2289 = vpack.c.b16 %v2257, %v2255
        %2322 = vmatpush.bf16.msra.mxu0 %v2272
        %2323 = vmatpush.bf16.msra.mxu0 %v2270
        %2324 = vmatpush.bf16.msra.mxu0 %v2268
        %2325 = vmatpush.bf16.msra.mxu0 %v2266
        %2326 = vmatpush.bf16.msra.mxu0 %v2264
        %2327 = vmatpush.bf16.msra.mxu0 %v2262
        %2328 = vmatpush.bf16.msra.mxu0 %v2260
        %2329 = vmatpush.bf16.msra.mxu0 %v2258
        %2330 = vmatmul.bf16.gmra.mxu0 %v415
        %v2331 = vpop.f32.mrf.mxu0
        %v2332 = vadd.f32 0.0, %v2331
        %v2333 = vpop.f32.mrf.mxu0
        %2334 = vdwg.mxu0
        %2335 = vmatpush.bf16.msra.mxu0 %v2288
        %2336 = vmatpush.bf16.msra.mxu0 %v2286
        %2337 = vmatpush.bf16.msra.mxu0 %v2284
        %2338 = vmatpush.bf16.msra.mxu0 %v2282
        %2339 = vmatpush.bf16.msra.mxu0 %v2280
        %2340 = vmatpush.bf16.msra.mxu0 %v2278
        %2341 = vmatpush.bf16.msra.mxu0 %v2276
        %2342 = vmatpush.bf16.msra.mxu0 %v2274
        %2343 = vmatmul.bf16.gmra.mxu0 %v416
        %v2344 = vpop.f32.mrf.mxu0
        %v2345 = vadd.f32 %v2332, %v2344
        %v2346 = vpop.f32.mrf.mxu0
        %2347 = vdwg.mxu0
        %2348 = vmatpush.bf16.msra.mxu0 %v2273
        %2349 = vmatpush.bf16.msra.mxu0 %v2271
        %2350 = vmatpush.bf16.msra.mxu0 %v2269
        %2351 = vmatpush.bf16.msra.mxu0 %v2267
        %2352 = vmatpush.bf16.msra.mxu0 %v2265
        %2353 = vmatpush.bf16.msra.mxu0 %v2263
        %2354 = vmatpush.bf16.msra.mxu0 %v2261
        %2355 = vmatpush.bf16.msra.mxu0 %v2259
        %2356 = vmatmul.bf16.gmra.mxu0 %v415
        %v2357 = vpop.f32.mrf.mxu0
        %v2358 = vadd.f32 0.0, %v2357
        %v2359 = vpop.f32.mrf.mxu0
        %2360 = vdwg.mxu0
        %2361 = vmatpush.bf16.msra.mxu0 %v2289
        %2362 = vmatpush.bf16.msra.mxu0 %v2287
        %2363 = vmatpush.bf16.msra.mxu0 %v2285
        %2364 = vmatpush.bf16.msra.mxu0 %v2283
        %2365 = vmatpush.bf16.msra.mxu0 %v2281
        %2366 = vmatpush.bf16.msra.mxu0 %v2279
        %2367 = vmatpush.bf16.msra.mxu0 %v2277
        %2368 = vmatpush.bf16.msra.mxu0 %v2275
        %2369 = vmatmul.bf16.gmra.mxu0 %v416
        %v2370 = vpop.f32.mrf.mxu0
        %v2371 = vadd.f32 %v2358, %v2370
        %v2372 = vpop.f32.mrf.mxu0
        %2373 = vdwg.mxu0
        %v2374 = vpack.c.bf16 %v2345, %v2345
        %v2375 = vpack.c.bf16 %v2371, %v2371
        %s2376 = scalar_lea.vmem %s1, 24
        %v2377 = vld [vmem:[%s2376] sm:$0xf]
        %v2379 = vsel %vm913, %v2377, 0
        %v2382 = vsel %vm917, %v2374, 0
        %v2385 = vsel %vm917, %v2375, 0
        %2387 = vmatpush.bf16.msra.mxu0 0
        %2388 = vmatpush.bf16.msra.mxu0 0
        %2389 = vmatpush.bf16.msra.mxu0 0
        %2390 = vmatpush.bf16.msra.mxu0 0
        %2391 = vmatpush.bf16.msra.mxu0 0
        %2392 = vmatpush.bf16.msra.mxu0 0
        %2393 = vmatpush.bf16.msra.mxu0 0
        %2394 = vmatpush.bf16.msra.mxu0 %v2382
        %2395 = vmatmul.bf16.gmra.mxu0 %v2379
        %v2396 = vpop.f32.mrf.mxu0
        %v2397 = vadd.f32 0.0, %v2396
        %v2398 = vpop.f32.mrf.mxu0
        %2399 = vdwg.mxu0
        %2400 = vmatpush.bf16.msra.mxu0 0
        %2401 = vmatpush.bf16.msra.mxu0 0
        %2402 = vmatpush.bf16.msra.mxu0 0
        %2403 = vmatpush.bf16.msra.mxu0 0
        %2404 = vmatpush.bf16.msra.mxu0 0
        %2405 = vmatpush.bf16.msra.mxu0 0
        %2406 = vmatpush.bf16.msra.mxu0 0
        %2407 = vmatpush.bf16.msra.mxu0 %v2385
        %2408 = vmatmul.bf16.gmra.mxu0 %v2379
        %v2409 = vpop.f32.mrf.mxu0
        %v2410 = vadd.f32 0.0, %v2409
        %v2411 = vpop.f32.mrf.mxu0
        %2412 = vdwg.mxu0
        %v2413 = vadd.f32 %v2127, %v2397
        %v2414 = vadd.f32 %v2128, %v2410
        %s2415 = scalar_lea.vmem [#allocation2], 1792
        %v2416 = vld [vmem:[%s2415] sm:$0xff]
        %v2417 = vld [vmem:[%s2415 + $0x8] sm:$0xff]
        %v2418 = vld [vmem:[%s2415 + $0x10] sm:$0xff]
        %v2419 = vld [vmem:[%s2415 + $0x18] sm:$0xff]
        %v2420 = vld [vmem:[%s2415 + $0x20] sm:$0xff]
        %v2421 = vld [vmem:[%s2415 + $0x28] sm:$0xff]
        %v2422 = vld [vmem:[%s2415 + $0x30] sm:$0xff]
        %v2423 = vld [vmem:[%s2415 + $0x38] sm:$0xff]
        %v2424 = vld [vmem:[%s2415 + $0x40] sm:$0xff]
        %v2425 = vld [vmem:[%s2415 + $0x48] sm:$0xff]
        %v2426 = vld [vmem:[%s2415 + $0x50] sm:$0xff]
        %v2427 = vld [vmem:[%s2415 + $0x58] sm:$0xff]
        %v2428 = vld [vmem:[%s2415 + $0x60] sm:$0xff]
        %v2429 = vld [vmem:[%s2415 + $0x68] sm:$0xff]
        %v2430 = vld [vmem:[%s2415 + $0x70] sm:$0xff]
        %v2431 = vld [vmem:[%s2415 + $0x78] sm:$0xff]
        %v2432 = vld [vmem:[%s2415 + $0x80] sm:$0xff]
        %v2433 = vld [vmem:[%s2415 + $0x88] sm:$0xff]
        %v2434 = vld [vmem:[%s2415 + $0x90] sm:$0xff]
        %v2435 = vld [vmem:[%s2415 + $0x98] sm:$0xff]
        %v2436 = vld [vmem:[%s2415 + $0xa0] sm:$0xff]
        %v2437 = vld [vmem:[%s2415 + $0xa8] sm:$0xff]
        %v2438 = vld [vmem:[%s2415 + $0xb0] sm:$0xff]
        %v2439 = vld [vmem:[%s2415 + $0xb8] sm:$0xff]
        %v2440 = vld [vmem:[%s2415 + $0xc0] sm:$0xff]
        %v2441 = vld [vmem:[%s2415 + $0xc8] sm:$0xff]
        %v2442 = vld [vmem:[%s2415 + $0xd0] sm:$0xff]
        %v2443 = vld [vmem:[%s2415 + $0xd8] sm:$0xff]
        %v2444 = vld [vmem:[%s2415 + $0xe0] sm:$0xff]
        %v2445 = vld [vmem:[%s2415 + $0xe8] sm:$0xff]
        %v2446 = vld [vmem:[%s2415 + $0xf0] sm:$0xff]
        %v2447 = vld [vmem:[%s2415 + $0xf8] sm:$0xff]
        %v2480 = vunpack.c.l.b16 %v2416
        %v2481 = vunpack.c.h.b16 %v2416
        %v2482 = vunpack.c.l.b16 %v2417
        %v2483 = vunpack.c.h.b16 %v2417
        %v2484 = vunpack.c.l.b16 %v2418
        %v2485 = vunpack.c.h.b16 %v2418
        %v2486 = vunpack.c.l.b16 %v2419
        %v2487 = vunpack.c.h.b16 %v2419
        %v2488 = vunpack.c.l.b16 %v2420
        %v2489 = vunpack.c.h.b16 %v2420
        %v2490 = vunpack.c.l.b16 %v2421
        %v2491 = vunpack.c.h.b16 %v2421
        %v2492 = vunpack.c.l.b16 %v2422
        %v2493 = vunpack.c.h.b16 %v2422
        %v2494 = vunpack.c.l.b16 %v2423
        %v2495 = vunpack.c.h.b16 %v2423
        %v2496 = vunpack.c.l.b16 %v2424
        %v2497 = vunpack.c.h.b16 %v2424
        %v2498 = vunpack.c.l.b16 %v2425
        %v2499 = vunpack.c.h.b16 %v2425
        %v2500 = vunpack.c.l.b16 %v2426
        %v2501 = vunpack.c.h.b16 %v2426
        %v2502 = vunpack.c.l.b16 %v2427
        %v2503 = vunpack.c.h.b16 %v2427
        %v2504 = vunpack.c.l.b16 %v2428
        %v2505 = vunpack.c.h.b16 %v2428
        %v2506 = vunpack.c.l.b16 %v2429
        %v2507 = vunpack.c.h.b16 %v2429
        %v2508 = vunpack.c.l.b16 %v2430
        %v2509 = vunpack.c.h.b16 %v2430
        %v2510 = vunpack.c.l.b16 %v2431
        %v2511 = vunpack.c.h.b16 %v2431
        %v2512 = vunpack.c.l.b16 %v2432
        %v2513 = vunpack.c.h.b16 %v2432
        %v2514 = vunpack.c.l.b16 %v2433
        %v2515 = vunpack.c.h.b16 %v2433
        %v2516 = vunpack.c.l.b16 %v2434
        %v2517 = vunpack.c.h.b16 %v2434
        %v2518 = vunpack.c.l.b16 %v2435
        %v2519 = vunpack.c.h.b16 %v2435
        %v2520 = vunpack.c.l.b16 %v2436
        %v2521 = vunpack.c.h.b16 %v2436
        %v2522 = vunpack.c.l.b16 %v2437
        %v2523 = vunpack.c.h.b16 %v2437
        %v2524 = vunpack.c.l.b16 %v2438
        %v2525 = vunpack.c.h.b16 %v2438
        %v2526 = vunpack.c.l.b16 %v2439
        %v2527 = vunpack.c.h.b16 %v2439
        %v2528 = vunpack.c.l.b16 %v2440
        %v2529 = vunpack.c.h.b16 %v2440
        %v2530 = vunpack.c.l.b16 %v2441
        %v2531 = vunpack.c.h.b16 %v2441
        %v2532 = vunpack.c.l.b16 %v2442
        %v2533 = vunpack.c.h.b16 %v2442
        %v2534 = vunpack.c.l.b16 %v2443
        %v2535 = vunpack.c.h.b16 %v2443
        %v2536 = vunpack.c.l.b16 %v2444
        %v2537 = vunpack.c.h.b16 %v2444
        %v2538 = vunpack.c.l.b16 %v2445
        %v2539 = vunpack.c.h.b16 %v2445
        %v2540 = vunpack.c.l.b16 %v2446
        %v2541 = vunpack.c.h.b16 %v2446
        %v2542 = vunpack.c.l.b16 %v2447
        %v2543 = vunpack.c.h.b16 %v2447
        %v2544 = vpack.c.b16 %v2482, %v2480
        %v2545 = vpack.c.b16 %v2483, %v2481
        %v2546 = vpack.c.b16 %v2486, %v2484
        %v2547 = vpack.c.b16 %v2487, %v2485
        %v2548 = vpack.c.b16 %v2490, %v2488
        %v2549 = vpack.c.b16 %v2491, %v2489
        %v2550 = vpack.c.b16 %v2494, %v2492
        %v2551 = vpack.c.b16 %v2495, %v2493
        %v2552 = vpack.c.b16 %v2498, %v2496
        %v2553 = vpack.c.b16 %v2499, %v2497
        %v2554 = vpack.c.b16 %v2502, %v2500
        %v2555 = vpack.c.b16 %v2503, %v2501
        %v2556 = vpack.c.b16 %v2506, %v2504
        %v2557 = vpack.c.b16 %v2507, %v2505
        %v2558 = vpack.c.b16 %v2510, %v2508
        %v2559 = vpack.c.b16 %v2511, %v2509
        %v2560 = vpack.c.b16 %v2514, %v2512
        %v2561 = vpack.c.b16 %v2515, %v2513
        %v2562 = vpack.c.b16 %v2518, %v2516
        %v2563 = vpack.c.b16 %v2519, %v2517
        %v2564 = vpack.c.b16 %v2522, %v2520
        %v2565 = vpack.c.b16 %v2523, %v2521
        %v2566 = vpack.c.b16 %v2526, %v2524
        %v2567 = vpack.c.b16 %v2527, %v2525
        %v2568 = vpack.c.b16 %v2530, %v2528
        %v2569 = vpack.c.b16 %v2531, %v2529
        %v2570 = vpack.c.b16 %v2534, %v2532
        %v2571 = vpack.c.b16 %v2535, %v2533
        %v2572 = vpack.c.b16 %v2538, %v2536
        %v2573 = vpack.c.b16 %v2539, %v2537
        %v2574 = vpack.c.b16 %v2542, %v2540
        %v2575 = vpack.c.b16 %v2543, %v2541
        %2608 = vmatpush.bf16.msra.mxu0 %v2558
        %2609 = vmatpush.bf16.msra.mxu0 %v2556
        %2610 = vmatpush.bf16.msra.mxu0 %v2554
        %2611 = vmatpush.bf16.msra.mxu0 %v2552
        %2612 = vmatpush.bf16.msra.mxu0 %v2550
        %2613 = vmatpush.bf16.msra.mxu0 %v2548
        %2614 = vmatpush.bf16.msra.mxu0 %v2546
        %2615 = vmatpush.bf16.msra.mxu0 %v2544
        %2616 = vmatmul.bf16.gmra.mxu0 %v415
        %v2617 = vpop.f32.mrf.mxu0
        %v2618 = vadd.f32 0.0, %v2617
        %v2619 = vpop.f32.mrf.mxu0
        %2620 = vdwg.mxu0
        %2621 = vmatpush.bf16.msra.mxu0 %v2574
        %2622 = vmatpush.bf16.msra.mxu0 %v2572
        %2623 = vmatpush.bf16.msra.mxu0 %v2570
        %2624 = vmatpush.bf16.msra.mxu0 %v2568
        %2625 = vmatpush.bf16.msra.mxu0 %v2566
        %2626 = vmatpush.bf16.msra.mxu0 %v2564
        %2627 = vmatpush.bf16.msra.mxu0 %v2562
        %2628 = vmatpush.bf16.msra.mxu0 %v2560
        %2629 = vmatmul.bf16.gmra.mxu0 %v416
        %v2630 = vpop.f32.mrf.mxu0
        %v2631 = vadd.f32 %v2618, %v2630
        %v2632 = vpop.f32.mrf.mxu0
        %2633 = vdwg.mxu0
        %2634 = vmatpush.bf16.msra.mxu0 %v2559
        %2635 = vmatpush.bf16.msra.mxu0 %v2557
        %2636 = vmatpush.bf16.msra.mxu0 %v2555
        %2637 = vmatpush.bf16.msra.mxu0 %v2553
        %2638 = vmatpush.bf16.msra.mxu0 %v2551
        %2639 = vmatpush.bf16.msra.mxu0 %v2549
        %2640 = vmatpush.bf16.msra.mxu0 %v2547
        %2641 = vmatpush.bf16.msra.mxu0 %v2545
        %2642 = vmatmul.bf16.gmra.mxu0 %v415
        %v2643 = vpop.f32.mrf.mxu0
        %v2644 = vadd.f32 0.0, %v2643
        %v2645 = vpop.f32.mrf.mxu0
        %2646 = vdwg.mxu0
        %2647 = vmatpush.bf16.msra.mxu0 %v2575
        %2648 = vmatpush.bf16.msra.mxu0 %v2573
        %2649 = vmatpush.bf16.msra.mxu0 %v2571
        %2650 = vmatpush.bf16.msra.mxu0 %v2569
        %2651 = vmatpush.bf16.msra.mxu0 %v2567
        %2652 = vmatpush.bf16.msra.mxu0 %v2565
        %2653 = vmatpush.bf16.msra.mxu0 %v2563
        %2654 = vmatpush.bf16.msra.mxu0 %v2561
        %2655 = vmatmul.bf16.gmra.mxu0 %v416
        %v2656 = vpop.f32.mrf.mxu0
        %v2657 = vadd.f32 %v2644, %v2656
        %v2658 = vpop.f32.mrf.mxu0
        %2659 = vdwg.mxu0
        %v2660 = vpack.c.bf16 %v2631, %v2631
        %v2661 = vpack.c.bf16 %v2657, %v2657
        %s2662 = scalar_lea.vmem %s1, 28
        %v2663 = vld [vmem:[%s2662] sm:$0xf]
        %v2665 = vsel %vm913, %v2663, 0
        %v2668 = vsel %vm917, %v2660, 0
        %v2671 = vsel %vm917, %v2661, 0
        %2673 = vmatpush.bf16.msra.mxu0 0
        %2674 = vmatpush.bf16.msra.mxu0 0
        %2675 = vmatpush.bf16.msra.mxu0 0
        %2676 = vmatpush.bf16.msra.mxu0 0
        %2677 = vmatpush.bf16.msra.mxu0 0
        %2678 = vmatpush.bf16.msra.mxu0 0
        %2679 = vmatpush.bf16.msra.mxu0 0
        %2680 = vmatpush.bf16.msra.mxu0 %v2668
        %2681 = vmatmul.bf16.gmra.mxu0 %v2665
        %v2682 = vpop.f32.mrf.mxu0
        %v2683 = vadd.f32 0.0, %v2682
        %v2684 = vpop.f32.mrf.mxu0
        %2685 = vdwg.mxu0
        %2686 = vmatpush.bf16.msra.mxu0 0
        %2687 = vmatpush.bf16.msra.mxu0 0
        %2688 = vmatpush.bf16.msra.mxu0 0
        %2689 = vmatpush.bf16.msra.mxu0 0
        %2690 = vmatpush.bf16.msra.mxu0 0
        %2691 = vmatpush.bf16.msra.mxu0 0
        %2692 = vmatpush.bf16.msra.mxu0 0
        %2693 = vmatpush.bf16.msra.mxu0 %v2671
        %2694 = vmatmul.bf16.gmra.mxu0 %v2665
        %v2695 = vpop.f32.mrf.mxu0
        %v2696 = vadd.f32 0.0, %v2695
        %v2697 = vpop.f32.mrf.mxu0
        %2698 = vdwg.mxu0
        %v2699 = vadd.f32 %v2413, %v2683
        %v2700 = vadd.f32 %v2414, %v2696
        %s2701 = scalar_lea.vmem [#allocation2], 2048
        %v2702 = vld [vmem:[%s2701] sm:$0xff]
        %v2703 = vld [vmem:[%s2701 + $0x8] sm:$0xff]
        %v2704 = vld [vmem:[%s2701 + $0x10] sm:$0xff]
        %v2705 = vld [vmem:[%s2701 + $0x18] sm:$0xff]
        %v2706 = vld [vmem:[%s2701 + $0x20] sm:$0xff]
        %v2707 = vld [vmem:[%s2701 + $0x28] sm:$0xff]
        %v2708 = vld [vmem:[%s2701 + $0x30] sm:$0xff]
        %v2709 = vld [vmem:[%s2701 + $0x38] sm:$0xff]
        %v2710 = vld [vmem:[%s2701 + $0x40] sm:$0xff]
        %v2711 = vld [vmem:[%s2701 + $0x48] sm:$0xff]
        %v2712 = vld [vmem:[%s2701 + $0x50] sm:$0xff]
        %v2713 = vld [vmem:[%s2701 + $0x58] sm:$0xff]
        %v2714 = vld [vmem:[%s2701 + $0x60] sm:$0xff]
        %v2715 = vld [vmem:[%s2701 + $0x68] sm:$0xff]
        %v2716 = vld [vmem:[%s2701 + $0x70] sm:$0xff]
        %v2717 = vld [vmem:[%s2701 + $0x78] sm:$0xff]
        %v2718 = vld [vmem:[%s2701 + $0x80] sm:$0xff]
        %v2719 = vld [vmem:[%s2701 + $0x88] sm:$0xff]
        %v2720 = vld [vmem:[%s2701 + $0x90] sm:$0xff]
        %v2721 = vld [vmem:[%s2701 + $0x98] sm:$0xff]
        %v2722 = vld [vmem:[%s2701 + $0xa0] sm:$0xff]
        %v2723 = vld [vmem:[%s2701 + $0xa8] sm:$0xff]
        %v2724 = vld [vmem:[%s2701 + $0xb0] sm:$0xff]
        %v2725 = vld [vmem:[%s2701 + $0xb8] sm:$0xff]
        %v2726 = vld [vmem:[%s2701 + $0xc0] sm:$0xff]
        %v2727 = vld [vmem:[%s2701 + $0xc8] sm:$0xff]
        %v2728 = vld [vmem:[%s2701 + $0xd0] sm:$0xff]
        %v2729 = vld [vmem:[%s2701 + $0xd8] sm:$0xff]
        %v2730 = vld [vmem:[%s2701 + $0xe0] sm:$0xff]
        %v2731 = vld [vmem:[%s2701 + $0xe8] sm:$0xff]
        %v2732 = vld [vmem:[%s2701 + $0xf0] sm:$0xff]
        %v2733 = vld [vmem:[%s2701 + $0xf8] sm:$0xff]
        %v2766 = vunpack.c.l.b16 %v2702
        %v2767 = vunpack.c.h.b16 %v2702
        %v2768 = vunpack.c.l.b16 %v2703
        %v2769 = vunpack.c.h.b16 %v2703
        %v2770 = vunpack.c.l.b16 %v2704
        %v2771 = vunpack.c.h.b16 %v2704
        %v2772 = vunpack.c.l.b16 %v2705
        %v2773 = vunpack.c.h.b16 %v2705
        %v2774 = vunpack.c.l.b16 %v2706
        %v2775 = vunpack.c.h.b16 %v2706
        %v2776 = vunpack.c.l.b16 %v2707
        %v2777 = vunpack.c.h.b16 %v2707
        %v2778 = vunpack.c.l.b16 %v2708
        %v2779 = vunpack.c.h.b16 %v2708
        %v2780 = vunpack.c.l.b16 %v2709
        %v2781 = vunpack.c.h.b16 %v2709
        %v2782 = vunpack.c.l.b16 %v2710
        %v2783 = vunpack.c.h.b16 %v2710
        %v2784 = vunpack.c.l.b16 %v2711
        %v2785 = vunpack.c.h.b16 %v2711
        %v2786 = vunpack.c.l.b16 %v2712
        %v2787 = vunpack.c.h.b16 %v2712
        %v2788 = vunpack.c.l.b16 %v2713
        %v2789 = vunpack.c.h.b16 %v2713
        %v2790 = vunpack.c.l.b16 %v2714
        %v2791 = vunpack.c.h.b16 %v2714
        %v2792 = vunpack.c.l.b16 %v2715
        %v2793 = vunpack.c.h.b16 %v2715
        %v2794 = vunpack.c.l.b16 %v2716
        %v2795 = vunpack.c.h.b16 %v2716
        %v2796 = vunpack.c.l.b16 %v2717
        %v2797 = vunpack.c.h.b16 %v2717
        %v2798 = vunpack.c.l.b16 %v2718
        %v2799 = vunpack.c.h.b16 %v2718
        %v2800 = vunpack.c.l.b16 %v2719
        %v2801 = vunpack.c.h.b16 %v2719
        %v2802 = vunpack.c.l.b16 %v2720
        %v2803 = vunpack.c.h.b16 %v2720
        %v2804 = vunpack.c.l.b16 %v2721
        %v2805 = vunpack.c.h.b16 %v2721
        %v2806 = vunpack.c.l.b16 %v2722
        %v2807 = vunpack.c.h.b16 %v2722
        %v2808 = vunpack.c.l.b16 %v2723
        %v2809 = vunpack.c.h.b16 %v2723
        %v2810 = vunpack.c.l.b16 %v2724
        %v2811 = vunpack.c.h.b16 %v2724
        %v2812 = vunpack.c.l.b16 %v2725
        %v2813 = vunpack.c.h.b16 %v2725
        %v2814 = vunpack.c.l.b16 %v2726
        %v2815 = vunpack.c.h.b16 %v2726
        %v2816 = vunpack.c.l.b16 %v2727
        %v2817 = vunpack.c.h.b16 %v2727
        %v2818 = vunpack.c.l.b16 %v2728
        %v2819 = vunpack.c.h.b16 %v2728
        %v2820 = vunpack.c.l.b16 %v2729
        %v2821 = vunpack.c.h.b16 %v2729
        %v2822 = vunpack.c.l.b16 %v2730
        %v2823 = vunpack.c.h.b16 %v2730
        %v2824 = vunpack.c.l.b16 %v2731
        %v2825 = vunpack.c.h.b16 %v2731
        %v2826 = vunpack.c.l.b16 %v2732
        %v2827 = vunpack.c.h.b16 %v2732
        %v2828 = vunpack.c.l.b16 %v2733
        %v2829 = vunpack.c.h.b16 %v2733
        %v2830 = vpack.c.b16 %v2768, %v2766
        %v2831 = vpack.c.b16 %v2769, %v2767
        %v2832 = vpack.c.b16 %v2772, %v2770
        %v2833 = vpack.c.b16 %v2773, %v2771
        %v2834 = vpack.c.b16 %v2776, %v2774
        %v2835 = vpack.c.b16 %v2777, %v2775
        %v2836 = vpack.c.b16 %v2780, %v2778
        %v2837 = vpack.c.b16 %v2781, %v2779
        %v2838 = vpack.c.b16 %v2784, %v2782
        %v2839 = vpack.c.b16 %v2785, %v2783
        %v2840 = vpack.c.b16 %v2788, %v2786
        %v2841 = vpack.c.b16 %v2789, %v2787
        %v2842 = vpack.c.b16 %v2792, %v2790
        %v2843 = vpack.c.b16 %v2793, %v2791
        %v2844 = vpack.c.b16 %v2796, %v2794
        %v2845 = vpack.c.b16 %v2797, %v2795
        %v2846 = vpack.c.b16 %v2800, %v2798
        %v2847 = vpack.c.b16 %v2801, %v2799
        %v2848 = vpack.c.b16 %v2804, %v2802
        %v2849 = vpack.c.b16 %v2805, %v2803
        %v2850 = vpack.c.b16 %v2808, %v2806
        %v2851 = vpack.c.b16 %v2809, %v2807
        %v2852 = vpack.c.b16 %v2812, %v2810
        %v2853 = vpack.c.b16 %v2813, %v2811
        %v2854 = vpack.c.b16 %v2816, %v2814
        %v2855 = vpack.c.b16 %v2817, %v2815
        %v2856 = vpack.c.b16 %v2820, %v2818
        %v2857 = vpack.c.b16 %v2821, %v2819
        %v2858 = vpack.c.b16 %v2824, %v2822
        %v2859 = vpack.c.b16 %v2825, %v2823
        %v2860 = vpack.c.b16 %v2828, %v2826
        %v2861 = vpack.c.b16 %v2829, %v2827
        %2894 = vmatpush.bf16.msra.mxu0 %v2844
        %2895 = vmatpush.bf16.msra.mxu0 %v2842
        %2896 = vmatpush.bf16.msra.mxu0 %v2840
        %2897 = vmatpush.bf16.msra.mxu0 %v2838
        %2898 = vmatpush.bf16.msra.mxu0 %v2836
        %2899 = vmatpush.bf16.msra.mxu0 %v2834
        %2900 = vmatpush.bf16.msra.mxu0 %v2832
        %2901 = vmatpush.bf16.msra.mxu0 %v2830
        %2902 = vmatmul.bf16.gmra.mxu0 %v415
        %v2903 = vpop.f32.mrf.mxu0
        %v2904 = vadd.f32 0.0, %v2903
        %v2905 = vpop.f32.mrf.mxu0
        %2906 = vdwg.mxu0
        %2907 = vmatpush.bf16.msra.mxu0 %v2860
        %2908 = vmatpush.bf16.msra.mxu0 %v2858
        %2909 = vmatpush.bf16.msra.mxu0 %v2856
        %2910 = vmatpush.bf16.msra.mxu0 %v2854
        %2911 = vmatpush.bf16.msra.mxu0 %v2852
        %2912 = vmatpush.bf16.msra.mxu0 %v2850
        %2913 = vmatpush.bf16.msra.mxu0 %v2848
        %2914 = vmatpush.bf16.msra.mxu0 %v2846
        %2915 = vmatmul.bf16.gmra.mxu0 %v416
        %v2916 = vpop.f32.mrf.mxu0
        %v2917 = vadd.f32 %v2904, %v2916
        %v2918 = vpop.f32.mrf.mxu0
        %2919 = vdwg.mxu0
        %2920 = vmatpush.bf16.msra.mxu0 %v2845
        %2921 = vmatpush.bf16.msra.mxu0 %v2843
        %2922 = vmatpush.bf16.msra.mxu0 %v2841
        %2923 = vmatpush.bf16.msra.mxu0 %v2839
        %2924 = vmatpush.bf16.msra.mxu0 %v2837
        %2925 = vmatpush.bf16.msra.mxu0 %v2835
        %2926 = vmatpush.bf16.msra.mxu0 %v2833
        %2927 = vmatpush.bf16.msra.mxu0 %v2831
        %2928 = vmatmul.bf16.gmra.mxu0 %v415
        %v2929 = vpop.f32.mrf.mxu0
        %v2930 = vadd.f32 0.0, %v2929
        %v2931 = vpop.f32.mrf.mxu0
        %2932 = vdwg.mxu0
        %2933 = vmatpush.bf16.msra.mxu0 %v2861
        %2934 = vmatpush.bf16.msra.mxu0 %v2859
        %2935 = vmatpush.bf16.msra.mxu0 %v2857
        %2936 = vmatpush.bf16.msra.mxu0 %v2855
        %2937 = vmatpush.bf16.msra.mxu0 %v2853
        %2938 = vmatpush.bf16.msra.mxu0 %v2851
        %2939 = vmatpush.bf16.msra.mxu0 %v2849
        %2940 = vmatpush.bf16.msra.mxu0 %v2847
        %2941 = vmatmul.bf16.gmra.mxu0 %v416
        %v2942 = vpop.f32.mrf.mxu0
        %v2943 = vadd.f32 %v2930, %v2942
        %v2944 = vpop.f32.mrf.mxu0
        %2945 = vdwg.mxu0
        %v2946 = vpack.c.bf16 %v2917, %v2917
        %v2947 = vpack.c.bf16 %v2943, %v2943
        %s2948 = scalar_lea.vmem %s1, 32
        %v2949 = vld [vmem:[%s2948] sm:$0xf]
        %v2951 = vsel %vm913, %v2949, 0
        %v2954 = vsel %vm917, %v2946, 0
        %v2957 = vsel %vm917, %v2947, 0
        %2959 = vmatpush.bf16.msra.mxu0 0
        %2960 = vmatpush.bf16.msra.mxu0 0
        %2961 = vmatpush.bf16.msra.mxu0 0
        %2962 = vmatpush.bf16.msra.mxu0 0
        %2963 = vmatpush.bf16.msra.mxu0 0
        %2964 = vmatpush.bf16.msra.mxu0 0
        %2965 = vmatpush.bf16.msra.mxu0 0
        %2966 = vmatpush.bf16.msra.mxu0 %v2954
        %2967 = vmatmul.bf16.gmra.mxu0 %v2951
        %v2968 = vpop.f32.mrf.mxu0
        %v2969 = vadd.f32 0.0, %v2968
        %v2970 = vpop.f32.mrf.mxu0
        %2971 = vdwg.mxu0
        %2972 = vmatpush.bf16.msra.mxu0 0
        %2973 = vmatpush.bf16.msra.mxu0 0
        %2974 = vmatpush.bf16.msra.mxu0 0
        %2975 = vmatpush.bf16.msra.mxu0 0
        %2976 = vmatpush.bf16.msra.mxu0 0
        %2977 = vmatpush.bf16.msra.mxu0 0
        %2978 = vmatpush.bf16.msra.mxu0 0
        %2979 = vmatpush.bf16.msra.mxu0 %v2957
        %2980 = vmatmul.bf16.gmra.mxu0 %v2951
        %v2981 = vpop.f32.mrf.mxu0
        %v2982 = vadd.f32 0.0, %v2981
        %v2983 = vpop.f32.mrf.mxu0
        %2984 = vdwg.mxu0
        %v2985 = vadd.f32 %v2699, %v2969
        %v2986 = vadd.f32 %v2700, %v2982
        %v2987 = vld [vmem:[%s2] sm:$0xff]
        %2989 = vset.pattern.permute.xlu0 0
        %2990 = vperm.xlu0 %2989, %v2987
        %v2991 = vpop.permute.xlu0 %2990
        %v2993 = vadd.f32 %v2985, %v2991
        %v2994 = vadd.f32 %v2986, %v2991
        %v2995 = vmax.f32 %v2993, 0.0
        %v2996 = vmax.f32 %v2994, 0.0
        %v2997 = vpack.c.bf16 %v2995, %v2995
        %v2998 = vpack.c.bf16 %v2996, %v2996
        %v2999 = vld [vmem:[#allocation4] sm:$0xff]
        %v3000 = vld [vmem:[#allocation4 + $0x8] sm:$0xff]
        %v3001 = vld [vmem:[#allocation4 + $0x10] sm:$0xff]
        %v3002 = vld [vmem:[#allocation4 + $0x18] sm:$0xff]
        %v3003 = vld [vmem:[#allocation4 + $0x20] sm:$0xff]
        %v3004 = vld [vmem:[#allocation4 + $0x28] sm:$0xff]
        %v3005 = vld [vmem:[#allocation4 + $0x30] sm:$0xff]
        %v3006 = vld [vmem:[#allocation4 + $0x38] sm:$0xff]
        %v3007 = vld [vmem:[#allocation4 + $0x40] sm:$0xff]
        %v3008 = vld [vmem:[#allocation4 + $0x48] sm:$0xff]
        %v3009 = vld [vmem:[#allocation4 + $0x50] sm:$0xff]
        %v3010 = vld [vmem:[#allocation4 + $0x58] sm:$0xff]
        %v3011 = vld [vmem:[#allocation4 + $0x60] sm:$0xff]
        %v3012 = vld [vmem:[#allocation4 + $0x68] sm:$0xff]
        %v3013 = vld [vmem:[#allocation4 + $0x70] sm:$0xff]
        %v3014 = vld [vmem:[#allocation4 + $0x78] sm:$0xff]
        %v3015 = vld [vmem:[#allocation4 + $0x80] sm:$0xff]
        %v3016 = vld [vmem:[#allocation4 + $0x88] sm:$0xff]
        %v3017 = vld [vmem:[#allocation4 + $0x90] sm:$0xff]
        %v3018 = vld [vmem:[#allocation4 + $0x98] sm:$0xff]
        %v3019 = vld [vmem:[#allocation4 + $0xa0] sm:$0xff]
        %v3020 = vld [vmem:[#allocation4 + $0xa8] sm:$0xff]
        %v3021 = vld [vmem:[#allocation4 + $0xb0] sm:$0xff]
        %v3022 = vld [vmem:[#allocation4 + $0xb8] sm:$0xff]
        %v3023 = vld [vmem:[#allocation4 + $0xc0] sm:$0xff]
        %v3024 = vld [vmem:[#allocation4 + $0xc8] sm:$0xff]
        %v3025 = vld [vmem:[#allocation4 + $0xd0] sm:$0xff]
        %v3026 = vld [vmem:[#allocation4 + $0xd8] sm:$0xff]
        %v3027 = vld [vmem:[#allocation4 + $0xe0] sm:$0xff]
        %v3028 = vld [vmem:[#allocation4 + $0xe8] sm:$0xff]
        %v3029 = vld [vmem:[#allocation4 + $0xf0] sm:$0xff]
        %v3030 = vld [vmem:[#allocation4 + $0xf8] sm:$0xff]
        %v3063 = vunpack.c.l.b16 %v2999
        %v3064 = vunpack.c.h.b16 %v2999
        %v3065 = vunpack.c.l.b16 %v3000
        %v3066 = vunpack.c.h.b16 %v3000
        %v3067 = vunpack.c.l.b16 %v3001
        %v3068 = vunpack.c.h.b16 %v3001
        %v3069 = vunpack.c.l.b16 %v3002
        %v3070 = vunpack.c.h.b16 %v3002
        %v3071 = vunpack.c.l.b16 %v3003
        %v3072 = vunpack.c.h.b16 %v3003
        %v3073 = vunpack.c.l.b16 %v3004
        %v3074 = vunpack.c.h.b16 %v3004
        %v3075 = vunpack.c.l.b16 %v3005
        %v3076 = vunpack.c.h.b16 %v3005
        %v3077 = vunpack.c.l.b16 %v3006
        %v3078 = vunpack.c.h.b16 %v3006
        %v3079 = vunpack.c.l.b16 %v3007
        %v3080 = vunpack.c.h.b16 %v3007
        %v3081 = vunpack.c.l.b16 %v3008
        %v3082 = vunpack.c.h.b16 %v3008
        %v3083 = vunpack.c.l.b16 %v3009
        %v3084 = vunpack.c.h.b16 %v3009
        %v3085 = vunpack.c.l.b16 %v3010
        %v3086 = vunpack.c.h.b16 %v3010
        %v3087 = vunpack.c.l.b16 %v3011
        %v3088 = vunpack.c.h.b16 %v3011
        %v3089 = vunpack.c.l.b16 %v3012
        %v3090 = vunpack.c.h.b16 %v3012
        %v3091 = vunpack.c.l.b16 %v3013
        %v3092 = vunpack.c.h.b16 %v3013
        %v3093 = vunpack.c.l.b16 %v3014
        %v3094 = vunpack.c.h.b16 %v3014
        %v3095 = vunpack.c.l.b16 %v3015
        %v3096 = vunpack.c.h.b16 %v3015
        %v3097 = vunpack.c.l.b16 %v3016
        %v3098 = vunpack.c.h.b16 %v3016
        %v3099 = vunpack.c.l.b16 %v3017
        %v3100 = vunpack.c.h.b16 %v3017
        %v3101 = vunpack.c.l.b16 %v3018
        %v3102 = vunpack.c.h.b16 %v3018
        %v3103 = vunpack.c.l.b16 %v3019
        %v3104 = vunpack.c.h.b16 %v3019
        %v3105 = vunpack.c.l.b16 %v3020
        %v3106 = vunpack.c.h.b16 %v3020
        %v3107 = vunpack.c.l.b16 %v3021
        %v3108 = vunpack.c.h.b16 %v3021
        %v3109 = vunpack.c.l.b16 %v3022
        %v3110 = vunpack.c.h.b16 %v3022
        %v3111 = vunpack.c.l.b16 %v3023
        %v3112 = vunpack.c.h.b16 %v3023
        %v3113 = vunpack.c.l.b16 %v3024
        %v3114 = vunpack.c.h.b16 %v3024
        %v3115 = vunpack.c.l.b16 %v3025
        %v3116 = vunpack.c.h.b16 %v3025
        %v3117 = vunpack.c.l.b16 %v3026
        %v3118 = vunpack.c.h.b16 %v3026
        %v3119 = vunpack.c.l.b16 %v3027
        %v3120 = vunpack.c.h.b16 %v3027
        %v3121 = vunpack.c.l.b16 %v3028
        %v3122 = vunpack.c.h.b16 %v3028
        %v3123 = vunpack.c.l.b16 %v3029
        %v3124 = vunpack.c.h.b16 %v3029
        %v3125 = vunpack.c.l.b16 %v3030
        %v3126 = vunpack.c.h.b16 %v3030
        %v3127 = vpack.c.b16 %v3065, %v3063
        %v3128 = vpack.c.b16 %v3066, %v3064
        %v3129 = vpack.c.b16 %v3069, %v3067
        %v3130 = vpack.c.b16 %v3070, %v3068
        %v3131 = vpack.c.b16 %v3073, %v3071
        %v3132 = vpack.c.b16 %v3074, %v3072
        %v3133 = vpack.c.b16 %v3077, %v3075
        %v3134 = vpack.c.b16 %v3078, %v3076
        %v3135 = vpack.c.b16 %v3081, %v3079
        %v3136 = vpack.c.b16 %v3082, %v3080
        %v3137 = vpack.c.b16 %v3085, %v3083
        %v3138 = vpack.c.b16 %v3086, %v3084
        %v3139 = vpack.c.b16 %v3089, %v3087
        %v3140 = vpack.c.b16 %v3090, %v3088
        %v3141 = vpack.c.b16 %v3093, %v3091
        %v3142 = vpack.c.b16 %v3094, %v3092
        %v3143 = vpack.c.b16 %v3097, %v3095
        %v3144 = vpack.c.b16 %v3098, %v3096
        %v3145 = vpack.c.b16 %v3101, %v3099
        %v3146 = vpack.c.b16 %v3102, %v3100
        %v3147 = vpack.c.b16 %v3105, %v3103
        %v3148 = vpack.c.b16 %v3106, %v3104
        %v3149 = vpack.c.b16 %v3109, %v3107
        %v3150 = vpack.c.b16 %v3110, %v3108
        %v3151 = vpack.c.b16 %v3113, %v3111
        %v3152 = vpack.c.b16 %v3114, %v3112
        %v3153 = vpack.c.b16 %v3117, %v3115
        %v3154 = vpack.c.b16 %v3118, %v3116
        %v3155 = vpack.c.b16 %v3121, %v3119
        %v3156 = vpack.c.b16 %v3122, %v3120
        %v3157 = vpack.c.b16 %v3125, %v3123
        %v3158 = vpack.c.b16 %v3126, %v3124
        %3191 = vmatpush.bf16.msra.mxu0 %v3141
        %3192 = vmatpush.bf16.msra.mxu0 %v3139
        %3193 = vmatpush.bf16.msra.mxu0 %v3137
        %3194 = vmatpush.bf16.msra.mxu0 %v3135
        %3195 = vmatpush.bf16.msra.mxu0 %v3133
        %3196 = vmatpush.bf16.msra.mxu0 %v3131
        %3197 = vmatpush.bf16.msra.mxu0 %v3129
        %3198 = vmatpush.bf16.msra.mxu0 %v3127
        %3199 = vmatmul.bf16.gmra.mxu0 %v2997
        %v3200 = vpop.f32.mrf.mxu0
        %v3201 = vadd.f32 0.0, %v3200
        %v3202 = vpop.f32.mrf.mxu0
        %3203 = vdwg.mxu0
        %3204 = vmatpush.bf16.msra.mxu0 %v3157
        %3205 = vmatpush.bf16.msra.mxu0 %v3155
        %3206 = vmatpush.bf16.msra.mxu0 %v3153
        %3207 = vmatpush.bf16.msra.mxu0 %v3151
        %3208 = vmatpush.bf16.msra.mxu0 %v3149
        %3209 = vmatpush.bf16.msra.mxu0 %v3147
        %3210 = vmatpush.bf16.msra.mxu0 %v3145
        %3211 = vmatpush.bf16.msra.mxu0 %v3143
        %3212 = vmatmul.bf16.gmra.mxu0 %v2998
        %v3213 = vpop.f32.mrf.mxu0
        %v3214 = vadd.f32 %v3201, %v3213
        %v3215 = vpop.f32.mrf.mxu0
        %3216 = vdwg.mxu0
        %3217 = vmatpush.bf16.msra.mxu0 %v3142
        %3218 = vmatpush.bf16.msra.mxu0 %v3140
        %3219 = vmatpush.bf16.msra.mxu0 %v3138
        %3220 = vmatpush.bf16.msra.mxu0 %v3136
        %3221 = vmatpush.bf16.msra.mxu0 %v3134
        %3222 = vmatpush.bf16.msra.mxu0 %v3132
        %3223 = vmatpush.bf16.msra.mxu0 %v3130
        %3224 = vmatpush.bf16.msra.mxu0 %v3128
        %3225 = vmatmul.bf16.gmra.mxu0 %v2997
        %v3226 = vpop.f32.mrf.mxu0
        %v3227 = vadd.f32 0.0, %v3226
        %v3228 = vpop.f32.mrf.mxu0
        %3229 = vdwg.mxu0
        %3230 = vmatpush.bf16.msra.mxu0 %v3158
        %3231 = vmatpush.bf16.msra.mxu0 %v3156
        %3232 = vmatpush.bf16.msra.mxu0 %v3154
        %3233 = vmatpush.bf16.msra.mxu0 %v3152
        %3234 = vmatpush.bf16.msra.mxu0 %v3150
        %3235 = vmatpush.bf16.msra.mxu0 %v3148
        %3236 = vmatpush.bf16.msra.mxu0 %v3146
        %3237 = vmatpush.bf16.msra.mxu0 %v3144
        %3238 = vmatmul.bf16.gmra.mxu0 %v2998
        %v3239 = vpop.f32.mrf.mxu0
        %v3240 = vadd.f32 %v3227, %v3239
        %v3241 = vpop.f32.mrf.mxu0
        %3242 = vdwg.mxu0
        %v3243 = vpack.c.bf16 %v3214, %v3214
        %v3244 = vpack.c.bf16 %v3240, %v3240
        %v3245 = vld [vmem:[%s4] sm:$0xf]
        %s3246 = scalar_lea.vmem [#allocation4], 256
        %v3247 = vld [vmem:[%s3246] sm:$0xff]
        %v3248 = vld [vmem:[%s3246 + $0x8] sm:$0xff]
        %v3249 = vld [vmem:[%s3246 + $0x10] sm:$0xff]
        %v3250 = vld [vmem:[%s3246 + $0x18] sm:$0xff]
        %v3251 = vld [vmem:[%s3246 + $0x20] sm:$0xff]
        %v3252 = vld [vmem:[%s3246 + $0x28] sm:$0xff]
        %v3253 = vld [vmem:[%s3246 + $0x30] sm:$0xff]
        %v3254 = vld [vmem:[%s3246 + $0x38] sm:$0xff]
        %v3255 = vld [vmem:[%s3246 + $0x40] sm:$0xff]
        %v3256 = vld [vmem:[%s3246 + $0x48] sm:$0xff]
        %v3257 = vld [vmem:[%s3246 + $0x50] sm:$0xff]
        %v3258 = vld [vmem:[%s3246 + $0x58] sm:$0xff]
        %v3259 = vld [vmem:[%s3246 + $0x60] sm:$0xff]
        %v3260 = vld [vmem:[%s3246 + $0x68] sm:$0xff]
        %v3261 = vld [vmem:[%s3246 + $0x70] sm:$0xff]
        %v3262 = vld [vmem:[%s3246 + $0x78] sm:$0xff]
        %v3263 = vld [vmem:[%s3246 + $0x80] sm:$0xff]
        %v3264 = vld [vmem:[%s3246 + $0x88] sm:$0xff]
        %v3265 = vld [vmem:[%s3246 + $0x90] sm:$0xff]
        %v3266 = vld [vmem:[%s3246 + $0x98] sm:$0xff]
        %v3267 = vld [vmem:[%s3246 + $0xa0] sm:$0xff]
        %v3268 = vld [vmem:[%s3246 + $0xa8] sm:$0xff]
        %v3269 = vld [vmem:[%s3246 + $0xb0] sm:$0xff]
        %v3270 = vld [vmem:[%s3246 + $0xb8] sm:$0xff]
        %v3271 = vld [vmem:[%s3246 + $0xc0] sm:$0xff]
        %v3272 = vld [vmem:[%s3246 + $0xc8] sm:$0xff]
        %v3273 = vld [vmem:[%s3246 + $0xd0] sm:$0xff]
        %v3274 = vld [vmem:[%s3246 + $0xd8] sm:$0xff]
        %v3275 = vld [vmem:[%s3246 + $0xe0] sm:$0xff]
        %v3276 = vld [vmem:[%s3246 + $0xe8] sm:$0xff]
        %v3277 = vld [vmem:[%s3246 + $0xf0] sm:$0xff]
        %v3278 = vld [vmem:[%s3246 + $0xf8] sm:$0xff]
        %v3311 = vunpack.c.l.b16 %v3247
        %v3312 = vunpack.c.h.b16 %v3247
        %v3313 = vunpack.c.l.b16 %v3248
        %v3314 = vunpack.c.h.b16 %v3248
        %v3315 = vunpack.c.l.b16 %v3249
        %v3316 = vunpack.c.h.b16 %v3249
        %v3317 = vunpack.c.l.b16 %v3250
        %v3318 = vunpack.c.h.b16 %v3250
        %v3319 = vunpack.c.l.b16 %v3251
        %v3320 = vunpack.c.h.b16 %v3251
        %v3321 = vunpack.c.l.b16 %v3252
        %v3322 = vunpack.c.h.b16 %v3252
        %v3323 = vunpack.c.l.b16 %v3253
        %v3324 = vunpack.c.h.b16 %v3253
        %v3325 = vunpack.c.l.b16 %v3254
        %v3326 = vunpack.c.h.b16 %v3254
        %v3327 = vunpack.c.l.b16 %v3255
        %v3328 = vunpack.c.h.b16 %v3255
        %v3329 = vunpack.c.l.b16 %v3256
        %v3330 = vunpack.c.h.b16 %v3256
        %v3331 = vunpack.c.l.b16 %v3257
        %v3332 = vunpack.c.h.b16 %v3257
        %v3333 = vunpack.c.l.b16 %v3258
        %v3334 = vunpack.c.h.b16 %v3258
        %v3335 = vunpack.c.l.b16 %v3259
        %v3336 = vunpack.c.h.b16 %v3259
        %v3337 = vunpack.c.l.b16 %v3260
        %v3338 = vunpack.c.h.b16 %v3260
        %v3339 = vunpack.c.l.b16 %v3261
        %v3340 = vunpack.c.h.b16 %v3261
        %v3341 = vunpack.c.l.b16 %v3262
        %v3342 = vunpack.c.h.b16 %v3262
        %v3343 = vunpack.c.l.b16 %v3263
        %v3344 = vunpack.c.h.b16 %v3263
        %v3345 = vunpack.c.l.b16 %v3264
        %v3346 = vunpack.c.h.b16 %v3264
        %v3347 = vunpack.c.l.b16 %v3265
        %v3348 = vunpack.c.h.b16 %v3265
        %v3349 = vunpack.c.l.b16 %v3266
        %v3350 = vunpack.c.h.b16 %v3266
        %v3351 = vunpack.c.l.b16 %v3267
        %v3352 = vunpack.c.h.b16 %v3267
        %v3353 = vunpack.c.l.b16 %v3268
        %v3354 = vunpack.c.h.b16 %v3268
        %v3355 = vunpack.c.l.b16 %v3269
        %v3356 = vunpack.c.h.b16 %v3269
        %v3357 = vunpack.c.l.b16 %v3270
        %v3358 = vunpack.c.h.b16 %v3270
        %v3359 = vunpack.c.l.b16 %v3271
        %v3360 = vunpack.c.h.b16 %v3271
        %v3361 = vunpack.c.l.b16 %v3272
        %v3362 = vunpack.c.h.b16 %v3272
        %v3363 = vunpack.c.l.b16 %v3273
        %v3364 = vunpack.c.h.b16 %v3273
        %v3365 = vunpack.c.l.b16 %v3274
        %v3366 = vunpack.c.h.b16 %v3274
        %v3367 = vunpack.c.l.b16 %v3275
        %v3368 = vunpack.c.h.b16 %v3275
        %v3369 = vunpack.c.l.b16 %v3276
        %v3370 = vunpack.c.h.b16 %v3276
        %v3371 = vunpack.c.l.b16 %v3277
        %v3372 = vunpack.c.h.b16 %v3277
        %v3373 = vunpack.c.l.b16 %v3278
        %v3374 = vunpack.c.h.b16 %v3278
        %v3375 = vpack.c.b16 %v3313, %v3311
        %v3376 = vpack.c.b16 %v3314, %v3312
        %v3377 = vpack.c.b16 %v3317, %v3315
        %v3378 = vpack.c.b16 %v3318, %v3316
        %v3379 = vpack.c.b16 %v3321, %v3319
        %v3380 = vpack.c.b16 %v3322, %v3320
        %v3381 = vpack.c.b16 %v3325, %v3323
        %v3382 = vpack.c.b16 %v3326, %v3324
        %v3383 = vpack.c.b16 %v3329, %v3327
        %v3384 = vpack.c.b16 %v3330, %v3328
        %v3385 = vpack.c.b16 %v3333, %v3331
        %v3386 = vpack.c.b16 %v3334, %v3332
        %v3387 = vpack.c.b16 %v3337, %v3335
        %v3388 = vpack.c.b16 %v3338, %v3336
        %v3389 = vpack.c.b16 %v3341, %v3339
        %v3390 = vpack.c.b16 %v3342, %v3340
        %v3391 = vpack.c.b16 %v3345, %v3343
        %v3392 = vpack.c.b16 %v3346, %v3344
        %v3393 = vpack.c.b16 %v3349, %v3347
        %v3394 = vpack.c.b16 %v3350, %v3348
        %v3395 = vpack.c.b16 %v3353, %v3351
        %v3396 = vpack.c.b16 %v3354, %v3352
        %v3397 = vpack.c.b16 %v3357, %v3355
        %v3398 = vpack.c.b16 %v3358, %v3356
        %v3399 = vpack.c.b16 %v3361, %v3359
        %v3400 = vpack.c.b16 %v3362, %v3360
        %v3401 = vpack.c.b16 %v3365, %v3363
        %v3402 = vpack.c.b16 %v3366, %v3364
        %v3403 = vpack.c.b16 %v3369, %v3367
        %v3404 = vpack.c.b16 %v3370, %v3368
        %v3405 = vpack.c.b16 %v3373, %v3371
        %v3406 = vpack.c.b16 %v3374, %v3372
        %3439 = vmatpush.bf16.msra.mxu0 %v3389
        %3440 = vmatpush.bf16.msra.mxu0 %v3387
        %3441 = vmatpush.bf16.msra.mxu0 %v3385
        %3442 = vmatpush.bf16.msra.mxu0 %v3383
        %3443 = vmatpush.bf16.msra.mxu0 %v3381
        %3444 = vmatpush.bf16.msra.mxu0 %v3379
        %3445 = vmatpush.bf16.msra.mxu0 %v3377
        %3446 = vmatpush.bf16.msra.mxu0 %v3375
        %3447 = vmatmul.bf16.gmra.mxu0 %v2997
        %v3448 = vpop.f32.mrf.mxu0
        %v3449 = vadd.f32 0.0, %v3448
        %v3450 = vpop.f32.mrf.mxu0
        %3451 = vdwg.mxu0
        %3452 = vmatpush.bf16.msra.mxu0 %v3405
        %3453 = vmatpush.bf16.msra.mxu0 %v3403
        %3454 = vmatpush.bf16.msra.mxu0 %v3401
        %3455 = vmatpush.bf16.msra.mxu0 %v3399
        %3456 = vmatpush.bf16.msra.mxu0 %v3397
        %3457 = vmatpush.bf16.msra.mxu0 %v3395
        %3458 = vmatpush.bf16.msra.mxu0 %v3393
        %3459 = vmatpush.bf16.msra.mxu0 %v3391
        %3460 = vmatmul.bf16.gmra.mxu0 %v2998
        %v3461 = vpop.f32.mrf.mxu0
        %v3462 = vadd.f32 %v3449, %v3461
        %v3463 = vpop.f32.mrf.mxu0
        %3464 = vdwg.mxu0
        %3465 = vmatpush.bf16.msra.mxu0 %v3390
        %3466 = vmatpush.bf16.msra.mxu0 %v3388
        %3467 = vmatpush.bf16.msra.mxu0 %v3386
        %3468 = vmatpush.bf16.msra.mxu0 %v3384
        %3469 = vmatpush.bf16.msra.mxu0 %v3382
        %3470 = vmatpush.bf16.msra.mxu0 %v3380
        %3471 = vmatpush.bf16.msra.mxu0 %v3378
        %3472 = vmatpush.bf16.msra.mxu0 %v3376
        %3473 = vmatmul.bf16.gmra.mxu0 %v2997
        %v3474 = vpop.f32.mrf.mxu0
        %v3475 = vadd.f32 0.0, %v3474
        %v3476 = vpop.f32.mrf.mxu0
        %3477 = vdwg.mxu0
        %3478 = vmatpush.bf16.msra.mxu0 %v3406
        %3479 = vmatpush.bf16.msra.mxu0 %v3404
        %3480 = vmatpush.bf16.msra.mxu0 %v3402
        %3481 = vmatpush.bf16.msra.mxu0 %v3400
        %3482 = vmatpush.bf16.msra.mxu0 %v3398
        %3483 = vmatpush.bf16.msra.mxu0 %v3396
        %3484 = vmatpush.bf16.msra.mxu0 %v3394
        %3485 = vmatpush.bf16.msra.mxu0 %v3392
        %3486 = vmatmul.bf16.gmra.mxu0 %v2998
        %v3487 = vpop.f32.mrf.mxu0
        %v3488 = vadd.f32 %v3475, %v3487
        %v3489 = vpop.f32.mrf.mxu0
        %3490 = vdwg.mxu0
        %v3491 = vpack.c.bf16 %v3462, %v3462
        %v3492 = vpack.c.bf16 %v3488, %v3488
        %s3493 = scalar_lea.vmem %s4, 4
        %v3494 = vld [vmem:[%s3493] sm:$0xf]
        %vm3495 = vcmask 64512
        %v3497 = vsel %vm3495, %v3494, 0
        %vm3499 = vcmask 1043456
        %v3501 = vsel %vm3499, %v3491, 0
        %v3504 = vsel %vm3499, %v3492, 0
        %3506 = vmatpush.bf16.msra.mxu0 0
        %3507 = vmatpush.bf16.msra.mxu0 0
        %3508 = vmatpush.bf16.msra.mxu0 0
        %3509 = vmatpush.bf16.msra.mxu0 0
        %3510 = vmatpush.bf16.msra.mxu0 0
        %3511 = vmatpush.bf16.msra.mxu0 0
        %3512 = vmatpush.bf16.msra.mxu0 0
        %3513 = vmatpush.bf16.msra.mxu0 %v3501
        %3514 = vmatmul.bf16.gmra.mxu0 %v3497
        %v3515 = vpop.f32.mrf.mxu0
        %v3516 = vadd.f32 0.0, %v3515
        %v3517 = vpop.f32.mrf.mxu0
        %3518 = vdwg.mxu0
        %3519 = vmatpush.bf16.msra.mxu0 0
        %3520 = vmatpush.bf16.msra.mxu0 0
        %3521 = vmatpush.bf16.msra.mxu0 0
        %3522 = vmatpush.bf16.msra.mxu0 0
        %3523 = vmatpush.bf16.msra.mxu0 0
        %3524 = vmatpush.bf16.msra.mxu0 0
        %3525 = vmatpush.bf16.msra.mxu0 0
        %3526 = vmatpush.bf16.msra.mxu0 %v3504
        %3527 = vmatmul.bf16.gmra.mxu0 %v3497
        %v3528 = vpop.f32.mrf.mxu0
        %v3529 = vadd.f32 0.0, %v3528
        %v3530 = vpop.f32.mrf.mxu0
        %3531 = vdwg.mxu0
        %v3533 = vsel %vm3495, %v3245, 0
        %v3536 = vsel %vm3499, %v3243, 0
        %v3539 = vsel %vm3499, %v3244, 0
        %3541 = vmatpush.bf16.msra.mxu0 0
        %3542 = vmatpush.bf16.msra.mxu0 0
        %3543 = vmatpush.bf16.msra.mxu0 0
        %3544 = vmatpush.bf16.msra.mxu0 0
        %3545 = vmatpush.bf16.msra.mxu0 0
        %3546 = vmatpush.bf16.msra.mxu0 0
        %3547 = vmatpush.bf16.msra.mxu0 0
        %3548 = vmatpush.bf16.msra.mxu0 %v3536
        %3549 = vmatmul.bf16.gmra.mxu0 %v3533
        %v3550 = vpop.f32.mrf.mxu0
        %v3551 = vadd.f32 %v3516, %v3550
        %v3552 = vpop.f32.mrf.mxu0
        %3553 = vdwg.mxu0
        %3554 = vmatpush.bf16.msra.mxu0 0
        %3555 = vmatpush.bf16.msra.mxu0 0
        %3556 = vmatpush.bf16.msra.mxu0 0
        %3557 = vmatpush.bf16.msra.mxu0 0
        %3558 = vmatpush.bf16.msra.mxu0 0
        %3559 = vmatpush.bf16.msra.mxu0 0
        %3560 = vmatpush.bf16.msra.mxu0 0
        %3561 = vmatpush.bf16.msra.mxu0 %v3539
        %3562 = vmatmul.bf16.gmra.mxu0 %v3533
        %v3563 = vpop.f32.mrf.mxu0
        %v3564 = vadd.f32 %v3529, %v3563
        %v3565 = vpop.f32.mrf.mxu0
        %3566 = vdwg.mxu0
        %s3567 = scalar_lea.vmem [#allocation4], 512
        %v3568 = vld [vmem:[%s3567] sm:$0xff]
        %v3569 = vld [vmem:[%s3567 + $0x8] sm:$0xff]
        %v3570 = vld [vmem:[%s3567 + $0x10] sm:$0xff]
        %v3571 = vld [vmem:[%s3567 + $0x18] sm:$0xff]
        %v3572 = vld [vmem:[%s3567 + $0x20] sm:$0xff]
        %v3573 = vld [vmem:[%s3567 + $0x28] sm:$0xff]
        %v3574 = vld [vmem:[%s3567 + $0x30] sm:$0xff]
        %v3575 = vld [vmem:[%s3567 + $0x38] sm:$0xff]
        %v3576 = vld [vmem:[%s3567 + $0x40] sm:$0xff]
        %v3577 = vld [vmem:[%s3567 + $0x48] sm:$0xff]
        %v3578 = vld [vmem:[%s3567 + $0x50] sm:$0xff]
        %v3579 = vld [vmem:[%s3567 + $0x58] sm:$0xff]
        %v3580 = vld [vmem:[%s3567 + $0x60] sm:$0xff]
        %v3581 = vld [vmem:[%s3567 + $0x68] sm:$0xff]
        %v3582 = vld [vmem:[%s3567 + $0x70] sm:$0xff]
        %v3583 = vld [vmem:[%s3567 + $0x78] sm:$0xff]
        %v3584 = vld [vmem:[%s3567 + $0x80] sm:$0xff]
        %v3585 = vld [vmem:[%s3567 + $0x88] sm:$0xff]
        %v3586 = vld [vmem:[%s3567 + $0x90] sm:$0xff]
        %v3587 = vld [vmem:[%s3567 + $0x98] sm:$0xff]
        %v3588 = vld [vmem:[%s3567 + $0xa0] sm:$0xff]
        %v3589 = vld [vmem:[%s3567 + $0xa8] sm:$0xff]
        %v3590 = vld [vmem:[%s3567 + $0xb0] sm:$0xff]
        %v3591 = vld [vmem:[%s3567 + $0xb8] sm:$0xff]
        %v3592 = vld [vmem:[%s3567 + $0xc0] sm:$0xff]
        %v3593 = vld [vmem:[%s3567 + $0xc8] sm:$0xff]
        %v3594 = vld [vmem:[%s3567 + $0xd0] sm:$0xff]
        %v3595 = vld [vmem:[%s3567 + $0xd8] sm:$0xff]
        %v3596 = vld [vmem:[%s3567 + $0xe0] sm:$0xff]
        %v3597 = vld [vmem:[%s3567 + $0xe8] sm:$0xff]
        %v3598 = vld [vmem:[%s3567 + $0xf0] sm:$0xff]
        %v3599 = vld [vmem:[%s3567 + $0xf8] sm:$0xff]
        %v3632 = vunpack.c.l.b16 %v3568
        %v3633 = vunpack.c.h.b16 %v3568
        %v3634 = vunpack.c.l.b16 %v3569
        %v3635 = vunpack.c.h.b16 %v3569
        %v3636 = vunpack.c.l.b16 %v3570
        %v3637 = vunpack.c.h.b16 %v3570
        %v3638 = vunpack.c.l.b16 %v3571
        %v3639 = vunpack.c.h.b16 %v3571
        %v3640 = vunpack.c.l.b16 %v3572
        %v3641 = vunpack.c.h.b16 %v3572
        %v3642 = vunpack.c.l.b16 %v3573
        %v3643 = vunpack.c.h.b16 %v3573
        %v3644 = vunpack.c.l.b16 %v3574
        %v3645 = vunpack.c.h.b16 %v3574
        %v3646 = vunpack.c.l.b16 %v3575
        %v3647 = vunpack.c.h.b16 %v3575
        %v3648 = vunpack.c.l.b16 %v3576
        %v3649 = vunpack.c.h.b16 %v3576
        %v3650 = vunpack.c.l.b16 %v3577
        %v3651 = vunpack.c.h.b16 %v3577
        %v3652 = vunpack.c.l.b16 %v3578
        %v3653 = vunpack.c.h.b16 %v3578
        %v3654 = vunpack.c.l.b16 %v3579
        %v3655 = vunpack.c.h.b16 %v3579
        %v3656 = vunpack.c.l.b16 %v3580
        %v3657 = vunpack.c.h.b16 %v3580
        %v3658 = vunpack.c.l.b16 %v3581
        %v3659 = vunpack.c.h.b16 %v3581
        %v3660 = vunpack.c.l.b16 %v3582
        %v3661 = vunpack.c.h.b16 %v3582
        %v3662 = vunpack.c.l.b16 %v3583
        %v3663 = vunpack.c.h.b16 %v3583
        %v3664 = vunpack.c.l.b16 %v3584
        %v3665 = vunpack.c.h.b16 %v3584
        %v3666 = vunpack.c.l.b16 %v3585
        %v3667 = vunpack.c.h.b16 %v3585
        %v3668 = vunpack.c.l.b16 %v3586
        %v3669 = vunpack.c.h.b16 %v3586
        %v3670 = vunpack.c.l.b16 %v3587
        %v3671 = vunpack.c.h.b16 %v3587
        %v3672 = vunpack.c.l.b16 %v3588
        %v3673 = vunpack.c.h.b16 %v3588
        %v3674 = vunpack.c.l.b16 %v3589
        %v3675 = vunpack.c.h.b16 %v3589
        %v3676 = vunpack.c.l.b16 %v3590
        %v3677 = vunpack.c.h.b16 %v3590
        %v3678 = vunpack.c.l.b16 %v3591
        %v3679 = vunpack.c.h.b16 %v3591
        %v3680 = vunpack.c.l.b16 %v3592
        %v3681 = vunpack.c.h.b16 %v3592
        %v3682 = vunpack.c.l.b16 %v3593
        %v3683 = vunpack.c.h.b16 %v3593
        %v3684 = vunpack.c.l.b16 %v3594
        %v3685 = vunpack.c.h.b16 %v3594
        %v3686 = vunpack.c.l.b16 %v3595
        %v3687 = vunpack.c.h.b16 %v3595
        %v3688 = vunpack.c.l.b16 %v3596
        %v3689 = vunpack.c.h.b16 %v3596
        %v3690 = vunpack.c.l.b16 %v3597
        %v3691 = vunpack.c.h.b16 %v3597
        %v3692 = vunpack.c.l.b16 %v3598
        %v3693 = vunpack.c.h.b16 %v3598
        %v3694 = vunpack.c.l.b16 %v3599
        %v3695 = vunpack.c.h.b16 %v3599
        %v3696 = vpack.c.b16 %v3634, %v3632
        %v3697 = vpack.c.b16 %v3635, %v3633
        %v3698 = vpack.c.b16 %v3638, %v3636
        %v3699 = vpack.c.b16 %v3639, %v3637
        %v3700 = vpack.c.b16 %v3642, %v3640
        %v3701 = vpack.c.b16 %v3643, %v3641
        %v3702 = vpack.c.b16 %v3646, %v3644
        %v3703 = vpack.c.b16 %v3647, %v3645
        %v3704 = vpack.c.b16 %v3650, %v3648
        %v3705 = vpack.c.b16 %v3651, %v3649
        %v3706 = vpack.c.b16 %v3654, %v3652
        %v3707 = vpack.c.b16 %v3655, %v3653
        %v3708 = vpack.c.b16 %v3658, %v3656
        %v3709 = vpack.c.b16 %v3659, %v3657
        %v3710 = vpack.c.b16 %v3662, %v3660
        %v3711 = vpack.c.b16 %v3663, %v3661
        %v3712 = vpack.c.b16 %v3666, %v3664
        %v3713 = vpack.c.b16 %v3667, %v3665
        %v3714 = vpack.c.b16 %v3670, %v3668
        %v3715 = vpack.c.b16 %v3671, %v3669
        %v3716 = vpack.c.b16 %v3674, %v3672
        %v3717 = vpack.c.b16 %v3675, %v3673
        %v3718 = vpack.c.b16 %v3678, %v3676
        %v3719 = vpack.c.b16 %v3679, %v3677
        %v3720 = vpack.c.b16 %v3682, %v3680
        %v3721 = vpack.c.b16 %v3683, %v3681
        %v3722 = vpack.c.b16 %v3686, %v3684
        %v3723 = vpack.c.b16 %v3687, %v3685
        %v3724 = vpack.c.b16 %v3690, %v3688
        %v3725 = vpack.c.b16 %v3691, %v3689
        %v3726 = vpack.c.b16 %v3694, %v3692
        %v3727 = vpack.c.b16 %v3695, %v3693
        %3760 = vmatpush.bf16.msra.mxu0 %v3710
        %3761 = vmatpush.bf16.msra.mxu0 %v3708
        %3762 = vmatpush.bf16.msra.mxu0 %v3706
        %3763 = vmatpush.bf16.msra.mxu0 %v3704
        %3764 = vmatpush.bf16.msra.mxu0 %v3702
        %3765 = vmatpush.bf16.msra.mxu0 %v3700
        %3766 = vmatpush.bf16.msra.mxu0 %v3698
        %3767 = vmatpush.bf16.msra.mxu0 %v3696
        %3768 = vmatmul.bf16.gmra.mxu0 %v2997
        %v3769 = vpop.f32.mrf.mxu0
        %v3770 = vadd.f32 0.0, %v3769
        %v3771 = vpop.f32.mrf.mxu0
        %3772 = vdwg.mxu0
        %3773 = vmatpush.bf16.msra.mxu0 %v3726
        %3774 = vmatpush.bf16.msra.mxu0 %v3724
        %3775 = vmatpush.bf16.msra.mxu0 %v3722
        %3776 = vmatpush.bf16.msra.mxu0 %v3720
        %3777 = vmatpush.bf16.msra.mxu0 %v3718
        %3778 = vmatpush.bf16.msra.mxu0 %v3716
        %3779 = vmatpush.bf16.msra.mxu0 %v3714
        %3780 = vmatpush.bf16.msra.mxu0 %v3712
        %3781 = vmatmul.bf16.gmra.mxu0 %v2998
        %v3782 = vpop.f32.mrf.mxu0
        %v3783 = vadd.f32 %v3770, %v3782
        %v3784 = vpop.f32.mrf.mxu0
        %3785 = vdwg.mxu0
        %3786 = vmatpush.bf16.msra.mxu0 %v3711
        %3787 = vmatpush.bf16.msra.mxu0 %v3709
        %3788 = vmatpush.bf16.msra.mxu0 %v3707
        %3789 = vmatpush.bf16.msra.mxu0 %v3705
        %3790 = vmatpush.bf16.msra.mxu0 %v3703
        %3791 = vmatpush.bf16.msra.mxu0 %v3701
        %3792 = vmatpush.bf16.msra.mxu0 %v3699
        %3793 = vmatpush.bf16.msra.mxu0 %v3697
        %3794 = vmatmul.bf16.gmra.mxu0 %v2997
        %v3795 = vpop.f32.mrf.mxu0
        %v3796 = vadd.f32 0.0, %v3795
        %v3797 = vpop.f32.mrf.mxu0
        %3798 = vdwg.mxu0
        %3799 = vmatpush.bf16.msra.mxu0 %v3727
        %3800 = vmatpush.bf16.msra.mxu0 %v3725
        %3801 = vmatpush.bf16.msra.mxu0 %v3723
        %3802 = vmatpush.bf16.msra.mxu0 %v3721
        %3803 = vmatpush.bf16.msra.mxu0 %v3719
        %3804 = vmatpush.bf16.msra.mxu0 %v3717
        %3805 = vmatpush.bf16.msra.mxu0 %v3715
        %3806 = vmatpush.bf16.msra.mxu0 %v3713
        %3807 = vmatmul.bf16.gmra.mxu0 %v2998
        %v3808 = vpop.f32.mrf.mxu0
        %v3809 = vadd.f32 %v3796, %v3808
        %v3810 = vpop.f32.mrf.mxu0
        %3811 = vdwg.mxu0
        %v3812 = vpack.c.bf16 %v3783, %v3783
        %v3813 = vpack.c.bf16 %v3809, %v3809
        %s3814 = scalar_lea.vmem %s4, 8
        %v3815 = vld [vmem:[%s3814] sm:$0xf]
        %v3817 = vsel %vm3495, %v3815, 0
        %v3820 = vsel %vm3499, %v3812, 0
        %v3823 = vsel %vm3499, %v3813, 0
        %3825 = vmatpush.bf16.msra.mxu0 0
        %3826 = vmatpush.bf16.msra.mxu0 0
        %3827 = vmatpush.bf16.msra.mxu0 0
        %3828 = vmatpush.bf16.msra.mxu0 0
        %3829 = vmatpush.bf16.msra.mxu0 0
        %3830 = vmatpush.bf16.msra.mxu0 0
        %3831 = vmatpush.bf16.msra.mxu0 0
        %3832 = vmatpush.bf16.msra.mxu0 %v3820
        %3833 = vmatmul.bf16.gmra.mxu0 %v3817
        %v3834 = vpop.f32.mrf.mxu0
        %v3835 = vadd.f32 0.0, %v3834
        %v3836 = vpop.f32.mrf.mxu0
        %3837 = vdwg.mxu0
        %3838 = vmatpush.bf16.msra.mxu0 0
        %3839 = vmatpush.bf16.msra.mxu0 0
        %3840 = vmatpush.bf16.msra.mxu0 0
        %3841 = vmatpush.bf16.msra.mxu0 0
        %3842 = vmatpush.bf16.msra.mxu0 0
        %3843 = vmatpush.bf16.msra.mxu0 0
        %3844 = vmatpush.bf16.msra.mxu0 0
        %3845 = vmatpush.bf16.msra.mxu0 %v3823
        %3846 = vmatmul.bf16.gmra.mxu0 %v3817
        %v3847 = vpop.f32.mrf.mxu0
        %v3848 = vadd.f32 0.0, %v3847
        %v3849 = vpop.f32.mrf.mxu0
        %3850 = vdwg.mxu0
        %v3851 = vadd.f32 %v3551, %v3835
        %v3852 = vadd.f32 %v3564, %v3848
        %s3853 = scalar_lea.vmem [#allocation4], 768
        %v3854 = vld [vmem:[%s3853] sm:$0xff]
        %v3855 = vld [vmem:[%s3853 + $0x8] sm:$0xff]
        %v3856 = vld [vmem:[%s3853 + $0x10] sm:$0xff]
        %v3857 = vld [vmem:[%s3853 + $0x18] sm:$0xff]
        %v3858 = vld [vmem:[%s3853 + $0x20] sm:$0xff]
        %v3859 = vld [vmem:[%s3853 + $0x28] sm:$0xff]
        %v3860 = vld [vmem:[%s3853 + $0x30] sm:$0xff]
        %v3861 = vld [vmem:[%s3853 + $0x38] sm:$0xff]
        %v3862 = vld [vmem:[%s3853 + $0x40] sm:$0xff]
        %v3863 = vld [vmem:[%s3853 + $0x48] sm:$0xff]
        %v3864 = vld [vmem:[%s3853 + $0x50] sm:$0xff]
        %v3865 = vld [vmem:[%s3853 + $0x58] sm:$0xff]
        %v3866 = vld [vmem:[%s3853 + $0x60] sm:$0xff]
        %v3867 = vld [vmem:[%s3853 + $0x68] sm:$0xff]
        %v3868 = vld [vmem:[%s3853 + $0x70] sm:$0xff]
        %v3869 = vld [vmem:[%s3853 + $0x78] sm:$0xff]
        %v3870 = vld [vmem:[%s3853 + $0x80] sm:$0xff]
        %v3871 = vld [vmem:[%s3853 + $0x88] sm:$0xff]
        %v3872 = vld [vmem:[%s3853 + $0x90] sm:$0xff]
        %v3873 = vld [vmem:[%s3853 + $0x98] sm:$0xff]
        %v3874 = vld [vmem:[%s3853 + $0xa0] sm:$0xff]
        %v3875 = vld [vmem:[%s3853 + $0xa8] sm:$0xff]
        %v3876 = vld [vmem:[%s3853 + $0xb0] sm:$0xff]
        %v3877 = vld [vmem:[%s3853 + $0xb8] sm:$0xff]
        %v3878 = vld [vmem:[%s3853 + $0xc0] sm:$0xff]
        %v3879 = vld [vmem:[%s3853 + $0xc8] sm:$0xff]
        %v3880 = vld [vmem:[%s3853 + $0xd0] sm:$0xff]
        %v3881 = vld [vmem:[%s3853 + $0xd8] sm:$0xff]
        %v3882 = vld [vmem:[%s3853 + $0xe0] sm:$0xff]
        %v3883 = vld [vmem:[%s3853 + $0xe8] sm:$0xff]
        %v3884 = vld [vmem:[%s3853 + $0xf0] sm:$0xff]
        %v3885 = vld [vmem:[%s3853 + $0xf8] sm:$0xff]
        %v3918 = vunpack.c.l.b16 %v3854
        %v3919 = vunpack.c.h.b16 %v3854
        %v3920 = vunpack.c.l.b16 %v3855
        %v3921 = vunpack.c.h.b16 %v3855
        %v3922 = vunpack.c.l.b16 %v3856
        %v3923 = vunpack.c.h.b16 %v3856
        %v3924 = vunpack.c.l.b16 %v3857
        %v3925 = vunpack.c.h.b16 %v3857
        %v3926 = vunpack.c.l.b16 %v3858
        %v3927 = vunpack.c.h.b16 %v3858
        %v3928 = vunpack.c.l.b16 %v3859
        %v3929 = vunpack.c.h.b16 %v3859
        %v3930 = vunpack.c.l.b16 %v3860
        %v3931 = vunpack.c.h.b16 %v3860
        %v3932 = vunpack.c.l.b16 %v3861
        %v3933 = vunpack.c.h.b16 %v3861
        %v3934 = vunpack.c.l.b16 %v3862
        %v3935 = vunpack.c.h.b16 %v3862
        %v3936 = vunpack.c.l.b16 %v3863
        %v3937 = vunpack.c.h.b16 %v3863
        %v3938 = vunpack.c.l.b16 %v3864
        %v3939 = vunpack.c.h.b16 %v3864
        %v3940 = vunpack.c.l.b16 %v3865
        %v3941 = vunpack.c.h.b16 %v3865
        %v3942 = vunpack.c.l.b16 %v3866
        %v3943 = vunpack.c.h.b16 %v3866
        %v3944 = vunpack.c.l.b16 %v3867
        %v3945 = vunpack.c.h.b16 %v3867
        %v3946 = vunpack.c.l.b16 %v3868
        %v3947 = vunpack.c.h.b16 %v3868
        %v3948 = vunpack.c.l.b16 %v3869
        %v3949 = vunpack.c.h.b16 %v3869
        %v3950 = vunpack.c.l.b16 %v3870
        %v3951 = vunpack.c.h.b16 %v3870
        %v3952 = vunpack.c.l.b16 %v3871
        %v3953 = vunpack.c.h.b16 %v3871
        %v3954 = vunpack.c.l.b16 %v3872
        %v3955 = vunpack.c.h.b16 %v3872
        %v3956 = vunpack.c.l.b16 %v3873
        %v3957 = vunpack.c.h.b16 %v3873
        %v3958 = vunpack.c.l.b16 %v3874
        %v3959 = vunpack.c.h.b16 %v3874
        %v3960 = vunpack.c.l.b16 %v3875
        %v3961 = vunpack.c.h.b16 %v3875
        %v3962 = vunpack.c.l.b16 %v3876
        %v3963 = vunpack.c.h.b16 %v3876
        %v3964 = vunpack.c.l.b16 %v3877
        %v3965 = vunpack.c.h.b16 %v3877
        %v3966 = vunpack.c.l.b16 %v3878
        %v3967 = vunpack.c.h.b16 %v3878
        %v3968 = vunpack.c.l.b16 %v3879
        %v3969 = vunpack.c.h.b16 %v3879
        %v3970 = vunpack.c.l.b16 %v3880
        %v3971 = vunpack.c.h.b16 %v3880
        %v3972 = vunpack.c.l.b16 %v3881
        %v3973 = vunpack.c.h.b16 %v3881
        %v3974 = vunpack.c.l.b16 %v3882
        %v3975 = vunpack.c.h.b16 %v3882
        %v3976 = vunpack.c.l.b16 %v3883
        %v3977 = vunpack.c.h.b16 %v3883
        %v3978 = vunpack.c.l.b16 %v3884
        %v3979 = vunpack.c.h.b16 %v3884
        %v3980 = vunpack.c.l.b16 %v3885
        %v3981 = vunpack.c.h.b16 %v3885
        %v3982 = vpack.c.b16 %v3920, %v3918
        %v3983 = vpack.c.b16 %v3921, %v3919
        %v3984 = vpack.c.b16 %v3924, %v3922
        %v3985 = vpack.c.b16 %v3925, %v3923
        %v3986 = vpack.c.b16 %v3928, %v3926
        %v3987 = vpack.c.b16 %v3929, %v3927
        %v3988 = vpack.c.b16 %v3932, %v3930
        %v3989 = vpack.c.b16 %v3933, %v3931
        %v3990 = vpack.c.b16 %v3936, %v3934
        %v3991 = vpack.c.b16 %v3937, %v3935
        %v3992 = vpack.c.b16 %v3940, %v3938
        %v3993 = vpack.c.b16 %v3941, %v3939
        %v3994 = vpack.c.b16 %v3944, %v3942
        %v3995 = vpack.c.b16 %v3945, %v3943
        %v3996 = vpack.c.b16 %v3948, %v3946
        %v3997 = vpack.c.b16 %v3949, %v3947
        %v3998 = vpack.c.b16 %v3952, %v3950
        %v3999 = vpack.c.b16 %v3953, %v3951
        %v4000 = vpack.c.b16 %v3956, %v3954
        %v4001 = vpack.c.b16 %v3957, %v3955
        %v4002 = vpack.c.b16 %v3960, %v3958
        %v4003 = vpack.c.b16 %v3961, %v3959
        %v4004 = vpack.c.b16 %v3964, %v3962
        %v4005 = vpack.c.b16 %v3965, %v3963
        %v4006 = vpack.c.b16 %v3968, %v3966
        %v4007 = vpack.c.b16 %v3969, %v3967
        %v4008 = vpack.c.b16 %v3972, %v3970
        %v4009 = vpack.c.b16 %v3973, %v3971
        %v4010 = vpack.c.b16 %v3976, %v3974
        %v4011 = vpack.c.b16 %v3977, %v3975
        %v4012 = vpack.c.b16 %v3980, %v3978
        %v4013 = vpack.c.b16 %v3981, %v3979
        %4046 = vmatpush.bf16.msra.mxu0 %v3996
        %4047 = vmatpush.bf16.msra.mxu0 %v3994
        %4048 = vmatpush.bf16.msra.mxu0 %v3992
        %4049 = vmatpush.bf16.msra.mxu0 %v3990
        %4050 = vmatpush.bf16.msra.mxu0 %v3988
        %4051 = vmatpush.bf16.msra.mxu0 %v3986
        %4052 = vmatpush.bf16.msra.mxu0 %v3984
        %4053 = vmatpush.bf16.msra.mxu0 %v3982
        %4054 = vmatmul.bf16.gmra.mxu0 %v2997
        %v4055 = vpop.f32.mrf.mxu0
        %v4056 = vadd.f32 0.0, %v4055
        %v4057 = vpop.f32.mrf.mxu0
        %4058 = vdwg.mxu0
        %4059 = vmatpush.bf16.msra.mxu0 %v4012
        %4060 = vmatpush.bf16.msra.mxu0 %v4010
        %4061 = vmatpush.bf16.msra.mxu0 %v4008
        %4062 = vmatpush.bf16.msra.mxu0 %v4006
        %4063 = vmatpush.bf16.msra.mxu0 %v4004
        %4064 = vmatpush.bf16.msra.mxu0 %v4002
        %4065 = vmatpush.bf16.msra.mxu0 %v4000
        %4066 = vmatpush.bf16.msra.mxu0 %v3998
        %4067 = vmatmul.bf16.gmra.mxu0 %v2998
        %v4068 = vpop.f32.mrf.mxu0
        %v4069 = vadd.f32 %v4056, %v4068
        %v4070 = vpop.f32.mrf.mxu0
        %4071 = vdwg.mxu0
        %4072 = vmatpush.bf16.msra.mxu0 %v3997
        %4073 = vmatpush.bf16.msra.mxu0 %v3995
        %4074 = vmatpush.bf16.msra.mxu0 %v3993
        %4075 = vmatpush.bf16.msra.mxu0 %v3991
        %4076 = vmatpush.bf16.msra.mxu0 %v3989
        %4077 = vmatpush.bf16.msra.mxu0 %v3987
        %4078 = vmatpush.bf16.msra.mxu0 %v3985
        %4079 = vmatpush.bf16.msra.mxu0 %v3983
        %4080 = vmatmul.bf16.gmra.mxu0 %v2997
        %v4081 = vpop.f32.mrf.mxu0
        %v4082 = vadd.f32 0.0, %v4081
        %v4083 = vpop.f32.mrf.mxu0
        %4084 = vdwg.mxu0
        %4085 = vmatpush.bf16.msra.mxu0 %v4013
        %4086 = vmatpush.bf16.msra.mxu0 %v4011
        %4087 = vmatpush.bf16.msra.mxu0 %v4009
        %4088 = vmatpush.bf16.msra.mxu0 %v4007
        %4089 = vmatpush.bf16.msra.mxu0 %v4005
        %4090 = vmatpush.bf16.msra.mxu0 %v4003
        %4091 = vmatpush.bf16.msra.mxu0 %v4001
        %4092 = vmatpush.bf16.msra.mxu0 %v3999
        %4093 = vmatmul.bf16.gmra.mxu0 %v2998
        %v4094 = vpop.f32.mrf.mxu0
        %v4095 = vadd.f32 %v4082, %v4094
        %v4096 = vpop.f32.mrf.mxu0
        %4097 = vdwg.mxu0
        %v4098 = vpack.c.bf16 %v4069, %v4069
        %v4099 = vpack.c.bf16 %v4095, %v4095
        %s4100 = scalar_lea.vmem %s4, 12
        %v4101 = vld [vmem:[%s4100] sm:$0xf]
        %v4103 = vsel %vm3495, %v4101, 0
        %v4106 = vsel %vm3499, %v4098, 0
        %v4109 = vsel %vm3499, %v4099, 0
        %4111 = vmatpush.bf16.msra.mxu0 0
        %4112 = vmatpush.bf16.msra.mxu0 0
        %4113 = vmatpush.bf16.msra.mxu0 0
        %4114 = vmatpush.bf16.msra.mxu0 0
        %4115 = vmatpush.bf16.msra.mxu0 0
        %4116 = vmatpush.bf16.msra.mxu0 0
        %4117 = vmatpush.bf16.msra.mxu0 0
        %4118 = vmatpush.bf16.msra.mxu0 %v4106
        %4119 = vmatmul.bf16.gmra.mxu0 %v4103
        %v4120 = vpop.f32.mrf.mxu0
        %v4121 = vadd.f32 0.0, %v4120
        %v4122 = vpop.f32.mrf.mxu0
        %4123 = vdwg.mxu0
        %4124 = vmatpush.bf16.msra.mxu0 0
        %4125 = vmatpush.bf16.msra.mxu0 0
        %4126 = vmatpush.bf16.msra.mxu0 0
        %4127 = vmatpush.bf16.msra.mxu0 0
        %4128 = vmatpush.bf16.msra.mxu0 0
        %4129 = vmatpush.bf16.msra.mxu0 0
        %4130 = vmatpush.bf16.msra.mxu0 0
        %4131 = vmatpush.bf16.msra.mxu0 %v4109
        %4132 = vmatmul.bf16.gmra.mxu0 %v4103
        %v4133 = vpop.f32.mrf.mxu0
        %v4134 = vadd.f32 0.0, %v4133
        %v4135 = vpop.f32.mrf.mxu0
        %4136 = vdwg.mxu0
        %v4137 = vadd.f32 %v3851, %v4121
        %v4138 = vadd.f32 %v3852, %v4134
        %s4139 = scalar_lea.vmem [#allocation4], 1024
        %v4140 = vld [vmem:[%s4139] sm:$0xff]
        %v4141 = vld [vmem:[%s4139 + $0x8] sm:$0xff]
        %v4142 = vld [vmem:[%s4139 + $0x10] sm:$0xff]
        %v4143 = vld [vmem:[%s4139 + $0x18] sm:$0xff]
        %v4144 = vld [vmem:[%s4139 + $0x20] sm:$0xff]
        %v4145 = vld [vmem:[%s4139 + $0x28] sm:$0xff]
        %v4146 = vld [vmem:[%s4139 + $0x30] sm:$0xff]
        %v4147 = vld [vmem:[%s4139 + $0x38] sm:$0xff]
        %v4148 = vld [vmem:[%s4139 + $0x40] sm:$0xff]
        %v4149 = vld [vmem:[%s4139 + $0x48] sm:$0xff]
        %v4150 = vld [vmem:[%s4139 + $0x50] sm:$0xff]
        %v4151 = vld [vmem:[%s4139 + $0x58] sm:$0xff]
        %v4152 = vld [vmem:[%s4139 + $0x60] sm:$0xff]
        %v4153 = vld [vmem:[%s4139 + $0x68] sm:$0xff]
        %v4154 = vld [vmem:[%s4139 + $0x70] sm:$0xff]
        %v4155 = vld [vmem:[%s4139 + $0x78] sm:$0xff]
        %v4156 = vld [vmem:[%s4139 + $0x80] sm:$0xff]
        %v4157 = vld [vmem:[%s4139 + $0x88] sm:$0xff]
        %v4158 = vld [vmem:[%s4139 + $0x90] sm:$0xff]
        %v4159 = vld [vmem:[%s4139 + $0x98] sm:$0xff]
        %v4160 = vld [vmem:[%s4139 + $0xa0] sm:$0xff]
        %v4161 = vld [vmem:[%s4139 + $0xa8] sm:$0xff]
        %v4162 = vld [vmem:[%s4139 + $0xb0] sm:$0xff]
        %v4163 = vld [vmem:[%s4139 + $0xb8] sm:$0xff]
        %v4164 = vld [vmem:[%s4139 + $0xc0] sm:$0xff]
        %v4165 = vld [vmem:[%s4139 + $0xc8] sm:$0xff]
        %v4166 = vld [vmem:[%s4139 + $0xd0] sm:$0xff]
        %v4167 = vld [vmem:[%s4139 + $0xd8] sm:$0xff]
        %v4168 = vld [vmem:[%s4139 + $0xe0] sm:$0xff]
        %v4169 = vld [vmem:[%s4139 + $0xe8] sm:$0xff]
        %v4170 = vld [vmem:[%s4139 + $0xf0] sm:$0xff]
        %v4171 = vld [vmem:[%s4139 + $0xf8] sm:$0xff]
        %v4204 = vunpack.c.l.b16 %v4140
        %v4205 = vunpack.c.h.b16 %v4140
        %v4206 = vunpack.c.l.b16 %v4141
        %v4207 = vunpack.c.h.b16 %v4141
        %v4208 = vunpack.c.l.b16 %v4142
        %v4209 = vunpack.c.h.b16 %v4142
        %v4210 = vunpack.c.l.b16 %v4143
        %v4211 = vunpack.c.h.b16 %v4143
        %v4212 = vunpack.c.l.b16 %v4144
        %v4213 = vunpack.c.h.b16 %v4144
        %v4214 = vunpack.c.l.b16 %v4145
        %v4215 = vunpack.c.h.b16 %v4145
        %v4216 = vunpack.c.l.b16 %v4146
        %v4217 = vunpack.c.h.b16 %v4146
        %v4218 = vunpack.c.l.b16 %v4147
        %v4219 = vunpack.c.h.b16 %v4147
        %v4220 = vunpack.c.l.b16 %v4148
        %v4221 = vunpack.c.h.b16 %v4148
        %v4222 = vunpack.c.l.b16 %v4149
        %v4223 = vunpack.c.h.b16 %v4149
        %v4224 = vunpack.c.l.b16 %v4150
        %v4225 = vunpack.c.h.b16 %v4150
        %v4226 = vunpack.c.l.b16 %v4151
        %v4227 = vunpack.c.h.b16 %v4151
        %v4228 = vunpack.c.l.b16 %v4152
        %v4229 = vunpack.c.h.b16 %v4152
        %v4230 = vunpack.c.l.b16 %v4153
        %v4231 = vunpack.c.h.b16 %v4153
        %v4232 = vunpack.c.l.b16 %v4154
        %v4233 = vunpack.c.h.b16 %v4154
        %v4234 = vunpack.c.l.b16 %v4155
        %v4235 = vunpack.c.h.b16 %v4155
        %v4236 = vunpack.c.l.b16 %v4156
        %v4237 = vunpack.c.h.b16 %v4156
        %v4238 = vunpack.c.l.b16 %v4157
        %v4239 = vunpack.c.h.b16 %v4157
        %v4240 = vunpack.c.l.b16 %v4158
        %v4241 = vunpack.c.h.b16 %v4158
        %v4242 = vunpack.c.l.b16 %v4159
        %v4243 = vunpack.c.h.b16 %v4159
        %v4244 = vunpack.c.l.b16 %v4160
        %v4245 = vunpack.c.h.b16 %v4160
        %v4246 = vunpack.c.l.b16 %v4161
        %v4247 = vunpack.c.h.b16 %v4161
        %v4248 = vunpack.c.l.b16 %v4162
        %v4249 = vunpack.c.h.b16 %v4162
        %v4250 = vunpack.c.l.b16 %v4163
        %v4251 = vunpack.c.h.b16 %v4163
        %v4252 = vunpack.c.l.b16 %v4164
        %v4253 = vunpack.c.h.b16 %v4164
        %v4254 = vunpack.c.l.b16 %v4165
        %v4255 = vunpack.c.h.b16 %v4165
        %v4256 = vunpack.c.l.b16 %v4166
        %v4257 = vunpack.c.h.b16 %v4166
        %v4258 = vunpack.c.l.b16 %v4167
        %v4259 = vunpack.c.h.b16 %v4167
        %v4260 = vunpack.c.l.b16 %v4168
        %v4261 = vunpack.c.h.b16 %v4168
        %v4262 = vunpack.c.l.b16 %v4169
        %v4263 = vunpack.c.h.b16 %v4169
        %v4264 = vunpack.c.l.b16 %v4170
        %v4265 = vunpack.c.h.b16 %v4170
        %v4266 = vunpack.c.l.b16 %v4171
        %v4267 = vunpack.c.h.b16 %v4171
        %v4268 = vpack.c.b16 %v4206, %v4204
        %v4269 = vpack.c.b16 %v4207, %v4205
        %v4270 = vpack.c.b16 %v4210, %v4208
        %v4271 = vpack.c.b16 %v4211, %v4209
        %v4272 = vpack.c.b16 %v4214, %v4212
        %v4273 = vpack.c.b16 %v4215, %v4213
        %v4274 = vpack.c.b16 %v4218, %v4216
        %v4275 = vpack.c.b16 %v4219, %v4217
        %v4276 = vpack.c.b16 %v4222, %v4220
        %v4277 = vpack.c.b16 %v4223, %v4221
        %v4278 = vpack.c.b16 %v4226, %v4224
        %v4279 = vpack.c.b16 %v4227, %v4225
        %v4280 = vpack.c.b16 %v4230, %v4228
        %v4281 = vpack.c.b16 %v4231, %v4229
        %v4282 = vpack.c.b16 %v4234, %v4232
        %v4283 = vpack.c.b16 %v4235, %v4233
        %v4284 = vpack.c.b16 %v4238, %v4236
        %v4285 = vpack.c.b16 %v4239, %v4237
        %v4286 = vpack.c.b16 %v4242, %v4240
        %v4287 = vpack.c.b16 %v4243, %v4241
        %v4288 = vpack.c.b16 %v4246, %v4244
        %v4289 = vpack.c.b16 %v4247, %v4245
        %v4290 = vpack.c.b16 %v4250, %v4248
        %v4291 = vpack.c.b16 %v4251, %v4249
        %v4292 = vpack.c.b16 %v4254, %v4252
        %v4293 = vpack.c.b16 %v4255, %v4253
        %v4294 = vpack.c.b16 %v4258, %v4256
        %v4295 = vpack.c.b16 %v4259, %v4257
        %v4296 = vpack.c.b16 %v4262, %v4260
        %v4297 = vpack.c.b16 %v4263, %v4261
        %v4298 = vpack.c.b16 %v4266, %v4264
        %v4299 = vpack.c.b16 %v4267, %v4265
        %4332 = vmatpush.bf16.msra.mxu0 %v4282
        %4333 = vmatpush.bf16.msra.mxu0 %v4280
        %4334 = vmatpush.bf16.msra.mxu0 %v4278
        %4335 = vmatpush.bf16.msra.mxu0 %v4276
        %4336 = vmatpush.bf16.msra.mxu0 %v4274
        %4337 = vmatpush.bf16.msra.mxu0 %v4272
        %4338 = vmatpush.bf16.msra.mxu0 %v4270
        %4339 = vmatpush.bf16.msra.mxu0 %v4268
        %4340 = vmatmul.bf16.gmra.mxu0 %v2997
        %v4341 = vpop.f32.mrf.mxu0
        %v4342 = vadd.f32 0.0, %v4341
        %v4343 = vpop.f32.mrf.mxu0
        %4344 = vdwg.mxu0
        %4345 = vmatpush.bf16.msra.mxu0 %v4298
        %4346 = vmatpush.bf16.msra.mxu0 %v4296
        %4347 = vmatpush.bf16.msra.mxu0 %v4294
        %4348 = vmatpush.bf16.msra.mxu0 %v4292
        %4349 = vmatpush.bf16.msra.mxu0 %v4290
        %4350 = vmatpush.bf16.msra.mxu0 %v4288
        %4351 = vmatpush.bf16.msra.mxu0 %v4286
        %4352 = vmatpush.bf16.msra.mxu0 %v4284
        %4353 = vmatmul.bf16.gmra.mxu0 %v2998
        %v4354 = vpop.f32.mrf.mxu0
        %v4355 = vadd.f32 %v4342, %v4354
        %v4356 = vpop.f32.mrf.mxu0
        %4357 = vdwg.mxu0
        %4358 = vmatpush.bf16.msra.mxu0 %v4283
        %4359 = vmatpush.bf16.msra.mxu0 %v4281
        %4360 = vmatpush.bf16.msra.mxu0 %v4279
        %4361 = vmatpush.bf16.msra.mxu0 %v4277
        %4362 = vmatpush.bf16.msra.mxu0 %v4275
        %4363 = vmatpush.bf16.msra.mxu0 %v4273
        %4364 = vmatpush.bf16.msra.mxu0 %v4271
        %4365 = vmatpush.bf16.msra.mxu0 %v4269
        %4366 = vmatmul.bf16.gmra.mxu0 %v2997
        %v4367 = vpop.f32.mrf.mxu0
        %v4368 = vadd.f32 0.0, %v4367
        %v4369 = vpop.f32.mrf.mxu0
        %4370 = vdwg.mxu0
        %4371 = vmatpush.bf16.msra.mxu0 %v4299
        %4372 = vmatpush.bf16.msra.mxu0 %v4297
        %4373 = vmatpush.bf16.msra.mxu0 %v4295
        %4374 = vmatpush.bf16.msra.mxu0 %v4293
        %4375 = vmatpush.bf16.msra.mxu0 %v4291
        %4376 = vmatpush.bf16.msra.mxu0 %v4289
        %4377 = vmatpush.bf16.msra.mxu0 %v4287
        %4378 = vmatpush.bf16.msra.mxu0 %v4285
        %4379 = vmatmul.bf16.gmra.mxu0 %v2998
        %v4380 = vpop.f32.mrf.mxu0
        %v4381 = vadd.f32 %v4368, %v4380
        %v4382 = vpop.f32.mrf.mxu0
        %4383 = vdwg.mxu0
        %v4384 = vpack.c.bf16 %v4355, %v4355
        %v4385 = vpack.c.bf16 %v4381, %v4381
        %s4386 = scalar_lea.vmem %s4, 16
        %v4387 = vld [vmem:[%s4386] sm:$0xf]
        %v4389 = vsel %vm3495, %v4387, 0
        %v4392 = vsel %vm3499, %v4384, 0
        %v4395 = vsel %vm3499, %v4385, 0
        %4397 = vmatpush.bf16.msra.mxu0 0
        %4398 = vmatpush.bf16.msra.mxu0 0
        %4399 = vmatpush.bf16.msra.mxu0 0
        %4400 = vmatpush.bf16.msra.mxu0 0
        %4401 = vmatpush.bf16.msra.mxu0 0
        %4402 = vmatpush.bf16.msra.mxu0 0
        %4403 = vmatpush.bf16.msra.mxu0 0
        %4404 = vmatpush.bf16.msra.mxu0 %v4392
        %4405 = vmatmul.bf16.gmra.mxu0 %v4389
        %v4406 = vpop.f32.mrf.mxu0
        %v4407 = vadd.f32 0.0, %v4406
        %v4408 = vpop.f32.mrf.mxu0
        %4409 = vdwg.mxu0
        %4410 = vmatpush.bf16.msra.mxu0 0
        %4411 = vmatpush.bf16.msra.mxu0 0
        %4412 = vmatpush.bf16.msra.mxu0 0
        %4413 = vmatpush.bf16.msra.mxu0 0
        %4414 = vmatpush.bf16.msra.mxu0 0
        %4415 = vmatpush.bf16.msra.mxu0 0
        %4416 = vmatpush.bf16.msra.mxu0 0
        %4417 = vmatpush.bf16.msra.mxu0 %v4395
        %4418 = vmatmul.bf16.gmra.mxu0 %v4389
        %v4419 = vpop.f32.mrf.mxu0
        %v4420 = vadd.f32 0.0, %v4419
        %v4421 = vpop.f32.mrf.mxu0
        %4422 = vdwg.mxu0
        %v4423 = vadd.f32 %v4137, %v4407
        %v4424 = vadd.f32 %v4138, %v4420
        %s4425 = scalar_lea.vmem [#allocation4], 1280
        %v4426 = vld [vmem:[%s4425] sm:$0xff]
        %v4427 = vld [vmem:[%s4425 + $0x8] sm:$0xff]
        %v4428 = vld [vmem:[%s4425 + $0x10] sm:$0xff]
        %v4429 = vld [vmem:[%s4425 + $0x18] sm:$0xff]
        %v4430 = vld [vmem:[%s4425 + $0x20] sm:$0xff]
        %v4431 = vld [vmem:[%s4425 + $0x28] sm:$0xff]
        %v4432 = vld [vmem:[%s4425 + $0x30] sm:$0xff]
        %v4433 = vld [vmem:[%s4425 + $0x38] sm:$0xff]
        %v4434 = vld [vmem:[%s4425 + $0x40] sm:$0xff]
        %v4435 = vld [vmem:[%s4425 + $0x48] sm:$0xff]
        %v4436 = vld [vmem:[%s4425 + $0x50] sm:$0xff]
        %v4437 = vld [vmem:[%s4425 + $0x58] sm:$0xff]
        %v4438 = vld [vmem:[%s4425 + $0x60] sm:$0xff]
        %v4439 = vld [vmem:[%s4425 + $0x68] sm:$0xff]
        %v4440 = vld [vmem:[%s4425 + $0x70] sm:$0xff]
        %v4441 = vld [vmem:[%s4425 + $0x78] sm:$0xff]
        %v4442 = vld [vmem:[%s4425 + $0x80] sm:$0xff]
        %v4443 = vld [vmem:[%s4425 + $0x88] sm:$0xff]
        %v4444 = vld [vmem:[%s4425 + $0x90] sm:$0xff]
        %v4445 = vld [vmem:[%s4425 + $0x98] sm:$0xff]
        %v4446 = vld [vmem:[%s4425 + $0xa0] sm:$0xff]
        %v4447 = vld [vmem:[%s4425 + $0xa8] sm:$0xff]
        %v4448 = vld [vmem:[%s4425 + $0xb0] sm:$0xff]
        %v4449 = vld [vmem:[%s4425 + $0xb8] sm:$0xff]
        %v4450 = vld [vmem:[%s4425 + $0xc0] sm:$0xff]
        %v4451 = vld [vmem:[%s4425 + $0xc8] sm:$0xff]
        %v4452 = vld [vmem:[%s4425 + $0xd0] sm:$0xff]
        %v4453 = vld [vmem:[%s4425 + $0xd8] sm:$0xff]
        %v4454 = vld [vmem:[%s4425 + $0xe0] sm:$0xff]
        %v4455 = vld [vmem:[%s4425 + $0xe8] sm:$0xff]
        %v4456 = vld [vmem:[%s4425 + $0xf0] sm:$0xff]
        %v4457 = vld [vmem:[%s4425 + $0xf8] sm:$0xff]
        %v4490 = vunpack.c.l.b16 %v4426
        %v4491 = vunpack.c.h.b16 %v4426
        %v4492 = vunpack.c.l.b16 %v4427
        %v4493 = vunpack.c.h.b16 %v4427
        %v4494 = vunpack.c.l.b16 %v4428
        %v4495 = vunpack.c.h.b16 %v4428
        %v4496 = vunpack.c.l.b16 %v4429
        %v4497 = vunpack.c.h.b16 %v4429
        %v4498 = vunpack.c.l.b16 %v4430
        %v4499 = vunpack.c.h.b16 %v4430
        %v4500 = vunpack.c.l.b16 %v4431
        %v4501 = vunpack.c.h.b16 %v4431
        %v4502 = vunpack.c.l.b16 %v4432
        %v4503 = vunpack.c.h.b16 %v4432
        %v4504 = vunpack.c.l.b16 %v4433
        %v4505 = vunpack.c.h.b16 %v4433
        %v4506 = vunpack.c.l.b16 %v4434
        %v4507 = vunpack.c.h.b16 %v4434
        %v4508 = vunpack.c.l.b16 %v4435
        %v4509 = vunpack.c.h.b16 %v4435
        %v4510 = vunpack.c.l.b16 %v4436
        %v4511 = vunpack.c.h.b16 %v4436
        %v4512 = vunpack.c.l.b16 %v4437
        %v4513 = vunpack.c.h.b16 %v4437
        %v4514 = vunpack.c.l.b16 %v4438
        %v4515 = vunpack.c.h.b16 %v4438
        %v4516 = vunpack.c.l.b16 %v4439
        %v4517 = vunpack.c.h.b16 %v4439
        %v4518 = vunpack.c.l.b16 %v4440
        %v4519 = vunpack.c.h.b16 %v4440
        %v4520 = vunpack.c.l.b16 %v4441
        %v4521 = vunpack.c.h.b16 %v4441
        %v4522 = vunpack.c.l.b16 %v4442
        %v4523 = vunpack.c.h.b16 %v4442
        %v4524 = vunpack.c.l.b16 %v4443
        %v4525 = vunpack.c.h.b16 %v4443
        %v4526 = vunpack.c.l.b16 %v4444
        %v4527 = vunpack.c.h.b16 %v4444
        %v4528 = vunpack.c.l.b16 %v4445
        %v4529 = vunpack.c.h.b16 %v4445
        %v4530 = vunpack.c.l.b16 %v4446
        %v4531 = vunpack.c.h.b16 %v4446
        %v4532 = vunpack.c.l.b16 %v4447
        %v4533 = vunpack.c.h.b16 %v4447
        %v4534 = vunpack.c.l.b16 %v4448
        %v4535 = vunpack.c.h.b16 %v4448
        %v4536 = vunpack.c.l.b16 %v4449
        %v4537 = vunpack.c.h.b16 %v4449
        %v4538 = vunpack.c.l.b16 %v4450
        %v4539 = vunpack.c.h.b16 %v4450
        %v4540 = vunpack.c.l.b16 %v4451
        %v4541 = vunpack.c.h.b16 %v4451
        %v4542 = vunpack.c.l.b16 %v4452
        %v4543 = vunpack.c.h.b16 %v4452
        %v4544 = vunpack.c.l.b16 %v4453
        %v4545 = vunpack.c.h.b16 %v4453
        %v4546 = vunpack.c.l.b16 %v4454
        %v4547 = vunpack.c.h.b16 %v4454
        %v4548 = vunpack.c.l.b16 %v4455
        %v4549 = vunpack.c.h.b16 %v4455
        %v4550 = vunpack.c.l.b16 %v4456
        %v4551 = vunpack.c.h.b16 %v4456
        %v4552 = vunpack.c.l.b16 %v4457
        %v4553 = vunpack.c.h.b16 %v4457
        %v4554 = vpack.c.b16 %v4492, %v4490
        %v4555 = vpack.c.b16 %v4493, %v4491
        %v4556 = vpack.c.b16 %v4496, %v4494
        %v4557 = vpack.c.b16 %v4497, %v4495
        %v4558 = vpack.c.b16 %v4500, %v4498
        %v4559 = vpack.c.b16 %v4501, %v4499
        %v4560 = vpack.c.b16 %v4504, %v4502
        %v4561 = vpack.c.b16 %v4505, %v4503
        %v4562 = vpack.c.b16 %v4508, %v4506
        %v4563 = vpack.c.b16 %v4509, %v4507
        %v4564 = vpack.c.b16 %v4512, %v4510
        %v4565 = vpack.c.b16 %v4513, %v4511
        %v4566 = vpack.c.b16 %v4516, %v4514
        %v4567 = vpack.c.b16 %v4517, %v4515
        %v4568 = vpack.c.b16 %v4520, %v4518
        %v4569 = vpack.c.b16 %v4521, %v4519
        %v4570 = vpack.c.b16 %v4524, %v4522
        %v4571 = vpack.c.b16 %v4525, %v4523
        %v4572 = vpack.c.b16 %v4528, %v4526
        %v4573 = vpack.c.b16 %v4529, %v4527
        %v4574 = vpack.c.b16 %v4532, %v4530
        %v4575 = vpack.c.b16 %v4533, %v4531
        %v4576 = vpack.c.b16 %v4536, %v4534
        %v4577 = vpack.c.b16 %v4537, %v4535
        %v4578 = vpack.c.b16 %v4540, %v4538
        %v4579 = vpack.c.b16 %v4541, %v4539
        %v4580 = vpack.c.b16 %v4544, %v4542
        %v4581 = vpack.c.b16 %v4545, %v4543
        %v4582 = vpack.c.b16 %v4548, %v4546
        %v4583 = vpack.c.b16 %v4549, %v4547
        %v4584 = vpack.c.b16 %v4552, %v4550
        %v4585 = vpack.c.b16 %v4553, %v4551
        %4618 = vmatpush.bf16.msra.mxu0 %v4568
        %4619 = vmatpush.bf16.msra.mxu0 %v4566
        %4620 = vmatpush.bf16.msra.mxu0 %v4564
        %4621 = vmatpush.bf16.msra.mxu0 %v4562
        %4622 = vmatpush.bf16.msra.mxu0 %v4560
        %4623 = vmatpush.bf16.msra.mxu0 %v4558
        %4624 = vmatpush.bf16.msra.mxu0 %v4556
        %4625 = vmatpush.bf16.msra.mxu0 %v4554
        %4626 = vmatmul.bf16.gmra.mxu0 %v2997
        %v4627 = vpop.f32.mrf.mxu0
        %v4628 = vadd.f32 0.0, %v4627
        %v4629 = vpop.f32.mrf.mxu0
        %4630 = vdwg.mxu0
        %4631 = vmatpush.bf16.msra.mxu0 %v4584
        %4632 = vmatpush.bf16.msra.mxu0 %v4582
        %4633 = vmatpush.bf16.msra.mxu0 %v4580
        %4634 = vmatpush.bf16.msra.mxu0 %v4578
        %4635 = vmatpush.bf16.msra.mxu0 %v4576
        %4636 = vmatpush.bf16.msra.mxu0 %v4574
        %4637 = vmatpush.bf16.msra.mxu0 %v4572
        %4638 = vmatpush.bf16.msra.mxu0 %v4570
        %4639 = vmatmul.bf16.gmra.mxu0 %v2998
        %v4640 = vpop.f32.mrf.mxu0
        %v4641 = vadd.f32 %v4628, %v4640
        %v4642 = vpop.f32.mrf.mxu0
        %4643 = vdwg.mxu0
        %4644 = vmatpush.bf16.msra.mxu0 %v4569
        %4645 = vmatpush.bf16.msra.mxu0 %v4567
        %4646 = vmatpush.bf16.msra.mxu0 %v4565
        %4647 = vmatpush.bf16.msra.mxu0 %v4563
        %4648 = vmatpush.bf16.msra.mxu0 %v4561
        %4649 = vmatpush.bf16.msra.mxu0 %v4559
        %4650 = vmatpush.bf16.msra.mxu0 %v4557
        %4651 = vmatpush.bf16.msra.mxu0 %v4555
        %4652 = vmatmul.bf16.gmra.mxu0 %v2997
        %v4653 = vpop.f32.mrf.mxu0
        %v4654 = vadd.f32 0.0, %v4653
        %v4655 = vpop.f32.mrf.mxu0
        %4656 = vdwg.mxu0
        %4657 = vmatpush.bf16.msra.mxu0 %v4585
        %4658 = vmatpush.bf16.msra.mxu0 %v4583
        %4659 = vmatpush.bf16.msra.mxu0 %v4581
        %4660 = vmatpush.bf16.msra.mxu0 %v4579
        %4661 = vmatpush.bf16.msra.mxu0 %v4577
        %4662 = vmatpush.bf16.msra.mxu0 %v4575
        %4663 = vmatpush.bf16.msra.mxu0 %v4573
        %4664 = vmatpush.bf16.msra.mxu0 %v4571
        %4665 = vmatmul.bf16.gmra.mxu0 %v2998
        %v4666 = vpop.f32.mrf.mxu0
        %v4667 = vadd.f32 %v4654, %v4666
        %v4668 = vpop.f32.mrf.mxu0
        %4669 = vdwg.mxu0
        %v4670 = vpack.c.bf16 %v4641, %v4641
        %v4671 = vpack.c.bf16 %v4667, %v4667
        %s4672 = scalar_lea.vmem %s4, 20
        %v4673 = vld [vmem:[%s4672] sm:$0xf]
        %v4675 = vsel %vm3495, %v4673, 0
        %v4678 = vsel %vm3499, %v4670, 0
        %v4681 = vsel %vm3499, %v4671, 0
        %4683 = vmatpush.bf16.msra.mxu0 0
        %4684 = vmatpush.bf16.msra.mxu0 0
        %4685 = vmatpush.bf16.msra.mxu0 0
        %4686 = vmatpush.bf16.msra.mxu0 0
        %4687 = vmatpush.bf16.msra.mxu0 0
        %4688 = vmatpush.bf16.msra.mxu0 0
        %4689 = vmatpush.bf16.msra.mxu0 0
        %4690 = vmatpush.bf16.msra.mxu0 %v4678
        %4691 = vmatmul.bf16.gmra.mxu0 %v4675
        %v4692 = vpop.f32.mrf.mxu0
        %v4693 = vadd.f32 0.0, %v4692
        %v4694 = vpop.f32.mrf.mxu0
        %4695 = vdwg.mxu0
        %4696 = vmatpush.bf16.msra.mxu0 0
        %4697 = vmatpush.bf16.msra.mxu0 0
        %4698 = vmatpush.bf16.msra.mxu0 0
        %4699 = vmatpush.bf16.msra.mxu0 0
        %4700 = vmatpush.bf16.msra.mxu0 0
        %4701 = vmatpush.bf16.msra.mxu0 0
        %4702 = vmatpush.bf16.msra.mxu0 0
        %4703 = vmatpush.bf16.msra.mxu0 %v4681
        %4704 = vmatmul.bf16.gmra.mxu0 %v4675
        %v4705 = vpop.f32.mrf.mxu0
        %v4706 = vadd.f32 0.0, %v4705
        %v4707 = vpop.f32.mrf.mxu0
        %4708 = vdwg.mxu0
        %v4709 = vadd.f32 %v4423, %v4693
        %v4710 = vadd.f32 %v4424, %v4706
        %s4711 = scalar_lea.vmem [#allocation4], 1536
        %v4712 = vld [vmem:[%s4711] sm:$0xff]
        %v4713 = vld [vmem:[%s4711 + $0x8] sm:$0xff]
        %v4714 = vld [vmem:[%s4711 + $0x10] sm:$0xff]
        %v4715 = vld [vmem:[%s4711 + $0x18] sm:$0xff]
        %v4716 = vld [vmem:[%s4711 + $0x20] sm:$0xff]
        %v4717 = vld [vmem:[%s4711 + $0x28] sm:$0xff]
        %v4718 = vld [vmem:[%s4711 + $0x30] sm:$0xff]
        %v4719 = vld [vmem:[%s4711 + $0x38] sm:$0xff]
        %v4720 = vld [vmem:[%s4711 + $0x40] sm:$0xff]
        %v4721 = vld [vmem:[%s4711 + $0x48] sm:$0xff]
        %v4722 = vld [vmem:[%s4711 + $0x50] sm:$0xff]
        %v4723 = vld [vmem:[%s4711 + $0x58] sm:$0xff]
        %v4724 = vld [vmem:[%s4711 + $0x60] sm:$0xff]
        %v4725 = vld [vmem:[%s4711 + $0x68] sm:$0xff]
        %v4726 = vld [vmem:[%s4711 + $0x70] sm:$0xff]
        %v4727 = vld [vmem:[%s4711 + $0x78] sm:$0xff]
        %v4728 = vld [vmem:[%s4711 + $0x80] sm:$0xff]
        %v4729 = vld [vmem:[%s4711 + $0x88] sm:$0xff]
        %v4730 = vld [vmem:[%s4711 + $0x90] sm:$0xff]
        %v4731 = vld [vmem:[%s4711 + $0x98] sm:$0xff]
        %v4732 = vld [vmem:[%s4711 + $0xa0] sm:$0xff]
        %v4733 = vld [vmem:[%s4711 + $0xa8] sm:$0xff]
        %v4734 = vld [vmem:[%s4711 + $0xb0] sm:$0xff]
        %v4735 = vld [vmem:[%s4711 + $0xb8] sm:$0xff]
        %v4736 = vld [vmem:[%s4711 + $0xc0] sm:$0xff]
        %v4737 = vld [vmem:[%s4711 + $0xc8] sm:$0xff]
        %v4738 = vld [vmem:[%s4711 + $0xd0] sm:$0xff]
        %v4739 = vld [vmem:[%s4711 + $0xd8] sm:$0xff]
        %v4740 = vld [vmem:[%s4711 + $0xe0] sm:$0xff]
        %v4741 = vld [vmem:[%s4711 + $0xe8] sm:$0xff]
        %v4742 = vld [vmem:[%s4711 + $0xf0] sm:$0xff]
        %v4743 = vld [vmem:[%s4711 + $0xf8] sm:$0xff]
        %v4776 = vunpack.c.l.b16 %v4712
        %v4777 = vunpack.c.h.b16 %v4712
        %v4778 = vunpack.c.l.b16 %v4713
        %v4779 = vunpack.c.h.b16 %v4713
        %v4780 = vunpack.c.l.b16 %v4714
        %v4781 = vunpack.c.h.b16 %v4714
        %v4782 = vunpack.c.l.b16 %v4715
        %v4783 = vunpack.c.h.b16 %v4715
        %v4784 = vunpack.c.l.b16 %v4716
        %v4785 = vunpack.c.h.b16 %v4716
        %v4786 = vunpack.c.l.b16 %v4717
        %v4787 = vunpack.c.h.b16 %v4717
        %v4788 = vunpack.c.l.b16 %v4718
        %v4789 = vunpack.c.h.b16 %v4718
        %v4790 = vunpack.c.l.b16 %v4719
        %v4791 = vunpack.c.h.b16 %v4719
        %v4792 = vunpack.c.l.b16 %v4720
        %v4793 = vunpack.c.h.b16 %v4720
        %v4794 = vunpack.c.l.b16 %v4721
        %v4795 = vunpack.c.h.b16 %v4721
        %v4796 = vunpack.c.l.b16 %v4722
        %v4797 = vunpack.c.h.b16 %v4722
        %v4798 = vunpack.c.l.b16 %v4723
        %v4799 = vunpack.c.h.b16 %v4723
        %v4800 = vunpack.c.l.b16 %v4724
        %v4801 = vunpack.c.h.b16 %v4724
        %v4802 = vunpack.c.l.b16 %v4725
        %v4803 = vunpack.c.h.b16 %v4725
        %v4804 = vunpack.c.l.b16 %v4726
        %v4805 = vunpack.c.h.b16 %v4726
        %v4806 = vunpack.c.l.b16 %v4727
        %v4807 = vunpack.c.h.b16 %v4727
        %v4808 = vunpack.c.l.b16 %v4728
        %v4809 = vunpack.c.h.b16 %v4728
        %v4810 = vunpack.c.l.b16 %v4729
        %v4811 = vunpack.c.h.b16 %v4729
        %v4812 = vunpack.c.l.b16 %v4730
        %v4813 = vunpack.c.h.b16 %v4730
        %v4814 = vunpack.c.l.b16 %v4731
        %v4815 = vunpack.c.h.b16 %v4731
        %v4816 = vunpack.c.l.b16 %v4732
        %v4817 = vunpack.c.h.b16 %v4732
        %v4818 = vunpack.c.l.b16 %v4733
        %v4819 = vunpack.c.h.b16 %v4733
        %v4820 = vunpack.c.l.b16 %v4734
        %v4821 = vunpack.c.h.b16 %v4734
        %v4822 = vunpack.c.l.b16 %v4735
        %v4823 = vunpack.c.h.b16 %v4735
        %v4824 = vunpack.c.l.b16 %v4736
        %v4825 = vunpack.c.h.b16 %v4736
        %v4826 = vunpack.c.l.b16 %v4737
        %v4827 = vunpack.c.h.b16 %v4737
        %v4828 = vunpack.c.l.b16 %v4738
        %v4829 = vunpack.c.h.b16 %v4738
        %v4830 = vunpack.c.l.b16 %v4739
        %v4831 = vunpack.c.h.b16 %v4739
        %v4832 = vunpack.c.l.b16 %v4740
        %v4833 = vunpack.c.h.b16 %v4740
        %v4834 = vunpack.c.l.b16 %v4741
        %v4835 = vunpack.c.h.b16 %v4741
        %v4836 = vunpack.c.l.b16 %v4742
        %v4837 = vunpack.c.h.b16 %v4742
        %v4838 = vunpack.c.l.b16 %v4743
        %v4839 = vunpack.c.h.b16 %v4743
        %v4840 = vpack.c.b16 %v4778, %v4776
        %v4841 = vpack.c.b16 %v4779, %v4777
        %v4842 = vpack.c.b16 %v4782, %v4780
        %v4843 = vpack.c.b16 %v4783, %v4781
        %v4844 = vpack.c.b16 %v4786, %v4784
        %v4845 = vpack.c.b16 %v4787, %v4785
        %v4846 = vpack.c.b16 %v4790, %v4788
        %v4847 = vpack.c.b16 %v4791, %v4789
        %v4848 = vpack.c.b16 %v4794, %v4792
        %v4849 = vpack.c.b16 %v4795, %v4793
        %v4850 = vpack.c.b16 %v4798, %v4796
        %v4851 = vpack.c.b16 %v4799, %v4797
        %v4852 = vpack.c.b16 %v4802, %v4800
        %v4853 = vpack.c.b16 %v4803, %v4801
        %v4854 = vpack.c.b16 %v4806, %v4804
        %v4855 = vpack.c.b16 %v4807, %v4805
        %v4856 = vpack.c.b16 %v4810, %v4808
        %v4857 = vpack.c.b16 %v4811, %v4809
        %v4858 = vpack.c.b16 %v4814, %v4812
        %v4859 = vpack.c.b16 %v4815, %v4813
        %v4860 = vpack.c.b16 %v4818, %v4816
        %v4861 = vpack.c.b16 %v4819, %v4817
        %v4862 = vpack.c.b16 %v4822, %v4820
        %v4863 = vpack.c.b16 %v4823, %v4821
        %v4864 = vpack.c.b16 %v4826, %v4824
        %v4865 = vpack.c.b16 %v4827, %v4825
        %v4866 = vpack.c.b16 %v4830, %v4828
        %v4867 = vpack.c.b16 %v4831, %v4829
        %v4868 = vpack.c.b16 %v4834, %v4832
        %v4869 = vpack.c.b16 %v4835, %v4833
        %v4870 = vpack.c.b16 %v4838, %v4836
        %v4871 = vpack.c.b16 %v4839, %v4837
        %4904 = vmatpush.bf16.msra.mxu0 %v4854
        %4905 = vmatpush.bf16.msra.mxu0 %v4852
        %4906 = vmatpush.bf16.msra.mxu0 %v4850
        %4907 = vmatpush.bf16.msra.mxu0 %v4848
        %4908 = vmatpush.bf16.msra.mxu0 %v4846
        %4909 = vmatpush.bf16.msra.mxu0 %v4844
        %4910 = vmatpush.bf16.msra.mxu0 %v4842
        %4911 = vmatpush.bf16.msra.mxu0 %v4840
        %4912 = vmatmul.bf16.gmra.mxu0 %v2997
        %v4913 = vpop.f32.mrf.mxu0
        %v4914 = vadd.f32 0.0, %v4913
        %v4915 = vpop.f32.mrf.mxu0
        %4916 = vdwg.mxu0
        %4917 = vmatpush.bf16.msra.mxu0 %v4870
        %4918 = vmatpush.bf16.msra.mxu0 %v4868
        %4919 = vmatpush.bf16.msra.mxu0 %v4866
        %4920 = vmatpush.bf16.msra.mxu0 %v4864
        %4921 = vmatpush.bf16.msra.mxu0 %v4862
        %4922 = vmatpush.bf16.msra.mxu0 %v4860
        %4923 = vmatpush.bf16.msra.mxu0 %v4858
        %4924 = vmatpush.bf16.msra.mxu0 %v4856
        %4925 = vmatmul.bf16.gmra.mxu0 %v2998
        %v4926 = vpop.f32.mrf.mxu0
        %v4927 = vadd.f32 %v4914, %v4926
        %v4928 = vpop.f32.mrf.mxu0
        %4929 = vdwg.mxu0
        %4930 = vmatpush.bf16.msra.mxu0 %v4855
        %4931 = vmatpush.bf16.msra.mxu0 %v4853
        %4932 = vmatpush.bf16.msra.mxu0 %v4851
        %4933 = vmatpush.bf16.msra.mxu0 %v4849
        %4934 = vmatpush.bf16.msra.mxu0 %v4847
        %4935 = vmatpush.bf16.msra.mxu0 %v4845
        %4936 = vmatpush.bf16.msra.mxu0 %v4843
        %4937 = vmatpush.bf16.msra.mxu0 %v4841
        %4938 = vmatmul.bf16.gmra.mxu0 %v2997
        %v4939 = vpop.f32.mrf.mxu0
        %v4940 = vadd.f32 0.0, %v4939
        %v4941 = vpop.f32.mrf.mxu0
        %4942 = vdwg.mxu0
        %4943 = vmatpush.bf16.msra.mxu0 %v4871
        %4944 = vmatpush.bf16.msra.mxu0 %v4869
        %4945 = vmatpush.bf16.msra.mxu0 %v4867
        %4946 = vmatpush.bf16.msra.mxu0 %v4865
        %4947 = vmatpush.bf16.msra.mxu0 %v4863
        %4948 = vmatpush.bf16.msra.mxu0 %v4861
        %4949 = vmatpush.bf16.msra.mxu0 %v4859
        %4950 = vmatpush.bf16.msra.mxu0 %v4857
        %4951 = vmatmul.bf16.gmra.mxu0 %v2998
        %v4952 = vpop.f32.mrf.mxu0
        %v4953 = vadd.f32 %v4940, %v4952
        %v4954 = vpop.f32.mrf.mxu0
        %4955 = vdwg.mxu0
        %v4956 = vpack.c.bf16 %v4927, %v4927
        %v4957 = vpack.c.bf16 %v4953, %v4953
        %s4958 = scalar_lea.vmem %s4, 24
        %v4959 = vld [vmem:[%s4958] sm:$0xf]
        %v4961 = vsel %vm3495, %v4959, 0
        %v4964 = vsel %vm3499, %v4956, 0
        %v4967 = vsel %vm3499, %v4957, 0
        %4969 = vmatpush.bf16.msra.mxu0 0
        %4970 = vmatpush.bf16.msra.mxu0 0
        %4971 = vmatpush.bf16.msra.mxu0 0
        %4972 = vmatpush.bf16.msra.mxu0 0
        %4973 = vmatpush.bf16.msra.mxu0 0
        %4974 = vmatpush.bf16.msra.mxu0 0
        %4975 = vmatpush.bf16.msra.mxu0 0
        %4976 = vmatpush.bf16.msra.mxu0 %v4964
        %4977 = vmatmul.bf16.gmra.mxu0 %v4961
        %v4978 = vpop.f32.mrf.mxu0
        %v4979 = vadd.f32 0.0, %v4978
        %v4980 = vpop.f32.mrf.mxu0
        %4981 = vdwg.mxu0
        %4982 = vmatpush.bf16.msra.mxu0 0
        %4983 = vmatpush.bf16.msra.mxu0 0
        %4984 = vmatpush.bf16.msra.mxu0 0
        %4985 = vmatpush.bf16.msra.mxu0 0
        %4986 = vmatpush.bf16.msra.mxu0 0
        %4987 = vmatpush.bf16.msra.mxu0 0
        %4988 = vmatpush.bf16.msra.mxu0 0
        %4989 = vmatpush.bf16.msra.mxu0 %v4967
        %4990 = vmatmul.bf16.gmra.mxu0 %v4961
        %v4991 = vpop.f32.mrf.mxu0
        %v4992 = vadd.f32 0.0, %v4991
        %v4993 = vpop.f32.mrf.mxu0
        %4994 = vdwg.mxu0
        %v4995 = vadd.f32 %v4709, %v4979
        %v4996 = vadd.f32 %v4710, %v4992
        %s4997 = scalar_lea.vmem [#allocation4], 1792
        %v4998 = vld [vmem:[%s4997] sm:$0xff]
        %v4999 = vld [vmem:[%s4997 + $0x8] sm:$0xff]
        %v5000 = vld [vmem:[%s4997 + $0x10] sm:$0xff]
        %v5001 = vld [vmem:[%s4997 + $0x18] sm:$0xff]
        %v5002 = vld [vmem:[%s4997 + $0x20] sm:$0xff]
        %v5003 = vld [vmem:[%s4997 + $0x28] sm:$0xff]
        %v5004 = vld [vmem:[%s4997 + $0x30] sm:$0xff]
        %v5005 = vld [vmem:[%s4997 + $0x38] sm:$0xff]
        %v5006 = vld [vmem:[%s4997 + $0x40] sm:$0xff]
        %v5007 = vld [vmem:[%s4997 + $0x48] sm:$0xff]
        %v5008 = vld [vmem:[%s4997 + $0x50] sm:$0xff]
        %v5009 = vld [vmem:[%s4997 + $0x58] sm:$0xff]
        %v5010 = vld [vmem:[%s4997 + $0x60] sm:$0xff]
        %v5011 = vld [vmem:[%s4997 + $0x68] sm:$0xff]
        %v5012 = vld [vmem:[%s4997 + $0x70] sm:$0xff]
        %v5013 = vld [vmem:[%s4997 + $0x78] sm:$0xff]
        %v5014 = vld [vmem:[%s4997 + $0x80] sm:$0xff]
        %v5015 = vld [vmem:[%s4997 + $0x88] sm:$0xff]
        %v5016 = vld [vmem:[%s4997 + $0x90] sm:$0xff]
        %v5017 = vld [vmem:[%s4997 + $0x98] sm:$0xff]
        %v5018 = vld [vmem:[%s4997 + $0xa0] sm:$0xff]
        %v5019 = vld [vmem:[%s4997 + $0xa8] sm:$0xff]
        %v5020 = vld [vmem:[%s4997 + $0xb0] sm:$0xff]
        %v5021 = vld [vmem:[%s4997 + $0xb8] sm:$0xff]
        %v5022 = vld [vmem:[%s4997 + $0xc0] sm:$0xff]
        %v5023 = vld [vmem:[%s4997 + $0xc8] sm:$0xff]
        %v5024 = vld [vmem:[%s4997 + $0xd0] sm:$0xff]
        %v5025 = vld [vmem:[%s4997 + $0xd8] sm:$0xff]
        %v5026 = vld [vmem:[%s4997 + $0xe0] sm:$0xff]
        %v5027 = vld [vmem:[%s4997 + $0xe8] sm:$0xff]
        %v5028 = vld [vmem:[%s4997 + $0xf0] sm:$0xff]
        %v5029 = vld [vmem:[%s4997 + $0xf8] sm:$0xff]
        %v5062 = vunpack.c.l.b16 %v4998
        %v5063 = vunpack.c.h.b16 %v4998
        %v5064 = vunpack.c.l.b16 %v4999
        %v5065 = vunpack.c.h.b16 %v4999
        %v5066 = vunpack.c.l.b16 %v5000
        %v5067 = vunpack.c.h.b16 %v5000
        %v5068 = vunpack.c.l.b16 %v5001
        %v5069 = vunpack.c.h.b16 %v5001
        %v5070 = vunpack.c.l.b16 %v5002
        %v5071 = vunpack.c.h.b16 %v5002
        %v5072 = vunpack.c.l.b16 %v5003
        %v5073 = vunpack.c.h.b16 %v5003
        %v5074 = vunpack.c.l.b16 %v5004
        %v5075 = vunpack.c.h.b16 %v5004
        %v5076 = vunpack.c.l.b16 %v5005
        %v5077 = vunpack.c.h.b16 %v5005
        %v5078 = vunpack.c.l.b16 %v5006
        %v5079 = vunpack.c.h.b16 %v5006
        %v5080 = vunpack.c.l.b16 %v5007
        %v5081 = vunpack.c.h.b16 %v5007
        %v5082 = vunpack.c.l.b16 %v5008
        %v5083 = vunpack.c.h.b16 %v5008
        %v5084 = vunpack.c.l.b16 %v5009
        %v5085 = vunpack.c.h.b16 %v5009
        %v5086 = vunpack.c.l.b16 %v5010
        %v5087 = vunpack.c.h.b16 %v5010
        %v5088 = vunpack.c.l.b16 %v5011
        %v5089 = vunpack.c.h.b16 %v5011
        %v5090 = vunpack.c.l.b16 %v5012
        %v5091 = vunpack.c.h.b16 %v5012
        %v5092 = vunpack.c.l.b16 %v5013
        %v5093 = vunpack.c.h.b16 %v5013
        %v5094 = vunpack.c.l.b16 %v5014
        %v5095 = vunpack.c.h.b16 %v5014
        %v5096 = vunpack.c.l.b16 %v5015
        %v5097 = vunpack.c.h.b16 %v5015
        %v5098 = vunpack.c.l.b16 %v5016
        %v5099 = vunpack.c.h.b16 %v5016
        %v5100 = vunpack.c.l.b16 %v5017
        %v5101 = vunpack.c.h.b16 %v5017
        %v5102 = vunpack.c.l.b16 %v5018
        %v5103 = vunpack.c.h.b16 %v5018
        %v5104 = vunpack.c.l.b16 %v5019
        %v5105 = vunpack.c.h.b16 %v5019
        %v5106 = vunpack.c.l.b16 %v5020
        %v5107 = vunpack.c.h.b16 %v5020
        %v5108 = vunpack.c.l.b16 %v5021
        %v5109 = vunpack.c.h.b16 %v5021
        %v5110 = vunpack.c.l.b16 %v5022
        %v5111 = vunpack.c.h.b16 %v5022
        %v5112 = vunpack.c.l.b16 %v5023
        %v5113 = vunpack.c.h.b16 %v5023
        %v5114 = vunpack.c.l.b16 %v5024
        %v5115 = vunpack.c.h.b16 %v5024
        %v5116 = vunpack.c.l.b16 %v5025
        %v5117 = vunpack.c.h.b16 %v5025
        %v5118 = vunpack.c.l.b16 %v5026
        %v5119 = vunpack.c.h.b16 %v5026
        %v5120 = vunpack.c.l.b16 %v5027
        %v5121 = vunpack.c.h.b16 %v5027
        %v5122 = vunpack.c.l.b16 %v5028
        %v5123 = vunpack.c.h.b16 %v5028
        %v5124 = vunpack.c.l.b16 %v5029
        %v5125 = vunpack.c.h.b16 %v5029
        %v5126 = vpack.c.b16 %v5064, %v5062
        %v5127 = vpack.c.b16 %v5065, %v5063
        %v5128 = vpack.c.b16 %v5068, %v5066
        %v5129 = vpack.c.b16 %v5069, %v5067
        %v5130 = vpack.c.b16 %v5072, %v5070
        %v5131 = vpack.c.b16 %v5073, %v5071
        %v5132 = vpack.c.b16 %v5076, %v5074
        %v5133 = vpack.c.b16 %v5077, %v5075
        %v5134 = vpack.c.b16 %v5080, %v5078
        %v5135 = vpack.c.b16 %v5081, %v5079
        %v5136 = vpack.c.b16 %v5084, %v5082
        %v5137 = vpack.c.b16 %v5085, %v5083
        %v5138 = vpack.c.b16 %v5088, %v5086
        %v5139 = vpack.c.b16 %v5089, %v5087
        %v5140 = vpack.c.b16 %v5092, %v5090
        %v5141 = vpack.c.b16 %v5093, %v5091
        %v5142 = vpack.c.b16 %v5096, %v5094
        %v5143 = vpack.c.b16 %v5097, %v5095
        %v5144 = vpack.c.b16 %v5100, %v5098
        %v5145 = vpack.c.b16 %v5101, %v5099
        %v5146 = vpack.c.b16 %v5104, %v5102
        %v5147 = vpack.c.b16 %v5105, %v5103
        %v5148 = vpack.c.b16 %v5108, %v5106
        %v5149 = vpack.c.b16 %v5109, %v5107
        %v5150 = vpack.c.b16 %v5112, %v5110
        %v5151 = vpack.c.b16 %v5113, %v5111
        %v5152 = vpack.c.b16 %v5116, %v5114
        %v5153 = vpack.c.b16 %v5117, %v5115
        %v5154 = vpack.c.b16 %v5120, %v5118
        %v5155 = vpack.c.b16 %v5121, %v5119
        %v5156 = vpack.c.b16 %v5124, %v5122
        %v5157 = vpack.c.b16 %v5125, %v5123
        %5190 = vmatpush.bf16.msra.mxu0 %v5140
        %5191 = vmatpush.bf16.msra.mxu0 %v5138
        %5192 = vmatpush.bf16.msra.mxu0 %v5136
        %5193 = vmatpush.bf16.msra.mxu0 %v5134
        %5194 = vmatpush.bf16.msra.mxu0 %v5132
        %5195 = vmatpush.bf16.msra.mxu0 %v5130
        %5196 = vmatpush.bf16.msra.mxu0 %v5128
        %5197 = vmatpush.bf16.msra.mxu0 %v5126
        %5198 = vmatmul.bf16.gmra.mxu0 %v2997
        %v5199 = vpop.f32.mrf.mxu0
        %v5200 = vadd.f32 0.0, %v5199
        %v5201 = vpop.f32.mrf.mxu0
        %5202 = vdwg.mxu0
        %5203 = vmatpush.bf16.msra.mxu0 %v5156
        %5204 = vmatpush.bf16.msra.mxu0 %v5154
        %5205 = vmatpush.bf16.msra.mxu0 %v5152
        %5206 = vmatpush.bf16.msra.mxu0 %v5150
        %5207 = vmatpush.bf16.msra.mxu0 %v5148
        %5208 = vmatpush.bf16.msra.mxu0 %v5146
        %5209 = vmatpush.bf16.msra.mxu0 %v5144
        %5210 = vmatpush.bf16.msra.mxu0 %v5142
        %5211 = vmatmul.bf16.gmra.mxu0 %v2998
        %v5212 = vpop.f32.mrf.mxu0
        %v5213 = vadd.f32 %v5200, %v5212
        %v5214 = vpop.f32.mrf.mxu0
        %5215 = vdwg.mxu0
        %5216 = vmatpush.bf16.msra.mxu0 %v5141
        %5217 = vmatpush.bf16.msra.mxu0 %v5139
        %5218 = vmatpush.bf16.msra.mxu0 %v5137
        %5219 = vmatpush.bf16.msra.mxu0 %v5135
        %5220 = vmatpush.bf16.msra.mxu0 %v5133
        %5221 = vmatpush.bf16.msra.mxu0 %v5131
        %5222 = vmatpush.bf16.msra.mxu0 %v5129
        %5223 = vmatpush.bf16.msra.mxu0 %v5127
        %5224 = vmatmul.bf16.gmra.mxu0 %v2997
        %v5225 = vpop.f32.mrf.mxu0
        %v5226 = vadd.f32 0.0, %v5225
        %v5227 = vpop.f32.mrf.mxu0
        %5228 = vdwg.mxu0
        %5229 = vmatpush.bf16.msra.mxu0 %v5157
        %5230 = vmatpush.bf16.msra.mxu0 %v5155
        %5231 = vmatpush.bf16.msra.mxu0 %v5153
        %5232 = vmatpush.bf16.msra.mxu0 %v5151
        %5233 = vmatpush.bf16.msra.mxu0 %v5149
        %5234 = vmatpush.bf16.msra.mxu0 %v5147
        %5235 = vmatpush.bf16.msra.mxu0 %v5145
        %5236 = vmatpush.bf16.msra.mxu0 %v5143
        %5237 = vmatmul.bf16.gmra.mxu0 %v2998
        %v5238 = vpop.f32.mrf.mxu0
        %v5239 = vadd.f32 %v5226, %v5238
        %v5240 = vpop.f32.mrf.mxu0
        %5241 = vdwg.mxu0
        %v5242 = vpack.c.bf16 %v5213, %v5213
        %v5243 = vpack.c.bf16 %v5239, %v5239
        %s5244 = scalar_lea.vmem %s4, 28
        %v5245 = vld [vmem:[%s5244] sm:$0xf]
        %v5247 = vsel %vm3495, %v5245, 0
        %v5250 = vsel %vm3499, %v5242, 0
        %v5253 = vsel %vm3499, %v5243, 0
        %5255 = vmatpush.bf16.msra.mxu0 0
        %5256 = vmatpush.bf16.msra.mxu0 0
        %5257 = vmatpush.bf16.msra.mxu0 0
        %5258 = vmatpush.bf16.msra.mxu0 0
        %5259 = vmatpush.bf16.msra.mxu0 0
        %5260 = vmatpush.bf16.msra.mxu0 0
        %5261 = vmatpush.bf16.msra.mxu0 0
        %5262 = vmatpush.bf16.msra.mxu0 %v5250
        %5263 = vmatmul.bf16.gmra.mxu0 %v5247
        %v5264 = vpop.f32.mrf.mxu0
        %v5265 = vadd.f32 0.0, %v5264
        %v5266 = vpop.f32.mrf.mxu0
        %5267 = vdwg.mxu0
        %5268 = vmatpush.bf16.msra.mxu0 0
        %5269 = vmatpush.bf16.msra.mxu0 0
        %5270 = vmatpush.bf16.msra.mxu0 0
        %5271 = vmatpush.bf16.msra.mxu0 0
        %5272 = vmatpush.bf16.msra.mxu0 0
        %5273 = vmatpush.bf16.msra.mxu0 0
        %5274 = vmatpush.bf16.msra.mxu0 0
        %5275 = vmatpush.bf16.msra.mxu0 %v5253
        %5276 = vmatmul.bf16.gmra.mxu0 %v5247
        %v5277 = vpop.f32.mrf.mxu0
        %v5278 = vadd.f32 0.0, %v5277
        %v5279 = vpop.f32.mrf.mxu0
        %5280 = vdwg.mxu0
        %v5281 = vadd.f32 %v4995, %v5265
        %v5282 = vadd.f32 %v4996, %v5278
        %s5283 = scalar_lea.vmem [#allocation4], 2048
        %v5284 = vld [vmem:[%s5283] sm:$0xff]
        %v5285 = vld [vmem:[%s5283 + $0x8] sm:$0xff]
        %v5286 = vld [vmem:[%s5283 + $0x10] sm:$0xff]
        %v5287 = vld [vmem:[%s5283 + $0x18] sm:$0xff]
        %v5288 = vld [vmem:[%s5283 + $0x20] sm:$0xff]
        %v5289 = vld [vmem:[%s5283 + $0x28] sm:$0xff]
        %v5290 = vld [vmem:[%s5283 + $0x30] sm:$0xff]
        %v5291 = vld [vmem:[%s5283 + $0x38] sm:$0xff]
        %v5292 = vld [vmem:[%s5283 + $0x40] sm:$0xff]
        %v5293 = vld [vmem:[%s5283 + $0x48] sm:$0xff]
        %v5294 = vld [vmem:[%s5283 + $0x50] sm:$0xff]
        %v5295 = vld [vmem:[%s5283 + $0x58] sm:$0xff]
        %v5296 = vld [vmem:[%s5283 + $0x60] sm:$0xff]
        %v5297 = vld [vmem:[%s5283 + $0x68] sm:$0xff]
        %v5298 = vld [vmem:[%s5283 + $0x70] sm:$0xff]
        %v5299 = vld [vmem:[%s5283 + $0x78] sm:$0xff]
        %v5300 = vld [vmem:[%s5283 + $0x80] sm:$0xff]
        %v5301 = vld [vmem:[%s5283 + $0x88] sm:$0xff]
        %v5302 = vld [vmem:[%s5283 + $0x90] sm:$0xff]
        %v5303 = vld [vmem:[%s5283 + $0x98] sm:$0xff]
        %v5304 = vld [vmem:[%s5283 + $0xa0] sm:$0xff]
        %v5305 = vld [vmem:[%s5283 + $0xa8] sm:$0xff]
        %v5306 = vld [vmem:[%s5283 + $0xb0] sm:$0xff]
        %v5307 = vld [vmem:[%s5283 + $0xb8] sm:$0xff]
        %v5308 = vld [vmem:[%s5283 + $0xc0] sm:$0xff]
        %v5309 = vld [vmem:[%s5283 + $0xc8] sm:$0xff]
        %v5310 = vld [vmem:[%s5283 + $0xd0] sm:$0xff]
        %v5311 = vld [vmem:[%s5283 + $0xd8] sm:$0xff]
        %v5312 = vld [vmem:[%s5283 + $0xe0] sm:$0xff]
        %v5313 = vld [vmem:[%s5283 + $0xe8] sm:$0xff]
        %v5314 = vld [vmem:[%s5283 + $0xf0] sm:$0xff]
        %v5315 = vld [vmem:[%s5283 + $0xf8] sm:$0xff]
        %v5348 = vunpack.c.l.b16 %v5284
        %v5349 = vunpack.c.h.b16 %v5284
        %v5350 = vunpack.c.l.b16 %v5285
        %v5351 = vunpack.c.h.b16 %v5285
        %v5352 = vunpack.c.l.b16 %v5286
        %v5353 = vunpack.c.h.b16 %v5286
        %v5354 = vunpack.c.l.b16 %v5287
        %v5355 = vunpack.c.h.b16 %v5287
        %v5356 = vunpack.c.l.b16 %v5288
        %v5357 = vunpack.c.h.b16 %v5288
        %v5358 = vunpack.c.l.b16 %v5289
        %v5359 = vunpack.c.h.b16 %v5289
        %v5360 = vunpack.c.l.b16 %v5290
        %v5361 = vunpack.c.h.b16 %v5290
        %v5362 = vunpack.c.l.b16 %v5291
        %v5363 = vunpack.c.h.b16 %v5291
        %v5364 = vunpack.c.l.b16 %v5292
        %v5365 = vunpack.c.h.b16 %v5292
        %v5366 = vunpack.c.l.b16 %v5293
        %v5367 = vunpack.c.h.b16 %v5293
        %v5368 = vunpack.c.l.b16 %v5294
        %v5369 = vunpack.c.h.b16 %v5294
        %v5370 = vunpack.c.l.b16 %v5295
        %v5371 = vunpack.c.h.b16 %v5295
        %v5372 = vunpack.c.l.b16 %v5296
        %v5373 = vunpack.c.h.b16 %v5296
        %v5374 = vunpack.c.l.b16 %v5297
        %v5375 = vunpack.c.h.b16 %v5297
        %v5376 = vunpack.c.l.b16 %v5298
        %v5377 = vunpack.c.h.b16 %v5298
        %v5378 = vunpack.c.l.b16 %v5299
        %v5379 = vunpack.c.h.b16 %v5299
        %v5380 = vunpack.c.l.b16 %v5300
        %v5381 = vunpack.c.h.b16 %v5300
        %v5382 = vunpack.c.l.b16 %v5301
        %v5383 = vunpack.c.h.b16 %v5301
        %v5384 = vunpack.c.l.b16 %v5302
        %v5385 = vunpack.c.h.b16 %v5302
        %v5386 = vunpack.c.l.b16 %v5303
        %v5387 = vunpack.c.h.b16 %v5303
        %v5388 = vunpack.c.l.b16 %v5304
        %v5389 = vunpack.c.h.b16 %v5304
        %v5390 = vunpack.c.l.b16 %v5305
        %v5391 = vunpack.c.h.b16 %v5305
        %v5392 = vunpack.c.l.b16 %v5306
        %v5393 = vunpack.c.h.b16 %v5306
        %v5394 = vunpack.c.l.b16 %v5307
        %v5395 = vunpack.c.h.b16 %v5307
        %v5396 = vunpack.c.l.b16 %v5308
        %v5397 = vunpack.c.h.b16 %v5308
        %v5398 = vunpack.c.l.b16 %v5309
        %v5399 = vunpack.c.h.b16 %v5309
        %v5400 = vunpack.c.l.b16 %v5310
        %v5401 = vunpack.c.h.b16 %v5310
        %v5402 = vunpack.c.l.b16 %v5311
        %v5403 = vunpack.c.h.b16 %v5311
        %v5404 = vunpack.c.l.b16 %v5312
        %v5405 = vunpack.c.h.b16 %v5312
        %v5406 = vunpack.c.l.b16 %v5313
        %v5407 = vunpack.c.h.b16 %v5313
        %v5408 = vunpack.c.l.b16 %v5314
        %v5409 = vunpack.c.h.b16 %v5314
        %v5410 = vunpack.c.l.b16 %v5315
        %v5411 = vunpack.c.h.b16 %v5315
        %v5412 = vpack.c.b16 %v5350, %v5348
        %v5413 = vpack.c.b16 %v5351, %v5349
        %v5414 = vpack.c.b16 %v5354, %v5352
        %v5415 = vpack.c.b16 %v5355, %v5353
        %v5416 = vpack.c.b16 %v5358, %v5356
        %v5417 = vpack.c.b16 %v5359, %v5357
        %v5418 = vpack.c.b16 %v5362, %v5360
        %v5419 = vpack.c.b16 %v5363, %v5361
        %v5420 = vpack.c.b16 %v5366, %v5364
        %v5421 = vpack.c.b16 %v5367, %v5365
        %v5422 = vpack.c.b16 %v5370, %v5368
        %v5423 = vpack.c.b16 %v5371, %v5369
        %v5424 = vpack.c.b16 %v5374, %v5372
        %v5425 = vpack.c.b16 %v5375, %v5373
        %v5426 = vpack.c.b16 %v5378, %v5376
        %v5427 = vpack.c.b16 %v5379, %v5377
        %v5428 = vpack.c.b16 %v5382, %v5380
        %v5429 = vpack.c.b16 %v5383, %v5381
        %v5430 = vpack.c.b16 %v5386, %v5384
        %v5431 = vpack.c.b16 %v5387, %v5385
        %v5432 = vpack.c.b16 %v5390, %v5388
        %v5433 = vpack.c.b16 %v5391, %v5389
        %v5434 = vpack.c.b16 %v5394, %v5392
        %v5435 = vpack.c.b16 %v5395, %v5393
        %v5436 = vpack.c.b16 %v5398, %v5396
        %v5437 = vpack.c.b16 %v5399, %v5397
        %v5438 = vpack.c.b16 %v5402, %v5400
        %v5439 = vpack.c.b16 %v5403, %v5401
        %v5440 = vpack.c.b16 %v5406, %v5404
        %v5441 = vpack.c.b16 %v5407, %v5405
        %v5442 = vpack.c.b16 %v5410, %v5408
        %v5443 = vpack.c.b16 %v5411, %v5409
        %5476 = vmatpush.bf16.msra.mxu0 %v5426
        %5477 = vmatpush.bf16.msra.mxu0 %v5424
        %5478 = vmatpush.bf16.msra.mxu0 %v5422
        %5479 = vmatpush.bf16.msra.mxu0 %v5420
        %5480 = vmatpush.bf16.msra.mxu0 %v5418
        %5481 = vmatpush.bf16.msra.mxu0 %v5416
        %5482 = vmatpush.bf16.msra.mxu0 %v5414
        %5483 = vmatpush.bf16.msra.mxu0 %v5412
        %5484 = vmatmul.bf16.gmra.mxu0 %v2997
        %v5485 = vpop.f32.mrf.mxu0
        %v5486 = vadd.f32 0.0, %v5485
        %v5487 = vpop.f32.mrf.mxu0
        %5488 = vdwg.mxu0
        %5489 = vmatpush.bf16.msra.mxu0 %v5442
        %5490 = vmatpush.bf16.msra.mxu0 %v5440
        %5491 = vmatpush.bf16.msra.mxu0 %v5438
        %5492 = vmatpush.bf16.msra.mxu0 %v5436
        %5493 = vmatpush.bf16.msra.mxu0 %v5434
        %5494 = vmatpush.bf16.msra.mxu0 %v5432
        %5495 = vmatpush.bf16.msra.mxu0 %v5430
        %5496 = vmatpush.bf16.msra.mxu0 %v5428
        %5497 = vmatmul.bf16.gmra.mxu0 %v2998
        %v5498 = vpop.f32.mrf.mxu0
        %v5499 = vadd.f32 %v5486, %v5498
        %v5500 = vpop.f32.mrf.mxu0
        %5501 = vdwg.mxu0
        %5502 = vmatpush.bf16.msra.mxu0 %v5427
        %5503 = vmatpush.bf16.msra.mxu0 %v5425
        %5504 = vmatpush.bf16.msra.mxu0 %v5423
        %5505 = vmatpush.bf16.msra.mxu0 %v5421
        %5506 = vmatpush.bf16.msra.mxu0 %v5419
        %5507 = vmatpush.bf16.msra.mxu0 %v5417
        %5508 = vmatpush.bf16.msra.mxu0 %v5415
        %5509 = vmatpush.bf16.msra.mxu0 %v5413
        %5510 = vmatmul.bf16.gmra.mxu0 %v2997
        %v5511 = vpop.f32.mrf.mxu0
        %v5512 = vadd.f32 0.0, %v5511
        %v5513 = vpop.f32.mrf.mxu0
        %5514 = vdwg.mxu0
        %5515 = vmatpush.bf16.msra.mxu0 %v5443
        %5516 = vmatpush.bf16.msra.mxu0 %v5441
        %5517 = vmatpush.bf16.msra.mxu0 %v5439
        %5518 = vmatpush.bf16.msra.mxu0 %v5437
        %5519 = vmatpush.bf16.msra.mxu0 %v5435
        %5520 = vmatpush.bf16.msra.mxu0 %v5433
        %5521 = vmatpush.bf16.msra.mxu0 %v5431
        %5522 = vmatpush.bf16.msra.mxu0 %v5429
        %5523 = vmatmul.bf16.gmra.mxu0 %v2998
        %v5524 = vpop.f32.mrf.mxu0
        %v5525 = vadd.f32 %v5512, %v5524
        %v5526 = vpop.f32.mrf.mxu0
        %5527 = vdwg.mxu0
        %v5528 = vpack.c.bf16 %v5499, %v5499
        %v5529 = vpack.c.bf16 %v5525, %v5525
        %s5530 = scalar_lea.vmem %s4, 32
        %v5531 = vld [vmem:[%s5530] sm:$0xf]
        %v5533 = vsel %vm3495, %v5531, 0
        %v5536 = vsel %vm3499, %v5528, 0
        %v5539 = vsel %vm3499, %v5529, 0
        %5541 = vmatpush.bf16.msra.mxu0 0
        %5542 = vmatpush.bf16.msra.mxu0 0
        %5543 = vmatpush.bf16.msra.mxu0 0
        %5544 = vmatpush.bf16.msra.mxu0 0
        %5545 = vmatpush.bf16.msra.mxu0 0
        %5546 = vmatpush.bf16.msra.mxu0 0
        %5547 = vmatpush.bf16.msra.mxu0 0
        %5548 = vmatpush.bf16.msra.mxu0 %v5536
        %5549 = vmatmul.bf16.gmra.mxu0 %v5533
        %v5550 = vpop.f32.mrf.mxu0
        %v5551 = vadd.f32 0.0, %v5550
        %v5552 = vpop.f32.mrf.mxu0
        %5553 = vdwg.mxu0
        %5554 = vmatpush.bf16.msra.mxu0 0
        %5555 = vmatpush.bf16.msra.mxu0 0
        %5556 = vmatpush.bf16.msra.mxu0 0
        %5557 = vmatpush.bf16.msra.mxu0 0
        %5558 = vmatpush.bf16.msra.mxu0 0
        %5559 = vmatpush.bf16.msra.mxu0 0
        %5560 = vmatpush.bf16.msra.mxu0 0
        %5561 = vmatpush.bf16.msra.mxu0 %v5539
        %5562 = vmatmul.bf16.gmra.mxu0 %v5533
        %v5563 = vpop.f32.mrf.mxu0
        %v5564 = vadd.f32 0.0, %v5563
        %v5565 = vpop.f32.mrf.mxu0
        %5566 = vdwg.mxu0
        %v5567 = vadd.f32 %v5281, %v5551
        %v5568 = vadd.f32 %v5282, %v5564
        %v5569 = vld [vmem:[%s5] sm:$0xff]
        %5571 = vset.pattern.permute.xlu0 0
        %5572 = vperm.xlu0 %5571, %v5569
        %v5573 = vpop.permute.xlu0 %5572
        %v5575 = vadd.f32 %v5567, %v5573
        %v5576 = vadd.f32 %v5568, %v5573
        %v5577 = vmax.f32 %v5575, 0.0
        %v5578 = vmax.f32 %v5576, 0.0
        %5579 = vst [vmem:[%s401] sm:$0xff] %v5577
        %5580 = vst [vmem:[%s401 + $0x8] sm:$0xff] %v5578
        %v5581 = vpack.c.bf16 %v5577, %v5577
        %v5582 = vpack.c.bf16 %v5578, %v5578
        %v5583 = vld [vmem:[%s7] sm:$0xf]
        %v5584 = vld [vmem:[%s8] sm:$0xff]
        %5586 = vset.pattern.permute.xlu0 0
        %5587 = vperm.xlu0 %5586, %v5584
        %v5588 = vpop.permute.xlu0 %5587
        %v5591 = vsel %vm3495, %v5583, 0
        %v5594 = vsel %vm3499, %v5581, 0
        %v5597 = vsel %vm3499, %v5582, 0
        %5599 = vmatpush.bf16.msra.mxu0 0
        %5600 = vmatpush.bf16.msra.mxu0 0
        %5601 = vmatpush.bf16.msra.mxu0 0
        %5602 = vmatpush.bf16.msra.mxu0 0
        %5603 = vmatpush.bf16.msra.mxu0 0
        %5604 = vmatpush.bf16.msra.mxu0 0
        %5605 = vmatpush.bf16.msra.mxu0 0
        %5606 = vmatpush.bf16.msra.mxu0 %v5594
        %5607 = vmatmul.bf16.gmra.mxu0 %v5591
        %v5608 = vpop.f32.mrf.mxu0
        %v5609 = vadd.f32 %v5588, %v5608
        %v5610 = vpop.f32.mrf.mxu0
        %5611 = vdwg.mxu0
        %5612 = vmatpush.bf16.msra.mxu0 0
        %5613 = vmatpush.bf16.msra.mxu0 0
        %5614 = vmatpush.bf16.msra.mxu0 0
        %5615 = vmatpush.bf16.msra.mxu0 0
        %5616 = vmatpush.bf16.msra.mxu0 0
        %5617 = vmatpush.bf16.msra.mxu0 0
        %5618 = vmatpush.bf16.msra.mxu0 0
        %5619 = vmatpush.bf16.msra.mxu0 %v5597
        %5620 = vmatmul.bf16.gmra.mxu0 %v5591
        %v5621 = vpop.f32.mrf.mxu0
        %v5622 = vadd.f32 %v5588, %v5621
        %v5623 = vpop.f32.mrf.mxu0
        %5624 = vdwg.mxu0
        %v5625 = vmax.f32 %v5609, 0.0
        %v5626 = vmax.f32 %v5622, 0.0
        %5627 = vst [vmem:[%s406] sm:$0xff] %v5625
        %5628 = vst [vmem:[%s406 + $0x8] sm:$0xff] %v5626
        %p5629 = scmp.lt.s32.totalorder %s24, 1
        %s5630 = scalar_select %p5629, %s24, 1
        %s5631 = smul.addr %s5630, 2
        %s5632 = smul.addr %s5631, 8
        %s5633 = scalar_lea.vmem %s9, %s5632
        %p5634 = scmp.lt.s32.totalorder %s24, 1
        %s5635 = scalar_select %p5634, %s24, 1
        %s5636 = smul.addr %s5635, 2
        %s5637 = smul.addr %s5636, 8
        %s5638 = scalar_lea.vmem %s10, %s5637
        // Predicated region
        $region65: #{forward.2} parent=55 // pred_check
          %p5639 = pneg %p236
        $region66: #{forward.2} parent=55 // pred_check_branch
          %5641 = sbr.rel (%p5639) target = $region68
        $region67: #{forward.2} parent=55 // pred_region
          _
        $region68: #{forward.2} parent=55 // pred_fallthru
          _
        // Predicated region
        $region69: #{forward.2} parent=55 // pred_check
          %p5642 = pneg %p262
        $region70: #{forward.2} parent=55 // pred_check_branch
          %5644 = sbr.rel (%p5642) target = $region72
        $region71: #{forward.2} parent=55 // pred_region
          _
        $region72: #{forward.2} parent=55 // pred_fallthru
          _
      $region56: #{forward.2} parent=5 // pred_fallthru
        _
      %p5645 = scmp.le.s32.totalorder 2, %s19
      // Predicated region
      $region73: #{forward.2} parent=5 // pred_check
        %p5646 = pneg %p5645
      $region74: #{forward.2} parent=5 // pred_check_branch
        %5648 = sbr.rel (%p5646) target = $region76
      $region75: #{forward.2} parent=5 // pred_region
        %s5649 = ssub.s32 %s19, 2
        // Predicated region
        $region77: #{forward.2} parent=75 // pred_check
          %p5650 = pneg %p242
        $region78: #{forward.2} parent=75 // pred_check_branch
          %5652 = sbr.rel (%p5650) target = $region80
        $region79: #{forward.2} parent=75 // pred_region
          %p5653 = scmp.lt.s32.totalorder %s25, 1
          %s5654 = scalar_select %p5653, %s25, 1
          %s5655 = smul.addr %s5654, 2
          %s5656 = smul.addr %s5655, 8
          %s5657 = scalar_lea.vmem %s9, %s5656
        $region80: #{forward.2} parent=75 // pred_fallthru
          _
        // Predicated region
        $region81: #{forward.2} parent=75 // pred_check
          %p5658 = pneg %p268
        $region82: #{forward.2} parent=75 // pred_check_branch
          %5660 = sbr.rel (%p5658) target = $region84
        $region83: #{forward.2} parent=75 // pred_region
          %p5661 = scmp.lt.s32.totalorder %s25, 1
          %s5662 = scalar_select %p5661, %s25, 1
          %s5663 = smul.addr %s5662, 2
          %s5664 = smul.addr %s5663, 8
          %s5665 = scalar_lea.vmem %s10, %s5664
        $region84: #{forward.2} parent=75 // pred_fallthru
          _
      $region76: #{forward.2} parent=5 // pred_fallthru
        _
    $region6: #{forward.2} parent=1 // loop_footer
      %s23 = sadd.s32 1, %s19
    $region7: #{forward.2} parent=1 // loop_footer_branch
      %18 = sbr.rel target = $region3
    $region8: #{forward.2} parent=1 // loop_exit
      _
    %5666 = vsyncpa [#allocation3], 1
    %s5667 = scalar_lea.sflag [#allocation3], 1
    %5668 = vsyncpa %s5667, 1
    %5669 = vsyncpa [#allocation5], 1

</llo_original>
